<compile_context>
chip_gen: v7x
topology: tpu7x:2x2x1
jax: 0.10.0
libtpu: 0.0.40
codegen_flags: <defaults>
</compile_context>

<pallas_src>
import functools

import numpy as np
import jax
import jax.numpy as jnp
from jax.experimental import pallas as pl
from jax.experimental.pallas import tpu as pltpu

SEQ_LEN = 20
HIDDEN = 128                              # fixed by fc_out(1143): 9 * 127 -> 2H = 256
N_LSTM = 6                                # audio_fwd, audio_rev, resnet_fwd, resnet_rev, c3d_fwd, c3d_rev
POOL_T = (SEQ_LEN - 3) // 2 + 1           # 9
POOL_W = (2 * HIDDEN - 3) // 2 + 1        # 127
B_PAD = 8                                 # sublane-full padded batch
C_PAD = 128                               # lane-dense padded class dim


# ------------------------------ Pallas kernel -------------------------------

def _forward_kernel(x_ref, wih_ref, b_ref, whh_ref, wout_ref, bout_ref,
                    o_ref, gx_scr, pool_scr):
    """Grid step l runs LSTM l; the last step adds the fused pool+fc_out tail.

    x_ref   : [T*B, 2P]    bf16, rows t*B + b; cols = [x(t), x(T-1-t)] per modality
    wih_ref : [2P, 4H]     bf16 folded (fc -> LSTM) input-weight strip of LSTM l
    b_ref   : [1, 4H]      f32 folded bias strip of LSTM l
    whh_ref : [1, H, 4H]   bf16 recurrent weights of LSTM l
    wout_ref: [2*9*H, C]   f32 fc_out with width pooling folded in, rows (half, k, h)
    bout_ref: [1, C]       f32
    o_ref   : [B, C]       f32
    gx_scr  : [T*B, 4H]    f32 hoisted input-gate activations for LSTM l
    pool_scr: [2, B, 9*H]  f32 time-pooled (3-row-sum) fusion-grid halves
    """
    H = HIDDEN
    T = SEQ_LEN
    B = x_ref.shape[0] // T
    l = pl.program_id(0)
    half = l % 2                    # 0 = forward-direction (left) half, 1 = reverse
    use_c = l == 1                  # audio_rev contributes its cell state

    @pl.when(l == 0)
    def _init():
        pool_scr[...] = jnp.zeros_like(pool_scr)

    # (1) Hoisted input projection + input-gate matmul for all T steps of LSTM l.
    gx_scr[...] = (jnp.dot(x_ref[...], wih_ref[...],
                           preferred_element_type=jnp.float32)
                   + b_ref[...])

    # (2) 20-step recurrence (serial critical path); accumulate 3-row time-pool
    #     sums for the 9 stride-2 windows in vregs, flush once per LSTM.
    h = jnp.zeros((B, H), jnp.float32)
    c = jnp.zeros((B, H), jnp.float32)
    trows = [None] * POOL_T
    for s in range(T):
        gates = (gx_scr[s * B:(s + 1) * B, :]
                 + jnp.dot(h.astype(jnp.bfloat16), whh_ref[0],
                           preferred_element_type=jnp.float32))
        # PyTorch LSTMCell gate order: i, f, g, o
        i_g = jax.nn.sigmoid(gates[:, 0 * H:1 * H])
        f_g = jax.nn.sigmoid(gates[:, 1 * H:2 * H])
        g_g = jnp.tanh(gates[:, 2 * H:3 * H])
        o_g = jax.nn.sigmoid(gates[:, 3 * H:4 * H])
        c = f_g * c + i_g * g_g
        h = o_g * jnp.tanh(c)
        v = jnp.where(use_c, c, h)
        for k in range(POOL_T):
            if 2 * k <= s <= 2 * k + 2:
                trows[k] = v if trows[k] is None else trows[k] + v

    pool_scr[half] += jnp.concatenate(trows, axis=1)            # [B, 9*H]

    # (3) Width pooling (folded into wout) + fc_out, single matmul on last step.
    @pl.when(l == N_LSTM - 1)
    def _tail():
        feat = jnp.concatenate([pool_scr[0], pool_scr[1]], axis=1)   # [B, 2*9*H]
        o_ref[...] = (jnp.dot(feat, wout_ref[...],
                              preferred_element_type=jnp.float32)
                      + bout_ref[...])


def fused_forward(x_proc, wih, b, whh, w_out, b_out, *, batch):
    T = SEQ_LEN
    H = HIDDEN
    G = 4 * H
    P2 = x_proc.shape[1]
    return pl.pallas_call(
        _forward_kernel,
        out_shape=jax.ShapeDtypeStruct((batch, C_PAD), jnp.float32),
        grid=(N_LSTM,),
        in_specs=[
            pl.BlockSpec((T * batch, P2), lambda l: (0, 0)),          # x (resident)
            pl.BlockSpec((P2, G), lambda l: (0, l)),                  # wih strip l
            pl.BlockSpec((1, G), lambda l: (0, l)),                   # bias strip l
            pl.BlockSpec((1, H, G), lambda l: (l, 0, 0)),             # whh strip l
            pl.BlockSpec((2 * POOL_T * H, C_PAD), lambda l: (0, 0)),  # folded fc_out
            pl.BlockSpec((1, C_PAD), lambda l: (0, 0)),               # fc_out bias
        ],
        out_specs=pl.BlockSpec((batch, C_PAD), lambda l: (0, 0)),
        scratch_shapes=[
            pltpu.VMEM((T * batch, G), jnp.float32),                  # gx
            pltpu.VMEM((2, batch, POOL_T * H), jnp.float32),          # pooled halves
        ],
        compiler_params=pltpu.CompilerParams(
            dimension_semantics=("arbitrary",)),
    )(x_proc, wih, b, whh, w_out, b_out)


# ------------------------- parameter preparation -----------------------------

def build_fused_params(params):
    """Fold fc_* into LSTM input weights and fold AvgPool width sums into fc_out."""
    H = HIDDEN

    def fold(fc, lstm):
        w_fc, b_fc = fc
        wih, whh, b = lstm
        return w_fc @ wih, b_fc @ wih + b, whh          # Wih', b', Whh

    folds = [fold(params['fc_audio'], params['lstm_audio_fwd']),
             fold(params['fc_audio'], params['lstm_audio_rev']),
             fold(params['fc_resnet'], params['lstm_resnet_fwd']),
             fold(params['fc_resnet'], params['lstm_resnet_rev']),
             fold(params['fc_c3d'], params['lstm_c3d_fwd']),
             fold(params['fc_c3d'], params['lstm_c3d_rev'])]

    A = params['fc_audio'][0].shape[0]
    R = params['fc_resnet'][0].shape[0]
    C3 = params['fc_c3d'][0].shape[0]
    P = A + R + C3
    # x_proc column layout: [audio(t), resnet(t), c3d(t), audio(T-1-t), resnet(T-1-t), c3d(T-1-t)]
    row_off = [0, P, A, P + A, A + R, P + A + R]

    wih_comb = jnp.zeros((2 * P, N_LSTM * 4 * H), jnp.float32)
    b_comb = jnp.zeros((1, N_LSTM * 4 * H), jnp.float32)
    for l in range(N_LSTM):
        wih_f, b_f, _ = folds[l]
        r0, c0 = row_off[l], l * 4 * H
        wih_comb = wih_comb.at[r0:r0 + wih_f.shape[0], c0:c0 + 4 * H].set(wih_f)
        b_comb = b_comb.at[:, c0:c0 + 4 * H].set(b_f)
    whh_stack = jnp.stack([f[2] for f in folds], axis=0)            # [6, H, 4H]

    # Fold the AvgPool2d width dimension (3-wide, stride-2, 1/9 scale) into
    # fc_out:  Wf[k, w, c] = sum_j pw[w, j] * w_out[k*127 + j, c].
    w_out, b_out = params['fc_out']                                 # [1143, C], [1, C]
    C = w_out.shape[1]
    pw = np.zeros((2 * H, POOL_W), np.float32)
    for j in range(POOL_W):
        pw[2 * j:2 * j + 3, j] = 1.0 / 9.0
    w3 = w_out.reshape(POOL_T, POOL_W, C)
    w_fold = jnp.einsum('wj,kjc->kwc', jnp.asarray(pw), w3)         # [9, 2H, C]
    # reorder rows to (half, window, hidden) to match the kernel's feature slab
    w_fold = w_fold.reshape(POOL_T, 2, H, C).transpose(1, 0, 2, 3)
    w_fold = w_fold.reshape(2 * POOL_T * H, C)
    w_fold = jnp.pad(w_fold, ((0, 0), (0, C_PAD - C)))
    b_out_pad = jnp.pad(b_out, ((0, 0), (0, C_PAD - C)))

    return {'wih': wih_comb.astype(jnp.bfloat16),
            'b': b_comb,
            'whh': whh_stack.astype(jnp.bfloat16),
            'w_out': w_fold,
            'b_out': b_out_pad}


@functools.partial(jax.jit, static_argnames=('num_classes',))
def forward(fused, resnet_features, c3d_features, audio_features, *, num_classes):
    B, T, _ = audio_features.shape
    # Pack fwd + time-reversed feature streams so fwd and rev LSTMs share the
    # same hoisted input-gate matmul layout.  Pad batch to a sublane-full 8.
    x_cat = jnp.concatenate([audio_features, resnet_features, c3d_features], axis=-1)
    x_proc = jnp.concatenate([x_cat, x_cat[:, ::-1, :]], axis=-1)   # [B, T, 2P]
    bp = max(B_PAD, ((B + 7) // 8) * 8)
    if bp != B:
        x_proc = jnp.pad(x_proc, ((0, bp - B), (0, 0), (0, 0)))
    x_proc = (jnp.transpose(x_proc, (1, 0, 2))
              .reshape(T * bp, -1).astype(jnp.bfloat16))            # rows = t*bp + b
    out = fused_forward(x_proc, fused['wih'], fused['b'], fused['whh'],
                        fused['w_out'], fused['b_out'], batch=bp)
    return out[:B, :num_classes]


# ----------------------------- parameter init --------------------------------

def init_params(key, resnet_size, c3d_size, audio_size, projected_size,
                hidden_size, num_classes):
    ks = list(jax.random.split(key, 32))
    it = iter(range(32))

    def lin(fin, fout):
        w = jax.random.normal(ks[next(it)], (fin, fout), jnp.float32) * 0.05
        b = jax.random.normal(ks[next(it)], (1, fout), jnp.float32) * 0.05
        return w, b

    def lstm(fin, h):
        wih = jax.random.normal(ks[next(it)], (fin, 4 * h), jnp.float32) * 0.05
        whh = jax.random.normal(ks[next(it)], (h, 4 * h), jnp.float32) * 0.05
        b = jax.random.normal(ks[next(it)], (1, 4 * h), jnp.float32) * 0.05  # b_ih+b_hh
        return wih, whh, b

    p = {}
    p['fc_audio'] = lin(audio_size, projected_size)
    p['fc_resnet'] = lin(resnet_size, projected_size)
    p['fc_c3d'] = lin(c3d_size, projected_size)
    for name in ('audio', 'resnet', 'c3d'):
        p[f'lstm_{name}_fwd'] = lstm(projected_size, hidden_size)
        p[f'lstm_{name}_rev'] = lstm(projected_size, hidden_size)
    p['fc_out'] = lin(POOL_T * POOL_W, num_classes)
    return p


# --------------------------- pure-JAX reference ------------------------------

def forward_ref(params, resnet_features, c3d_features, audio_features):
    B, T, _ = audio_features.shape
    H = HIDDEN

    def lin(x, wb):
        w, b = wb
        return x @ w + b

    out_audio = lin(audio_features, params['fc_audio'])
    out_resnet = lin(resnet_features, params['fc_resnet'])
    out_c3d = lin(c3d_features, params['fc_c3d'])

    def cell(x, h, c, wb):
        wih, whh, b = wb
        g = x @ wih + h @ whh + b
        i = jax.nn.sigmoid(g[:, :H])
        f = jax.nn.sigmoid(g[:, H:2 * H])
        gg = jnp.tanh(g[:, 2 * H:3 * H])
        o = jax.nn.sigmoid(g[:, 3 * H:4 * H])
        c = f * c + i * gg
        h = o * jnp.tanh(c)
        return h, c

    def run(x, wb, order):
        h = jnp.zeros((B, H), jnp.float32)
        c = jnp.zeros((B, H), jnp.float32)
        hs, cs = [], []
        for t in order:
            h, c = cell(x[:, t, :], h, c, wb)
            hs.append(h[:, None, :])
            cs.append(c[:, None, :])
        return jnp.concatenate(hs, 1), jnp.concatenate(cs, 1)

    fwd = list(range(T))
    rev = list(reversed(range(T)))
    a_f_h, _ = run(out_audio, params['lstm_audio_fwd'], fwd)
    _, a_r_c = run(out_audio, params['lstm_audio_rev'], rev)
    r_f_h, _ = run(out_resnet, params['lstm_resnet_fwd'], fwd)
    r_r_h, _ = run(out_resnet, params['lstm_resnet_rev'], rev)
    c_f_h, _ = run(out_c3d, params['lstm_c3d_fwd'], fwd)
    c_r_h, _ = run(out_c3d, params['lstm_c3d_rev'], rev)

    grid = (jnp.concatenate([a_f_h, a_r_c], 2)
            + jnp.concatenate([r_f_h, r_r_h], 2)
            + jnp.concatenate([c_f_h, c_r_h], 2))                   # [B, 20, 256]

    win = jax.lax.reduce_window(grid, 0.0, jax.lax.add,
                                (1, 3, 3), (1, 2, 2), 'VALID') / 9.0
    fused = win.reshape(B, -1)
    return lin(fused, params['fc_out'])


# ------------------------------------ main -----------------------------------

if __name__ == "__main__":
    resnet_size, c3d_size, audio_size = 48, 64, 32
    projected_size, num_classes = 32, 10
    B, T = 2, SEQ_LEN

    key = jax.random.PRNGKey(0)
    kp, kr, kc, ka = jax.random.split(key, 4)
    params = init_params(kp, resnet_size, c3d_size, audio_size,
                         projected_size, HIDDEN, num_classes)
    resnet_features = jax.random.normal(kr, (B, T, resnet_size), jnp.float32)
    c3d_features = jax.random.normal(kc, (B, T, c3d_size), jnp.float32)
    audio_features = jax.random.normal(ka, (B, T, audio_size), jnp.float32)

    fused_params = build_fused_params(params)

    preds = forward(fused_params, resnet_features, c3d_features, audio_features,
                    num_classes=num_classes)
    preds = jax.block_until_ready(preds)

    ref = forward_ref(params, resnet_features, c3d_features, audio_features)
    ref = jax.block_until_ready(ref)

    assert preds.shape == (B, num_classes)
    np.testing.assert_allclose(np.asarray(preds), np.asarray(ref),
                               atol=5e-2, rtol=0)
    print("KERNEL_OK")
</pallas_src>

<mosaic_0001>
module attributes {stable_mosaic.version = 11 : i64} {
  func.func @_forward_kernel(%arg0: i32, %arg1: memref<160x288xbf16, #tpu.memory_space<vmem>>, %arg2: memref<288x512xbf16, #tpu.memory_space<vmem>>, %arg3: memref<1x512xf32, #tpu.memory_space<vmem>>, %arg4: memref<1x128x512xbf16, #tpu.memory_space<vmem>>, %arg5: memref<2304x128xf32, #tpu.memory_space<vmem>>, %arg6: memref<1x128xf32, #tpu.memory_space<vmem>>, %arg7: memref<8x128xf32, #tpu.memory_space<vmem>>, %arg8: memref<160x512xf32, #tpu.memory_space<vmem>>, %arg9: memref<2x8x1152xf32, #tpu.memory_space<vmem>>) attributes {dimension_semantics = [#tpu.dimension_semantics<arbitrary>], iteration_bounds = array<i64: 6>, scalar_prefetch = 0 : i64, scratch_operands = 2 : i64, tpu.core_type = #tpu.core_type<tc>, window_params = [{pipeline_mode = #tpu.pipeline_mode<synchronous>, transform_indices = @transform_0, window_bounds = array<i64: 160, 288>}, {transform_indices = @transform_1, window_bounds = array<i64: 288, 512>}, {transform_indices = @transform_2, window_bounds = array<i64: 1, 512>}, {transform_indices = @transform_3, window_bounds = array<i64: 1, 128, 512>}, {pipeline_mode = #tpu.pipeline_mode<synchronous>, transform_indices = @transform_4, window_bounds = array<i64: 2304, 128>}, {pipeline_mode = #tpu.pipeline_mode<synchronous>, transform_indices = @transform_5, window_bounds = array<i64: 1, 128>}, {pipeline_mode = #tpu.pipeline_mode<synchronous>, transform_indices = @transform_6, window_bounds = array<i64: 8, 128>}]} {
    %c2_i32 = arith.constant 2 : i32
    %c0_i32 = arith.constant 0 : i32
    %0 = arith.cmpi eq, %c2_i32, %c0_i32 : i32
    %c1_i32 = arith.constant 1 : i32
    %1 = arith.select %0, %c1_i32, %c2_i32 : i32
    %2 = arith.remsi %arg0, %1 : i32
    %c0_i32_0 = arith.constant 0 : i32
    %3 = arith.cmpi ne, %2, %c0_i32_0 : i32
    %c0_i32_1 = arith.constant 0 : i32
    %4 = arith.cmpi slt, %2, %c0_i32_1 : i32
    %c0_i32_2 = arith.constant 0 : i32
    %5 = arith.cmpi slt, %1, %c0_i32_2 : i32
    %6 = arith.xori %4, %5 : i1
    %7 = arith.andi %6, %3 : i1
    %8 = arith.addi %2, %1 : i32
    %9 = arith.select %7, %8, %2 : i32
    %c1_i32_3 = arith.constant 1 : i32
    %10 = arith.cmpi eq, %arg0, %c1_i32_3 : i32
    %c0_i32_4 = arith.constant 0 : i32
    %11 = arith.cmpi eq, %arg0, %c0_i32_4 : i32
    %12 = arith.extui %11 : i1 to i32
    %c0_i32_5 = arith.constant 0 : i32
    %13 = arith.cmpi ne, %12, %c0_i32_5 : i32
    scf.if %13 {
      %cst_173 = arith.constant 0.000000e+00 : f32
      %661 = vector.broadcast %cst_173 : f32 to vector<2x8x1152xf32>
      %c0_174 = arith.constant 0 : index
      %c0_175 = arith.constant 0 : index
      %c0_176 = arith.constant 0 : index
      %662 = vector.load %arg9[%c0_174, %c0_175, %c0_176] : memref<2x8x1152xf32, #tpu.memory_space<vmem>>, vector<2x8x1152xf32>
      tpu.vector_store %arg9[%c0_174, %c0_175, %c0_176], %661 {strides = array<i32>} : memref<2x8x1152xf32, #tpu.memory_space<vmem>>, vector<2x8x1152xf32>,
    } else {
    }
    %c0 = arith.constant 0 : index
    %c0_6 = arith.constant 0 : index
    %14 = vector.load %arg1[%c0, %c0_6] : memref<160x288xbf16, #tpu.memory_space<vmem>>, vector<160x288xbf16>
    %c0_7 = arith.constant 0 : index
    %c0_8 = arith.constant 0 : index
    %15 = vector.load %arg2[%c0_7, %c0_8] : memref<288x512xbf16, #tpu.memory_space<vmem>>, vector<288x512xbf16>
    %cst = arith.constant dense<0.000000e+00> : vector<160x512xf32>
    %16 = tpu.matmul %14, %15, %cst {dimension_numbers = #tpu.dot_dimension_numbers<[1], [0], [0], [1], [0, 0, 1, 1], [], []>} : vector<160x288xbf16>, vector<288x512xbf16>, vector<160x512xf32> -> vector<160x512xf32>
    %c0_9 = arith.constant 0 : index
    %c0_10 = arith.constant 0 : index
    %17 = vector.load %arg3[%c0_9, %c0_10] : memref<1x512xf32, #tpu.memory_space<vmem>>, vector<1x512xf32>
    %18 = vector.broadcast %17 : vector<1x512xf32> to vector<160x512xf32>
    %19 = arith.addf %16, %18 : vector<160x512xf32>
    %c0_11 = arith.constant 0 : index
    %c0_12 = arith.constant 0 : index
    %20 = vector.load %arg8[%c0_11, %c0_12] : memref<160x512xf32, #tpu.memory_space<vmem>>, vector<160x512xf32>
    tpu.vector_store %arg8[%c0_11, %c0_12], %19 {strides = array<i32>} : memref<160x512xf32, #tpu.memory_space<vmem>>, vector<160x512xf32>,
    %cst_13 = arith.constant 0.000000e+00 : f32
    %21 = vector.broadcast %cst_13 : f32 to vector<8x128xf32>
    %cst_14 = arith.constant 0.000000e+00 : f32
    %22 = vector.broadcast %cst_14 : f32 to vector<8x128xf32>
    %c0_15 = arith.constant 0 : index
    %c0_16 = arith.constant 0 : index
    %23 = vector.load %arg8[%c0_15, %c0_16] : memref<160x512xf32, #tpu.memory_space<vmem>>, vector<8x512xf32>
    %24 = arith.truncf %21 : vector<8x128xf32> to vector<8x128xbf16>
    %c0_17 = arith.constant 0 : index
    %c0_18 = arith.constant 0 : index
    %c0_19 = arith.constant 0 : index
    %25 = vector.load %arg4[%c0_17, %c0_18, %c0_19] : memref<1x128x512xbf16, #tpu.memory_space<vmem>>, vector<1x128x512xbf16>
    %26 = vector.shape_cast %25 : vector<1x128x512xbf16> to vector<128x512xbf16>
    %cst_20 = arith.constant dense<0.000000e+00> : vector<8x512xf32>
    %27 = tpu.matmul %24, %26, %cst_20 {dimension_numbers = #tpu.dot_dimension_numbers<[1], [0], [0], [1], [0, 0, 1, 1], [], []>} : vector<8x128xbf16>, vector<128x512xbf16>, vector<8x512xf32> -> vector<8x512xf32>
    %28 = arith.addf %23, %27 : vector<8x512xf32>
    %29 = vector.extract_strided_slice %28 {offsets = [0, 0], sizes = [8, 128], strides = [1, 1]} : vector<8x512xf32> to vector<8x128xf32>
    %30 = arith.negf %29 : vector<8x128xf32>
    %31 = math.exp %30 : vector<8x128xf32>
    %cst_21 = arith.constant 1.000000e+00 : f32
    %32 = vector.broadcast %cst_21 : f32 to vector<8x128xf32>
    %33 = arith.addf %32, %31 : vector<8x128xf32>
    %34 = arith.divf %32, %33 : vector<8x128xf32>
    %35 = vector.extract_strided_slice %28 {offsets = [0, 128], sizes = [8, 128], strides = [1, 1]} : vector<8x512xf32> to vector<8x128xf32>
    %36 = arith.negf %35 : vector<8x128xf32>
    %37 = math.exp %36 : vector<8x128xf32>
    %cst_22 = arith.constant 1.000000e+00 : f32
    %38 = vector.broadcast %cst_22 : f32 to vector<8x128xf32>
    %39 = arith.addf %38, %37 : vector<8x128xf32>
    %40 = arith.divf %38, %39 : vector<8x128xf32>
    %41 = vector.extract_strided_slice %28 {offsets = [0, 256], sizes = [8, 128], strides = [1, 1]} : vector<8x512xf32> to vector<8x128xf32>
    %42 = math.tanh %41 : vector<8x128xf32>
    %43 = vector.extract_strided_slice %28 {offsets = [0, 384], sizes = [8, 128], strides = [1, 1]} : vector<8x512xf32> to vector<8x128xf32>
    %44 = arith.negf %43 : vector<8x128xf32>
    %45 = math.exp %44 : vector<8x128xf32>
    %cst_23 = arith.constant 1.000000e+00 : f32
    %46 = vector.broadcast %cst_23 : f32 to vector<8x128xf32>
    %47 = arith.addf %46, %45 : vector<8x128xf32>
    %48 = arith.divf %46, %47 : vector<8x128xf32>
    %49 = arith.mulf %40, %22 : vector<8x128xf32>
    %50 = arith.mulf %34, %42 : vector<8x128xf32>
    %51 = arith.addf %49, %50 : vector<8x128xf32>
    %52 = math.tanh %51 : vector<8x128xf32>
    %53 = arith.mulf %48, %52 : vector<8x128xf32>
    %54 = arith.select %10, %51, %53 : vector<8x128xf32>
    %c8 = arith.constant 8 : index
    %c0_24 = arith.constant 0 : index
    %55 = vector.load %arg8[%c8, %c0_24] : memref<160x512xf32, #tpu.memory_space<vmem>>, vector<8x512xf32>
    %56 = arith.truncf %53 : vector<8x128xf32> to vector<8x128xbf16>
    %c0_25 = arith.constant 0 : index
    %c0_26 = arith.constant 0 : index
    %c0_27 = arith.constant 0 : index
    %57 = vector.load %arg4[%c0_25, %c0_26, %c0_27] : memref<1x128x512xbf16, #tpu.memory_space<vmem>>, vector<1x128x512xbf16>
    %58 = vector.shape_cast %57 : vector<1x128x512xbf16> to vector<128x512xbf16>
    %cst_28 = arith.constant dense<0.000000e+00> : vector<8x512xf32>
    %59 = tpu.matmul %56, %58, %cst_28 {dimension_numbers = #tpu.dot_dimension_numbers<[1], [0], [0], [1], [0, 0, 1, 1], [], []>} : vector<8x128xbf16>, vector<128x512xbf16>, vector<8x512xf32> -> vector<8x512xf32>
    %60 = arith.addf %55, %59 : vector<8x512xf32>
    %61 = vector.extract_strided_slice %60 {offsets = [0, 0], sizes = [8, 128], strides = [1, 1]} : vector<8x512xf32> to vector<8x128xf32>
    %62 = arith.negf %61 : vector<8x128xf32>
    %63 = math.exp %62 : vector<8x128xf32>
    %cst_29 = arith.constant 1.000000e+00 : f32
    %64 = vector.broadcast %cst_29 : f32 to vector<8x128xf32>
    %65 = arith.addf %64, %63 : vector<8x128xf32>
    %66 = arith.divf %64, %65 : vector<8x128xf32>
    %67 = vector.extract_strided_slice %60 {offsets = [0, 128], sizes = [8, 128], strides = [1, 1]} : vector<8x512xf32> to vector<8x128xf32>
    %68 = arith.negf %67 : vector<8x128xf32>
    %69 = math.exp %68 : vector<8x128xf32>
    %cst_30 = arith.constant 1.000000e+00 : f32
    %70 = vector.broadcast %cst_30 : f32 to vector<8x128xf32>
    %71 = arith.addf %70, %69 : vector<8x128xf32>
    %72 = arith.divf %70, %71 : vector<8x128xf32>
    %73 = vector.extract_strided_slice %60 {offsets = [0, 256], sizes = [8, 128], strides = [1, 1]} : vector<8x512xf32> to vector<8x128xf32>
    %74 = math.tanh %73 : vector<8x128xf32>
    %75 = vector.extract_strided_slice %60 {offsets = [0, 384], sizes = [8, 128], strides = [1, 1]} : vector<8x512xf32> to vector<8x128xf32>
    %76 = arith.negf %75 : vector<8x128xf32>
    %77 = math.exp %76 : vector<8x128xf32>
    %cst_31 = arith.constant 1.000000e+00 : f32
    %78 = vector.broadcast %cst_31 : f32 to vector<8x128xf32>
    %79 = arith.addf %78, %77 : vector<8x128xf32>
    %80 = arith.divf %78, %79 : vector<8x128xf32>
    %81 = arith.mulf %72, %51 : vector<8x128xf32>
    %82 = arith.mulf %66, %74 : vector<8x128xf32>
    %83 = arith.addf %81, %82 : vector<8x128xf32>
    %84 = math.tanh %83 : vector<8x128xf32>
    %85 = arith.mulf %80, %84 : vector<8x128xf32>
    %86 = arith.select %10, %83, %85 : vector<8x128xf32>
    %87 = arith.addf %54, %86 : vector<8x128xf32>
    %c16 = arith.constant 16 : index
    %c0_32 = arith.constant 0 : index
    %88 = vector.load %arg8[%c16, %c0_32] : memref<160x512xf32, #tpu.memory_space<vmem>>, vector<8x512xf32>
    %89 = arith.truncf %85 : vector<8x128xf32> to vector<8x128xbf16>
    %c0_33 = arith.constant 0 : index
    %c0_34 = arith.constant 0 : index
    %c0_35 = arith.constant 0 : index
    %90 = vector.load %arg4[%c0_33, %c0_34, %c0_35] : memref<1x128x512xbf16, #tpu.memory_space<vmem>>, vector<1x128x512xbf16>
    %91 = vector.shape_cast %90 : vector<1x128x512xbf16> to vector<128x512xbf16>
    %cst_36 = arith.constant dense<0.000000e+00> : vector<8x512xf32>
    %92 = tpu.matmul %89, %91, %cst_36 {dimension_numbers = #tpu.dot_dimension_numbers<[1], [0], [0], [1], [0, 0, 1, 1], [], []>} : vector<8x128xbf16>, vector<128x512xbf16>, vector<8x512xf32> -> vector<8x512xf32>
    %93 = arith.addf %88, %92 : vector<8x512xf32>
    %94 = vector.extract_strided_slice %93 {offsets = [0, 0], sizes = [8, 128], strides = [1, 1]} : vector<8x512xf32> to vector<8x128xf32>
    %95 = arith.negf %94 : vector<8x128xf32>
    %96 = math.exp %95 : vector<8x128xf32>
    %cst_37 = arith.constant 1.000000e+00 : f32
    %97 = vector.broadcast %cst_37 : f32 to vector<8x128xf32>
    %98 = arith.addf %97, %96 : vector<8x128xf32>
    %99 = arith.divf %97, %98 : vector<8x128xf32>
    %100 = vector.extract_strided_slice %93 {offsets = [0, 128], sizes = [8, 128], strides = [1, 1]} : vector<8x512xf32> to vector<8x128xf32>
    %101 = arith.negf %100 : vector<8x128xf32>
    %102 = math.exp %101 : vector<8x128xf32>
    %cst_38 = arith.constant 1.000000e+00 : f32
    %103 = vector.broadcast %cst_38 : f32 to vector<8x128xf32>
    %104 = arith.addf %103, %102 : vector<8x128xf32>
    %105 = arith.divf %103, %104 : vector<8x128xf32>
    %106 = vector.extract_strided_slice %93 {offsets = [0, 256], sizes = [8, 128], strides = [1, 1]} : vector<8x512xf32> to vector<8x128xf32>
    %107 = math.tanh %106 : vector<8x128xf32>
    %108 = vector.extract_strided_slice %93 {offsets = [0, 384], sizes = [8, 128], strides = [1, 1]} : vector<8x512xf32> to vector<8x128xf32>
    %109 = arith.negf %108 : vector<8x128xf32>
    %110 = math.exp %109 : vector<8x128xf32>
    %cst_39 = arith.constant 1.000000e+00 : f32
    %111 = vector.broadcast %cst_39 : f32 to vector<8x128xf32>
    %112 = arith.addf %111, %110 : vector<8x128xf32>
    %113 = arith.divf %111, %112 : vector<8x128xf32>
    %114 = arith.mulf %105, %83 : vector<8x128xf32>
    %115 = arith.mulf %99, %107 : vector<8x128xf32>
    %116 = arith.addf %114, %115 : vector<8x128xf32>
    %117 = math.tanh %116 : vector<8x128xf32>
    %118 = arith.mulf %113, %117 : vector<8x128xf32>
    %119 = arith.select %10, %116, %118 : vector<8x128xf32>
    %120 = arith.addf %87, %119 : vector<8x128xf32>
    %c24 = arith.constant 24 : index
    %c0_40 = arith.constant 0 : index
    %121 = vector.load %arg8[%c24, %c0_40] : memref<160x512xf32, #tpu.memory_space<vmem>>, vector<8x512xf32>
    %122 = arith.truncf %118 : vector<8x128xf32> to vector<8x128xbf16>
    %c0_41 = arith.constant 0 : index
    %c0_42 = arith.constant 0 : index
    %c0_43 = arith.constant 0 : index
    %123 = vector.load %arg4[%c0_41, %c0_42, %c0_43] : memref<1x128x512xbf16, #tpu.memory_space<vmem>>, vector<1x128x512xbf16>
    %124 = vector.shape_cast %123 : vector<1x128x512xbf16> to vector<128x512xbf16>
    %cst_44 = arith.constant dense<0.000000e+00> : vector<8x512xf32>
    %125 = tpu.matmul %122, %124, %cst_44 {dimension_numbers = #tpu.dot_dimension_numbers<[1], [0], [0], [1], [0, 0, 1, 1], [], []>} : vector<8x128xbf16>, vector<128x512xbf16>, vector<8x512xf32> -> vector<8x512xf32>
    %126 = arith.addf %121, %125 : vector<8x512xf32>
    %127 = vector.extract_strided_slice %126 {offsets = [0, 0], sizes = [8, 128], strides = [1, 1]} : vector<8x512xf32> to vector<8x128xf32>
    %128 = arith.negf %127 : vector<8x128xf32>
    %129 = math.exp %128 : vector<8x128xf32>
    %cst_45 = arith.constant 1.000000e+00 : f32
    %130 = vector.broadcast %cst_45 : f32 to vector<8x128xf32>
    %131 = arith.addf %130, %129 : vector<8x128xf32>
    %132 = arith.divf %130, %131 : vector<8x128xf32>
    %133 = vector.extract_strided_slice %126 {offsets = [0, 128], sizes = [8, 128], strides = [1, 1]} : vector<8x512xf32> to vector<8x128xf32>
    %134 = arith.negf %133 : vector<8x128xf32>
    %135 = math.exp %134 : vector<8x128xf32>
    %cst_46 = arith.constant 1.000000e+00 : f32
    %136 = vector.broadcast %cst_46 : f32 to vector<8x128xf32>
    %137 = arith.addf %136, %135 : vector<8x128xf32>
    %138 = arith.divf %136, %137 : vector<8x128xf32>
    %139 = vector.extract_strided_slice %126 {offsets = [0, 256], sizes = [8, 128], strides = [1, 1]} : vector<8x512xf32> to vector<8x128xf32>
    %140 = math.tanh %139 : vector<8x128xf32>
    %141 = vector.extract_strided_slice %126 {offsets = [0, 384], sizes = [8, 128], strides = [1, 1]} : vector<8x512xf32> to vector<8x128xf32>
    %142 = arith.negf %141 : vector<8x128xf32>
    %143 = math.exp %142 : vector<8x128xf32>
    %cst_47 = arith.constant 1.000000e+00 : f32
    %144 = vector.broadcast %cst_47 : f32 to vector<8x128xf32>
    %145 = arith.addf %144, %143 : vector<8x128xf32>
    %146 = arith.divf %144, %145 : vector<8x128xf32>
    %147 = arith.mulf %138, %116 : vector<8x128xf32>
    %148 = arith.mulf %132, %140 : vector<8x128xf32>
    %149 = arith.addf %147, %148 : vector<8x128xf32>
    %150 = math.tanh %149 : vector<8x128xf32>
    %151 = arith.mulf %146, %150 : vector<8x128xf32>
    %152 = arith.select %10, %149, %151 : vector<8x128xf32>
    %153 = arith.addf %119, %152 : vector<8x128xf32>
    %c32 = arith.constant 32 : index
    %c0_48 = arith.constant 0 : index
    %154 = vector.load %arg8[%c32, %c0_48] : memref<160x512xf32, #tpu.memory_space<vmem>>, vector<8x512xf32>
    %155 = arith.truncf %151 : vector<8x128xf32> to vector<8x128xbf16>
    %c0_49 = arith.constant 0 : index
    %c0_50 = arith.constant 0 : index
    %c0_51 = arith.constant 0 : index
    %156 = vector.load %arg4[%c0_49, %c0_50, %c0_51] : memref<1x128x512xbf16, #tpu.memory_space<vmem>>, vector<1x128x512xbf16>
    %157 = vector.shape_cast %156 : vector<1x128x512xbf16> to vector<128x512xbf16>
    %cst_52 = arith.constant dense<0.000000e+00> : vector<8x512xf32>
    %158 = tpu.matmul %155, %157, %cst_52 {dimension_numbers = #tpu.dot_dimension_numbers<[1], [0], [0], [1], [0, 0, 1, 1], [], []>} : vector<8x128xbf16>, vector<128x512xbf16>, vector<8x512xf32> -> vector<8x512xf32>
    %159 = arith.addf %154, %158 : vector<8x512xf32>
    %160 = vector.extract_strided_slice %159 {offsets = [0, 0], sizes = [8, 128], strides = [1, 1]} : vector<8x512xf32> to vector<8x128xf32>
    %161 = arith.negf %160 : vector<8x128xf32>
    %162 = math.exp %161 : vector<8x128xf32>
    %cst_53 = arith.constant 1.000000e+00 : f32
    %163 = vector.broadcast %cst_53 : f32 to vector<8x128xf32>
    %164 = arith.addf %163, %162 : vector<8x128xf32>
    %165 = arith.divf %163, %164 : vector<8x128xf32>
    %166 = vector.extract_strided_slice %159 {offsets = [0, 128], sizes = [8, 128], strides = [1, 1]} : vector<8x512xf32> to vector<8x128xf32>
    %167 = arith.negf %166 : vector<8x128xf32>
    %168 = math.exp %167 : vector<8x128xf32>
    %cst_54 = arith.constant 1.000000e+00 : f32
    %169 = vector.broadcast %cst_54 : f32 to vector<8x128xf32>
    %170 = arith.addf %169, %168 : vector<8x128xf32>
    %171 = arith.divf %169, %170 : vector<8x128xf32>
    %172 = vector.extract_strided_slice %159 {offsets = [0, 256], sizes = [8, 128], strides = [1, 1]} : vector<8x512xf32> to vector<8x128xf32>
    %173 = math.tanh %172 : vector<8x128xf32>
    %174 = vector.extract_strided_slice %159 {offsets = [0, 384], sizes = [8, 128], strides = [1, 1]} : vector<8x512xf32> to vector<8x128xf32>
    %175 = arith.negf %174 : vector<8x128xf32>
    %176 = math.exp %175 : vector<8x128xf32>
    %cst_55 = arith.constant 1.000000e+00 : f32
    %177 = vector.broadcast %cst_55 : f32 to vector<8x128xf32>
    %178 = arith.addf %177, %176 : vector<8x128xf32>
    %179 = arith.divf %177, %178 : vector<8x128xf32>
    %180 = arith.mulf %171, %149 : vector<8x128xf32>
    %181 = arith.mulf %165, %173 : vector<8x128xf32>
    %182 = arith.addf %180, %181 : vector<8x128xf32>
    %183 = math.tanh %182 : vector<8x128xf32>
    %184 = arith.mulf %179, %183 : vector<8x128xf32>
    %185 = arith.select %10, %182, %184 : vector<8x128xf32>
    %186 = arith.addf %153, %185 : vector<8x128xf32>
    %c40 = arith.constant 40 : index
    %c0_56 = arith.constant 0 : index
    %187 = vector.load %arg8[%c40, %c0_56] : memref<160x512xf32, #tpu.memory_space<vmem>>, vector<8x512xf32>
    %188 = arith.truncf %184 : vector<8x128xf32> to vector<8x128xbf16>
    %c0_57 = arith.constant 0 : index
    %c0_58 = arith.constant 0 : index
    %c0_59 = arith.constant 0 : index
    %189 = vector.load %arg4[%c0_57, %c0_58, %c0_59] : memref<1x128x512xbf16, #tpu.memory_space<vmem>>, vector<1x128x512xbf16>
    %190 = vector.shape_cast %189 : vector<1x128x512xbf16> to vector<128x512xbf16>
    %cst_60 = arith.constant dense<0.000000e+00> : vector<8x512xf32>
    %191 = tpu.matmul %188, %190, %cst_60 {dimension_numbers = #tpu.dot_dimension_numbers<[1], [0], [0], [1], [0, 0, 1, 1], [], []>} : vector<8x128xbf16>, vector<128x512xbf16>, vector<8x512xf32> -> vector<8x512xf32>
    %192 = arith.addf %187, %191 : vector<8x512xf32>
    %193 = vector.extract_strided_slice %192 {offsets = [0, 0], sizes = [8, 128], strides = [1, 1]} : vector<8x512xf32> to vector<8x128xf32>
    %194 = arith.negf %193 : vector<8x128xf32>
    %195 = math.exp %194 : vector<8x128xf32>
    %cst_61 = arith.constant 1.000000e+00 : f32
    %196 = vector.broadcast %cst_61 : f32 to vector<8x128xf32>
    %197 = arith.addf %196, %195 : vector<8x128xf32>
    %198 = arith.divf %196, %197 : vector<8x128xf32>
    %199 = vector.extract_strided_slice %192 {offsets = [0, 128], sizes = [8, 128], strides = [1, 1]} : vector<8x512xf32> to vector<8x128xf32>
    %200 = arith.negf %199 : vector<8x128xf32>
    %201 = math.exp %200 : vector<8x128xf32>
    %cst_62 = arith.constant 1.000000e+00 : f32
    %202 = vector.broadcast %cst_62 : f32 to vector<8x128xf32>
    %203 = arith.addf %202, %201 : vector<8x128xf32>
    %204 = arith.divf %202, %203 : vector<8x128xf32>
    %205 = vector.extract_strided_slice %192 {offsets = [0, 256], sizes = [8, 128], strides = [1, 1]} : vector<8x512xf32> to vector<8x128xf32>
    %206 = math.tanh %205 : vector<8x128xf32>
    %207 = vector.extract_strided_slice %192 {offsets = [0, 384], sizes = [8, 128], strides = [1, 1]} : vector<8x512xf32> to vector<8x128xf32>
    %208 = arith.negf %207 : vector<8x128xf32>
    %209 = math.exp %208 : vector<8x128xf32>
    %cst_63 = arith.constant 1.000000e+00 : f32
    %210 = vector.broadcast %cst_63 : f32 to vector<8x128xf32>
    %211 = arith.addf %210, %209 : vector<8x128xf32>
    %212 = arith.divf %210, %211 : vector<8x128xf32>
    %213 = arith.mulf %204, %182 : vector<8x128xf32>
    %214 = arith.mulf %198, %206 : vector<8x128xf32>
    %215 = arith.addf %213, %214 : vector<8x128xf32>
    %216 = math.tanh %215 : vector<8x128xf32>
    %217 = arith.mulf %212, %216 : vector<8x128xf32>
    %218 = arith.select %10, %215, %217 : vector<8x128xf32>
    %219 = arith.addf %185, %218 : vector<8x128xf32>
    %c48 = arith.constant 48 : index
    %c0_64 = arith.constant 0 : index
    %220 = vector.load %arg8[%c48, %c0_64] : memref<160x512xf32, #tpu.memory_space<vmem>>, vector<8x512xf32>
    %221 = arith.truncf %217 : vector<8x128xf32> to vector<8x128xbf16>
    %c0_65 = arith.constant 0 : index
    %c0_66 = arith.constant 0 : index
    %c0_67 = arith.constant 0 : index
    %222 = vector.load %arg4[%c0_65, %c0_66, %c0_67] : memref<1x128x512xbf16, #tpu.memory_space<vmem>>, vector<1x128x512xbf16>
    %223 = vector.shape_cast %222 : vector<1x128x512xbf16> to vector<128x512xbf16>
    %cst_68 = arith.constant dense<0.000000e+00> : vector<8x512xf32>
    %224 = tpu.matmul %221, %223, %cst_68 {dimension_numbers = #tpu.dot_dimension_numbers<[1], [0], [0], [1], [0, 0, 1, 1], [], []>} : vector<8x128xbf16>, vector<128x512xbf16>, vector<8x512xf32> -> vector<8x512xf32>
    %225 = arith.addf %220, %224 : vector<8x512xf32>
    %226 = vector.extract_strided_slice %225 {offsets = [0, 0], sizes = [8, 128], strides = [1, 1]} : vector<8x512xf32> to vector<8x128xf32>
    %227 = arith.negf %226 : vector<8x128xf32>
    %228 = math.exp %227 : vector<8x128xf32>
    %cst_69 = arith.constant 1.000000e+00 : f32
    %229 = vector.broadcast %cst_69 : f32 to vector<8x128xf32>
    %230 = arith.addf %229, %228 : vector<8x128xf32>
    %231 = arith.divf %229, %230 : vector<8x128xf32>
    %232 = vector.extract_strided_slice %225 {offsets = [0, 128], sizes = [8, 128], strides = [1, 1]} : vector<8x512xf32> to vector<8x128xf32>
    %233 = arith.negf %232 : vector<8x128xf32>
    %234 = math.exp %233 : vector<8x128xf32>
    %cst_70 = arith.constant 1.000000e+00 : f32
    %235 = vector.broadcast %cst_70 : f32 to vector<8x128xf32>
    %236 = arith.addf %235, %234 : vector<8x128xf32>
    %237 = arith.divf %235, %236 : vector<8x128xf32>
    %238 = vector.extract_strided_slice %225 {offsets = [0, 256], sizes = [8, 128], strides = [1, 1]} : vector<8x512xf32> to vector<8x128xf32>
    %239 = math.tanh %238 : vector<8x128xf32>
    %240 = vector.extract_strided_slice %225 {offsets = [0, 384], sizes = [8, 128], strides = [1, 1]} : vector<8x512xf32> to vector<8x128xf32>
    %241 = arith.negf %240 : vector<8x128xf32>
    %242 = math.exp %241 : vector<8x128xf32>
    %cst_71 = arith.constant 1.000000e+00 : f32
    %243 = vector.broadcast %cst_71 : f32 to vector<8x128xf32>
    %244 = arith.addf %243, %242 : vector<8x128xf32>
    %245 = arith.divf %243, %244 : vector<8x128xf32>
    %246 = arith.mulf %237, %215 : vector<8x128xf32>
    %247 = arith.mulf %231, %239 : vector<8x128xf32>
    %248 = arith.addf %246, %247 : vector<8x128xf32>
    %249 = math.tanh %248 : vector<8x128xf32>
    %250 = arith.mulf %245, %249 : vector<8x128xf32>
    %251 = arith.select %10, %248, %250 : vector<8x128xf32>
    %252 = arith.addf %219, %251 : vector<8x128xf32>
    %c56 = arith.constant 56 : index
    %c0_72 = arith.constant 0 : index
    %253 = vector.load %arg8[%c56, %c0_72] : memref<160x512xf32, #tpu.memory_space<vmem>>, vector<8x512xf32>
    %254 = arith.truncf %250 : vector<8x128xf32> to vector<8x128xbf16>
    %c0_73 = arith.constant 0 : index
    %c0_74 = arith.constant 0 : index
    %c0_75 = arith.constant 0 : index
    %255 = vector.load %arg4[%c0_73, %c0_74, %c0_75] : memref<1x128x512xbf16, #tpu.memory_space<vmem>>, vector<1x128x512xbf16>
    %256 = vector.shape_cast %255 : vector<1x128x512xbf16> to vector<128x512xbf16>
    %cst_76 = arith.constant dense<0.000000e+00> : vector<8x512xf32>
    %257 = tpu.matmul %254, %256, %cst_76 {dimension_numbers = #tpu.dot_dimension_numbers<[1], [0], [0], [1], [0, 0, 1, 1], [], []>} : vector<8x128xbf16>, vector<128x512xbf16>, vector<8x512xf32> -> vector<8x512xf32>
    %258 = arith.addf %253, %257 : vector<8x512xf32>
    %259 = vector.extract_strided_slice %258 {offsets = [0, 0], sizes = [8, 128], strides = [1, 1]} : vector<8x512xf32> to vector<8x128xf32>
    %260 = arith.negf %259 : vector<8x128xf32>
    %261 = math.exp %260 : vector<8x128xf32>
    %cst_77 = arith.constant 1.000000e+00 : f32
    %262 = vector.broadcast %cst_77 : f32 to vector<8x128xf32>
    %263 = arith.addf %262, %261 : vector<8x128xf32>
    %264 = arith.divf %262, %263 : vector<8x128xf32>
    %265 = vector.extract_strided_slice %258 {offsets = [0, 128], sizes = [8, 128], strides = [1, 1]} : vector<8x512xf32> to vector<8x128xf32>
    %266 = arith.negf %265 : vector<8x128xf32>
    %267 = math.exp %266 : vector<8x128xf32>
    %cst_78 = arith.constant 1.000000e+00 : f32
    %268 = vector.broadcast %cst_78 : f32 to vector<8x128xf32>
    %269 = arith.addf %268, %267 : vector<8x128xf32>
    %270 = arith.divf %268, %269 : vector<8x128xf32>
    %271 = vector.extract_strided_slice %258 {offsets = [0, 256], sizes = [8, 128], strides = [1, 1]} : vector<8x512xf32> to vector<8x128xf32>
    %272 = math.tanh %271 : vector<8x128xf32>
    %273 = vector.extract_strided_slice %258 {offsets = [0, 384], sizes = [8, 128], strides = [1, 1]} : vector<8x512xf32> to vector<8x128xf32>
    %274 = arith.negf %273 : vector<8x128xf32>
    %275 = math.exp %274 : vector<8x128xf32>
    %cst_79 = arith.constant 1.000000e+00 : f32
    %276 = vector.broadcast %cst_79 : f32 to vector<8x128xf32>
    %277 = arith.addf %276, %275 : vector<8x128xf32>
    %278 = arith.divf %276, %277 : vector<8x128xf32>
    %279 = arith.mulf %270, %248 : vector<8x128xf32>
    %280 = arith.mulf %264, %272 : vector<8x128xf32>
    %281 = arith.addf %279, %280 : vector<8x128xf32>
    %282 = math.tanh %281 : vector<8x128xf32>
    %283 = arith.mulf %278, %282 : vector<8x128xf32>
    %284 = arith.select %10, %281, %283 : vector<8x128xf32>
    %285 = arith.addf %251, %284 : vector<8x128xf32>
    %c64 = arith.constant 64 : index
    %c0_80 = arith.constant 0 : index
    %286 = vector.load %arg8[%c64, %c0_80] : memref<160x512xf32, #tpu.memory_space<vmem>>, vector<8x512xf32>
    %287 = arith.truncf %283 : vector<8x128xf32> to vector<8x128xbf16>
    %c0_81 = arith.constant 0 : index
    %c0_82 = arith.constant 0 : index
    %c0_83 = arith.constant 0 : index
    %288 = vector.load %arg4[%c0_81, %c0_82, %c0_83] : memref<1x128x512xbf16, #tpu.memory_space<vmem>>, vector<1x128x512xbf16>
    %289 = vector.shape_cast %288 : vector<1x128x512xbf16> to vector<128x512xbf16>
    %cst_84 = arith.constant dense<0.000000e+00> : vector<8x512xf32>
    %290 = tpu.matmul %287, %289, %cst_84 {dimension_numbers = #tpu.dot_dimension_numbers<[1], [0], [0], [1], [0, 0, 1, 1], [], []>} : vector<8x128xbf16>, vector<128x512xbf16>, vector<8x512xf32> -> vector<8x512xf32>
    %291 = arith.addf %286, %290 : vector<8x512xf32>
    %292 = vector.extract_strided_slice %291 {offsets = [0, 0], sizes = [8, 128], strides = [1, 1]} : vector<8x512xf32> to vector<8x128xf32>
    %293 = arith.negf %292 : vector<8x128xf32>
    %294 = math.exp %293 : vector<8x128xf32>
    %cst_85 = arith.constant 1.000000e+00 : f32
    %295 = vector.broadcast %cst_85 : f32 to vector<8x128xf32>
    %296 = arith.addf %295, %294 : vector<8x128xf32>
    %297 = arith.divf %295, %296 : vector<8x128xf32>
    %298 = vector.extract_strided_slice %291 {offsets = [0, 128], sizes = [8, 128], strides = [1, 1]} : vector<8x512xf32> to vector<8x128xf32>
    %299 = arith.negf %298 : vector<8x128xf32>
    %300 = math.exp %299 : vector<8x128xf32>
    %cst_86 = arith.constant 1.000000e+00 : f32
    %301 = vector.broadcast %cst_86 : f32 to vector<8x128xf32>
    %302 = arith.addf %301, %300 : vector<8x128xf32>
    %303 = arith.divf %301, %302 : vector<8x128xf32>
    %304 = vector.extract_strided_slice %291 {offsets = [0, 256], sizes = [8, 128], strides = [1, 1]} : vector<8x512xf32> to vector<8x128xf32>
    %305 = math.tanh %304 : vector<8x128xf32>
    %306 = vector.extract_strided_slice %291 {offsets = [0, 384], sizes = [8, 128], strides = [1, 1]} : vector<8x512xf32> to vector<8x128xf32>
    %307 = arith.negf %306 : vector<8x128xf32>
    %308 = math.exp %307 : vector<8x128xf32>
    %cst_87 = arith.constant 1.000000e+00 : f32
    %309 = vector.broadcast %cst_87 : f32 to vector<8x128xf32>
    %310 = arith.addf %309, %308 : vector<8x128xf32>
    %311 = arith.divf %309, %310 : vector<8x128xf32>
    %312 = arith.mulf %303, %281 : vector<8x128xf32>
    %313 = arith.mulf %297, %305 : vector<8x128xf32>
    %314 = arith.addf %312, %313 : vector<8x128xf32>
    %315 = math.tanh %314 : vector<8x128xf32>
    %316 = arith.mulf %311, %315 : vector<8x128xf32>
    %317 = arith.select %10, %314, %316 : vector<8x128xf32>
    %318 = arith.addf %285, %317 : vector<8x128xf32>
    %c72 = arith.constant 72 : index
    %c0_88 = arith.constant 0 : index
    %319 = vector.load %arg8[%c72, %c0_88] : memref<160x512xf32, #tpu.memory_space<vmem>>, vector<8x512xf32>
    %320 = arith.truncf %316 : vector<8x128xf32> to vector<8x128xbf16>
    %c0_89 = arith.constant 0 : index
    %c0_90 = arith.constant 0 : index
    %c0_91 = arith.constant 0 : index
    %321 = vector.load %arg4[%c0_89, %c0_90, %c0_91] : memref<1x128x512xbf16, #tpu.memory_space<vmem>>, vector<1x128x512xbf16>
    %322 = vector.shape_cast %321 : vector<1x128x512xbf16> to vector<128x512xbf16>
    %cst_92 = arith.constant dense<0.000000e+00> : vector<8x512xf32>
    %323 = tpu.matmul %320, %322, %cst_92 {dimension_numbers = #tpu.dot_dimension_numbers<[1], [0], [0], [1], [0, 0, 1, 1], [], []>} : vector<8x128xbf16>, vector<128x512xbf16>, vector<8x512xf32> -> vector<8x512xf32>
    %324 = arith.addf %319, %323 : vector<8x512xf32>
    %325 = vector.extract_strided_slice %324 {offsets = [0, 0], sizes = [8, 128], strides = [1, 1]} : vector<8x512xf32> to vector<8x128xf32>
    %326 = arith.negf %325 : vector<8x128xf32>
    %327 = math.exp %326 : vector<8x128xf32>
    %cst_93 = arith.constant 1.000000e+00 : f32
    %328 = vector.broadcast %cst_93 : f32 to vector<8x128xf32>
    %329 = arith.addf %328, %327 : vector<8x128xf32>
    %330 = arith.divf %328, %329 : vector<8x128xf32>
    %331 = vector.extract_strided_slice %324 {offsets = [0, 128], sizes = [8, 128], strides = [1, 1]} : vector<8x512xf32> to vector<8x128xf32>
    %332 = arith.negf %331 : vector<8x128xf32>
    %333 = math.exp %332 : vector<8x128xf32>
    %cst_94 = arith.constant 1.000000e+00 : f32
    %334 = vector.broadcast %cst_94 : f32 to vector<8x128xf32>
    %335 = arith.addf %334, %333 : vector<8x128xf32>
    %336 = arith.divf %334, %335 : vector<8x128xf32>
    %337 = vector.extract_strided_slice %324 {offsets = [0, 256], sizes = [8, 128], strides = [1, 1]} : vector<8x512xf32> to vector<8x128xf32>
    %338 = math.tanh %337 : vector<8x128xf32>
    %339 = vector.extract_strided_slice %324 {offsets = [0, 384], sizes = [8, 128], strides = [1, 1]} : vector<8x512xf32> to vector<8x128xf32>
    %340 = arith.negf %339 : vector<8x128xf32>
    %341 = math.exp %340 : vector<8x128xf32>
    %cst_95 = arith.constant 1.000000e+00 : f32
    %342 = vector.broadcast %cst_95 : f32 to vector<8x128xf32>
    %343 = arith.addf %342, %341 : vector<8x128xf32>
    %344 = arith.divf %342, %343 : vector<8x128xf32>
    %345 = arith.mulf %336, %314 : vector<8x128xf32>
    %346 = arith.mulf %330, %338 : vector<8x128xf32>
    %347 = arith.addf %345, %346 : vector<8x128xf32>
    %348 = math.tanh %347 : vector<8x128xf32>
    %349 = arith.mulf %344, %348 : vector<8x128xf32>
    %350 = arith.select %10, %347, %349 : vector<8x128xf32>
    %351 = arith.addf %317, %350 : vector<8x128xf32>
    %c80 = arith.constant 80 : index
    %c0_96 = arith.constant 0 : index
    %352 = vector.load %arg8[%c80, %c0_96] : memref<160x512xf32, #tpu.memory_space<vmem>>, vector<8x512xf32>
    %353 = arith.truncf %349 : vector<8x128xf32> to vector<8x128xbf16>
    %c0_97 = arith.constant 0 : index
    %c0_98 = arith.constant 0 : index
    %c0_99 = arith.constant 0 : index
    %354 = vector.load %arg4[%c0_97, %c0_98, %c0_99] : memref<1x128x512xbf16, #tpu.memory_space<vmem>>, vector<1x128x512xbf16>
    %355 = vector.shape_cast %354 : vector<1x128x512xbf16> to vector<128x512xbf16>
    %cst_100 = arith.constant dense<0.000000e+00> : vector<8x512xf32>
    %356 = tpu.matmul %353, %355, %cst_100 {dimension_numbers = #tpu.dot_dimension_numbers<[1], [0], [0], [1], [0, 0, 1, 1], [], []>} : vector<8x128xbf16>, vector<128x512xbf16>, vector<8x512xf32> -> vector<8x512xf32>
    %357 = arith.addf %352, %356 : vector<8x512xf32>
    %358 = vector.extract_strided_slice %357 {offsets = [0, 0], sizes = [8, 128], strides = [1, 1]} : vector<8x512xf32> to vector<8x128xf32>
    %359 = arith.negf %358 : vector<8x128xf32>
    %360 = math.exp %359 : vector<8x128xf32>
    %cst_101 = arith.constant 1.000000e+00 : f32
    %361 = vector.broadcast %cst_101 : f32 to vector<8x128xf32>
    %362 = arith.addf %361, %360 : vector<8x128xf32>
    %363 = arith.divf %361, %362 : vector<8x128xf32>
    %364 = vector.extract_strided_slice %357 {offsets = [0, 128], sizes = [8, 128], strides = [1, 1]} : vector<8x512xf32> to vector<8x128xf32>
    %365 = arith.negf %364 : vector<8x128xf32>
    %366 = math.exp %365 : vector<8x128xf32>
    %cst_102 = arith.constant 1.000000e+00 : f32
    %367 = vector.broadcast %cst_102 : f32 to vector<8x128xf32>
    %368 = arith.addf %367, %366 : vector<8x128xf32>
    %369 = arith.divf %367, %368 : vector<8x128xf32>
    %370 = vector.extract_strided_slice %357 {offsets = [0, 256], sizes = [8, 128], strides = [1, 1]} : vector<8x512xf32> to vector<8x128xf32>
    %371 = math.tanh %370 : vector<8x128xf32>
    %372 = vector.extract_strided_slice %357 {offsets = [0, 384], sizes = [8, 128], strides = [1, 1]} : vector<8x512xf32> to vector<8x128xf32>
    %373 = arith.negf %372 : vector<8x128xf32>
    %374 = math.exp %373 : vector<8x128xf32>
    %cst_103 = arith.constant 1.000000e+00 : f32
    %375 = vector.broadcast %cst_103 : f32 to vector<8x128xf32>
    %376 = arith.addf %375, %374 : vector<8x128xf32>
    %377 = arith.divf %375, %376 : vector<8x128xf32>
    %378 = arith.mulf %369, %347 : vector<8x128xf32>
    %379 = arith.mulf %363, %371 : vector<8x128xf32>
    %380 = arith.addf %378, %379 : vector<8x128xf32>
    %381 = math.tanh %380 : vector<8x128xf32>
    %382 = arith.mulf %377, %381 : vector<8x128xf32>
    %383 = arith.select %10, %380, %382 : vector<8x128xf32>
    %384 = arith.addf %351, %383 : vector<8x128xf32>
    %c88 = arith.constant 88 : index
    %c0_104 = arith.constant 0 : index
    %385 = vector.load %arg8[%c88, %c0_104] : memref<160x512xf32, #tpu.memory_space<vmem>>, vector<8x512xf32>
    %386 = arith.truncf %382 : vector<8x128xf32> to vector<8x128xbf16>
    %c0_105 = arith.constant 0 : index
    %c0_106 = arith.constant 0 : index
    %c0_107 = arith.constant 0 : index
    %387 = vector.load %arg4[%c0_105, %c0_106, %c0_107] : memref<1x128x512xbf16, #tpu.memory_space<vmem>>, vector<1x128x512xbf16>
    %388 = vector.shape_cast %387 : vector<1x128x512xbf16> to vector<128x512xbf16>
    %cst_108 = arith.constant dense<0.000000e+00> : vector<8x512xf32>
    %389 = tpu.matmul %386, %388, %cst_108 {dimension_numbers = #tpu.dot_dimension_numbers<[1], [0], [0], [1], [0, 0, 1, 1], [], []>} : vector<8x128xbf16>, vector<128x512xbf16>, vector<8x512xf32> -> vector<8x512xf32>
    %390 = arith.addf %385, %389 : vector<8x512xf32>
    %391 = vector.extract_strided_slice %390 {offsets = [0, 0], sizes = [8, 128], strides = [1, 1]} : vector<8x512xf32> to vector<8x128xf32>
    %392 = arith.negf %391 : vector<8x128xf32>
    %393 = math.exp %392 : vector<8x128xf32>
    %cst_109 = arith.constant 1.000000e+00 : f32
    %394 = vector.broadcast %cst_109 : f32 to vector<8x128xf32>
    %395 = arith.addf %394, %393 : vector<8x128xf32>
    %396 = arith.divf %394, %395 : vector<8x128xf32>
    %397 = vector.extract_strided_slice %390 {offsets = [0, 128], sizes = [8, 128], strides = [1, 1]} : vector<8x512xf32> to vector<8x128xf32>
    %398 = arith.negf %397 : vector<8x128xf32>
    %399 = math.exp %398 : vector<8x128xf32>
    %cst_110 = arith.constant 1.000000e+00 : f32
    %400 = vector.broadcast %cst_110 : f32 to vector<8x128xf32>
    %401 = arith.addf %400, %399 : vector<8x128xf32>
    %402 = arith.divf %400, %401 : vector<8x128xf32>
    %403 = vector.extract_strided_slice %390 {offsets = [0, 256], sizes = [8, 128], strides = [1, 1]} : vector<8x512xf32> to vector<8x128xf32>
    %404 = math.tanh %403 : vector<8x128xf32>
    %405 = vector.extract_strided_slice %390 {offsets = [0, 384], sizes = [8, 128], strides = [1, 1]} : vector<8x512xf32> to vector<8x128xf32>
    %406 = arith.negf %405 : vector<8x128xf32>
    %407 = math.exp %406 : vector<8x128xf32>
    %cst_111 = arith.constant 1.000000e+00 : f32
    %408 = vector.broadcast %cst_111 : f32 to vector<8x128xf32>
    %409 = arith.addf %408, %407 : vector<8x128xf32>
    %410 = arith.divf %408, %409 : vector<8x128xf32>
    %411 = arith.mulf %402, %380 : vector<8x128xf32>
    %412 = arith.mulf %396, %404 : vector<8x128xf32>
    %413 = arith.addf %411, %412 : vector<8x128xf32>
    %414 = math.tanh %413 : vector<8x128xf32>
    %415 = arith.mulf %410, %414 : vector<8x128xf32>
    %416 = arith.select %10, %413, %415 : vector<8x128xf32>
    %417 = arith.addf %383, %416 : vector<8x128xf32>
    %c96 = arith.constant 96 : index
    %c0_112 = arith.constant 0 : index
    %418 = vector.load %arg8[%c96, %c0_112] : memref<160x512xf32, #tpu.memory_space<vmem>>, vector<8x512xf32>
    %419 = arith.truncf %415 : vector<8x128xf32> to vector<8x128xbf16>
    %c0_113 = arith.constant 0 : index
    %c0_114 = arith.constant 0 : index
    %c0_115 = arith.constant 0 : index
    %420 = vector.load %arg4[%c0_113, %c0_114, %c0_115] : memref<1x128x512xbf16, #tpu.memory_space<vmem>>, vector<1x128x512xbf16>
    %421 = vector.shape_cast %420 : vector<1x128x512xbf16> to vector<128x512xbf16>
    %cst_116 = arith.constant dense<0.000000e+00> : vector<8x512xf32>
    %422 = tpu.matmul %419, %421, %cst_116 {dimension_numbers = #tpu.dot_dimension_numbers<[1], [0], [0], [1], [0, 0, 1, 1], [], []>} : vector<8x128xbf16>, vector<128x512xbf16>, vector<8x512xf32> -> vector<8x512xf32>
    %423 = arith.addf %418, %422 : vector<8x512xf32>
    %424 = vector.extract_strided_slice %423 {offsets = [0, 0], sizes = [8, 128], strides = [1, 1]} : vector<8x512xf32> to vector<8x128xf32>
    %425 = arith.negf %424 : vector<8x128xf32>
    %426 = math.exp %425 : vector<8x128xf32>
    %cst_117 = arith.constant 1.000000e+00 : f32
    %427 = vector.broadcast %cst_117 : f32 to vector<8x128xf32>
    %428 = arith.addf %427, %426 : vector<8x128xf32>
    %429 = arith.divf %427, %428 : vector<8x128xf32>
    %430 = vector.extract_strided_slice %423 {offsets = [0, 128], sizes = [8, 128], strides = [1, 1]} : vector<8x512xf32> to vector<8x128xf32>
    %431 = arith.negf %430 : vector<8x128xf32>
    %432 = math.exp %431 : vector<8x128xf32>
    %cst_118 = arith.constant 1.000000e+00 : f32
    %433 = vector.broadcast %cst_118 : f32 to vector<8x128xf32>
    %434 = arith.addf %433, %432 : vector<8x128xf32>
    %435 = arith.divf %433, %434 : vector<8x128xf32>
    %436 = vector.extract_strided_slice %423 {offsets = [0, 256], sizes = [8, 128], strides = [1, 1]} : vector<8x512xf32> to vector<8x128xf32>
    %437 = math.tanh %436 : vector<8x128xf32>
    %438 = vector.extract_strided_slice %423 {offsets = [0, 384], sizes = [8, 128], strides = [1, 1]} : vector<8x512xf32> to vector<8x128xf32>
    %439 = arith.negf %438 : vector<8x128xf32>
    %440 = math.exp %439 : vector<8x128xf32>
    %cst_119 = arith.constant 1.000000e+00 : f32
    %441 = vector.broadcast %cst_119 : f32 to vector<8x128xf32>
    %442 = arith.addf %441, %440 : vector<8x128xf32>
    %443 = arith.divf %441, %442 : vector<8x128xf32>
    %444 = arith.mulf %435, %413 : vector<8x128xf32>
    %445 = arith.mulf %429, %437 : vector<8x128xf32>
    %446 = arith.addf %444, %445 : vector<8x128xf32>
    %447 = math.tanh %446 : vector<8x128xf32>
    %448 = arith.mulf %443, %447 : vector<8x128xf32>
    %449 = arith.select %10, %446, %448 : vector<8x128xf32>
    %450 = arith.addf %417, %449 : vector<8x128xf32>
    %c104 = arith.constant 104 : index
    %c0_120 = arith.constant 0 : index
    %451 = vector.load %arg8[%c104, %c0_120] : memref<160x512xf32, #tpu.memory_space<vmem>>, vector<8x512xf32>
    %452 = arith.truncf %448 : vector<8x128xf32> to vector<8x128xbf16>
    %c0_121 = arith.constant 0 : index
    %c0_122 = arith.constant 0 : index
    %c0_123 = arith.constant 0 : index
    %453 = vector.load %arg4[%c0_121, %c0_122, %c0_123] : memref<1x128x512xbf16, #tpu.memory_space<vmem>>, vector<1x128x512xbf16>
    %454 = vector.shape_cast %453 : vector<1x128x512xbf16> to vector<128x512xbf16>
    %cst_124 = arith.constant dense<0.000000e+00> : vector<8x512xf32>
    %455 = tpu.matmul %452, %454, %cst_124 {dimension_numbers = #tpu.dot_dimension_numbers<[1], [0], [0], [1], [0, 0, 1, 1], [], []>} : vector<8x128xbf16>, vector<128x512xbf16>, vector<8x512xf32> -> vector<8x512xf32>
    %456 = arith.addf %451, %455 : vector<8x512xf32>
    %457 = vector.extract_strided_slice %456 {offsets = [0, 0], sizes = [8, 128], strides = [1, 1]} : vector<8x512xf32> to vector<8x128xf32>
    %458 = arith.negf %457 : vector<8x128xf32>
    %459 = math.exp %458 : vector<8x128xf32>
    %cst_125 = arith.constant 1.000000e+00 : f32
    %460 = vector.broadcast %cst_125 : f32 to vector<8x128xf32>
    %461 = arith.addf %460, %459 : vector<8x128xf32>
    %462 = arith.divf %460, %461 : vector<8x128xf32>
    %463 = vector.extract_strided_slice %456 {offsets = [0, 128], sizes = [8, 128], strides = [1, 1]} : vector<8x512xf32> to vector<8x128xf32>
    %464 = arith.negf %463 : vector<8x128xf32>
    %465 = math.exp %464 : vector<8x128xf32>
    %cst_126 = arith.constant 1.000000e+00 : f32
    %466 = vector.broadcast %cst_126 : f32 to vector<8x128xf32>
    %467 = arith.addf %466, %465 : vector<8x128xf32>
    %468 = arith.divf %466, %467 : vector<8x128xf32>
    %469 = vector.extract_strided_slice %456 {offsets = [0, 256], sizes = [8, 128], strides = [1, 1]} : vector<8x512xf32> to vector<8x128xf32>
    %470 = math.tanh %469 : vector<8x128xf32>
    %471 = vector.extract_strided_slice %456 {offsets = [0, 384], sizes = [8, 128], strides = [1, 1]} : vector<8x512xf32> to vector<8x128xf32>
    %472 = arith.negf %471 : vector<8x128xf32>
    %473 = math.exp %472 : vector<8x128xf32>
    %cst_127 = arith.constant 1.000000e+00 : f32
    %474 = vector.broadcast %cst_127 : f32 to vector<8x128xf32>
    %475 = arith.addf %474, %473 : vector<8x128xf32>
    %476 = arith.divf %474, %475 : vector<8x128xf32>
    %477 = arith.mulf %468, %446 : vector<8x128xf32>
    %478 = arith.mulf %462, %470 : vector<8x128xf32>
    %479 = arith.addf %477, %478 : vector<8x128xf32>
    %480 = math.tanh %479 : vector<8x128xf32>
    %481 = arith.mulf %476, %480 : vector<8x128xf32>
    %482 = arith.select %10, %479, %481 : vector<8x128xf32>
    %483 = arith.addf %449, %482 : vector<8x128xf32>
    %c112 = arith.constant 112 : index
    %c0_128 = arith.constant 0 : index
    %484 = vector.load %arg8[%c112, %c0_128] : memref<160x512xf32, #tpu.memory_space<vmem>>, vector<8x512xf32>
    %485 = arith.truncf %481 : vector<8x128xf32> to vector<8x128xbf16>
    %c0_129 = arith.constant 0 : index
    %c0_130 = arith.constant 0 : index
    %c0_131 = arith.constant 0 : index
    %486 = vector.load %arg4[%c0_129, %c0_130, %c0_131] : memref<1x128x512xbf16, #tpu.memory_space<vmem>>, vector<1x128x512xbf16>
    %487 = vector.shape_cast %486 : vector<1x128x512xbf16> to vector<128x512xbf16>
    %cst_132 = arith.constant dense<0.000000e+00> : vector<8x512xf32>
    %488 = tpu.matmul %485, %487, %cst_132 {dimension_numbers = #tpu.dot_dimension_numbers<[1], [0], [0], [1], [0, 0, 1, 1], [], []>} : vector<8x128xbf16>, vector<128x512xbf16>, vector<8x512xf32> -> vector<8x512xf32>
    %489 = arith.addf %484, %488 : vector<8x512xf32>
    %490 = vector.extract_strided_slice %489 {offsets = [0, 0], sizes = [8, 128], strides = [1, 1]} : vector<8x512xf32> to vector<8x128xf32>
    %491 = arith.negf %490 : vector<8x128xf32>
    %492 = math.exp %491 : vector<8x128xf32>
    %cst_133 = arith.constant 1.000000e+00 : f32
    %493 = vector.broadcast %cst_133 : f32 to vector<8x128xf32>
    %494 = arith.addf %493, %492 : vector<8x128xf32>
    %495 = arith.divf %493, %494 : vector<8x128xf32>
    %496 = vector.extract_strided_slice %489 {offsets = [0, 128], sizes = [8, 128], strides = [1, 1]} : vector<8x512xf32> to vector<8x128xf32>
    %497 = arith.negf %496 : vector<8x128xf32>
    %498 = math.exp %497 : vector<8x128xf32>
    %cst_134 = arith.constant 1.000000e+00 : f32
    %499 = vector.broadcast %cst_134 : f32 to vector<8x128xf32>
    %500 = arith.addf %499, %498 : vector<8x128xf32>
    %501 = arith.divf %499, %500 : vector<8x128xf32>
    %502 = vector.extract_strided_slice %489 {offsets = [0, 256], sizes = [8, 128], strides = [1, 1]} : vector<8x512xf32> to vector<8x128xf32>
    %503 = math.tanh %502 : vector<8x128xf32>
    %504 = vector.extract_strided_slice %489 {offsets = [0, 384], sizes = [8, 128], strides = [1, 1]} : vector<8x512xf32> to vector<8x128xf32>
    %505 = arith.negf %504 : vector<8x128xf32>
    %506 = math.exp %505 : vector<8x128xf32>
    %cst_135 = arith.constant 1.000000e+00 : f32
    %507 = vector.broadcast %cst_135 : f32 to vector<8x128xf32>
    %508 = arith.addf %507, %506 : vector<8x128xf32>
    %509 = arith.divf %507, %508 : vector<8x128xf32>
    %510 = arith.mulf %501, %479 : vector<8x128xf32>
    %511 = arith.mulf %495, %503 : vector<8x128xf32>
    %512 = arith.addf %510, %511 : vector<8x128xf32>
    %513 = math.tanh %512 : vector<8x128xf32>
    %514 = arith.mulf %509, %513 : vector<8x128xf32>
    %515 = arith.select %10, %512, %514 : vector<8x128xf32>
    %516 = arith.addf %483, %515 : vector<8x128xf32>
    %c120 = arith.constant 120 : index
    %c0_136 = arith.constant 0 : index
    %517 = vector.load %arg8[%c120, %c0_136] : memref<160x512xf32, #tpu.memory_space<vmem>>, vector<8x512xf32>
    %518 = arith.truncf %514 : vector<8x128xf32> to vector<8x128xbf16>
    %c0_137 = arith.constant 0 : index
    %c0_138 = arith.constant 0 : index
    %c0_139 = arith.constant 0 : index
    %519 = vector.load %arg4[%c0_137, %c0_138, %c0_139] : memref<1x128x512xbf16, #tpu.memory_space<vmem>>, vector<1x128x512xbf16>
    %520 = vector.shape_cast %519 : vector<1x128x512xbf16> to vector<128x512xbf16>
    %cst_140 = arith.constant dense<0.000000e+00> : vector<8x512xf32>
    %521 = tpu.matmul %518, %520, %cst_140 {dimension_numbers = #tpu.dot_dimension_numbers<[1], [0], [0], [1], [0, 0, 1, 1], [], []>} : vector<8x128xbf16>, vector<128x512xbf16>, vector<8x512xf32> -> vector<8x512xf32>
    %522 = arith.addf %517, %521 : vector<8x512xf32>
    %523 = vector.extract_strided_slice %522 {offsets = [0, 0], sizes = [8, 128], strides = [1, 1]} : vector<8x512xf32> to vector<8x128xf32>
    %524 = arith.negf %523 : vector<8x128xf32>
    %525 = math.exp %524 : vector<8x128xf32>
    %cst_141 = arith.constant 1.000000e+00 : f32
    %526 = vector.broadcast %cst_141 : f32 to vector<8x128xf32>
    %527 = arith.addf %526, %525 : vector<8x128xf32>
    %528 = arith.divf %526, %527 : vector<8x128xf32>
    %529 = vector.extract_strided_slice %522 {offsets = [0, 128], sizes = [8, 128], strides = [1, 1]} : vector<8x512xf32> to vector<8x128xf32>
    %530 = arith.negf %529 : vector<8x128xf32>
    %531 = math.exp %530 : vector<8x128xf32>
    %cst_142 = arith.constant 1.000000e+00 : f32
    %532 = vector.broadcast %cst_142 : f32 to vector<8x128xf32>
    %533 = arith.addf %532, %531 : vector<8x128xf32>
    %534 = arith.divf %532, %533 : vector<8x128xf32>
    %535 = vector.extract_strided_slice %522 {offsets = [0, 256], sizes = [8, 128], strides = [1, 1]} : vector<8x512xf32> to vector<8x128xf32>
    %536 = math.tanh %535 : vector<8x128xf32>
    %537 = vector.extract_strided_slice %522 {offsets = [0, 384], sizes = [8, 128], strides = [1, 1]} : vector<8x512xf32> to vector<8x128xf32>
    %538 = arith.negf %537 : vector<8x128xf32>
    %539 = math.exp %538 : vector<8x128xf32>
    %cst_143 = arith.constant 1.000000e+00 : f32
    %540 = vector.broadcast %cst_143 : f32 to vector<8x128xf32>
    %541 = arith.addf %540, %539 : vector<8x128xf32>
    %542 = arith.divf %540, %541 : vector<8x128xf32>
    %543 = arith.mulf %534, %512 : vector<8x128xf32>
    %544 = arith.mulf %528, %536 : vector<8x128xf32>
    %545 = arith.addf %543, %544 : vector<8x128xf32>
    %546 = math.tanh %545 : vector<8x128xf32>
    %547 = arith.mulf %542, %546 : vector<8x128xf32>
    %548 = arith.select %10, %545, %547 : vector<8x128xf32>
    %549 = arith.addf %515, %548 : vector<8x128xf32>
    %c128 = arith.constant 128 : index
    %c0_144 = arith.constant 0 : index
    %550 = vector.load %arg8[%c128, %c0_144] : memref<160x512xf32, #tpu.memory_space<vmem>>, vector<8x512xf32>
    %551 = arith.truncf %547 : vector<8x128xf32> to vector<8x128xbf16>
    %c0_145 = arith.constant 0 : index
    %c0_146 = arith.constant 0 : index
    %c0_147 = arith.constant 0 : index
    %552 = vector.load %arg4[%c0_145, %c0_146, %c0_147] : memref<1x128x512xbf16, #tpu.memory_space<vmem>>, vector<1x128x512xbf16>
    %553 = vector.shape_cast %552 : vector<1x128x512xbf16> to vector<128x512xbf16>
    %cst_148 = arith.constant dense<0.000000e+00> : vector<8x512xf32>
    %554 = tpu.matmul %551, %553, %cst_148 {dimension_numbers = #tpu.dot_dimension_numbers<[1], [0], [0], [1], [0, 0, 1, 1], [], []>} : vector<8x128xbf16>, vector<128x512xbf16>, vector<8x512xf32> -> vector<8x512xf32>
    %555 = arith.addf %550, %554 : vector<8x512xf32>
    %556 = vector.extract_strided_slice %555 {offsets = [0, 0], sizes = [8, 128], strides = [1, 1]} : vector<8x512xf32> to vector<8x128xf32>
    %557 = arith.negf %556 : vector<8x128xf32>
    %558 = math.exp %557 : vector<8x128xf32>
    %cst_149 = arith.constant 1.000000e+00 : f32
    %559 = vector.broadcast %cst_149 : f32 to vector<8x128xf32>
    %560 = arith.addf %559, %558 : vector<8x128xf32>
    %561 = arith.divf %559, %560 : vector<8x128xf32>
    %562 = vector.extract_strided_slice %555 {offsets = [0, 128], sizes = [8, 128], strides = [1, 1]} : vector<8x512xf32> to vector<8x128xf32>
    %563 = arith.negf %562 : vector<8x128xf32>
    %564 = math.exp %563 : vector<8x128xf32>
    %cst_150 = arith.constant 1.000000e+00 : f32
    %565 = vector.broadcast %cst_150 : f32 to vector<8x128xf32>
    %566 = arith.addf %565, %564 : vector<8x128xf32>
    %567 = arith.divf %565, %566 : vector<8x128xf32>
    %568 = vector.extract_strided_slice %555 {offsets = [0, 256], sizes = [8, 128], strides = [1, 1]} : vector<8x512xf32> to vector<8x128xf32>
    %569 = math.tanh %568 : vector<8x128xf32>
    %570 = vector.extract_strided_slice %555 {offsets = [0, 384], sizes = [8, 128], strides = [1, 1]} : vector<8x512xf32> to vector<8x128xf32>
    %571 = arith.negf %570 : vector<8x128xf32>
    %572 = math.exp %571 : vector<8x128xf32>
    %cst_151 = arith.constant 1.000000e+00 : f32
    %573 = vector.broadcast %cst_151 : f32 to vector<8x128xf32>
    %574 = arith.addf %573, %572 : vector<8x128xf32>
    %575 = arith.divf %573, %574 : vector<8x128xf32>
    %576 = arith.mulf %567, %545 : vector<8x128xf32>
    %577 = arith.mulf %561, %569 : vector<8x128xf32>
    %578 = arith.addf %576, %577 : vector<8x128xf32>
    %579 = math.tanh %578 : vector<8x128xf32>
    %580 = arith.mulf %575, %579 : vector<8x128xf32>
    %581 = arith.select %10, %578, %580 : vector<8x128xf32>
    %582 = arith.addf %549, %581 : vector<8x128xf32>
    %c136 = arith.constant 136 : index
    %c0_152 = arith.constant 0 : index
    %583 = vector.load %arg8[%c136, %c0_152] : memref<160x512xf32, #tpu.memory_space<vmem>>, vector<8x512xf32>
    %584 = arith.truncf %580 : vector<8x128xf32> to vector<8x128xbf16>
    %c0_153 = arith.constant 0 : index
    %c0_154 = arith.constant 0 : index
    %c0_155 = arith.constant 0 : index
    %585 = vector.load %arg4[%c0_153, %c0_154, %c0_155] : memref<1x128x512xbf16, #tpu.memory_space<vmem>>, vector<1x128x512xbf16>
    %586 = vector.shape_cast %585 : vector<1x128x512xbf16> to vector<128x512xbf16>
    %cst_156 = arith.constant dense<0.000000e+00> : vector<8x512xf32>
    %587 = tpu.matmul %584, %586, %cst_156 {dimension_numbers = #tpu.dot_dimension_numbers<[1], [0], [0], [1], [0, 0, 1, 1], [], []>} : vector<8x128xbf16>, vector<128x512xbf16>, vector<8x512xf32> -> vector<8x512xf32>
    %588 = arith.addf %583, %587 : vector<8x512xf32>
    %589 = vector.extract_strided_slice %588 {offsets = [0, 0], sizes = [8, 128], strides = [1, 1]} : vector<8x512xf32> to vector<8x128xf32>
    %590 = arith.negf %589 : vector<8x128xf32>
    %591 = math.exp %590 : vector<8x128xf32>
    %cst_157 = arith.constant 1.000000e+00 : f32
    %592 = vector.broadcast %cst_157 : f32 to vector<8x128xf32>
    %593 = arith.addf %592, %591 : vector<8x128xf32>
    %594 = arith.divf %592, %593 : vector<8x128xf32>
    %595 = vector.extract_strided_slice %588 {offsets = [0, 128], sizes = [8, 128], strides = [1, 1]} : vector<8x512xf32> to vector<8x128xf32>
    %596 = arith.negf %595 : vector<8x128xf32>
    %597 = math.exp %596 : vector<8x128xf32>
    %cst_158 = arith.constant 1.000000e+00 : f32
    %598 = vector.broadcast %cst_158 : f32 to vector<8x128xf32>
    %599 = arith.addf %598, %597 : vector<8x128xf32>
    %600 = arith.divf %598, %599 : vector<8x128xf32>
    %601 = vector.extract_strided_slice %588 {offsets = [0, 256], sizes = [8, 128], strides = [1, 1]} : vector<8x512xf32> to vector<8x128xf32>
    %602 = math.tanh %601 : vector<8x128xf32>
    %603 = vector.extract_strided_slice %588 {offsets = [0, 384], sizes = [8, 128], strides = [1, 1]} : vector<8x512xf32> to vector<8x128xf32>
    %604 = arith.negf %603 : vector<8x128xf32>
    %605 = math.exp %604 : vector<8x128xf32>
    %cst_159 = arith.constant 1.000000e+00 : f32
    %606 = vector.broadcast %cst_159 : f32 to vector<8x128xf32>
    %607 = arith.addf %606, %605 : vector<8x128xf32>
    %608 = arith.divf %606, %607 : vector<8x128xf32>
    %609 = arith.mulf %600, %578 : vector<8x128xf32>
    %610 = arith.mulf %594, %602 : vector<8x128xf32>
    %611 = arith.addf %609, %610 : vector<8x128xf32>
    %612 = math.tanh %611 : vector<8x128xf32>
    %613 = arith.mulf %608, %612 : vector<8x128xf32>
    %614 = arith.select %10, %611, %613 : vector<8x128xf32>
    %615 = arith.addf %581, %614 : vector<8x128xf32>
    %c144 = arith.constant 144 : index
    %c0_160 = arith.constant 0 : index
    %616 = vector.load %arg8[%c144, %c0_160] : memref<160x512xf32, #tpu.memory_space<vmem>>, vector<8x512xf32>
    %617 = arith.truncf %613 : vector<8x128xf32> to vector<8x128xbf16>
    %c0_161 = arith.constant 0 : index
    %c0_162 = arith.constant 0 : index
    %c0_163 = arith.constant 0 : index
    %618 = vector.load %arg4[%c0_161, %c0_162, %c0_163] : memref<1x128x512xbf16, #tpu.memory_space<vmem>>, vector<1x128x512xbf16>
    %619 = vector.shape_cast %618 : vector<1x128x512xbf16> to vector<128x512xbf16>
    %cst_164 = arith.constant dense<0.000000e+00> : vector<8x512xf32>
    %620 = tpu.matmul %617, %619, %cst_164 {dimension_numbers = #tpu.dot_dimension_numbers<[1], [0], [0], [1], [0, 0, 1, 1], [], []>} : vector<8x128xbf16>, vector<128x512xbf16>, vector<8x512xf32> -> vector<8x512xf32>
    %621 = arith.addf %616, %620 : vector<8x512xf32>
    %622 = vector.extract_strided_slice %621 {offsets = [0, 0], sizes = [8, 128], strides = [1, 1]} : vector<8x512xf32> to vector<8x128xf32>
    %623 = arith.negf %622 : vector<8x128xf32>
    %624 = math.exp %623 : vector<8x128xf32>
    %cst_165 = arith.constant 1.000000e+00 : f32
    %625 = vector.broadcast %cst_165 : f32 to vector<8x128xf32>
    %626 = arith.addf %625, %624 : vector<8x128xf32>
    %627 = arith.divf %625, %626 : vector<8x128xf32>
    %628 = vector.extract_strided_slice %621 {offsets = [0, 128], sizes = [8, 128], strides = [1, 1]} : vector<8x512xf32> to vector<8x128xf32>
    %629 = arith.negf %628 : vector<8x128xf32>
    %630 = math.exp %629 : vector<8x128xf32>
    %cst_166 = arith.constant 1.000000e+00 : f32
    %631 = vector.broadcast %cst_166 : f32 to vector<8x128xf32>
    %632 = arith.addf %631, %630 : vector<8x128xf32>
    %633 = arith.divf %631, %632 : vector<8x128xf32>
    %634 = vector.extract_strided_slice %621 {offsets = [0, 256], sizes = [8, 128], strides = [1, 1]} : vector<8x512xf32> to vector<8x128xf32>
    %635 = math.tanh %634 : vector<8x128xf32>
    %636 = vector.extract_strided_slice %621 {offsets = [0, 384], sizes = [8, 128], strides = [1, 1]} : vector<8x512xf32> to vector<8x128xf32>
    %637 = arith.negf %636 : vector<8x128xf32>
    %638 = math.exp %637 : vector<8x128xf32>
    %cst_167 = arith.constant 1.000000e+00 : f32
    %639 = vector.broadcast %cst_167 : f32 to vector<8x128xf32>
    %640 = arith.addf %639, %638 : vector<8x128xf32>
    %641 = arith.divf %639, %640 : vector<8x128xf32>
    %642 = arith.mulf %633, %611 : vector<8x128xf32>
    %643 = arith.mulf %627, %635 : vector<8x128xf32>
    %644 = arith.addf %642, %643 : vector<8x128xf32>
    %645 = math.tanh %644 : vector<8x128xf32>
    %646 = arith.mulf %641, %645 : vector<8x128xf32>
    %647 = arith.select %10, %644, %646 : vector<8x128xf32>
    %648 = arith.addf %615, %647 : vector<8x128xf32>
    %649 = arith.index_cast %9 : i32 to index
    %c0_168 = arith.constant 0 : index
    %c0_169 = arith.constant 0 : index
    %650 = vector.load %arg9[%649, %c0_168, %c0_169] : memref<2x8x1152xf32, #tpu.memory_space<vmem>>, vector<1x8x1152xf32>
    %651 = vector.shape_cast %650 : vector<1x8x1152xf32> to vector<8x1152xf32>
    %652 = tpu.concatenate %120, %186, %252, %318, %384, %450, %516, %582, %648 in 1 : vector<8x128xf32>, vector<8x128xf32>, vector<8x128xf32>, vector<8x128xf32>, vector<8x128xf32>, vector<8x128xf32>, vector<8x128xf32>, vector<8x128xf32>, vector<8x128xf32> -> vector<8x1152xf32>
    %653 = arith.addf %651, %652 : vector<8x1152xf32>
    %654 = arith.index_cast %9 : i32 to index
    %c0_170 = arith.constant 0 : index
    %c0_171 = arith.constant 0 : index
    %655 = vector.load %arg9[%654, %c0_170, %c0_171] : memref<2x8x1152xf32, #tpu.memory_space<vmem>>, vector<1x8x1152xf32>
    %656 = vector.shape_cast %655 : vector<1x8x1152xf32> to vector<8x1152xf32>
    %657 = vector.shape_cast %653 : vector<8x1152xf32> to vector<1x8x1152xf32>
    tpu.vector_store %arg9[%654, %c0_170, %c0_171], %657 {strides = array<i32>} : memref<2x8x1152xf32, #tpu.memory_space<vmem>>, vector<1x8x1152xf32>,
    %c5_i32 = arith.constant 5 : i32
    %658 = arith.cmpi eq, %arg0, %c5_i32 : i32
    %659 = arith.extui %658 : i1 to i32
    %c0_i32_172 = arith.constant 0 : i32
    %660 = arith.cmpi ne, %659, %c0_i32_172 : i32
    scf.if %660 {
      %c0_173 = arith.constant 0 : index
      %c0_174 = arith.constant 0 : index
      %c0_175 = arith.constant 0 : index
      %661 = vector.load %arg9[%c0_173, %c0_174, %c0_175] : memref<2x8x1152xf32, #tpu.memory_space<vmem>>, vector<1x8x1152xf32>
      %662 = vector.shape_cast %661 : vector<1x8x1152xf32> to vector<8x1152xf32>
      %c1 = arith.constant 1 : index
      %c0_176 = arith.constant 0 : index
      %c0_177 = arith.constant 0 : index
      %663 = vector.load %arg9[%c1, %c0_176, %c0_177] : memref<2x8x1152xf32, #tpu.memory_space<vmem>>, vector<1x8x1152xf32>
      %664 = vector.shape_cast %663 : vector<1x8x1152xf32> to vector<8x1152xf32>
      %665 = tpu.concatenate %662, %664 in 1 : vector<8x1152xf32>, vector<8x1152xf32> -> vector<8x2304xf32>
      %c0_178 = arith.constant 0 : index
      %c0_179 = arith.constant 0 : index
      %666 = vector.load %arg5[%c0_178, %c0_179] : memref<2304x128xf32, #tpu.memory_space<vmem>>, vector<2304x128xf32>
      %cst_180 = arith.constant dense<0.000000e+00> : vector<8x128xf32>
      %667 = tpu.matmul %665, %666, %cst_180 {dimension_numbers = #tpu.dot_dimension_numbers<[1], [0], [0], [1], [0, 0, 1, 1], [], []>} : vector<8x2304xf32>, vector<2304x128xf32>, vector<8x128xf32> -> vector<8x128xf32>
      %c0_181 = arith.constant 0 : index
      %c0_182 = arith.constant 0 : index
      %668 = vector.load %arg6[%c0_181, %c0_182] : memref<1x128xf32, #tpu.memory_space<vmem>>, vector<1x128xf32>
      %669 = vector.broadcast %668 : vector<1x128xf32> to vector<8x128xf32>
      %670 = arith.addf %667, %669 : vector<8x128xf32>
      %c0_183 = arith.constant 0 : index
      %c0_184 = arith.constant 0 : index
      %671 = vector.load %arg7[%c0_183, %c0_184] : memref<8x128xf32, #tpu.memory_space<vmem>>, vector<8x128xf32>
      tpu.vector_store %arg7[%c0_183, %c0_184], %670 {strides = array<i32>} : memref<8x128xf32, #tpu.memory_space<vmem>>, vector<8x128xf32>,
    } else {
    }
    return
  }
  func.func @transform_0(%arg0: i32) -> (i32, i32) {
    %c0_i32 = arith.constant 0 : i32
    %c0_i32_0 = arith.constant 0 : i32
    %c0_i32_1 = arith.constant 0 : i32
    return %c0_i32, %c0_i32_0 : i32, i32
  }
  func.func @transform_1(%arg0: i32) -> (i32, i32) {
    %c0_i32 = arith.constant 0 : i32
    %c0_i32_0 = arith.constant 0 : i32
    return %c0_i32, %arg0 : i32, i32
  }
  func.func @transform_2(%arg0: i32) -> (i32, i32) {
    %c0_i32 = arith.constant 0 : i32
    %c0_i32_0 = arith.constant 0 : i32
    return %c0_i32, %arg0 : i32, i32
  }
  func.func @transform_3(%arg0: i32) -> (i32, i32, i32) {
    %c0_i32 = arith.constant 0 : i32
    %c0_i32_0 = arith.constant 0 : i32
    %c0_i32_1 = arith.constant 0 : i32
    return %arg0, %c0_i32, %c0_i32_0 : i32, i32, i32
  }
  func.func @transform_4(%arg0: i32) -> (i32, i32) {
    %c0_i32 = arith.constant 0 : i32
    %c0_i32_0 = arith.constant 0 : i32
    %c0_i32_1 = arith.constant 0 : i32
    return %c0_i32, %c0_i32_0 : i32, i32
  }
  func.func @transform_5(%arg0: i32) -> (i32, i32) {
    %c0_i32 = arith.constant 0 : i32
    %c0_i32_0 = arith.constant 0 : i32
    %c0_i32_1 = arith.constant 0 : i32
    return %c0_i32, %c0_i32_0 : i32, i32
  }
  func.func @transform_6(%arg0: i32) -> (i32, i32) {
    %c0_i32 = arith.constant 0 : i32
    %c0_i32_0 = arith.constant 0 : i32
    %c0_i32_1 = arith.constant 0 : i32
    return %c0_i32, %c0_i32_0 : i32, i32
  }
}

</mosaic_0001>

<llo_original>
// kernel: forward.1
$region0: #{forward.1}
  #allocation0 [shape = 'u32[]', space=smem, size = 0x4, offset = 0x4, fixed_abs, tag = 'smem constant byte address 0x4 - core index']
  #allocation1 [shape = 'u32[144,128]{1,0:T(1,128)}', space=vmem, size = 0x12000, scoped, tag = 'internal scratch']
  #allocation2 [shape = 'f32[160,512]{1,0:T(8,128)}', space=vmem, size = 0x50000, scoped, tag = 'scratch operand']
  #allocation3 [shape = 'f32[2,8,1152]{2,1,0:T(8,128)}', space=vmem, size = 0x12000, scoped, tag = 'scratch operand']
  %s0 = inlined_call_operand.vmem [shape: bf16[160,288], index: 0, kind: input, shape index: {}]
  %s1 = inlined_call_operand.hbm [shape: bf16[288,3072], index: 1, kind: input, shape index: {}]
  %s2 = inlined_call_operand.hbm [shape: f32[1,3072], index: 2, kind: input, shape index: {}]
  %s3 = inlined_call_operand.hbm [shape: bf16[6,128,512], index: 3, kind: input, shape index: {}]
  %s4 = inlined_call_operand.hbm [shape: f32[2304,128], index: 4, kind: input, shape index: {}]
  %s5 = inlined_call_operand.hbm [shape: f32[1,128], index: 5, kind: input, shape index: {}]
  %s6 = inlined_call_operand.vmem [shape: f32[8,128], index: 6, kind: output, shape index: {}]
  %s7 = sld [smem:[#allocation0]]
  $region85: #{forward.1} parent=0
    _
  %s9 = ssub.s32 1, %s7
  %s10 = scalar_select 0, %s9, %s7
  $region1: #{forward.1} parent=0
    #allocation4 [shape = 'u8[589824]{0}', space=vmem, size = 0x90000, scoped, tag = 'input window, operand 1']
    #allocation5 [shape = 's32[2]{0}', space=sflag, size = 0x8, scoped, tag = 'scoped memory for forward.1']
    #allocation6 [shape = 'u8[4096]{0}', space=vmem, size = 0x1000, scoped, tag = 'input window, operand 2']
    #allocation7 [shape = 's32[2]{0}', space=sflag, size = 0x8, scoped, tag = 'scoped memory for forward.1']
    #allocation8 [shape = 'u8[262144]{0}', space=vmem, size = 0x40000, scoped, tag = 'input window, operand 3']
    #allocation9 [shape = 'u8[1179648]{0}', space=vmem, size = 0x120000, scoped, tag = 'input window, operand 4, single buffered']
    #allocation10 [shape = 's32[1]{0}', space=sflag, size = 0x4, scoped, tag = 'scoped memory for forward.1']
    #allocation11 [shape = 'u8[512]{0}', space=vmem, size = 0x400, scoped, tag = 'input window, operand 5, single buffered']
    %11 = vsyncpa [#allocation5], 0
    %s12 = scalar_lea.sflag [#allocation5], 1
    %13 = vsyncpa %s12, 0
    %14 = vsyncpa [#allocation7], 0
    %s15 = scalar_lea.sflag [#allocation7], 1
    %16 = vsyncpa %s15, 0
    %17 = vsyncpa [#allocation10], 0
    loop: start=0, step=1, limit=8
    $region2: #{forward.1} parent=1 // loop_pre_header
      _
    $region3: #{forward.1} parent=1 // loop_header
      %s19 = sphi 0, %s23
      %p20 = scmp.ge.s32.totalorder %s19, 8
      %s27 = sphi 0, %s27
      %s29 = sphi 0, %s27
      %s30 = sphi 0, %s29
      %s44 = sphi 0, %s30
      %s50 = sphi 0, %s52
      %s53 = sphi 0, %s50
      %s54 = sphi 0, %s53
      %s70 = sphi 0, %s54
      %s76 = sphi 0, %s78
      %s79 = sphi 0, %s76
      %s80 = sphi 0, %s79
      %s96 = sphi 0, %s80
      %s102 = sphi 0, %s104
      %s105 = sphi 0, %s102
      %s106 = sphi 0, %s105
      %s122 = sphi 0, %s106
      %s126 = sphi 0, %s126
      %s128 = sphi 0, %s126
      %s129 = sphi 0, %s128
      %s143 = sphi 0, %s129
      %s147 = sphi 0, %s147
      %s149 = sphi 0, %s147
      %s150 = sphi 0, %s149
      %s164 = sphi 0, %s150
      %s168 = sphi 0, %s168
      %s170 = sphi 0, %s168
      %s171 = sphi 0, %s170
      %s185 = sphi 0, %s171
    $region4: #{forward.1} parent=1 // loop_header_branch
      %22 = sbr.rel (%p20) target = $region8
    $region5: #{forward.1} parent=1 // loop_body
      %s24 = ssub.s32 %s19, 1
      %s25 = ssub.s32 %s19, 2
      %s26 = sadd.s32 %s19, 1
      %s28 = sadd.s32 %s27, 1
      %p31 = scmp.eq.s32.totalorder %s19, 5
      %p32 = scmp.ne.s32.totalorder %s27, %s29
      %p33 = scmp.eq.s32.totalorder %s19, 0
      %p34 = por %p32, %p33
      %p35 = scmp.ne.s32.totalorder %s27, %s29
      %p36 = scmp.eq.s32.totalorder %s24, 5
      %p37 = por %p35, %p36
      %p38 = scmp.ne.s32.totalorder %s29, %s30
      %p39 = scmp.eq.s32.totalorder %s24, 0
      %p40 = por %p38, %p39
      %p41 = scmp.ne.s32.totalorder %s29, %s30
      %p42 = scmp.eq.s32.totalorder %s25, 5
      %p43 = por %p41, %p42
      %p45 = scmp.ne.s32.totalorder %s30, %s44
      %p46 = scmp.eq.s32.totalorder %s25, 0
      %p47 = por %p45, %p46
      %s48 = ssub.s32 %s19, %s26
      %p49 = scmp.eq.s32.totalorder %s48, 0
      %s51 = sadd.s32 %s50, 1
      %s52 = scalar_select %p49, %s50, %s51
      %p55 = pneg %p49
      %p56 = scmp.eq.s32.totalorder %s19, 5
      %p57 = por %p55, %p56
      %p58 = scmp.ne.s32.totalorder %s50, %s53
      %p59 = scmp.eq.s32.totalorder %s19, 0
      %p60 = por %p58, %p59
      %p61 = scmp.ne.s32.totalorder %s50, %s53
      %p62 = scmp.eq.s32.totalorder %s24, 5
      %p63 = por %p61, %p62
      %p64 = scmp.ne.s32.totalorder %s53, %s54
      %p65 = scmp.eq.s32.totalorder %s24, 0
      %p66 = por %p64, %p65
      %p67 = scmp.ne.s32.totalorder %s53, %s54
      %p68 = scmp.eq.s32.totalorder %s25, 5
      %p69 = por %p67, %p68
      %p71 = scmp.ne.s32.totalorder %s54, %s70
      %p72 = scmp.eq.s32.totalorder %s25, 0
      %p73 = por %p71, %p72
      %s74 = ssub.s32 %s19, %s26
      %p75 = scmp.eq.s32.totalorder %s74, 0
      %s77 = sadd.s32 %s76, 1
      %s78 = scalar_select %p75, %s76, %s77
      %p81 = pneg %p75
      %p82 = scmp.eq.s32.totalorder %s19, 5
      %p83 = por %p81, %p82
      %p84 = scmp.ne.s32.totalorder %s76, %s79
      %p85 = scmp.eq.s32.totalorder %s19, 0
      %p86 = por %p84, %p85
      %p87 = scmp.ne.s32.totalorder %s76, %s79
      %p88 = scmp.eq.s32.totalorder %s24, 5
      %p89 = por %p87, %p88
      %p90 = scmp.ne.s32.totalorder %s79, %s80
      %p91 = scmp.eq.s32.totalorder %s24, 0
      %p92 = por %p90, %p91
      %p93 = scmp.ne.s32.totalorder %s79, %s80
      %p94 = scmp.eq.s32.totalorder %s25, 5
      %p95 = por %p93, %p94
      %p97 = scmp.ne.s32.totalorder %s80, %s96
      %p98 = scmp.eq.s32.totalorder %s25, 0
      %p99 = por %p97, %p98
      %s100 = ssub.s32 %s19, %s26
      %p101 = scmp.eq.s32.totalorder %s100, 0
      %s103 = sadd.s32 %s102, 1
      %s104 = scalar_select %p101, %s102, %s103
      %p107 = pneg %p101
      %p108 = scmp.eq.s32.totalorder %s19, 5
      %p109 = por %p107, %p108
      %p110 = scmp.ne.s32.totalorder %s102, %s105
      %p111 = scmp.eq.s32.totalorder %s19, 0
      %p112 = por %p110, %p111
      %p113 = scmp.ne.s32.totalorder %s102, %s105
      %p114 = scmp.eq.s32.totalorder %s24, 5
      %p115 = por %p113, %p114
      %p116 = scmp.ne.s32.totalorder %s105, %s106
      %p117 = scmp.eq.s32.totalorder %s24, 0
      %p118 = por %p116, %p117
      %p119 = scmp.ne.s32.totalorder %s105, %s106
      %p120 = scmp.eq.s32.totalorder %s25, 5
      %p121 = por %p119, %p120
      %p123 = scmp.ne.s32.totalorder %s106, %s122
      %p124 = scmp.eq.s32.totalorder %s25, 0
      %p125 = por %p123, %p124
      %s127 = sadd.s32 %s126, 1
      %p130 = scmp.eq.s32.totalorder %s19, 5
      %p131 = scmp.ne.s32.totalorder %s126, %s128
      %p132 = scmp.eq.s32.totalorder %s19, 0
      %p133 = por %p131, %p132
      %p134 = scmp.ne.s32.totalorder %s126, %s128
      %p135 = scmp.eq.s32.totalorder %s24, 5
      %p136 = por %p134, %p135
      %p137 = scmp.ne.s32.totalorder %s128, %s129
      %p138 = scmp.eq.s32.totalorder %s24, 0
      %p139 = por %p137, %p138
      %p140 = scmp.ne.s32.totalorder %s128, %s129
      %p141 = scmp.eq.s32.totalorder %s25, 5
      %p142 = por %p140, %p141
      %p144 = scmp.ne.s32.totalorder %s129, %s143
      %p145 = scmp.eq.s32.totalorder %s25, 0
      %p146 = por %p144, %p145
      %s148 = sadd.s32 %s147, 1
      %p151 = scmp.eq.s32.totalorder %s19, 5
      %p152 = scmp.ne.s32.totalorder %s147, %s149
      %p153 = scmp.eq.s32.totalorder %s19, 0
      %p154 = por %p152, %p153
      %p155 = scmp.ne.s32.totalorder %s147, %s149
      %p156 = scmp.eq.s32.totalorder %s24, 5
      %p157 = por %p155, %p156
      %p158 = scmp.ne.s32.totalorder %s149, %s150
      %p159 = scmp.eq.s32.totalorder %s24, 0
      %p160 = por %p158, %p159
      %p161 = scmp.ne.s32.totalorder %s149, %s150
      %p162 = scmp.eq.s32.totalorder %s25, 5
      %p163 = por %p161, %p162
      %p165 = scmp.ne.s32.totalorder %s150, %s164
      %p166 = scmp.eq.s32.totalorder %s25, 0
      %p167 = por %p165, %p166
      %s169 = sadd.s32 %s168, 1
      %p172 = scmp.eq.s32.totalorder %s19, 5
      %p173 = scmp.ne.s32.totalorder %s168, %s170
      %p174 = scmp.eq.s32.totalorder %s19, 0
      %p175 = por %p173, %p174
      %p176 = scmp.ne.s32.totalorder %s168, %s170
      %p177 = scmp.eq.s32.totalorder %s24, 5
      %p178 = por %p176, %p177
      %p179 = scmp.ne.s32.totalorder %s170, %s171
      %p180 = scmp.eq.s32.totalorder %s24, 0
      %p181 = por %p179, %p180
      %p182 = scmp.ne.s32.totalorder %s170, %s171
      %p183 = scmp.eq.s32.totalorder %s25, 5
      %p184 = por %p182, %p183
      %p186 = scmp.ne.s32.totalorder %s171, %s185
      %p187 = scmp.eq.s32.totalorder %s25, 0
      %p188 = por %p186, %p187
      %p189 = scmp.le.s32.totalorder 1, %s19
      %p190 = scmp.lt.s32.totalorder %s19, 7
      %p191 = pnand %p189, %p190
      %p192 = pneg %p191
      // Predicated region
      $region9: #{forward.1} parent=5 // pred_check
        _
      $region10: #{forward.1} parent=5 // pred_check_branch
        %194 = sbr.rel (%p191) target = $region12
      $region11: #{forward.1} parent=5 // pred_region
        %s195 = ssub.s32 %s19, 1
        // Predicated region
        $region13: #{forward.1} parent=11 // pred_check
          %p196 = pneg %p40
        $region14: #{forward.1} parent=11 // pred_check_branch
          %198 = sbr.rel (%p196) target = $region16
        $region15: #{forward.1} parent=11 // pred_region
          _
        $region16: #{forward.1} parent=11 // pred_fallthru
          _
        // Predicated region
        $region17: #{forward.1} parent=11 // pred_check
          %p199 = pneg %p139
        $region18: #{forward.1} parent=11 // pred_check_branch
          %201 = sbr.rel (%p199) target = $region20
        $region19: #{forward.1} parent=11 // pred_region
          %s203 = ssub.s32 36864, 36864
          %204 = vsyncadd [#allocation10], %s203
          %s205 = sshll.u32 [#allocation9], 4
          %s206 = int_to_ptr.vmem [resolvable:$true] %s205
          %211 = dma.hbm_to_vmem [thread:$0]  %s4, 36864, %s206, [#allocation10], 128, 128, 8
        $region20: #{forward.1} parent=11 // pred_fallthru
          _
        // Predicated region
        $region21: #{forward.1} parent=11 // pred_check
          %p212 = pneg %p160
        $region22: #{forward.1} parent=11 // pred_check_branch
          %214 = sbr.rel (%p212) target = $region24
        $region23: #{forward.1} parent=11 // pred_region
          %s216 = ssub.s32 16, 16
          %217 = vsyncadd [#allocation10], %s216
          %s219 = sshll.u32 [#allocation11], 4
          %s220 = int_to_ptr.vmem [resolvable:$true] %s219
          %222 = dma.hbm_to_vmem [thread:$0]  %s5, 16, %s220, [#allocation10]
        $region24: #{forward.1} parent=11 // pred_fallthru
          _
      $region12: #{forward.1} parent=5 // pred_fallthru
        _
      %p223 = scmp.lt.s32.totalorder %s19, 6
      // Predicated region
      $region25: #{forward.1} parent=5 // pred_check
        %p224 = pneg %p223
      $region26: #{forward.1} parent=5 // pred_check_branch
        %226 = sbr.rel (%p224) target = $region28
      $region27: #{forward.1} parent=5 // pred_region
        // Predicated region
        $region29: #{forward.1} parent=27 // pred_check
          %p227 = pneg %p60
        $region30: #{forward.1} parent=27 // pred_check_branch
          %229 = sbr.rel (%p227) target = $region32
        $region31: #{forward.1} parent=27 // pred_region
          %s230 = sand.u32 %s50, 1
          %s231 = scalar_lea.sflag [#allocation5], %s230
          %s232 = sand.u32 %s50, 1
          %s233 = smul.addr %s232, 576
          %s234 = scalar_lea.vmem [#allocation4], %s233
          %s235 = smul.u32 4, %s19
          %s237 = ssub.s32 9216, 9216
          %238 = vsyncadd %s231, %s237
          %s239 = smul.addr %s235, 64
          %s240 = scalar_lea.hbm %s1, %s239
          %s241 = sshll.u32 %s234, 4
          %s242 = int_to_ptr.vmem [resolvable:$true] %s241
          %247 = dma.hbm_to_vmem [thread:$0]  %s240, 9216, %s242, %s231, 1536, 256, 16
        $region32: #{forward.1} parent=27 // pred_fallthru
          _
        // Predicated region
        $region33: #{forward.1} parent=27 // pred_check
          %p248 = pneg %p86
        $region34: #{forward.1} parent=27 // pred_check_branch
          %250 = sbr.rel (%p248) target = $region36
        $region35: #{forward.1} parent=27 // pred_region
          %s251 = sand.u32 %s19, 1
          %s252 = scalar_lea.sflag [#allocation7], %s251
          %s253 = sand.u32 %s76, 1
          %s254 = smul.addr %s253, 4
          %s255 = scalar_lea.vmem [#allocation6], %s254
          %s256 = smul.u32 4, %s19
          %s258 = ssub.s32 64, 64
          %259 = vsyncadd %s252, %s258
          %s260 = smul.addr %s256, 16
          %s261 = scalar_lea.hbm %s2, %s260
          %s263 = sshll.u32 %s255, 4
          %s264 = int_to_ptr.vmem [resolvable:$true] %s263
          %266 = dma.hbm_to_vmem [thread:$0]  %s261, 64, %s264, %s252
        $region36: #{forward.1} parent=27 // pred_fallthru
          _
        // Predicated region
        $region37: #{forward.1} parent=27 // pred_check
          %p267 = pneg %p112
        $region38: #{forward.1} parent=27 // pred_check_branch
          %269 = sbr.rel (%p267) target = $region40
        $region39: #{forward.1} parent=27 // pred_region
          %s270 = sand.u32 %s19, 1
          %s271 = scalar_lea.sflag [#allocation7], %s270
          %s272 = sand.u32 %s102, 1
          %s273 = smul.addr %s272, 256
          %s274 = scalar_lea.vmem [#allocation8], %s273
          %s276 = ssub.s32 4096, 4096
          %277 = vsyncadd %s271, %s276
          %s278 = smul.addr %s19, 64
          %s279 = smul.addr %s278, 64
          %s280 = scalar_lea.hbm %s3, %s279
          %s281 = sshll.u32 %s274, 4
          %s282 = int_to_ptr.vmem [resolvable:$true] %s281
          %287 = dma.hbm_to_vmem [thread:$0]  %s280, 4096, %s282, %s271, 256, 256, 16
        $region40: #{forward.1} parent=27 // pred_fallthru
          _
      $region28: #{forward.1} parent=5 // pred_fallthru
        _
      %p288 = scmp.le.s32.totalorder 1, %s19
      %p289 = scmp.lt.s32.totalorder %s19, 7
      %p290 = pnand %p288, %p289
      %p291 = pneg %p290
      // Predicated region
      $region41: #{forward.1} parent=5 // pred_check
        _
      $region42: #{forward.1} parent=5 // pred_check_branch
        %293 = sbr.rel (%p290) target = $region44
      $region43: #{forward.1} parent=5 // pred_region
        %s294 = ssub.s32 %s19, 1
        %s295 = sand.u32 %s53, 1
        %s296 = scalar_lea.sflag [#allocation5], %s295
        %s297 = sand.u32 %s53, 1
        %s298 = smul.addr %s297, 576
        %s299 = scalar_lea.vmem [#allocation4], %s298
        // Predicated region
        $region45: #{forward.1} parent=43 // pred_check
          %p300 = pneg %p66
        $region46: #{forward.1} parent=43 // pred_check_branch
          %302 = sbr.rel (%p300) target = $region48
        $region47: #{forward.1} parent=43 // pred_region
          %303 = dma.done %s296, 9216
        $region48: #{forward.1} parent=43 // pred_fallthru
          _
        %s304 = sand.u32 %s24, 1
        %s305 = scalar_lea.sflag [#allocation7], %s304
        %s306 = sand.u32 %s79, 1
        %s307 = smul.addr %s306, 4
        %s308 = scalar_lea.vmem [#allocation6], %s307
        // Predicated region
        $region49: #{forward.1} parent=43 // pred_check
          %p309 = pneg %p92
        $region50: #{forward.1} parent=43 // pred_check_branch
          %311 = sbr.rel (%p309) target = $region52
        $region51: #{forward.1} parent=43 // pred_region
          %312 = dma.done %s305, 64
        $region52: #{forward.1} parent=43 // pred_fallthru
          _
        %s313 = sand.u32 %s24, 1
        %s314 = scalar_lea.sflag [#allocation7], %s313
        %s315 = sand.u32 %s105, 1
        %s316 = smul.addr %s315, 256
        %s317 = scalar_lea.vmem [#allocation8], %s316
        // Predicated region
        $region53: #{forward.1} parent=43 // pred_check
          %p318 = pneg %p118
        $region54: #{forward.1} parent=43 // pred_check_branch
          %320 = sbr.rel (%p318) target = $region56
        $region55: #{forward.1} parent=43 // pred_region
          %321 = dma.done %s314, 4096
        $region56: #{forward.1} parent=43 // pred_fallthru
          _
        // Predicated region
        $region57: #{forward.1} parent=43 // pred_check
          %p322 = pneg %p139
        $region58: #{forward.1} parent=43 // pred_check_branch
          %324 = sbr.rel (%p322) target = $region60
        $region59: #{forward.1} parent=43 // pred_region
          %325 = dma.done [#allocation10], 36864
        $region60: #{forward.1} parent=43 // pred_fallthru
          _
        // Predicated region
        $region61: #{forward.1} parent=43 // pred_check
          %p326 = pneg %p160
        $region62: #{forward.1} parent=43 // pred_check_branch
          %328 = sbr.rel (%p326) target = $region64
        $region63: #{forward.1} parent=43 // pred_region
          %329 = dma.done [#allocation10], 16
        $region64: #{forward.1} parent=43 // pred_fallthru
          _
        %p330 = pneg %p40
        %p331 = pneg %p37
        %s332 = sand.u32 %s53, 1
        %s333 = scalar_lea.sflag [#allocation5], %s332
        %s334 = sand.u32 %s53, 1
        %s335 = smul.addr %s334, 576
        %s336 = scalar_lea.vmem [#allocation4], %s335
        %p337 = pneg %p66
        %p338 = pneg %p63
        %s339 = sand.u32 %s24, 1
        %s340 = scalar_lea.sflag [#allocation7], %s339
        %s341 = sand.u32 %s79, 1
        %s342 = smul.addr %s341, 4
        %s343 = scalar_lea.vmem [#allocation6], %s342
        %p344 = pneg %p92
        %p345 = pneg %p89
        %s346 = sand.u32 %s24, 1
        %s347 = scalar_lea.sflag [#allocation7], %s346
        %s348 = sand.u32 %s105, 1
        %s349 = smul.addr %s348, 256
        %s350 = scalar_lea.vmem [#allocation8], %s349
        %p351 = pneg %p118
        %p352 = pneg %p115
        %p353 = pneg %p139
        %p354 = pneg %p136
        %p355 = pneg %p160
        %p356 = pneg %p157
        %p357 = pneg %p181
        %p358 = pneg %p178
        %s359 = smul.u32 4, %s24
        %s360 = smul.u32 4, %s24
        %p362 = scmp.lt.s32.totalorder %s24, 0
        %s363 = ssub.s32 0, %s24
        %s364 = scalar_select %p362, %s363, %s24
        %s365 = sand.u32 %s364, 1
        %s366 = ssub.s32 0, %s365
        %s367 = scalar_select %p362, %s366, %s365
        %p368 = scmp.ne.s32.totalorder %s367, 0
        %p369 = scmp.lt.s32.totalorder %s367, 0
        %p370 = pnand %p369, %p368
        %p371 = pneg %p370
        %s372 = sadd.s32 %s367, 2
        %s373 = scalar_select %p371, %s372, %s367
        %p374 = scmp.eq.s32.totalorder %s24, 1
        %p375 = scmp.eq.s32.totalorder %s24, 0
        // Predicated region
        $region65: #{forward.1} parent=43 // pred_check
          %p376 = pneg %p375
        $region66: #{forward.1} parent=43 // pred_check_branch
          %378 = sbr.rel (%p376) target = $region68
        $region67: #{forward.1} parent=43 // pred_region
          %379 = vst [vmem:[#allocation3] sm:$0xff] 0.0
          %380 = vst [vmem:[#allocation3 + $0x8] sm:$0xff] 0.0
          %381 = vst [vmem:[#allocation3 + $0x10] sm:$0xff] 0.0
          %382 = vst [vmem:[#allocation3 + $0x18] sm:$0xff] 0.0
          %383 = vst [vmem:[#allocation3 + $0x20] sm:$0xff] 0.0
          %384 = vst [vmem:[#allocation3 + $0x28] sm:$0xff] 0.0
          %385 = vst [vmem:[#allocation3 + $0x30] sm:$0xff] 0.0
          %386 = vst [vmem:[#allocation3 + $0x38] sm:$0xff] 0.0
          %387 = vst [vmem:[#allocation3 + $0x40] sm:$0xff] 0.0
          %388 = vst [vmem:[#allocation3 + $0x48] sm:$0xff] 0.0
          %389 = vst [vmem:[#allocation3 + $0x50] sm:$0xff] 0.0
          %390 = vst [vmem:[#allocation3 + $0x58] sm:$0xff] 0.0
          %391 = vst [vmem:[#allocation3 + $0x60] sm:$0xff] 0.0
          %392 = vst [vmem:[#allocation3 + $0x68] sm:$0xff] 0.0
          %393 = vst [vmem:[#allocation3 + $0x70] sm:$0xff] 0.0
          %394 = vst [vmem:[#allocation3 + $0x78] sm:$0xff] 0.0
          %395 = vst [vmem:[#allocation3 + $0x80] sm:$0xff] 0.0
          %396 = vst [vmem:[#allocation3 + $0x88] sm:$0xff] 0.0
        $region68: #{forward.1} parent=43 // pred_fallthru
          _
        %v397 = vld [vmem:[%s0] sm:$0xff]
        %v398 = vld [vmem:[%s0 + $0x8] sm:$0xf]
        %v399 = vld [vmem:[%s0 + $0xc] sm:$0xff]
        %v400 = vld [vmem:[%s0 + $0x14] sm:$0xf]
        %v401 = vld [vmem:[%s0 + $0x18] sm:$0xff]
        %v402 = vld [vmem:[%s0 + $0x20] sm:$0xf]
        %v403 = vld [vmem:[%s0 + $0x24] sm:$0xff]
        %v404 = vld [vmem:[%s0 + $0x2c] sm:$0xf]
        %v405 = vld [vmem:[%s0 + $0x30] sm:$0xff]
        %v406 = vld [vmem:[%s0 + $0x38] sm:$0xf]
        %v407 = vld [vmem:[%s0 + $0x3c] sm:$0xff]
        %v408 = vld [vmem:[%s0 + $0x44] sm:$0xf]
        %v409 = vld [vmem:[%s0 + $0x48] sm:$0xff]
        %v410 = vld [vmem:[%s0 + $0x50] sm:$0xf]
        %v411 = vld [vmem:[%s0 + $0x54] sm:$0xff]
        %v412 = vld [vmem:[%s0 + $0x5c] sm:$0xf]
        %v413 = vld [vmem:[%s0 + $0x60] sm:$0xff]
        %v414 = vld [vmem:[%s0 + $0x68] sm:$0xf]
        %v415 = vld [vmem:[%s0 + $0x6c] sm:$0xff]
        %v416 = vld [vmem:[%s0 + $0x74] sm:$0xf]
        %v417 = vld [vmem:[%s0 + $0x78] sm:$0xff]
        %v418 = vld [vmem:[%s0 + $0x80] sm:$0xf]
        %v419 = vld [vmem:[%s0 + $0x84] sm:$0xff]
        %v420 = vld [vmem:[%s0 + $0x8c] sm:$0xf]
        %v421 = vld [vmem:[%s0 + $0x90] sm:$0xff]
        %v422 = vld [vmem:[%s0 + $0x98] sm:$0xf]
        %v423 = vld [vmem:[%s0 + $0x9c] sm:$0xff]
        %v424 = vld [vmem:[%s0 + $0xa4] sm:$0xf]
        %v425 = vld [vmem:[%s0 + $0xa8] sm:$0xff]
        %v426 = vld [vmem:[%s0 + $0xb0] sm:$0xf]
        %v427 = vld [vmem:[%s0 + $0xb4] sm:$0xff]
        %v428 = vld [vmem:[%s0 + $0xbc] sm:$0xf]
        %v429 = vld [vmem:[%s0 + $0xc0] sm:$0xff]
        %v430 = vld [vmem:[%s0 + $0xc8] sm:$0xf]
        %v431 = vld [vmem:[%s0 + $0xcc] sm:$0xff]
        %v432 = vld [vmem:[%s0 + $0xd4] sm:$0xf]
        %v433 = vld [vmem:[%s0 + $0xd8] sm:$0xff]
        %v434 = vld [vmem:[%s0 + $0xe0] sm:$0xf]
        %v435 = vld [vmem:[%s0 + $0xe4] sm:$0xff]
        %v436 = vld [vmem:[%s0 + $0xec] sm:$0xf]
        %v437 = vld [vmem:[%s299] sm:$0xff]
        %v438 = vld [vmem:[%s299 + $0x8] sm:$0xff]
        %v439 = vld [vmem:[%s299 + $0x10] sm:$0xff]
        %v440 = vld [vmem:[%s299 + $0x18] sm:$0xff]
        %v441 = vld [vmem:[%s299 + $0x20] sm:$0xff]
        %v442 = vld [vmem:[%s299 + $0x28] sm:$0xff]
        %v443 = vld [vmem:[%s299 + $0x30] sm:$0xff]
        %v444 = vld [vmem:[%s299 + $0x38] sm:$0xff]
        %v445 = vld [vmem:[%s299 + $0x40] sm:$0xff]
        %v446 = vld [vmem:[%s299 + $0x48] sm:$0xff]
        %v447 = vld [vmem:[%s299 + $0x50] sm:$0xff]
        %v448 = vld [vmem:[%s299 + $0x58] sm:$0xff]
        %v449 = vld [vmem:[%s299 + $0x60] sm:$0xff]
        %v450 = vld [vmem:[%s299 + $0x68] sm:$0xff]
        %v451 = vld [vmem:[%s299 + $0x70] sm:$0xff]
        %v452 = vld [vmem:[%s299 + $0x78] sm:$0xff]
        %v453 = vld [vmem:[%s299 + $0x80] sm:$0xff]
        %v454 = vld [vmem:[%s299 + $0x88] sm:$0xff]
        %v455 = vld [vmem:[%s299 + $0x90] sm:$0xff]
        %v456 = vld [vmem:[%s299 + $0x98] sm:$0xff]
        %v457 = vld [vmem:[%s299 + $0xa0] sm:$0xff]
        %v458 = vld [vmem:[%s299 + $0xa8] sm:$0xff]
        %v459 = vld [vmem:[%s299 + $0xb0] sm:$0xff]
        %v460 = vld [vmem:[%s299 + $0xb8] sm:$0xff]
        %v461 = vld [vmem:[%s299 + $0xc0] sm:$0xff]
        %v462 = vld [vmem:[%s299 + $0xc8] sm:$0xff]
        %v463 = vld [vmem:[%s299 + $0xd0] sm:$0xff]
        %v464 = vld [vmem:[%s299 + $0xd8] sm:$0xff]
        %v465 = vld [vmem:[%s299 + $0xe0] sm:$0xff]
        %v466 = vld [vmem:[%s299 + $0xe8] sm:$0xff]
        %v467 = vld [vmem:[%s299 + $0xf0] sm:$0xff]
        %v468 = vld [vmem:[%s299 + $0xf8] sm:$0xff]
        %v469 = vld [vmem:[%s299 + $0x100] sm:$0xff]
        %v470 = vld [vmem:[%s299 + $0x108] sm:$0xff]
        %v471 = vld [vmem:[%s299 + $0x110] sm:$0xff]
        %v472 = vld [vmem:[%s299 + $0x118] sm:$0xff]
        %v473 = vld [vmem:[%s299 + $0x120] sm:$0xff]
        %v474 = vld [vmem:[%s299 + $0x128] sm:$0xff]
        %v475 = vld [vmem:[%s299 + $0x130] sm:$0xff]
        %v476 = vld [vmem:[%s299 + $0x138] sm:$0xff]
        %v477 = vld [vmem:[%s299 + $0x140] sm:$0xff]
        %v478 = vld [vmem:[%s299 + $0x148] sm:$0xff]
        %v479 = vld [vmem:[%s299 + $0x150] sm:$0xff]
        %v480 = vld [vmem:[%s299 + $0x158] sm:$0xff]
        %v481 = vld [vmem:[%s299 + $0x160] sm:$0xff]
        %v482 = vld [vmem:[%s299 + $0x168] sm:$0xff]
        %v483 = vld [vmem:[%s299 + $0x170] sm:$0xff]
        %v484 = vld [vmem:[%s299 + $0x178] sm:$0xff]
        %v485 = vld [vmem:[%s299 + $0x180] sm:$0xff]
        %v486 = vld [vmem:[%s299 + $0x188] sm:$0xff]
        %v487 = vld [vmem:[%s299 + $0x190] sm:$0xff]
        %v488 = vld [vmem:[%s299 + $0x198] sm:$0xff]
        %v489 = vld [vmem:[%s299 + $0x1a0] sm:$0xff]
        %v490 = vld [vmem:[%s299 + $0x1a8] sm:$0xff]
        %v491 = vld [vmem:[%s299 + $0x1b0] sm:$0xff]
        %v492 = vld [vmem:[%s299 + $0x1b8] sm:$0xff]
        %v493 = vld [vmem:[%s299 + $0x1c0] sm:$0xff]
        %v494 = vld [vmem:[%s299 + $0x1c8] sm:$0xff]
        %v495 = vld [vmem:[%s299 + $0x1d0] sm:$0xff]
        %v496 = vld [vmem:[%s299 + $0x1d8] sm:$0xff]
        %v497 = vld [vmem:[%s299 + $0x1e0] sm:$0xff]
        %v498 = vld [vmem:[%s299 + $0x1e8] sm:$0xff]
        %v499 = vld [vmem:[%s299 + $0x1f0] sm:$0xff]
        %v500 = vld [vmem:[%s299 + $0x1f8] sm:$0xff]
        %v501 = vld [vmem:[%s299 + $0x200] sm:$0xff]
        %v502 = vld [vmem:[%s299 + $0x208] sm:$0xff]
        %v503 = vld [vmem:[%s299 + $0x210] sm:$0xff]
        %v504 = vld [vmem:[%s299 + $0x218] sm:$0xff]
        %v505 = vld [vmem:[%s299 + $0x220] sm:$0xff]
        %v506 = vld [vmem:[%s299 + $0x228] sm:$0xff]
        %v507 = vld [vmem:[%s299 + $0x230] sm:$0xff]
        %v508 = vld [vmem:[%s299 + $0x238] sm:$0xff]
        %v509 = vld [vmem:[%s308] sm:$0xf]
        %v511 = vlaneseq
        %v512 = vshrl.u32 %v511, 7
        %v513 = vsub.s32 0, %v512
        %v514 = vrot.slane %v509, %v513
        %v515 = vlaneseq
        %v516 = vshrl.u32 %v515, 7
        %v517 = vsub.s32 1, %v516
        %v518 = vrot.slane %v509, %v517
        %v519 = vlaneseq
        %v520 = vshrl.u32 %v519, 7
        %v521 = vsub.s32 2, %v520
        %v522 = vrot.slane %v509, %v521
        %v523 = vlaneseq
        %v524 = vshrl.u32 %v523, 7
        %v525 = vsub.s32 3, %v524
        %v526 = vrot.slane %v509, %v525
        %v571 = vunpack.c.l.b16 %v397
        %v572 = vunpack.c.h.b16 %v397
        %v573 = vunpack.c.l.b16 %v398
        %v574 = vunpack.c.l.b16 %v399
        %v575 = vunpack.c.h.b16 %v399
        %v576 = vunpack.c.l.b16 %v400
        %v577 = vunpack.c.l.b16 %v401
        %v578 = vunpack.c.h.b16 %v401
        %v579 = vunpack.c.l.b16 %v402
        %v580 = vunpack.c.l.b16 %v403
        %v581 = vunpack.c.h.b16 %v403
        %v582 = vunpack.c.l.b16 %v404
        %v583 = vunpack.c.l.b16 %v405
        %v584 = vunpack.c.h.b16 %v405
        %v585 = vunpack.c.l.b16 %v406
        %v586 = vunpack.c.l.b16 %v407
        %v587 = vunpack.c.h.b16 %v407
        %v588 = vunpack.c.l.b16 %v408
        %v589 = vunpack.c.l.b16 %v409
        %v590 = vunpack.c.h.b16 %v409
        %v591 = vunpack.c.l.b16 %v410
        %v592 = vunpack.c.l.b16 %v411
        %v593 = vunpack.c.h.b16 %v411
        %v594 = vunpack.c.l.b16 %v412
        %v595 = vunpack.c.l.b16 %v413
        %v596 = vunpack.c.h.b16 %v413
        %v597 = vunpack.c.l.b16 %v414
        %v598 = vunpack.c.l.b16 %v415
        %v599 = vunpack.c.h.b16 %v415
        %v600 = vunpack.c.l.b16 %v416
        %v601 = vunpack.c.l.b16 %v417
        %v602 = vunpack.c.h.b16 %v417
        %v603 = vunpack.c.l.b16 %v418
        %v604 = vunpack.c.l.b16 %v419
        %v605 = vunpack.c.h.b16 %v419
        %v606 = vunpack.c.l.b16 %v420
        %v607 = vunpack.c.l.b16 %v421
        %v608 = vunpack.c.h.b16 %v421
        %v609 = vunpack.c.l.b16 %v422
        %v610 = vunpack.c.l.b16 %v423
        %v611 = vunpack.c.h.b16 %v423
        %v612 = vunpack.c.l.b16 %v424
        %v613 = vunpack.c.l.b16 %v425
        %v614 = vunpack.c.h.b16 %v425
        %v615 = vunpack.c.l.b16 %v426
        %v616 = vunpack.c.l.b16 %v427
        %v617 = vunpack.c.h.b16 %v427
        %v618 = vunpack.c.l.b16 %v428
        %v619 = vunpack.c.l.b16 %v429
        %v620 = vunpack.c.h.b16 %v429
        %v621 = vunpack.c.l.b16 %v430
        %v622 = vunpack.c.l.b16 %v431
        %v623 = vunpack.c.h.b16 %v431
        %v624 = vunpack.c.l.b16 %v432
        %v625 = vunpack.c.l.b16 %v433
        %v626 = vunpack.c.h.b16 %v433
        %v627 = vunpack.c.l.b16 %v434
        %v628 = vunpack.c.l.b16 %v435
        %v629 = vunpack.c.h.b16 %v435
        %v630 = vunpack.c.l.b16 %v436
        %v631 = vpack.c.b16 %v574, %v571
        %v632 = vpack.c.b16 %v575, %v572
        %v633 = vpack.c.b16 %v576, %v573
        %v634 = vpack.c.b16 %v580, %v577
        %v635 = vpack.c.b16 %v581, %v578
        %v636 = vpack.c.b16 %v582, %v579
        %v637 = vpack.c.b16 %v586, %v583
        %v638 = vpack.c.b16 %v587, %v584
        %v639 = vpack.c.b16 %v588, %v585
        %v640 = vpack.c.b16 %v592, %v589
        %v641 = vpack.c.b16 %v593, %v590
        %v642 = vpack.c.b16 %v594, %v591
        %v643 = vpack.c.b16 %v598, %v595
        %v644 = vpack.c.b16 %v599, %v596
        %v645 = vpack.c.b16 %v600, %v597
        %v646 = vpack.c.b16 %v604, %v601
        %v647 = vpack.c.b16 %v605, %v602
        %v648 = vpack.c.b16 %v606, %v603
        %v649 = vpack.c.b16 %v610, %v607
        %v650 = vpack.c.b16 %v611, %v608
        %v651 = vpack.c.b16 %v612, %v609
        %v652 = vpack.c.b16 %v616, %v613
        %v653 = vpack.c.b16 %v617, %v614
        %v654 = vpack.c.b16 %v618, %v615
        %v655 = vpack.c.b16 %v622, %v619
        %v656 = vpack.c.b16 %v623, %v620
        %v657 = vpack.c.b16 %v624, %v621
        %v658 = vpack.c.b16 %v628, %v625
        %v659 = vpack.c.b16 %v629, %v626
        %v660 = vpack.c.b16 %v630, %v627
        %v753 = vunpack.c.l.b16 %v437
        %v754 = vunpack.c.h.b16 %v437
        %v755 = vunpack.c.l.b16 %v438
        %v756 = vunpack.c.h.b16 %v438
        %v757 = vunpack.c.l.b16 %v439
        %v758 = vunpack.c.h.b16 %v439
        %v759 = vunpack.c.l.b16 %v440
        %v760 = vunpack.c.h.b16 %v440
        %v761 = vunpack.c.l.b16 %v441
        %v762 = vunpack.c.h.b16 %v441
        %v763 = vunpack.c.l.b16 %v442
        %v764 = vunpack.c.h.b16 %v442
        %v765 = vunpack.c.l.b16 %v443
        %v766 = vunpack.c.h.b16 %v443
        %v767 = vunpack.c.l.b16 %v444
        %v768 = vunpack.c.h.b16 %v444
        %v769 = vunpack.c.l.b16 %v445
        %v770 = vunpack.c.h.b16 %v445
        %v771 = vunpack.c.l.b16 %v446
        %v772 = vunpack.c.h.b16 %v446
        %v773 = vunpack.c.l.b16 %v447
        %v774 = vunpack.c.h.b16 %v447
        %v775 = vunpack.c.l.b16 %v448
        %v776 = vunpack.c.h.b16 %v448
        %v777 = vunpack.c.l.b16 %v449
        %v778 = vunpack.c.h.b16 %v449
        %v779 = vunpack.c.l.b16 %v450
        %v780 = vunpack.c.h.b16 %v450
        %v781 = vunpack.c.l.b16 %v451
        %v782 = vunpack.c.h.b16 %v451
        %v783 = vunpack.c.l.b16 %v452
        %v784 = vunpack.c.h.b16 %v452
        %v785 = vunpack.c.l.b16 %v453
        %v786 = vunpack.c.h.b16 %v453
        %v787 = vunpack.c.l.b16 %v454
        %v788 = vunpack.c.h.b16 %v454
        %v789 = vunpack.c.l.b16 %v455
        %v790 = vunpack.c.h.b16 %v455
        %v791 = vunpack.c.l.b16 %v456
        %v792 = vunpack.c.h.b16 %v456
        %v793 = vunpack.c.l.b16 %v457
        %v794 = vunpack.c.h.b16 %v457
        %v795 = vunpack.c.l.b16 %v458
        %v796 = vunpack.c.h.b16 %v458
        %v797 = vunpack.c.l.b16 %v459
        %v798 = vunpack.c.h.b16 %v459
        %v799 = vunpack.c.l.b16 %v460
        %v800 = vunpack.c.h.b16 %v460
        %v801 = vunpack.c.l.b16 %v461
        %v802 = vunpack.c.h.b16 %v461
        %v803 = vunpack.c.l.b16 %v462
        %v804 = vunpack.c.h.b16 %v462
        %v805 = vunpack.c.l.b16 %v463
        %v806 = vunpack.c.h.b16 %v463
        %v807 = vunpack.c.l.b16 %v464
        %v808 = vunpack.c.h.b16 %v464
        %v809 = vunpack.c.l.b16 %v465
        %v810 = vunpack.c.h.b16 %v465
        %v811 = vunpack.c.l.b16 %v466
        %v812 = vunpack.c.h.b16 %v466
        %v813 = vunpack.c.l.b16 %v467
        %v814 = vunpack.c.h.b16 %v467
        %v815 = vunpack.c.l.b16 %v468
        %v816 = vunpack.c.h.b16 %v468
        %v817 = vunpack.c.l.b16 %v469
        %v818 = vunpack.c.h.b16 %v469
        %v819 = vunpack.c.l.b16 %v470
        %v820 = vunpack.c.h.b16 %v470
        %v821 = vunpack.c.l.b16 %v471
        %v822 = vunpack.c.h.b16 %v471
        %v823 = vunpack.c.l.b16 %v472
        %v824 = vunpack.c.h.b16 %v472
        %v825 = vunpack.c.l.b16 %v473
        %v826 = vunpack.c.h.b16 %v473
        %v827 = vunpack.c.l.b16 %v474
        %v828 = vunpack.c.h.b16 %v474
        %v829 = vunpack.c.l.b16 %v475
        %v830 = vunpack.c.h.b16 %v475
        %v831 = vunpack.c.l.b16 %v476
        %v832 = vunpack.c.h.b16 %v476
        %v833 = vunpack.c.l.b16 %v477
        %v834 = vunpack.c.h.b16 %v477
        %v835 = vunpack.c.l.b16 %v478
        %v836 = vunpack.c.h.b16 %v478
        %v837 = vunpack.c.l.b16 %v479
        %v838 = vunpack.c.h.b16 %v479
        %v839 = vunpack.c.l.b16 %v480
        %v840 = vunpack.c.h.b16 %v480
        %v841 = vunpack.c.l.b16 %v481
        %v842 = vunpack.c.h.b16 %v481
        %v843 = vunpack.c.l.b16 %v482
        %v844 = vunpack.c.h.b16 %v482
        %v845 = vunpack.c.l.b16 %v483
        %v846 = vunpack.c.h.b16 %v483
        %v847 = vunpack.c.l.b16 %v484
        %v848 = vunpack.c.h.b16 %v484
        %v849 = vunpack.c.l.b16 %v485
        %v850 = vunpack.c.h.b16 %v485
        %v851 = vunpack.c.l.b16 %v486
        %v852 = vunpack.c.h.b16 %v486
        %v853 = vunpack.c.l.b16 %v487
        %v854 = vunpack.c.h.b16 %v487
        %v855 = vunpack.c.l.b16 %v488
        %v856 = vunpack.c.h.b16 %v488
        %v857 = vunpack.c.l.b16 %v489
        %v858 = vunpack.c.h.b16 %v489
        %v859 = vunpack.c.l.b16 %v490
        %v860 = vunpack.c.h.b16 %v490
        %v861 = vunpack.c.l.b16 %v491
        %v862 = vunpack.c.h.b16 %v491
        %v863 = vunpack.c.l.b16 %v492
        %v864 = vunpack.c.h.b16 %v492
        %v865 = vunpack.c.l.b16 %v493
        %v866 = vunpack.c.h.b16 %v493
        %v867 = vunpack.c.l.b16 %v494
        %v868 = vunpack.c.h.b16 %v494
        %v869 = vunpack.c.l.b16 %v495
        %v870 = vunpack.c.h.b16 %v495
        %v871 = vunpack.c.l.b16 %v496
        %v872 = vunpack.c.h.b16 %v496
        %v873 = vunpack.c.l.b16 %v497
        %v874 = vunpack.c.h.b16 %v497
        %v875 = vunpack.c.l.b16 %v498
        %v876 = vunpack.c.h.b16 %v498
        %v877 = vunpack.c.l.b16 %v499
        %v878 = vunpack.c.h.b16 %v499
        %v879 = vunpack.c.l.b16 %v500
        %v880 = vunpack.c.h.b16 %v500
        %v881 = vunpack.c.l.b16 %v501
        %v882 = vunpack.c.h.b16 %v501
        %v883 = vunpack.c.l.b16 %v502
        %v884 = vunpack.c.h.b16 %v502
        %v885 = vunpack.c.l.b16 %v503
        %v886 = vunpack.c.h.b16 %v503
        %v887 = vunpack.c.l.b16 %v504
        %v888 = vunpack.c.h.b16 %v504
        %v889 = vunpack.c.l.b16 %v505
        %v890 = vunpack.c.h.b16 %v505
        %v891 = vunpack.c.l.b16 %v506
        %v892 = vunpack.c.h.b16 %v506
        %v893 = vunpack.c.l.b16 %v507
        %v894 = vunpack.c.h.b16 %v507
        %v895 = vunpack.c.l.b16 %v508
        %v896 = vunpack.c.h.b16 %v508
        %v897 = vpack.c.b16 %v757, %v753
        %v898 = vpack.c.b16 %v758, %v754
        %v899 = vpack.c.b16 %v759, %v755
        %v900 = vpack.c.b16 %v760, %v756
        %v901 = vpack.c.b16 %v765, %v761
        %v902 = vpack.c.b16 %v766, %v762
        %v903 = vpack.c.b16 %v767, %v763
        %v904 = vpack.c.b16 %v768, %v764
        %v905 = vpack.c.b16 %v773, %v769
        %v906 = vpack.c.b16 %v774, %v770
        %v907 = vpack.c.b16 %v775, %v771
        %v908 = vpack.c.b16 %v776, %v772
        %v909 = vpack.c.b16 %v781, %v777
        %v910 = vpack.c.b16 %v782, %v778
        %v911 = vpack.c.b16 %v783, %v779
        %v912 = vpack.c.b16 %v784, %v780
        %v913 = vpack.c.b16 %v789, %v785
        %v914 = vpack.c.b16 %v790, %v786
        %v915 = vpack.c.b16 %v791, %v787
        %v916 = vpack.c.b16 %v792, %v788
        %v917 = vpack.c.b16 %v797, %v793
        %v918 = vpack.c.b16 %v798, %v794
        %v919 = vpack.c.b16 %v799, %v795
        %v920 = vpack.c.b16 %v800, %v796
        %v921 = vpack.c.b16 %v805, %v801
        %v922 = vpack.c.b16 %v806, %v802
        %v923 = vpack.c.b16 %v807, %v803
        %v924 = vpack.c.b16 %v808, %v804
        %v925 = vpack.c.b16 %v813, %v809
        %v926 = vpack.c.b16 %v814, %v810
        %v927 = vpack.c.b16 %v815, %v811
        %v928 = vpack.c.b16 %v816, %v812
        %v929 = vpack.c.b16 %v821, %v817
        %v930 = vpack.c.b16 %v822, %v818
        %v931 = vpack.c.b16 %v823, %v819
        %v932 = vpack.c.b16 %v824, %v820
        %v933 = vpack.c.b16 %v829, %v825
        %v934 = vpack.c.b16 %v830, %v826
        %v935 = vpack.c.b16 %v831, %v827
        %v936 = vpack.c.b16 %v832, %v828
        %v937 = vpack.c.b16 %v837, %v833
        %v938 = vpack.c.b16 %v838, %v834
        %v939 = vpack.c.b16 %v839, %v835
        %v940 = vpack.c.b16 %v840, %v836
        %v941 = vpack.c.b16 %v845, %v841
        %v942 = vpack.c.b16 %v846, %v842
        %v943 = vpack.c.b16 %v847, %v843
        %v944 = vpack.c.b16 %v848, %v844
        %v945 = vpack.c.b16 %v853, %v849
        %v946 = vpack.c.b16 %v854, %v850
        %v947 = vpack.c.b16 %v855, %v851
        %v948 = vpack.c.b16 %v856, %v852
        %v949 = vpack.c.b16 %v861, %v857
        %v950 = vpack.c.b16 %v862, %v858
        %v951 = vpack.c.b16 %v863, %v859
        %v952 = vpack.c.b16 %v864, %v860
        %v953 = vpack.c.b16 %v869, %v865
        %v954 = vpack.c.b16 %v870, %v866
        %v955 = vpack.c.b16 %v871, %v867
        %v956 = vpack.c.b16 %v872, %v868
        %v957 = vpack.c.b16 %v877, %v873
        %v958 = vpack.c.b16 %v878, %v874
        %v959 = vpack.c.b16 %v879, %v875
        %v960 = vpack.c.b16 %v880, %v876
        %v961 = vpack.c.b16 %v885, %v881
        %v962 = vpack.c.b16 %v886, %v882
        %v963 = vpack.c.b16 %v887, %v883
        %v964 = vpack.c.b16 %v888, %v884
        %v965 = vpack.c.b16 %v893, %v889
        %v966 = vpack.c.b16 %v894, %v890
        %v967 = vpack.c.b16 %v895, %v891
        %v968 = vpack.c.b16 %v896, %v892
        %vm1041 = vcmask 261120
        %v1043 = vsel %vm1041, %v633, 0
        %v1046 = vsel %vm1041, %v636, 0
        %v1049 = vsel %vm1041, %v639, 0
        %v1052 = vsel %vm1041, %v642, 0
        %v1055 = vsel %vm1041, %v645, 0
        %v1058 = vsel %vm1041, %v648, 0
        %v1061 = vsel %vm1041, %v651, 0
        %v1064 = vsel %vm1041, %v654, 0
        %v1067 = vsel %vm1041, %v657, 0
        %v1070 = vsel %vm1041, %v660, 0
        %1072 = vmatprep.subr.bf16.mxu0 %v898
        %1073 = vmatpush1.bf16.msra.mxu0 %v897
        %1074 = vmatprep.subr.bf16.mxu0 %v902
        %1075 = vmatpush1.bf16.msra.mxu0 %v901
        %1076 = vmatprep.subr.bf16.mxu0 %v906
        %1077 = vmatpush1.bf16.msra.mxu0 %v905
        %1078 = vmatprep.subr.bf16.mxu0 %v910
        %1079 = vmatpush1.bf16.msra.mxu0 %v909
        %1080 = vmatprep.subr.bf16.mxu0 %v914
        %1081 = vmatpush1.bf16.msra.mxu0 %v913
        %1082 = vmatprep.subr.bf16.mxu0 %v918
        %1083 = vmatpush1.bf16.msra.mxu0 %v917
        %1084 = vmatprep.subr.bf16.mxu0 %v922
        %1085 = vmatpush1.bf16.msra.mxu0 %v921
        %1086 = vmatprep.subr.bf16.mxu0 %v926
        %1087 = vmatpush1.bf16.msra.mxu0 %v925
        %1088 = vmatprep.subr.bf16.mxu0 %v930
        %1089 = vmatpush1.bf16.msra.mxu0 %v929
        %1090 = vmatprep.subr.bf16.mxu0 %v934
        %1091 = vmatpush1.bf16.msra.mxu0 %v933
        %1092 = vmatprep.subr.bf16.mxu0 %v938
        %1093 = vmatpush1.bf16.msra.mxu0 %v937
        %1094 = vmatprep.subr.bf16.mxu0 %v942
        %1095 = vmatpush1.bf16.msra.mxu0 %v941
        %1096 = vmatprep.subr.bf16.mxu0 %v946
        %1097 = vmatpush1.bf16.msra.mxu0 %v945
        %1098 = vmatprep.subr.bf16.mxu0 %v950
        %1099 = vmatpush1.bf16.msra.mxu0 %v949
        %1100 = vmatprep.subr.bf16.mxu0 %v954
        %1101 = vmatpush1.bf16.msra.mxu0 %v953
        %1102 = vmatprep.subr.bf16.mxu0 %v958
        %1103 = vmatpush1.bf16.msra.mxu0 %v957
        %1104 = vmatprep.mubr.bf16.mxu0 %v632
        %1105 = vmatmul.mubr.bf16.gmra.mrb[0].mxu0 %v631
        %v1106 = vpop.f32.mrb[0].mxu0
        %v1107 = vadd.f32 %v514, %v1106
        %v1108 = vpop.f32.mrb[0].mxu0
        %v1109 = vadd.f32 %v518, %v1108
        %v1110 = vpop.f32.mrb[0].mxu0
        %v1111 = vadd.f32 %v514, %v1110
        %v1112 = vpop.f32.mrb[0].mxu0
        %v1113 = vadd.f32 %v518, %v1112
        %1114 = vmatprep.mubr.bf16.mxu0 %v635
        %1115 = vmatmul.mubr.bf16.gmra.mrb[0].mxu0 %v634
        %v1116 = vpop.f32.mrb[0].mxu0
        %v1117 = vadd.f32 %v514, %v1116
        %v1118 = vpop.f32.mrb[0].mxu0
        %v1119 = vadd.f32 %v518, %v1118
        %v1120 = vpop.f32.mrb[0].mxu0
        %v1121 = vadd.f32 %v514, %v1120
        %v1122 = vpop.f32.mrb[0].mxu0
        %v1123 = vadd.f32 %v518, %v1122
        %1124 = vmatprep.mubr.bf16.mxu0 %v638
        %1125 = vmatmul.mubr.bf16.gmra.mrb[0].mxu0 %v637
        %v1126 = vpop.f32.mrb[0].mxu0
        %v1127 = vadd.f32 %v514, %v1126
        %v1128 = vpop.f32.mrb[0].mxu0
        %v1129 = vadd.f32 %v518, %v1128
        %v1130 = vpop.f32.mrb[0].mxu0
        %v1131 = vadd.f32 %v514, %v1130
        %v1132 = vpop.f32.mrb[0].mxu0
        %v1133 = vadd.f32 %v518, %v1132
        %1134 = vmatprep.mubr.bf16.mxu0 %v641
        %1135 = vmatmul.mubr.bf16.gmra.mrb[0].mxu0 %v640
        %v1136 = vpop.f32.mrb[0].mxu0
        %v1137 = vadd.f32 %v514, %v1136
        %v1138 = vpop.f32.mrb[0].mxu0
        %v1139 = vadd.f32 %v518, %v1138
        %v1140 = vpop.f32.mrb[0].mxu0
        %v1141 = vadd.f32 %v514, %v1140
        %v1142 = vpop.f32.mrb[0].mxu0
        %v1143 = vadd.f32 %v518, %v1142
        %1144 = vmatprep.mubr.bf16.mxu0 %v644
        %1145 = vmatmul.mubr.bf16.gmra.mrb[0].mxu0 %v643
        %v1146 = vpop.f32.mrb[0].mxu0
        %v1147 = vadd.f32 %v514, %v1146
        %v1148 = vpop.f32.mrb[0].mxu0
        %v1149 = vadd.f32 %v518, %v1148
        %v1150 = vpop.f32.mrb[0].mxu0
        %v1151 = vadd.f32 %v514, %v1150
        %v1152 = vpop.f32.mrb[0].mxu0
        %v1153 = vadd.f32 %v518, %v1152
        %1154 = vmatprep.mubr.bf16.mxu0 %v647
        %1155 = vmatmul.mubr.bf16.gmra.mrb[0].mxu0 %v646
        %v1156 = vpop.f32.mrb[0].mxu0
        %v1157 = vadd.f32 %v514, %v1156
        %v1158 = vpop.f32.mrb[0].mxu0
        %v1159 = vadd.f32 %v518, %v1158
        %v1160 = vpop.f32.mrb[0].mxu0
        %v1161 = vadd.f32 %v514, %v1160
        %v1162 = vpop.f32.mrb[0].mxu0
        %v1163 = vadd.f32 %v518, %v1162
        %1164 = vmatprep.mubr.bf16.mxu0 %v650
        %1165 = vmatmul.mubr.bf16.gmra.mrb[0].mxu0 %v649
        %v1166 = vpop.f32.mrb[0].mxu0
        %v1167 = vadd.f32 %v514, %v1166
        %v1168 = vpop.f32.mrb[0].mxu0
        %v1169 = vadd.f32 %v518, %v1168
        %v1170 = vpop.f32.mrb[0].mxu0
        %v1171 = vadd.f32 %v514, %v1170
        %v1172 = vpop.f32.mrb[0].mxu0
        %v1173 = vadd.f32 %v518, %v1172
        %1174 = vmatprep.mubr.bf16.mxu0 %v653
        %1175 = vmatmul.mubr.bf16.gmra.mrb[0].mxu0 %v652
        %v1176 = vpop.f32.mrb[0].mxu0
        %v1177 = vadd.f32 %v514, %v1176
        %v1178 = vpop.f32.mrb[0].mxu0
        %v1179 = vadd.f32 %v518, %v1178
        %v1180 = vpop.f32.mrb[0].mxu0
        %v1181 = vadd.f32 %v514, %v1180
        %v1182 = vpop.f32.mrb[0].mxu0
        %v1183 = vadd.f32 %v518, %v1182
        %1184 = vmatprep.mubr.bf16.mxu0 %v656
        %1185 = vmatmul.mubr.bf16.gmra.mrb[0].mxu0 %v655
        %v1186 = vpop.f32.mrb[0].mxu0
        %v1187 = vadd.f32 %v514, %v1186
        %v1188 = vpop.f32.mrb[0].mxu0
        %v1189 = vadd.f32 %v518, %v1188
        %v1190 = vpop.f32.mrb[0].mxu0
        %v1191 = vadd.f32 %v514, %v1190
        %v1192 = vpop.f32.mrb[0].mxu0
        %v1193 = vadd.f32 %v518, %v1192
        %1194 = vmatprep.mubr.bf16.mxu0 %v659
        %1195 = vmatmul.mubr.bf16.gmra.mrb[0].mxu0 %v658
        %v1196 = vpop.f32.mrb[0].mxu0
        %v1197 = vadd.f32 %v514, %v1196
        %v1198 = vpop.f32.mrb[0].mxu0
        %v1199 = vadd.f32 %v518, %v1198
        %v1200 = vpop.f32.mrb[0].mxu0
        %v1201 = vadd.f32 %v514, %v1200
        %v1202 = vpop.f32.mrb[0].mxu0
        %v1203 = vadd.f32 %v518, %v1202
        %1204 = vdwg.mxu0
        %1205 = vmatprep.subr.bf16.mxu0 %v962
        %1206 = vmatpush1.bf16.msra.mxu0 %v961
        %1207 = vmatprep.subr.bf16.mxu0 %v966
        %1208 = vmatpush1.bf16.msra.mxu0 %v965
        %1209 = vmatprep.subr.bf16.mxu0 0
        %1210 = vmatpush1.bf16.msra.mxu0 0
        %1211 = vmatprep.subr.bf16.mxu0 0
        %1212 = vmatpush1.bf16.msra.mxu0 0
        %1213 = vmatprep.subr.bf16.mxu0 0
        %1214 = vmatpush1.bf16.msra.mxu0 0
        %1215 = vmatprep.subr.bf16.mxu0 0
        %1216 = vmatpush1.bf16.msra.mxu0 0
        %1217 = vmatprep.subr.bf16.mxu0 0
        %1218 = vmatpush1.bf16.msra.mxu0 0
        %1219 = vmatprep.subr.bf16.mxu0 0
        %1220 = vmatpush1.bf16.msra.mxu0 0
        %1221 = vmatprep.subr.bf16.mxu0 0
        %1222 = vmatpush1.bf16.msra.mxu0 0
        %1223 = vmatprep.subr.bf16.mxu0 0
        %1224 = vmatpush1.bf16.msra.mxu0 0
        %1225 = vmatprep.subr.bf16.mxu0 0
        %1226 = vmatpush1.bf16.msra.mxu0 0
        %1227 = vmatprep.subr.bf16.mxu0 0
        %1228 = vmatpush1.bf16.msra.mxu0 0
        %1229 = vmatprep.subr.bf16.mxu0 0
        %1230 = vmatpush1.bf16.msra.mxu0 0
        %1231 = vmatprep.subr.bf16.mxu0 0
        %1232 = vmatpush1.bf16.msra.mxu0 0
        %1233 = vmatprep.subr.bf16.mxu0 0
        %1234 = vmatpush1.bf16.msra.mxu0 0
        %1235 = vmatprep.subr.bf16.mxu0 0
        %1236 = vmatpush1.bf16.msra.mxu0 0
        %1237 = vmatprep.mubr.bf16.mxu0 0
        %1238 = vmatmul.mubr.bf16.gmra.mrb[0].mxu0 %v1043
        %v1239 = vpop.f32.mrb[0].mxu0
        %v1240 = vadd.f32 %v1107, %v1239
        %v1241 = vpop.f32.mrb[0].mxu0
        %v1242 = vadd.f32 %v1109, %v1241
        %v1243 = vpop.f32.mrb[0].mxu0
        %v1244 = vadd.f32 %v1111, %v1243
        %v1245 = vpop.f32.mrb[0].mxu0
        %v1246 = vadd.f32 %v1113, %v1245
        %1247 = vmatprep.mubr.bf16.mxu0 0
        %1248 = vmatmul.mubr.bf16.gmra.mrb[0].mxu0 %v1046
        %v1249 = vpop.f32.mrb[0].mxu0
        %v1250 = vadd.f32 %v1117, %v1249
        %v1251 = vpop.f32.mrb[0].mxu0
        %v1252 = vadd.f32 %v1119, %v1251
        %v1253 = vpop.f32.mrb[0].mxu0
        %v1254 = vadd.f32 %v1121, %v1253
        %v1255 = vpop.f32.mrb[0].mxu0
        %v1256 = vadd.f32 %v1123, %v1255
        %1257 = vmatprep.mubr.bf16.mxu0 0
        %1258 = vmatmul.mubr.bf16.gmra.mrb[0].mxu0 %v1049
        %v1259 = vpop.f32.mrb[0].mxu0
        %v1260 = vadd.f32 %v1127, %v1259
        %v1261 = vpop.f32.mrb[0].mxu0
        %v1262 = vadd.f32 %v1129, %v1261
        %v1263 = vpop.f32.mrb[0].mxu0
        %v1264 = vadd.f32 %v1131, %v1263
        %v1265 = vpop.f32.mrb[0].mxu0
        %v1266 = vadd.f32 %v1133, %v1265
        %1267 = vmatprep.mubr.bf16.mxu0 0
        %1268 = vmatmul.mubr.bf16.gmra.mrb[0].mxu0 %v1052
        %v1269 = vpop.f32.mrb[0].mxu0
        %v1270 = vadd.f32 %v1137, %v1269
        %v1271 = vpop.f32.mrb[0].mxu0
        %v1272 = vadd.f32 %v1139, %v1271
        %v1273 = vpop.f32.mrb[0].mxu0
        %v1274 = vadd.f32 %v1141, %v1273
        %v1275 = vpop.f32.mrb[0].mxu0
        %v1276 = vadd.f32 %v1143, %v1275
        %1277 = vmatprep.mubr.bf16.mxu0 0
        %1278 = vmatmul.mubr.bf16.gmra.mrb[0].mxu0 %v1055
        %v1279 = vpop.f32.mrb[0].mxu0
        %v1280 = vadd.f32 %v1147, %v1279
        %v1281 = vpop.f32.mrb[0].mxu0
        %v1282 = vadd.f32 %v1149, %v1281
        %v1283 = vpop.f32.mrb[0].mxu0
        %v1284 = vadd.f32 %v1151, %v1283
        %v1285 = vpop.f32.mrb[0].mxu0
        %v1286 = vadd.f32 %v1153, %v1285
        %1287 = vmatprep.mubr.bf16.mxu0 0
        %1288 = vmatmul.mubr.bf16.gmra.mrb[0].mxu0 %v1058
        %v1289 = vpop.f32.mrb[0].mxu0
        %v1290 = vadd.f32 %v1157, %v1289
        %v1291 = vpop.f32.mrb[0].mxu0
        %v1292 = vadd.f32 %v1159, %v1291
        %v1293 = vpop.f32.mrb[0].mxu0
        %v1294 = vadd.f32 %v1161, %v1293
        %v1295 = vpop.f32.mrb[0].mxu0
        %v1296 = vadd.f32 %v1163, %v1295
        %1297 = vmatprep.mubr.bf16.mxu0 0
        %1298 = vmatmul.mubr.bf16.gmra.mrb[0].mxu0 %v1061
        %v1299 = vpop.f32.mrb[0].mxu0
        %v1300 = vadd.f32 %v1167, %v1299
        %v1301 = vpop.f32.mrb[0].mxu0
        %v1302 = vadd.f32 %v1169, %v1301
        %v1303 = vpop.f32.mrb[0].mxu0
        %v1304 = vadd.f32 %v1171, %v1303
        %v1305 = vpop.f32.mrb[0].mxu0
        %v1306 = vadd.f32 %v1173, %v1305
        %1307 = vmatprep.mubr.bf16.mxu0 0
        %1308 = vmatmul.mubr.bf16.gmra.mrb[0].mxu0 %v1064
        %v1309 = vpop.f32.mrb[0].mxu0
        %v1310 = vadd.f32 %v1177, %v1309
        %v1311 = vpop.f32.mrb[0].mxu0
        %v1312 = vadd.f32 %v1179, %v1311
        %v1313 = vpop.f32.mrb[0].mxu0
        %v1314 = vadd.f32 %v1181, %v1313
        %v1315 = vpop.f32.mrb[0].mxu0
        %v1316 = vadd.f32 %v1183, %v1315
        %1317 = vmatprep.mubr.bf16.mxu0 0
        %1318 = vmatmul.mubr.bf16.gmra.mrb[0].mxu0 %v1067
        %v1319 = vpop.f32.mrb[0].mxu0
        %v1320 = vadd.f32 %v1187, %v1319
        %v1321 = vpop.f32.mrb[0].mxu0
        %v1322 = vadd.f32 %v1189, %v1321
        %v1323 = vpop.f32.mrb[0].mxu0
        %v1324 = vadd.f32 %v1191, %v1323
        %v1325 = vpop.f32.mrb[0].mxu0
        %v1326 = vadd.f32 %v1193, %v1325
        %1327 = vmatprep.mubr.bf16.mxu0 0
        %1328 = vmatmul.mubr.bf16.gmra.mrb[0].mxu0 %v1070
        %v1329 = vpop.f32.mrb[0].mxu0
        %v1330 = vadd.f32 %v1197, %v1329
        %v1331 = vpop.f32.mrb[0].mxu0
        %v1332 = vadd.f32 %v1199, %v1331
        %v1333 = vpop.f32.mrb[0].mxu0
        %v1334 = vadd.f32 %v1201, %v1333
        %v1335 = vpop.f32.mrb[0].mxu0
        %v1336 = vadd.f32 %v1203, %v1335
        %1337 = vdwg.mxu0
        %1338 = vmatprep.subr.bf16.mxu0 %v900
        %1339 = vmatpush1.bf16.msra.mxu0 %v899
        %1340 = vmatprep.subr.bf16.mxu0 %v904
        %1341 = vmatpush1.bf16.msra.mxu0 %v903
        %1342 = vmatprep.subr.bf16.mxu0 %v908
        %1343 = vmatpush1.bf16.msra.mxu0 %v907
        %1344 = vmatprep.subr.bf16.mxu0 %v912
        %1345 = vmatpush1.bf16.msra.mxu0 %v911
        %1346 = vmatprep.subr.bf16.mxu0 %v916
        %1347 = vmatpush1.bf16.msra.mxu0 %v915
        %1348 = vmatprep.subr.bf16.mxu0 %v920
        %1349 = vmatpush1.bf16.msra.mxu0 %v919
        %1350 = vmatprep.subr.bf16.mxu0 %v924
        %1351 = vmatpush1.bf16.msra.mxu0 %v923
        %1352 = vmatprep.subr.bf16.mxu0 %v928
        %1353 = vmatpush1.bf16.msra.mxu0 %v927
        %1354 = vmatprep.subr.bf16.mxu0 %v932
        %1355 = vmatpush1.bf16.msra.mxu0 %v931
        %1356 = vmatprep.subr.bf16.mxu0 %v936
        %1357 = vmatpush1.bf16.msra.mxu0 %v935
        %1358 = vmatprep.subr.bf16.mxu0 %v940
        %1359 = vmatpush1.bf16.msra.mxu0 %v939
        %1360 = vmatprep.subr.bf16.mxu0 %v944
        %1361 = vmatpush1.bf16.msra.mxu0 %v943
        %1362 = vmatprep.subr.bf16.mxu0 %v948
        %1363 = vmatpush1.bf16.msra.mxu0 %v947
        %1364 = vmatprep.subr.bf16.mxu0 %v952
        %1365 = vmatpush1.bf16.msra.mxu0 %v951
        %1366 = vmatprep.subr.bf16.mxu0 %v956
        %1367 = vmatpush1.bf16.msra.mxu0 %v955
        %1368 = vmatprep.subr.bf16.mxu0 %v960
        %1369 = vmatpush1.bf16.msra.mxu0 %v959
        %1370 = vmatprep.mubr.bf16.mxu0 %v632
        %1371 = vmatmul.mubr.bf16.gmra.mrb[0].mxu0 %v631
        %v1372 = vpop.f32.mrb[0].mxu0
        %v1373 = vadd.f32 %v522, %v1372
        %v1374 = vpop.f32.mrb[0].mxu0
        %v1375 = vadd.f32 %v526, %v1374
        %v1376 = vpop.f32.mrb[0].mxu0
        %v1377 = vadd.f32 %v522, %v1376
        %v1378 = vpop.f32.mrb[0].mxu0
        %v1379 = vadd.f32 %v526, %v1378
        %1380 = vmatprep.mubr.bf16.mxu0 %v635
        %1381 = vmatmul.mubr.bf16.gmra.mrb[0].mxu0 %v634
        %v1382 = vpop.f32.mrb[0].mxu0
        %v1383 = vadd.f32 %v522, %v1382
        %v1384 = vpop.f32.mrb[0].mxu0
        %v1385 = vadd.f32 %v526, %v1384
        %v1386 = vpop.f32.mrb[0].mxu0
        %v1387 = vadd.f32 %v522, %v1386
        %v1388 = vpop.f32.mrb[0].mxu0
        %v1389 = vadd.f32 %v526, %v1388
        %1390 = vmatprep.mubr.bf16.mxu0 %v638
        %1391 = vmatmul.mubr.bf16.gmra.mrb[0].mxu0 %v637
        %v1392 = vpop.f32.mrb[0].mxu0
        %v1393 = vadd.f32 %v522, %v1392
        %v1394 = vpop.f32.mrb[0].mxu0
        %v1395 = vadd.f32 %v526, %v1394
        %v1396 = vpop.f32.mrb[0].mxu0
        %v1397 = vadd.f32 %v522, %v1396
        %v1398 = vpop.f32.mrb[0].mxu0
        %v1399 = vadd.f32 %v526, %v1398
        %1400 = vmatprep.mubr.bf16.mxu0 %v641
        %1401 = vmatmul.mubr.bf16.gmra.mrb[0].mxu0 %v640
        %v1402 = vpop.f32.mrb[0].mxu0
        %v1403 = vadd.f32 %v522, %v1402
        %v1404 = vpop.f32.mrb[0].mxu0
        %v1405 = vadd.f32 %v526, %v1404
        %v1406 = vpop.f32.mrb[0].mxu0
        %v1407 = vadd.f32 %v522, %v1406
        %v1408 = vpop.f32.mrb[0].mxu0
        %v1409 = vadd.f32 %v526, %v1408
        %1410 = vmatprep.mubr.bf16.mxu0 %v644
        %1411 = vmatmul.mubr.bf16.gmra.mrb[0].mxu0 %v643
        %v1412 = vpop.f32.mrb[0].mxu0
        %v1413 = vadd.f32 %v522, %v1412
        %v1414 = vpop.f32.mrb[0].mxu0
        %v1415 = vadd.f32 %v526, %v1414
        %v1416 = vpop.f32.mrb[0].mxu0
        %v1417 = vadd.f32 %v522, %v1416
        %v1418 = vpop.f32.mrb[0].mxu0
        %v1419 = vadd.f32 %v526, %v1418
        %1420 = vmatprep.mubr.bf16.mxu0 %v647
        %1421 = vmatmul.mubr.bf16.gmra.mrb[0].mxu0 %v646
        %v1422 = vpop.f32.mrb[0].mxu0
        %v1423 = vadd.f32 %v522, %v1422
        %v1424 = vpop.f32.mrb[0].mxu0
        %v1425 = vadd.f32 %v526, %v1424
        %v1426 = vpop.f32.mrb[0].mxu0
        %v1427 = vadd.f32 %v522, %v1426
        %v1428 = vpop.f32.mrb[0].mxu0
        %v1429 = vadd.f32 %v526, %v1428
        %1430 = vmatprep.mubr.bf16.mxu0 %v650
        %1431 = vmatmul.mubr.bf16.gmra.mrb[0].mxu0 %v649
        %v1432 = vpop.f32.mrb[0].mxu0
        %v1433 = vadd.f32 %v522, %v1432
        %v1434 = vpop.f32.mrb[0].mxu0
        %v1435 = vadd.f32 %v526, %v1434
        %v1436 = vpop.f32.mrb[0].mxu0
        %v1437 = vadd.f32 %v522, %v1436
        %v1438 = vpop.f32.mrb[0].mxu0
        %v1439 = vadd.f32 %v526, %v1438
        %1440 = vmatprep.mubr.bf16.mxu0 %v653
        %1441 = vmatmul.mubr.bf16.gmra.mrb[0].mxu0 %v652
        %v1442 = vpop.f32.mrb[0].mxu0
        %v1443 = vadd.f32 %v522, %v1442
        %v1444 = vpop.f32.mrb[0].mxu0
        %v1445 = vadd.f32 %v526, %v1444
        %v1446 = vpop.f32.mrb[0].mxu0
        %v1447 = vadd.f32 %v522, %v1446
        %v1448 = vpop.f32.mrb[0].mxu0
        %v1449 = vadd.f32 %v526, %v1448
        %1450 = vmatprep.mubr.bf16.mxu0 %v656
        %1451 = vmatmul.mubr.bf16.gmra.mrb[0].mxu0 %v655
        %v1452 = vpop.f32.mrb[0].mxu0
        %v1453 = vadd.f32 %v522, %v1452
        %v1454 = vpop.f32.mrb[0].mxu0
        %v1455 = vadd.f32 %v526, %v1454
        %v1456 = vpop.f32.mrb[0].mxu0
        %v1457 = vadd.f32 %v522, %v1456
        %v1458 = vpop.f32.mrb[0].mxu0
        %v1459 = vadd.f32 %v526, %v1458
        %1460 = vmatprep.mubr.bf16.mxu0 %v659
        %1461 = vmatmul.mubr.bf16.gmra.mrb[0].mxu0 %v658
        %v1462 = vpop.f32.mrb[0].mxu0
        %v1463 = vadd.f32 %v522, %v1462
        %v1464 = vpop.f32.mrb[0].mxu0
        %v1465 = vadd.f32 %v526, %v1464
        %v1466 = vpop.f32.mrb[0].mxu0
        %v1467 = vadd.f32 %v522, %v1466
        %v1468 = vpop.f32.mrb[0].mxu0
        %v1469 = vadd.f32 %v526, %v1468
        %1470 = vdwg.mxu0
        %1471 = vmatprep.subr.bf16.mxu0 %v964
        %1472 = vmatpush1.bf16.msra.mxu0 %v963
        %1473 = vmatprep.subr.bf16.mxu0 %v968
        %1474 = vmatpush1.bf16.msra.mxu0 %v967
        %1475 = vmatprep.subr.bf16.mxu0 0
        %1476 = vmatpush1.bf16.msra.mxu0 0
        %1477 = vmatprep.subr.bf16.mxu0 0
        %1478 = vmatpush1.bf16.msra.mxu0 0
        %1479 = vmatprep.subr.bf16.mxu0 0
        %1480 = vmatpush1.bf16.msra.mxu0 0
        %1481 = vmatprep.subr.bf16.mxu0 0
        %1482 = vmatpush1.bf16.msra.mxu0 0
        %1483 = vmatprep.subr.bf16.mxu0 0
        %1484 = vmatpush1.bf16.msra.mxu0 0
        %1485 = vmatprep.subr.bf16.mxu0 0
        %1486 = vmatpush1.bf16.msra.mxu0 0
        %1487 = vmatprep.subr.bf16.mxu0 0
        %1488 = vmatpush1.bf16.msra.mxu0 0
        %1489 = vmatprep.subr.bf16.mxu0 0
        %1490 = vmatpush1.bf16.msra.mxu0 0
        %1491 = vmatprep.subr.bf16.mxu0 0
        %1492 = vmatpush1.bf16.msra.mxu0 0
        %1493 = vmatprep.subr.bf16.mxu0 0
        %1494 = vmatpush1.bf16.msra.mxu0 0
        %1495 = vmatprep.subr.bf16.mxu0 0
        %1496 = vmatpush1.bf16.msra.mxu0 0
        %1497 = vmatprep.subr.bf16.mxu0 0
        %1498 = vmatpush1.bf16.msra.mxu0 0
        %1499 = vmatprep.subr.bf16.mxu0 0
        %1500 = vmatpush1.bf16.msra.mxu0 0
        %1501 = vmatprep.subr.bf16.mxu0 0
        %1502 = vmatpush1.bf16.msra.mxu0 0
        %1503 = vmatprep.mubr.bf16.mxu0 0
        %1504 = vmatmul.mubr.bf16.gmra.mrb[0].mxu0 %v1043
        %v1505 = vpop.f32.mrb[0].mxu0
        %v1506 = vadd.f32 %v1373, %v1505
        %v1507 = vpop.f32.mrb[0].mxu0
        %v1508 = vadd.f32 %v1375, %v1507
        %v1509 = vpop.f32.mrb[0].mxu0
        %v1510 = vadd.f32 %v1377, %v1509
        %v1511 = vpop.f32.mrb[0].mxu0
        %v1512 = vadd.f32 %v1379, %v1511
        %1513 = vmatprep.mubr.bf16.mxu0 0
        %1514 = vmatmul.mubr.bf16.gmra.mrb[0].mxu0 %v1046
        %v1515 = vpop.f32.mrb[0].mxu0
        %v1516 = vadd.f32 %v1383, %v1515
        %v1517 = vpop.f32.mrb[0].mxu0
        %v1518 = vadd.f32 %v1385, %v1517
        %v1519 = vpop.f32.mrb[0].mxu0
        %v1520 = vadd.f32 %v1387, %v1519
        %v1521 = vpop.f32.mrb[0].mxu0
        %v1522 = vadd.f32 %v1389, %v1521
        %1523 = vmatprep.mubr.bf16.mxu0 0
        %1524 = vmatmul.mubr.bf16.gmra.mrb[0].mxu0 %v1049
        %v1525 = vpop.f32.mrb[0].mxu0
        %v1526 = vadd.f32 %v1393, %v1525
        %v1527 = vpop.f32.mrb[0].mxu0
        %v1528 = vadd.f32 %v1395, %v1527
        %v1529 = vpop.f32.mrb[0].mxu0
        %v1530 = vadd.f32 %v1397, %v1529
        %v1531 = vpop.f32.mrb[0].mxu0
        %v1532 = vadd.f32 %v1399, %v1531
        %1533 = vmatprep.mubr.bf16.mxu0 0
        %1534 = vmatmul.mubr.bf16.gmra.mrb[0].mxu0 %v1052
        %v1535 = vpop.f32.mrb[0].mxu0
        %v1536 = vadd.f32 %v1403, %v1535
        %v1537 = vpop.f32.mrb[0].mxu0
        %v1538 = vadd.f32 %v1405, %v1537
        %v1539 = vpop.f32.mrb[0].mxu0
        %v1540 = vadd.f32 %v1407, %v1539
        %v1541 = vpop.f32.mrb[0].mxu0
        %v1542 = vadd.f32 %v1409, %v1541
        %1543 = vmatprep.mubr.bf16.mxu0 0
        %1544 = vmatmul.mubr.bf16.gmra.mrb[0].mxu0 %v1055
        %v1545 = vpop.f32.mrb[0].mxu0
        %v1546 = vadd.f32 %v1413, %v1545
        %v1547 = vpop.f32.mrb[0].mxu0
        %v1548 = vadd.f32 %v1415, %v1547
        %v1549 = vpop.f32.mrb[0].mxu0
        %v1550 = vadd.f32 %v1417, %v1549
        %v1551 = vpop.f32.mrb[0].mxu0
        %v1552 = vadd.f32 %v1419, %v1551
        %1553 = vmatprep.mubr.bf16.mxu0 0
        %1554 = vmatmul.mubr.bf16.gmra.mrb[0].mxu0 %v1058
        %v1555 = vpop.f32.mrb[0].mxu0
        %v1556 = vadd.f32 %v1423, %v1555
        %v1557 = vpop.f32.mrb[0].mxu0
        %v1558 = vadd.f32 %v1425, %v1557
        %v1559 = vpop.f32.mrb[0].mxu0
        %v1560 = vadd.f32 %v1427, %v1559
        %v1561 = vpop.f32.mrb[0].mxu0
        %v1562 = vadd.f32 %v1429, %v1561
        %1563 = vmatprep.mubr.bf16.mxu0 0
        %1564 = vmatmul.mubr.bf16.gmra.mrb[0].mxu0 %v1061
        %v1565 = vpop.f32.mrb[0].mxu0
        %v1566 = vadd.f32 %v1433, %v1565
        %v1567 = vpop.f32.mrb[0].mxu0
        %v1568 = vadd.f32 %v1435, %v1567
        %v1569 = vpop.f32.mrb[0].mxu0
        %v1570 = vadd.f32 %v1437, %v1569
        %v1571 = vpop.f32.mrb[0].mxu0
        %v1572 = vadd.f32 %v1439, %v1571
        %1573 = vmatprep.mubr.bf16.mxu0 0
        %1574 = vmatmul.mubr.bf16.gmra.mrb[0].mxu0 %v1064
        %v1575 = vpop.f32.mrb[0].mxu0
        %v1576 = vadd.f32 %v1443, %v1575
        %v1577 = vpop.f32.mrb[0].mxu0
        %v1578 = vadd.f32 %v1445, %v1577
        %v1579 = vpop.f32.mrb[0].mxu0
        %v1580 = vadd.f32 %v1447, %v1579
        %v1581 = vpop.f32.mrb[0].mxu0
        %v1582 = vadd.f32 %v1449, %v1581
        %1583 = vmatprep.mubr.bf16.mxu0 0
        %1584 = vmatmul.mubr.bf16.gmra.mrb[0].mxu0 %v1067
        %v1585 = vpop.f32.mrb[0].mxu0
        %v1586 = vadd.f32 %v1453, %v1585
        %v1587 = vpop.f32.mrb[0].mxu0
        %v1588 = vadd.f32 %v1455, %v1587
        %v1589 = vpop.f32.mrb[0].mxu0
        %v1590 = vadd.f32 %v1457, %v1589
        %v1591 = vpop.f32.mrb[0].mxu0
        %v1592 = vadd.f32 %v1459, %v1591
        %1593 = vmatprep.mubr.bf16.mxu0 0
        %1594 = vmatmul.mubr.bf16.gmra.mrb[0].mxu0 %v1070
        %v1595 = vpop.f32.mrb[0].mxu0
        %v1596 = vadd.f32 %v1463, %v1595
        %v1597 = vpop.f32.mrb[0].mxu0
        %v1598 = vadd.f32 %v1465, %v1597
        %v1599 = vpop.f32.mrb[0].mxu0
        %v1600 = vadd.f32 %v1467, %v1599
        %v1601 = vpop.f32.mrb[0].mxu0
        %v1602 = vadd.f32 %v1469, %v1601
        %1603 = vdwg.mxu0
        %1604 = vst [vmem:[#allocation2] sm:$0xff] %v1240
        %1605 = vst [vmem:[#allocation2 + $0x8] sm:$0xff] %v1242
        %1606 = vst [vmem:[#allocation2 + $0x10] sm:$0xff] %v1506
        %1607 = vst [vmem:[#allocation2 + $0x18] sm:$0xff] %v1508
        %1608 = vst [vmem:[#allocation2 + $0x20] sm:$0xff] %v1244
        %1609 = vst [vmem:[#allocation2 + $0x28] sm:$0xff] %v1246
        %1610 = vst [vmem:[#allocation2 + $0x30] sm:$0xff] %v1510
        %1611 = vst [vmem:[#allocation2 + $0x38] sm:$0xff] %v1512
        %1612 = vst [vmem:[#allocation2 + $0x40] sm:$0xff] %v1250
        %1613 = vst [vmem:[#allocation2 + $0x48] sm:$0xff] %v1252
        %1614 = vst [vmem:[#allocation2 + $0x50] sm:$0xff] %v1516
        %1615 = vst [vmem:[#allocation2 + $0x58] sm:$0xff] %v1518
        %1616 = vst [vmem:[#allocation2 + $0x60] sm:$0xff] %v1254
        %1617 = vst [vmem:[#allocation2 + $0x68] sm:$0xff] %v1256
        %1618 = vst [vmem:[#allocation2 + $0x70] sm:$0xff] %v1520
        %1619 = vst [vmem:[#allocation2 + $0x78] sm:$0xff] %v1522
        %1620 = vst [vmem:[#allocation2 + $0x80] sm:$0xff] %v1260
        %1621 = vst [vmem:[#allocation2 + $0x88] sm:$0xff] %v1262
        %1622 = vst [vmem:[#allocation2 + $0x90] sm:$0xff] %v1526
        %1623 = vst [vmem:[#allocation2 + $0x98] sm:$0xff] %v1528
        %1624 = vst [vmem:[#allocation2 + $0xa0] sm:$0xff] %v1264
        %1625 = vst [vmem:[#allocation2 + $0xa8] sm:$0xff] %v1266
        %1626 = vst [vmem:[#allocation2 + $0xb0] sm:$0xff] %v1530
        %1627 = vst [vmem:[#allocation2 + $0xb8] sm:$0xff] %v1532
        %1628 = vst [vmem:[#allocation2 + $0xc0] sm:$0xff] %v1270
        %1629 = vst [vmem:[#allocation2 + $0xc8] sm:$0xff] %v1272
        %1630 = vst [vmem:[#allocation2 + $0xd0] sm:$0xff] %v1536
        %1631 = vst [vmem:[#allocation2 + $0xd8] sm:$0xff] %v1538
        %1632 = vst [vmem:[#allocation2 + $0xe0] sm:$0xff] %v1274
        %1633 = vst [vmem:[#allocation2 + $0xe8] sm:$0xff] %v1276
        %1634 = vst [vmem:[#allocation2 + $0xf0] sm:$0xff] %v1540
        %1635 = vst [vmem:[#allocation2 + $0xf8] sm:$0xff] %v1542
        %1636 = vst [vmem:[#allocation2 + $0x100] sm:$0xff] %v1280
        %1637 = vst [vmem:[#allocation2 + $0x108] sm:$0xff] %v1282
        %1638 = vst [vmem:[#allocation2 + $0x110] sm:$0xff] %v1546
        %1639 = vst [vmem:[#allocation2 + $0x118] sm:$0xff] %v1548
        %1640 = vst [vmem:[#allocation2 + $0x120] sm:$0xff] %v1284
        %1641 = vst [vmem:[#allocation2 + $0x128] sm:$0xff] %v1286
        %1642 = vst [vmem:[#allocation2 + $0x130] sm:$0xff] %v1550
        %1643 = vst [vmem:[#allocation2 + $0x138] sm:$0xff] %v1552
        %1644 = vst [vmem:[#allocation2 + $0x140] sm:$0xff] %v1290
        %1645 = vst [vmem:[#allocation2 + $0x148] sm:$0xff] %v1292
        %1646 = vst [vmem:[#allocation2 + $0x150] sm:$0xff] %v1556
        %1647 = vst [vmem:[#allocation2 + $0x158] sm:$0xff] %v1558
        %1648 = vst [vmem:[#allocation2 + $0x160] sm:$0xff] %v1294
        %1649 = vst [vmem:[#allocation2 + $0x168] sm:$0xff] %v1296
        %1650 = vst [vmem:[#allocation2 + $0x170] sm:$0xff] %v1560
        %1651 = vst [vmem:[#allocation2 + $0x178] sm:$0xff] %v1562
        %1652 = vst [vmem:[#allocation2 + $0x180] sm:$0xff] %v1300
        %1653 = vst [vmem:[#allocation2 + $0x188] sm:$0xff] %v1302
        %1654 = vst [vmem:[#allocation2 + $0x190] sm:$0xff] %v1566
        %1655 = vst [vmem:[#allocation2 + $0x198] sm:$0xff] %v1568
        %1656 = vst [vmem:[#allocation2 + $0x1a0] sm:$0xff] %v1304
        %1657 = vst [vmem:[#allocation2 + $0x1a8] sm:$0xff] %v1306
        %1658 = vst [vmem:[#allocation2 + $0x1b0] sm:$0xff] %v1570
        %1659 = vst [vmem:[#allocation2 + $0x1b8] sm:$0xff] %v1572
        %1660 = vst [vmem:[#allocation2 + $0x1c0] sm:$0xff] %v1310
        %1661 = vst [vmem:[#allocation2 + $0x1c8] sm:$0xff] %v1312
        %1662 = vst [vmem:[#allocation2 + $0x1d0] sm:$0xff] %v1576
        %1663 = vst [vmem:[#allocation2 + $0x1d8] sm:$0xff] %v1578
        %1664 = vst [vmem:[#allocation2 + $0x1e0] sm:$0xff] %v1314
        %1665 = vst [vmem:[#allocation2 + $0x1e8] sm:$0xff] %v1316
        %1666 = vst [vmem:[#allocation2 + $0x1f0] sm:$0xff] %v1580
        %1667 = vst [vmem:[#allocation2 + $0x1f8] sm:$0xff] %v1582
        %1668 = vst [vmem:[#allocation2 + $0x200] sm:$0xff] %v1320
        %1669 = vst [vmem:[#allocation2 + $0x208] sm:$0xff] %v1322
        %1670 = vst [vmem:[#allocation2 + $0x210] sm:$0xff] %v1586
        %1671 = vst [vmem:[#allocation2 + $0x218] sm:$0xff] %v1588
        %1672 = vst [vmem:[#allocation2 + $0x220] sm:$0xff] %v1324
        %1673 = vst [vmem:[#allocation2 + $0x228] sm:$0xff] %v1326
        %1674 = vst [vmem:[#allocation2 + $0x230] sm:$0xff] %v1590
        %1675 = vst [vmem:[#allocation2 + $0x238] sm:$0xff] %v1592
        %1676 = vst [vmem:[#allocation2 + $0x240] sm:$0xff] %v1330
        %1677 = vst [vmem:[#allocation2 + $0x248] sm:$0xff] %v1332
        %1678 = vst [vmem:[#allocation2 + $0x250] sm:$0xff] %v1596
        %1679 = vst [vmem:[#allocation2 + $0x258] sm:$0xff] %v1598
        %1680 = vst [vmem:[#allocation2 + $0x260] sm:$0xff] %v1334
        %1681 = vst [vmem:[#allocation2 + $0x268] sm:$0xff] %v1336
        %1682 = vst [vmem:[#allocation2 + $0x270] sm:$0xff] %v1600
        %1683 = vst [vmem:[#allocation2 + $0x278] sm:$0xff] %v1602
        %v1684 = vld [vmem:[#allocation2] sm:$0xff]
        %v1685 = vld [vmem:[#allocation2 + $0x8] sm:$0xff]
        %v1686 = vld [vmem:[#allocation2 + $0x10] sm:$0xff]
        %v1687 = vld [vmem:[#allocation2 + $0x18] sm:$0xff]
        %v1688 = vld [vmem:[%s317] sm:$0xff]
        %v1689 = vld [vmem:[%s317 + $0x8] sm:$0xff]
        %v1690 = vld [vmem:[%s317 + $0x10] sm:$0xff]
        %v1691 = vld [vmem:[%s317 + $0x18] sm:$0xff]
        %v1692 = vld [vmem:[%s317 + $0x20] sm:$0xff]
        %v1693 = vld [vmem:[%s317 + $0x28] sm:$0xff]
        %v1694 = vld [vmem:[%s317 + $0x30] sm:$0xff]
        %v1695 = vld [vmem:[%s317 + $0x38] sm:$0xff]
        %v1696 = vld [vmem:[%s317 + $0x40] sm:$0xff]
        %v1697 = vld [vmem:[%s317 + $0x48] sm:$0xff]
        %v1698 = vld [vmem:[%s317 + $0x50] sm:$0xff]
        %v1699 = vld [vmem:[%s317 + $0x58] sm:$0xff]
        %v1700 = vld [vmem:[%s317 + $0x60] sm:$0xff]
        %v1701 = vld [vmem:[%s317 + $0x68] sm:$0xff]
        %v1702 = vld [vmem:[%s317 + $0x70] sm:$0xff]
        %v1703 = vld [vmem:[%s317 + $0x78] sm:$0xff]
        %v1704 = vld [vmem:[%s317 + $0x80] sm:$0xff]
        %v1705 = vld [vmem:[%s317 + $0x88] sm:$0xff]
        %v1706 = vld [vmem:[%s317 + $0x90] sm:$0xff]
        %v1707 = vld [vmem:[%s317 + $0x98] sm:$0xff]
        %v1708 = vld [vmem:[%s317 + $0xa0] sm:$0xff]
        %v1709 = vld [vmem:[%s317 + $0xa8] sm:$0xff]
        %v1710 = vld [vmem:[%s317 + $0xb0] sm:$0xff]
        %v1711 = vld [vmem:[%s317 + $0xb8] sm:$0xff]
        %v1712 = vld [vmem:[%s317 + $0xc0] sm:$0xff]
        %v1713 = vld [vmem:[%s317 + $0xc8] sm:$0xff]
        %v1714 = vld [vmem:[%s317 + $0xd0] sm:$0xff]
        %v1715 = vld [vmem:[%s317 + $0xd8] sm:$0xff]
        %v1716 = vld [vmem:[%s317 + $0xe0] sm:$0xff]
        %v1717 = vld [vmem:[%s317 + $0xe8] sm:$0xff]
        %v1718 = vld [vmem:[%s317 + $0xf0] sm:$0xff]
        %v1719 = vld [vmem:[%s317 + $0xf8] sm:$0xff]
        %v1752 = vunpack.c.l.b16 %v1688
        %v1753 = vunpack.c.h.b16 %v1688
        %v1754 = vunpack.c.l.b16 %v1689
        %v1755 = vunpack.c.h.b16 %v1689
        %v1756 = vunpack.c.l.b16 %v1690
        %v1757 = vunpack.c.h.b16 %v1690
        %v1758 = vunpack.c.l.b16 %v1691
        %v1759 = vunpack.c.h.b16 %v1691
        %v1760 = vunpack.c.l.b16 %v1692
        %v1761 = vunpack.c.h.b16 %v1692
        %v1762 = vunpack.c.l.b16 %v1693
        %v1763 = vunpack.c.h.b16 %v1693
        %v1764 = vunpack.c.l.b16 %v1694
        %v1765 = vunpack.c.h.b16 %v1694
        %v1766 = vunpack.c.l.b16 %v1695
        %v1767 = vunpack.c.h.b16 %v1695
        %v1768 = vunpack.c.l.b16 %v1696
        %v1769 = vunpack.c.h.b16 %v1696
        %v1770 = vunpack.c.l.b16 %v1697
        %v1771 = vunpack.c.h.b16 %v1697
        %v1772 = vunpack.c.l.b16 %v1698
        %v1773 = vunpack.c.h.b16 %v1698
        %v1774 = vunpack.c.l.b16 %v1699
        %v1775 = vunpack.c.h.b16 %v1699
        %v1776 = vunpack.c.l.b16 %v1700
        %v1777 = vunpack.c.h.b16 %v1700
        %v1778 = vunpack.c.l.b16 %v1701
        %v1779 = vunpack.c.h.b16 %v1701
        %v1780 = vunpack.c.l.b16 %v1702
        %v1781 = vunpack.c.h.b16 %v1702
        %v1782 = vunpack.c.l.b16 %v1703
        %v1783 = vunpack.c.h.b16 %v1703
        %v1784 = vunpack.c.l.b16 %v1704
        %v1785 = vunpack.c.h.b16 %v1704
        %v1786 = vunpack.c.l.b16 %v1705
        %v1787 = vunpack.c.h.b16 %v1705
        %v1788 = vunpack.c.l.b16 %v1706
        %v1789 = vunpack.c.h.b16 %v1706
        %v1790 = vunpack.c.l.b16 %v1707
        %v1791 = vunpack.c.h.b16 %v1707
        %v1792 = vunpack.c.l.b16 %v1708
        %v1793 = vunpack.c.h.b16 %v1708
        %v1794 = vunpack.c.l.b16 %v1709
        %v1795 = vunpack.c.h.b16 %v1709
        %v1796 = vunpack.c.l.b16 %v1710
        %v1797 = vunpack.c.h.b16 %v1710
        %v1798 = vunpack.c.l.b16 %v1711
        %v1799 = vunpack.c.h.b16 %v1711
        %v1800 = vunpack.c.l.b16 %v1712
        %v1801 = vunpack.c.h.b16 %v1712
        %v1802 = vunpack.c.l.b16 %v1713
        %v1803 = vunpack.c.h.b16 %v1713
        %v1804 = vunpack.c.l.b16 %v1714
        %v1805 = vunpack.c.h.b16 %v1714
        %v1806 = vunpack.c.l.b16 %v1715
        %v1807 = vunpack.c.h.b16 %v1715
        %v1808 = vunpack.c.l.b16 %v1716
        %v1809 = vunpack.c.h.b16 %v1716
        %v1810 = vunpack.c.l.b16 %v1717
        %v1811 = vunpack.c.h.b16 %v1717
        %v1812 = vunpack.c.l.b16 %v1718
        %v1813 = vunpack.c.h.b16 %v1718
        %v1814 = vunpack.c.l.b16 %v1719
        %v1815 = vunpack.c.h.b16 %v1719
        %v1816 = vpack.c.b16 %v1756, %v1752
        %v1817 = vpack.c.b16 %v1757, %v1753
        %v1818 = vpack.c.b16 %v1758, %v1754
        %v1819 = vpack.c.b16 %v1759, %v1755
        %v1820 = vpack.c.b16 %v1764, %v1760
        %v1821 = vpack.c.b16 %v1765, %v1761
        %v1822 = vpack.c.b16 %v1766, %v1762
        %v1823 = vpack.c.b16 %v1767, %v1763
        %v1824 = vpack.c.b16 %v1772, %v1768
        %v1825 = vpack.c.b16 %v1773, %v1769
        %v1826 = vpack.c.b16 %v1774, %v1770
        %v1827 = vpack.c.b16 %v1775, %v1771
        %v1828 = vpack.c.b16 %v1780, %v1776
        %v1829 = vpack.c.b16 %v1781, %v1777
        %v1830 = vpack.c.b16 %v1782, %v1778
        %v1831 = vpack.c.b16 %v1783, %v1779
        %v1832 = vpack.c.b16 %v1788, %v1784
        %v1833 = vpack.c.b16 %v1789, %v1785
        %v1834 = vpack.c.b16 %v1790, %v1786
        %v1835 = vpack.c.b16 %v1791, %v1787
        %v1836 = vpack.c.b16 %v1796, %v1792
        %v1837 = vpack.c.b16 %v1797, %v1793
        %v1838 = vpack.c.b16 %v1798, %v1794
        %v1839 = vpack.c.b16 %v1799, %v1795
        %v1840 = vpack.c.b16 %v1804, %v1800
        %v1841 = vpack.c.b16 %v1805, %v1801
        %v1842 = vpack.c.b16 %v1806, %v1802
        %v1843 = vpack.c.b16 %v1807, %v1803
        %v1844 = vpack.c.b16 %v1812, %v1808
        %v1845 = vpack.c.b16 %v1813, %v1809
        %v1846 = vpack.c.b16 %v1814, %v1810
        %v1847 = vpack.c.b16 %v1815, %v1811
        %1880 = vmatprep.subr.bf16.mxu0 %v1817
        %1881 = vmatpush1.bf16.msra.mxu0 %v1816
        %1882 = vmatprep.subr.bf16.mxu0 %v1821
        %1883 = vmatpush1.bf16.msra.mxu0 %v1820
        %1884 = vmatprep.subr.bf16.mxu0 %v1825
        %1885 = vmatpush1.bf16.msra.mxu0 %v1824
        %1886 = vmatprep.subr.bf16.mxu0 %v1829
        %1887 = vmatpush1.bf16.msra.mxu0 %v1828
        %1888 = vmatprep.subr.bf16.mxu0 %v1833
        %1889 = vmatpush1.bf16.msra.mxu0 %v1832
        %1890 = vmatprep.subr.bf16.mxu0 %v1837
        %1891 = vmatpush1.bf16.msra.mxu0 %v1836
        %1892 = vmatprep.subr.bf16.mxu0 %v1841
        %1893 = vmatpush1.bf16.msra.mxu0 %v1840
        %1894 = vmatprep.subr.bf16.mxu0 %v1845
        %1895 = vmatpush1.bf16.msra.mxu0 %v1844
        %1896 = vmatprep.subr.bf16.mxu0 0
        %1897 = vmatpush1.bf16.msra.mxu0 0
        %1898 = vmatprep.subr.bf16.mxu0 0
        %1899 = vmatpush1.bf16.msra.mxu0 0
        %1900 = vmatprep.subr.bf16.mxu0 0
        %1901 = vmatpush1.bf16.msra.mxu0 0
        %1902 = vmatprep.subr.bf16.mxu0 0
        %1903 = vmatpush1.bf16.msra.mxu0 0
        %1904 = vmatprep.subr.bf16.mxu0 0
        %1905 = vmatpush1.bf16.msra.mxu0 0
        %1906 = vmatprep.subr.bf16.mxu0 0
        %1907 = vmatpush1.bf16.msra.mxu0 0
        %1908 = vmatprep.subr.bf16.mxu0 0
        %1909 = vmatpush1.bf16.msra.mxu0 0
        %1910 = vmatprep.subr.bf16.mxu0 0
        %1911 = vmatpush1.bf16.msra.mxu0 0
        %1912 = vmatprep.mubr.bf16.mxu0 0
        %1913 = vmatmul.mubr.bf16.gmra.mrb[0].mxu0 0
        %v1914 = vpop.f32.mrb[0].mxu0
        %v1915 = vadd.f32 0.0, %v1914
        %v1916 = vpop.f32.mrb[0].mxu0
        %v1917 = vadd.f32 0.0, %v1916
        %v1918 = vpop.f32.mrb[0].mxu0
        %v1919 = vpop.f32.mrb[0].mxu0
        %1920 = vdwg.mxu0
        %1921 = vmatprep.subr.bf16.mxu0 %v1819
        %1922 = vmatpush1.bf16.msra.mxu0 %v1818
        %1923 = vmatprep.subr.bf16.mxu0 %v1823
        %1924 = vmatpush1.bf16.msra.mxu0 %v1822
        %1925 = vmatprep.subr.bf16.mxu0 %v1827
        %1926 = vmatpush1.bf16.msra.mxu0 %v1826
        %1927 = vmatprep.subr.bf16.mxu0 %v1831
        %1928 = vmatpush1.bf16.msra.mxu0 %v1830
        %1929 = vmatprep.subr.bf16.mxu0 %v1835
        %1930 = vmatpush1.bf16.msra.mxu0 %v1834
        %1931 = vmatprep.subr.bf16.mxu0 %v1839
        %1932 = vmatpush1.bf16.msra.mxu0 %v1838
        %1933 = vmatprep.subr.bf16.mxu0 %v1843
        %1934 = vmatpush1.bf16.msra.mxu0 %v1842
        %1935 = vmatprep.subr.bf16.mxu0 %v1847
        %1936 = vmatpush1.bf16.msra.mxu0 %v1846
        %1937 = vmatprep.subr.bf16.mxu0 0
        %1938 = vmatpush1.bf16.msra.mxu0 0
        %1939 = vmatprep.subr.bf16.mxu0 0
        %1940 = vmatpush1.bf16.msra.mxu0 0
        %1941 = vmatprep.subr.bf16.mxu0 0
        %1942 = vmatpush1.bf16.msra.mxu0 0
        %1943 = vmatprep.subr.bf16.mxu0 0
        %1944 = vmatpush1.bf16.msra.mxu0 0
        %1945 = vmatprep.subr.bf16.mxu0 0
        %1946 = vmatpush1.bf16.msra.mxu0 0
        %1947 = vmatprep.subr.bf16.mxu0 0
        %1948 = vmatpush1.bf16.msra.mxu0 0
        %1949 = vmatprep.subr.bf16.mxu0 0
        %1950 = vmatpush1.bf16.msra.mxu0 0
        %1951 = vmatprep.subr.bf16.mxu0 0
        %1952 = vmatpush1.bf16.msra.mxu0 0
        %1953 = vmatprep.mubr.bf16.mxu0 0
        %1954 = vmatmul.mubr.bf16.gmra.mrb[0].mxu0 0
        %v1955 = vpop.f32.mrb[0].mxu0
        %v1956 = vadd.f32 0.0, %v1955
        %v1957 = vpop.f32.mrb[0].mxu0
        %v1958 = vadd.f32 0.0, %v1957
        %v1959 = vpop.f32.mrb[0].mxu0
        %v1960 = vpop.f32.mrb[0].mxu0
        %1961 = vdwg.mxu0
        %v1962 = vadd.f32 %v1684, %v1915
        %v1963 = vadd.f32 %v1685, %v1917
        %v1964 = vadd.f32 %v1686, %v1956
        %v1965 = vadd.f32 %v1687, %v1958
        %v1966 = vxor.u32 %v1962, 2147483648
        %v1967 = vmul.f32 %v1966, 1.442695
        %v1968 = vpow.pop %v1967
        %v1969 = vadd.f32 %v1968, 1.0
        %v1970 = vrcp.pop %v1969
        %v1971 = vmul.f32 1.0, %v1970
        %v1972 = vxor.u32 %v1963, 2147483648
        %v1973 = vmul.f32 %v1972, 1.442695
        %v1974 = vpow.pop %v1973
        %v1975 = vadd.f32 %v1974, 1.0
        %v1976 = vrcp.pop %v1975
        %v1977 = vmul.f32 1.0, %v1976
        %v1978 = vtanh.pop %v1964
        %v1979 = vxor.u32 %v1965, 2147483648
        %v1980 = vmul.f32 %v1979, 1.442695
        %v1981 = vpow.pop %v1980
        %v1982 = vadd.f32 %v1981, 1.0
        %v1983 = vrcp.pop %v1982
        %v1984 = vmul.f32 1.0, %v1983
        %v1985 = vmul.f32 %v1977, 0.0
        %v1986 = vmul.f32 %v1971, %v1978
        %v1987 = vadd.f32 %v1985, %v1986
        %v1988 = vtanh.pop %v1987
        %v1989 = vmul.f32 %v1984, %v1988
        %s1990 = scalar_select %p374, 1, 0
        %v1991 = vstv %s1990
        %vm1992 = vcmp.eq.s32.totalorder %v1991, 1
        %v1993 = vsel %vm1992, %v1987, %v1989
        %v1994 = vld [vmem:[#allocation2 + $0x20] sm:$0xff]
        %v1995 = vld [vmem:[#allocation2 + $0x28] sm:$0xff]
        %v1996 = vld [vmem:[#allocation2 + $0x30] sm:$0xff]
        %v1997 = vld [vmem:[#allocation2 + $0x38] sm:$0xff]
        %v1998 = vpack.c.bf16 %v1989, %v1989
        %1999 = vmatprep.subr.bf16.mxu0 %v1817
        %2000 = vmatpush1.bf16.msra.mxu0 %v1816
        %2001 = vmatprep.subr.bf16.mxu0 %v1821
        %2002 = vmatpush1.bf16.msra.mxu0 %v1820
        %2003 = vmatprep.subr.bf16.mxu0 %v1825
        %2004 = vmatpush1.bf16.msra.mxu0 %v1824
        %2005 = vmatprep.subr.bf16.mxu0 %v1829
        %2006 = vmatpush1.bf16.msra.mxu0 %v1828
        %2007 = vmatprep.subr.bf16.mxu0 %v1833
        %2008 = vmatpush1.bf16.msra.mxu0 %v1832
        %2009 = vmatprep.subr.bf16.mxu0 %v1837
        %2010 = vmatpush1.bf16.msra.mxu0 %v1836
        %2011 = vmatprep.subr.bf16.mxu0 %v1841
        %2012 = vmatpush1.bf16.msra.mxu0 %v1840
        %2013 = vmatprep.subr.bf16.mxu0 %v1845
        %2014 = vmatpush1.bf16.msra.mxu0 %v1844
        %2015 = vmatprep.subr.bf16.mxu0 0
        %2016 = vmatpush1.bf16.msra.mxu0 0
        %2017 = vmatprep.subr.bf16.mxu0 0
        %2018 = vmatpush1.bf16.msra.mxu0 0
        %2019 = vmatprep.subr.bf16.mxu0 0
        %2020 = vmatpush1.bf16.msra.mxu0 0
        %2021 = vmatprep.subr.bf16.mxu0 0
        %2022 = vmatpush1.bf16.msra.mxu0 0
        %2023 = vmatprep.subr.bf16.mxu0 0
        %2024 = vmatpush1.bf16.msra.mxu0 0
        %2025 = vmatprep.subr.bf16.mxu0 0
        %2026 = vmatpush1.bf16.msra.mxu0 0
        %2027 = vmatprep.subr.bf16.mxu0 0
        %2028 = vmatpush1.bf16.msra.mxu0 0
        %2029 = vmatprep.subr.bf16.mxu0 0
        %2030 = vmatpush1.bf16.msra.mxu0 0
        %2031 = vmatprep.mubr.bf16.mxu0 0
        %2032 = vmatmul.mubr.bf16.gmra.mrb[0].mxu0 %v1998
        %v2033 = vpop.f32.mrb[0].mxu0
        %v2034 = vadd.f32 0.0, %v2033
        %v2035 = vpop.f32.mrb[0].mxu0
        %v2036 = vadd.f32 0.0, %v2035
        %v2037 = vpop.f32.mrb[0].mxu0
        %v2038 = vpop.f32.mrb[0].mxu0
        %2039 = vdwg.mxu0
        %2040 = vmatprep.subr.bf16.mxu0 %v1819
        %2041 = vmatpush1.bf16.msra.mxu0 %v1818
        %2042 = vmatprep.subr.bf16.mxu0 %v1823
        %2043 = vmatpush1.bf16.msra.mxu0 %v1822
        %2044 = vmatprep.subr.bf16.mxu0 %v1827
        %2045 = vmatpush1.bf16.msra.mxu0 %v1826
        %2046 = vmatprep.subr.bf16.mxu0 %v1831
        %2047 = vmatpush1.bf16.msra.mxu0 %v1830
        %2048 = vmatprep.subr.bf16.mxu0 %v1835
        %2049 = vmatpush1.bf16.msra.mxu0 %v1834
        %2050 = vmatprep.subr.bf16.mxu0 %v1839
        %2051 = vmatpush1.bf16.msra.mxu0 %v1838
        %2052 = vmatprep.subr.bf16.mxu0 %v1843
        %2053 = vmatpush1.bf16.msra.mxu0 %v1842
        %2054 = vmatprep.subr.bf16.mxu0 %v1847
        %2055 = vmatpush1.bf16.msra.mxu0 %v1846
        %2056 = vmatprep.subr.bf16.mxu0 0
        %2057 = vmatpush1.bf16.msra.mxu0 0
        %2058 = vmatprep.subr.bf16.mxu0 0
        %2059 = vmatpush1.bf16.msra.mxu0 0
        %2060 = vmatprep.subr.bf16.mxu0 0
        %2061 = vmatpush1.bf16.msra.mxu0 0
        %2062 = vmatprep.subr.bf16.mxu0 0
        %2063 = vmatpush1.bf16.msra.mxu0 0
        %2064 = vmatprep.subr.bf16.mxu0 0
        %2065 = vmatpush1.bf16.msra.mxu0 0
        %2066 = vmatprep.subr.bf16.mxu0 0
        %2067 = vmatpush1.bf16.msra.mxu0 0
        %2068 = vmatprep.subr.bf16.mxu0 0
        %2069 = vmatpush1.bf16.msra.mxu0 0
        %2070 = vmatprep.subr.bf16.mxu0 0
        %2071 = vmatpush1.bf16.msra.mxu0 0
        %2072 = vmatprep.mubr.bf16.mxu0 0
        %2073 = vmatmul.mubr.bf16.gmra.mrb[0].mxu0 %v1998
        %v2074 = vpop.f32.mrb[0].mxu0
        %v2075 = vadd.f32 0.0, %v2074
        %v2076 = vpop.f32.mrb[0].mxu0
        %v2077 = vadd.f32 0.0, %v2076
        %v2078 = vpop.f32.mrb[0].mxu0
        %v2079 = vpop.f32.mrb[0].mxu0
        %2080 = vdwg.mxu0
        %v2081 = vadd.f32 %v1994, %v2034
        %v2082 = vadd.f32 %v1995, %v2036
        %v2083 = vadd.f32 %v1996, %v2075
        %v2084 = vadd.f32 %v1997, %v2077
        %v2085 = vxor.u32 %v2081, 2147483648
        %v2086 = vmul.f32 %v2085, 1.442695
        %v2087 = vpow.pop %v2086
        %v2088 = vadd.f32 %v2087, 1.0
        %v2089 = vrcp.pop %v2088
        %v2090 = vmul.f32 1.0, %v2089
        %v2091 = vxor.u32 %v2082, 2147483648
        %v2092 = vmul.f32 %v2091, 1.442695
        %v2093 = vpow.pop %v2092
        %v2094 = vadd.f32 %v2093, 1.0
        %v2095 = vrcp.pop %v2094
        %v2096 = vmul.f32 1.0, %v2095
        %v2097 = vtanh.pop %v2083
        %v2098 = vxor.u32 %v2084, 2147483648
        %v2099 = vmul.f32 %v2098, 1.442695
        %v2100 = vpow.pop %v2099
        %v2101 = vadd.f32 %v2100, 1.0
        %v2102 = vrcp.pop %v2101
        %v2103 = vmul.f32 1.0, %v2102
        %v2104 = vmul.f32 %v2096, %v1987
        %v2105 = vmul.f32 %v2090, %v2097
        %v2106 = vadd.f32 %v2104, %v2105
        %v2107 = vtanh.pop %v2106
        %v2108 = vmul.f32 %v2103, %v2107
        %v2109 = vsel %vm1992, %v2106, %v2108
        %v2110 = vadd.f32 %v1993, %v2109
        %v2111 = vld [vmem:[#allocation2 + $0x40] sm:$0xff]
        %v2112 = vld [vmem:[#allocation2 + $0x48] sm:$0xff]
        %v2113 = vld [vmem:[#allocation2 + $0x50] sm:$0xff]
        %v2114 = vld [vmem:[#allocation2 + $0x58] sm:$0xff]
        %v2115 = vpack.c.bf16 %v2108, %v2108
        %2116 = vmatprep.subr.bf16.mxu0 %v1817
        %2117 = vmatpush1.bf16.msra.mxu0 %v1816
        %2118 = vmatprep.subr.bf16.mxu0 %v1821
        %2119 = vmatpush1.bf16.msra.mxu0 %v1820
        %2120 = vmatprep.subr.bf16.mxu0 %v1825
        %2121 = vmatpush1.bf16.msra.mxu0 %v1824
        %2122 = vmatprep.subr.bf16.mxu0 %v1829
        %2123 = vmatpush1.bf16.msra.mxu0 %v1828
        %2124 = vmatprep.subr.bf16.mxu0 %v1833
        %2125 = vmatpush1.bf16.msra.mxu0 %v1832
        %2126 = vmatprep.subr.bf16.mxu0 %v1837
        %2127 = vmatpush1.bf16.msra.mxu0 %v1836
        %2128 = vmatprep.subr.bf16.mxu0 %v1841
        %2129 = vmatpush1.bf16.msra.mxu0 %v1840
        %2130 = vmatprep.subr.bf16.mxu0 %v1845
        %2131 = vmatpush1.bf16.msra.mxu0 %v1844
        %2132 = vmatprep.subr.bf16.mxu0 0
        %2133 = vmatpush1.bf16.msra.mxu0 0
        %2134 = vmatprep.subr.bf16.mxu0 0
        %2135 = vmatpush1.bf16.msra.mxu0 0
        %2136 = vmatprep.subr.bf16.mxu0 0
        %2137 = vmatpush1.bf16.msra.mxu0 0
        %2138 = vmatprep.subr.bf16.mxu0 0
        %2139 = vmatpush1.bf16.msra.mxu0 0
        %2140 = vmatprep.subr.bf16.mxu0 0
        %2141 = vmatpush1.bf16.msra.mxu0 0
        %2142 = vmatprep.subr.bf16.mxu0 0
        %2143 = vmatpush1.bf16.msra.mxu0 0
        %2144 = vmatprep.subr.bf16.mxu0 0
        %2145 = vmatpush1.bf16.msra.mxu0 0
        %2146 = vmatprep.subr.bf16.mxu0 0
        %2147 = vmatpush1.bf16.msra.mxu0 0
        %2148 = vmatprep.mubr.bf16.mxu0 0
        %2149 = vmatmul.mubr.bf16.gmra.mrb[0].mxu0 %v2115
        %v2150 = vpop.f32.mrb[0].mxu0
        %v2151 = vadd.f32 0.0, %v2150
        %v2152 = vpop.f32.mrb[0].mxu0
        %v2153 = vadd.f32 0.0, %v2152
        %v2154 = vpop.f32.mrb[0].mxu0
        %v2155 = vpop.f32.mrb[0].mxu0
        %2156 = vdwg.mxu0
        %2157 = vmatprep.subr.bf16.mxu0 %v1819
        %2158 = vmatpush1.bf16.msra.mxu0 %v1818
        %2159 = vmatprep.subr.bf16.mxu0 %v1823
        %2160 = vmatpush1.bf16.msra.mxu0 %v1822
        %2161 = vmatprep.subr.bf16.mxu0 %v1827
        %2162 = vmatpush1.bf16.msra.mxu0 %v1826
        %2163 = vmatprep.subr.bf16.mxu0 %v1831
        %2164 = vmatpush1.bf16.msra.mxu0 %v1830
        %2165 = vmatprep.subr.bf16.mxu0 %v1835
        %2166 = vmatpush1.bf16.msra.mxu0 %v1834
        %2167 = vmatprep.subr.bf16.mxu0 %v1839
        %2168 = vmatpush1.bf16.msra.mxu0 %v1838
        %2169 = vmatprep.subr.bf16.mxu0 %v1843
        %2170 = vmatpush1.bf16.msra.mxu0 %v1842
        %2171 = vmatprep.subr.bf16.mxu0 %v1847
        %2172 = vmatpush1.bf16.msra.mxu0 %v1846
        %2173 = vmatprep.subr.bf16.mxu0 0
        %2174 = vmatpush1.bf16.msra.mxu0 0
        %2175 = vmatprep.subr.bf16.mxu0 0
        %2176 = vmatpush1.bf16.msra.mxu0 0
        %2177 = vmatprep.subr.bf16.mxu0 0
        %2178 = vmatpush1.bf16.msra.mxu0 0
        %2179 = vmatprep.subr.bf16.mxu0 0
        %2180 = vmatpush1.bf16.msra.mxu0 0
        %2181 = vmatprep.subr.bf16.mxu0 0
        %2182 = vmatpush1.bf16.msra.mxu0 0
        %2183 = vmatprep.subr.bf16.mxu0 0
        %2184 = vmatpush1.bf16.msra.mxu0 0
        %2185 = vmatprep.subr.bf16.mxu0 0
        %2186 = vmatpush1.bf16.msra.mxu0 0
        %2187 = vmatprep.subr.bf16.mxu0 0
        %2188 = vmatpush1.bf16.msra.mxu0 0
        %2189 = vmatprep.mubr.bf16.mxu0 0
        %2190 = vmatmul.mubr.bf16.gmra.mrb[0].mxu0 %v2115
        %v2191 = vpop.f32.mrb[0].mxu0
        %v2192 = vadd.f32 0.0, %v2191
        %v2193 = vpop.f32.mrb[0].mxu0
        %v2194 = vadd.f32 0.0, %v2193
        %v2195 = vpop.f32.mrb[0].mxu0
        %v2196 = vpop.f32.mrb[0].mxu0
        %2197 = vdwg.mxu0
        %v2198 = vadd.f32 %v2111, %v2151
        %v2199 = vadd.f32 %v2112, %v2153
        %v2200 = vadd.f32 %v2113, %v2192
        %v2201 = vadd.f32 %v2114, %v2194
        %v2202 = vxor.u32 %v2198, 2147483648
        %v2203 = vmul.f32 %v2202, 1.442695
        %v2204 = vpow.pop %v2203
        %v2205 = vadd.f32 %v2204, 1.0
        %v2206 = vrcp.pop %v2205
        %v2207 = vmul.f32 1.0, %v2206
        %v2208 = vxor.u32 %v2199, 2147483648
        %v2209 = vmul.f32 %v2208, 1.442695
        %v2210 = vpow.pop %v2209
        %v2211 = vadd.f32 %v2210, 1.0
        %v2212 = vrcp.pop %v2211
        %v2213 = vmul.f32 1.0, %v2212
        %v2214 = vtanh.pop %v2200
        %v2215 = vxor.u32 %v2201, 2147483648
        %v2216 = vmul.f32 %v2215, 1.442695
        %v2217 = vpow.pop %v2216
        %v2218 = vadd.f32 %v2217, 1.0
        %v2219 = vrcp.pop %v2218
        %v2220 = vmul.f32 1.0, %v2219
        %v2221 = vmul.f32 %v2213, %v2106
        %v2222 = vmul.f32 %v2207, %v2214
        %v2223 = vadd.f32 %v2221, %v2222
        %v2224 = vtanh.pop %v2223
        %v2225 = vmul.f32 %v2220, %v2224
        %v2226 = vsel %vm1992, %v2223, %v2225
        %v2227 = vadd.f32 %v2110, %v2226
        %v2228 = vld [vmem:[#allocation2 + $0x60] sm:$0xff]
        %v2229 = vld [vmem:[#allocation2 + $0x68] sm:$0xff]
        %v2230 = vld [vmem:[#allocation2 + $0x70] sm:$0xff]
        %v2231 = vld [vmem:[#allocation2 + $0x78] sm:$0xff]
        %v2232 = vpack.c.bf16 %v2225, %v2225
        %2233 = vmatprep.subr.bf16.mxu0 %v1817
        %2234 = vmatpush1.bf16.msra.mxu0 %v1816
        %2235 = vmatprep.subr.bf16.mxu0 %v1821
        %2236 = vmatpush1.bf16.msra.mxu0 %v1820
        %2237 = vmatprep.subr.bf16.mxu0 %v1825
        %2238 = vmatpush1.bf16.msra.mxu0 %v1824
        %2239 = vmatprep.subr.bf16.mxu0 %v1829
        %2240 = vmatpush1.bf16.msra.mxu0 %v1828
        %2241 = vmatprep.subr.bf16.mxu0 %v1833
        %2242 = vmatpush1.bf16.msra.mxu0 %v1832
        %2243 = vmatprep.subr.bf16.mxu0 %v1837
        %2244 = vmatpush1.bf16.msra.mxu0 %v1836
        %2245 = vmatprep.subr.bf16.mxu0 %v1841
        %2246 = vmatpush1.bf16.msra.mxu0 %v1840
        %2247 = vmatprep.subr.bf16.mxu0 %v1845
        %2248 = vmatpush1.bf16.msra.mxu0 %v1844
        %2249 = vmatprep.subr.bf16.mxu0 0
        %2250 = vmatpush1.bf16.msra.mxu0 0
        %2251 = vmatprep.subr.bf16.mxu0 0
        %2252 = vmatpush1.bf16.msra.mxu0 0
        %2253 = vmatprep.subr.bf16.mxu0 0
        %2254 = vmatpush1.bf16.msra.mxu0 0
        %2255 = vmatprep.subr.bf16.mxu0 0
        %2256 = vmatpush1.bf16.msra.mxu0 0
        %2257 = vmatprep.subr.bf16.mxu0 0
        %2258 = vmatpush1.bf16.msra.mxu0 0
        %2259 = vmatprep.subr.bf16.mxu0 0
        %2260 = vmatpush1.bf16.msra.mxu0 0
        %2261 = vmatprep.subr.bf16.mxu0 0
        %2262 = vmatpush1.bf16.msra.mxu0 0
        %2263 = vmatprep.subr.bf16.mxu0 0
        %2264 = vmatpush1.bf16.msra.mxu0 0
        %2265 = vmatprep.mubr.bf16.mxu0 0
        %2266 = vmatmul.mubr.bf16.gmra.mrb[0].mxu0 %v2232
        %v2267 = vpop.f32.mrb[0].mxu0
        %v2268 = vadd.f32 0.0, %v2267
        %v2269 = vpop.f32.mrb[0].mxu0
        %v2270 = vadd.f32 0.0, %v2269
        %v2271 = vpop.f32.mrb[0].mxu0
        %v2272 = vpop.f32.mrb[0].mxu0
        %2273 = vdwg.mxu0
        %2274 = vmatprep.subr.bf16.mxu0 %v1819
        %2275 = vmatpush1.bf16.msra.mxu0 %v1818
        %2276 = vmatprep.subr.bf16.mxu0 %v1823
        %2277 = vmatpush1.bf16.msra.mxu0 %v1822
        %2278 = vmatprep.subr.bf16.mxu0 %v1827
        %2279 = vmatpush1.bf16.msra.mxu0 %v1826
        %2280 = vmatprep.subr.bf16.mxu0 %v1831
        %2281 = vmatpush1.bf16.msra.mxu0 %v1830
        %2282 = vmatprep.subr.bf16.mxu0 %v1835
        %2283 = vmatpush1.bf16.msra.mxu0 %v1834
        %2284 = vmatprep.subr.bf16.mxu0 %v1839
        %2285 = vmatpush1.bf16.msra.mxu0 %v1838
        %2286 = vmatprep.subr.bf16.mxu0 %v1843
        %2287 = vmatpush1.bf16.msra.mxu0 %v1842
        %2288 = vmatprep.subr.bf16.mxu0 %v1847
        %2289 = vmatpush1.bf16.msra.mxu0 %v1846
        %2290 = vmatprep.subr.bf16.mxu0 0
        %2291 = vmatpush1.bf16.msra.mxu0 0
        %2292 = vmatprep.subr.bf16.mxu0 0
        %2293 = vmatpush1.bf16.msra.mxu0 0
        %2294 = vmatprep.subr.bf16.mxu0 0
        %2295 = vmatpush1.bf16.msra.mxu0 0
        %2296 = vmatprep.subr.bf16.mxu0 0
        %2297 = vmatpush1.bf16.msra.mxu0 0
        %2298 = vmatprep.subr.bf16.mxu0 0
        %2299 = vmatpush1.bf16.msra.mxu0 0
        %2300 = vmatprep.subr.bf16.mxu0 0
        %2301 = vmatpush1.bf16.msra.mxu0 0
        %2302 = vmatprep.subr.bf16.mxu0 0
        %2303 = vmatpush1.bf16.msra.mxu0 0
        %2304 = vmatprep.subr.bf16.mxu0 0
        %2305 = vmatpush1.bf16.msra.mxu0 0
        %2306 = vmatprep.mubr.bf16.mxu0 0
        %2307 = vmatmul.mubr.bf16.gmra.mrb[0].mxu0 %v2232
        %v2308 = vpop.f32.mrb[0].mxu0
        %v2309 = vadd.f32 0.0, %v2308
        %v2310 = vpop.f32.mrb[0].mxu0
        %v2311 = vadd.f32 0.0, %v2310
        %v2312 = vpop.f32.mrb[0].mxu0
        %v2313 = vpop.f32.mrb[0].mxu0
        %2314 = vdwg.mxu0
        %v2315 = vadd.f32 %v2228, %v2268
        %v2316 = vadd.f32 %v2229, %v2270
        %v2317 = vadd.f32 %v2230, %v2309
        %v2318 = vadd.f32 %v2231, %v2311
        %v2319 = vxor.u32 %v2315, 2147483648
        %v2320 = vmul.f32 %v2319, 1.442695
        %v2321 = vpow.pop %v2320
        %v2322 = vadd.f32 %v2321, 1.0
        %v2323 = vrcp.pop %v2322
        %v2324 = vmul.f32 1.0, %v2323
        %v2325 = vxor.u32 %v2316, 2147483648
        %v2326 = vmul.f32 %v2325, 1.442695
        %v2327 = vpow.pop %v2326
        %v2328 = vadd.f32 %v2327, 1.0
        %v2329 = vrcp.pop %v2328
        %v2330 = vmul.f32 1.0, %v2329
        %v2331 = vtanh.pop %v2317
        %v2332 = vxor.u32 %v2318, 2147483648
        %v2333 = vmul.f32 %v2332, 1.442695
        %v2334 = vpow.pop %v2333
        %v2335 = vadd.f32 %v2334, 1.0
        %v2336 = vrcp.pop %v2335
        %v2337 = vmul.f32 1.0, %v2336
        %v2338 = vmul.f32 %v2330, %v2223
        %v2339 = vmul.f32 %v2324, %v2331
        %v2340 = vadd.f32 %v2338, %v2339
        %v2341 = vtanh.pop %v2340
        %v2342 = vmul.f32 %v2337, %v2341
        %v2343 = vsel %vm1992, %v2340, %v2342
        %v2344 = vadd.f32 %v2226, %v2343
        %v2345 = vld [vmem:[#allocation2 + $0x80] sm:$0xff]
        %v2346 = vld [vmem:[#allocation2 + $0x88] sm:$0xff]
        %v2347 = vld [vmem:[#allocation2 + $0x90] sm:$0xff]
        %v2348 = vld [vmem:[#allocation2 + $0x98] sm:$0xff]
        %v2349 = vpack.c.bf16 %v2342, %v2342
        %2350 = vmatprep.subr.bf16.mxu0 %v1817
        %2351 = vmatpush1.bf16.msra.mxu0 %v1816
        %2352 = vmatprep.subr.bf16.mxu0 %v1821
        %2353 = vmatpush1.bf16.msra.mxu0 %v1820
        %2354 = vmatprep.subr.bf16.mxu0 %v1825
        %2355 = vmatpush1.bf16.msra.mxu0 %v1824
        %2356 = vmatprep.subr.bf16.mxu0 %v1829
        %2357 = vmatpush1.bf16.msra.mxu0 %v1828
        %2358 = vmatprep.subr.bf16.mxu0 %v1833
        %2359 = vmatpush1.bf16.msra.mxu0 %v1832
        %2360 = vmatprep.subr.bf16.mxu0 %v1837
        %2361 = vmatpush1.bf16.msra.mxu0 %v1836
        %2362 = vmatprep.subr.bf16.mxu0 %v1841
        %2363 = vmatpush1.bf16.msra.mxu0 %v1840
        %2364 = vmatprep.subr.bf16.mxu0 %v1845
        %2365 = vmatpush1.bf16.msra.mxu0 %v1844
        %2366 = vmatprep.subr.bf16.mxu0 0
        %2367 = vmatpush1.bf16.msra.mxu0 0
        %2368 = vmatprep.subr.bf16.mxu0 0
        %2369 = vmatpush1.bf16.msra.mxu0 0
        %2370 = vmatprep.subr.bf16.mxu0 0
        %2371 = vmatpush1.bf16.msra.mxu0 0
        %2372 = vmatprep.subr.bf16.mxu0 0
        %2373 = vmatpush1.bf16.msra.mxu0 0
        %2374 = vmatprep.subr.bf16.mxu0 0
        %2375 = vmatpush1.bf16.msra.mxu0 0
        %2376 = vmatprep.subr.bf16.mxu0 0
        %2377 = vmatpush1.bf16.msra.mxu0 0
        %2378 = vmatprep.subr.bf16.mxu0 0
        %2379 = vmatpush1.bf16.msra.mxu0 0
        %2380 = vmatprep.subr.bf16.mxu0 0
        %2381 = vmatpush1.bf16.msra.mxu0 0
        %2382 = vmatprep.mubr.bf16.mxu0 0
        %2383 = vmatmul.mubr.bf16.gmra.mrb[0].mxu0 %v2349
        %v2384 = vpop.f32.mrb[0].mxu0
        %v2385 = vadd.f32 0.0, %v2384
        %v2386 = vpop.f32.mrb[0].mxu0
        %v2387 = vadd.f32 0.0, %v2386
        %v2388 = vpop.f32.mrb[0].mxu0
        %v2389 = vpop.f32.mrb[0].mxu0
        %2390 = vdwg.mxu0
        %2391 = vmatprep.subr.bf16.mxu0 %v1819
        %2392 = vmatpush1.bf16.msra.mxu0 %v1818
        %2393 = vmatprep.subr.bf16.mxu0 %v1823
        %2394 = vmatpush1.bf16.msra.mxu0 %v1822
        %2395 = vmatprep.subr.bf16.mxu0 %v1827
        %2396 = vmatpush1.bf16.msra.mxu0 %v1826
        %2397 = vmatprep.subr.bf16.mxu0 %v1831
        %2398 = vmatpush1.bf16.msra.mxu0 %v1830
        %2399 = vmatprep.subr.bf16.mxu0 %v1835
        %2400 = vmatpush1.bf16.msra.mxu0 %v1834
        %2401 = vmatprep.subr.bf16.mxu0 %v1839
        %2402 = vmatpush1.bf16.msra.mxu0 %v1838
        %2403 = vmatprep.subr.bf16.mxu0 %v1843
        %2404 = vmatpush1.bf16.msra.mxu0 %v1842
        %2405 = vmatprep.subr.bf16.mxu0 %v1847
        %2406 = vmatpush1.bf16.msra.mxu0 %v1846
        %2407 = vmatprep.subr.bf16.mxu0 0
        %2408 = vmatpush1.bf16.msra.mxu0 0
        %2409 = vmatprep.subr.bf16.mxu0 0
        %2410 = vmatpush1.bf16.msra.mxu0 0
        %2411 = vmatprep.subr.bf16.mxu0 0
        %2412 = vmatpush1.bf16.msra.mxu0 0
        %2413 = vmatprep.subr.bf16.mxu0 0
        %2414 = vmatpush1.bf16.msra.mxu0 0
        %2415 = vmatprep.subr.bf16.mxu0 0
        %2416 = vmatpush1.bf16.msra.mxu0 0
        %2417 = vmatprep.subr.bf16.mxu0 0
        %2418 = vmatpush1.bf16.msra.mxu0 0
        %2419 = vmatprep.subr.bf16.mxu0 0
        %2420 = vmatpush1.bf16.msra.mxu0 0
        %2421 = vmatprep.subr.bf16.mxu0 0
        %2422 = vmatpush1.bf16.msra.mxu0 0
        %2423 = vmatprep.mubr.bf16.mxu0 0
        %2424 = vmatmul.mubr.bf16.gmra.mrb[0].mxu0 %v2349
        %v2425 = vpop.f32.mrb[0].mxu0
        %v2426 = vadd.f32 0.0, %v2425
        %v2427 = vpop.f32.mrb[0].mxu0
        %v2428 = vadd.f32 0.0, %v2427
        %v2429 = vpop.f32.mrb[0].mxu0
        %v2430 = vpop.f32.mrb[0].mxu0
        %2431 = vdwg.mxu0
        %v2432 = vadd.f32 %v2345, %v2385
        %v2433 = vadd.f32 %v2346, %v2387
        %v2434 = vadd.f32 %v2347, %v2426
        %v2435 = vadd.f32 %v2348, %v2428
        %v2436 = vxor.u32 %v2432, 2147483648
        %v2437 = vmul.f32 %v2436, 1.442695
        %v2438 = vpow.pop %v2437
        %v2439 = vadd.f32 %v2438, 1.0
        %v2440 = vrcp.pop %v2439
        %v2441 = vmul.f32 1.0, %v2440
        %v2442 = vxor.u32 %v2433, 2147483648
        %v2443 = vmul.f32 %v2442, 1.442695
        %v2444 = vpow.pop %v2443
        %v2445 = vadd.f32 %v2444, 1.0
        %v2446 = vrcp.pop %v2445
        %v2447 = vmul.f32 1.0, %v2446
        %v2448 = vtanh.pop %v2434
        %v2449 = vxor.u32 %v2435, 2147483648
        %v2450 = vmul.f32 %v2449, 1.442695
        %v2451 = vpow.pop %v2450
        %v2452 = vadd.f32 %v2451, 1.0
        %v2453 = vrcp.pop %v2452
        %v2454 = vmul.f32 1.0, %v2453
        %v2455 = vmul.f32 %v2447, %v2340
        %v2456 = vmul.f32 %v2441, %v2448
        %v2457 = vadd.f32 %v2455, %v2456
        %v2458 = vtanh.pop %v2457
        %v2459 = vmul.f32 %v2454, %v2458
        %v2460 = vsel %vm1992, %v2457, %v2459
        %v2461 = vadd.f32 %v2344, %v2460
        %v2462 = vld [vmem:[#allocation2 + $0xa0] sm:$0xff]
        %v2463 = vld [vmem:[#allocation2 + $0xa8] sm:$0xff]
        %v2464 = vld [vmem:[#allocation2 + $0xb0] sm:$0xff]
        %v2465 = vld [vmem:[#allocation2 + $0xb8] sm:$0xff]
        %v2466 = vpack.c.bf16 %v2459, %v2459
        %2467 = vmatprep.subr.bf16.mxu0 %v1817
        %2468 = vmatpush1.bf16.msra.mxu0 %v1816
        %2469 = vmatprep.subr.bf16.mxu0 %v1821
        %2470 = vmatpush1.bf16.msra.mxu0 %v1820
        %2471 = vmatprep.subr.bf16.mxu0 %v1825
        %2472 = vmatpush1.bf16.msra.mxu0 %v1824
        %2473 = vmatprep.subr.bf16.mxu0 %v1829
        %2474 = vmatpush1.bf16.msra.mxu0 %v1828
        %2475 = vmatprep.subr.bf16.mxu0 %v1833
        %2476 = vmatpush1.bf16.msra.mxu0 %v1832
        %2477 = vmatprep.subr.bf16.mxu0 %v1837
        %2478 = vmatpush1.bf16.msra.mxu0 %v1836
        %2479 = vmatprep.subr.bf16.mxu0 %v1841
        %2480 = vmatpush1.bf16.msra.mxu0 %v1840
        %2481 = vmatprep.subr.bf16.mxu0 %v1845
        %2482 = vmatpush1.bf16.msra.mxu0 %v1844
        %2483 = vmatprep.subr.bf16.mxu0 0
        %2484 = vmatpush1.bf16.msra.mxu0 0
        %2485 = vmatprep.subr.bf16.mxu0 0
        %2486 = vmatpush1.bf16.msra.mxu0 0
        %2487 = vmatprep.subr.bf16.mxu0 0
        %2488 = vmatpush1.bf16.msra.mxu0 0
        %2489 = vmatprep.subr.bf16.mxu0 0
        %2490 = vmatpush1.bf16.msra.mxu0 0
        %2491 = vmatprep.subr.bf16.mxu0 0
        %2492 = vmatpush1.bf16.msra.mxu0 0
        %2493 = vmatprep.subr.bf16.mxu0 0
        %2494 = vmatpush1.bf16.msra.mxu0 0
        %2495 = vmatprep.subr.bf16.mxu0 0
        %2496 = vmatpush1.bf16.msra.mxu0 0
        %2497 = vmatprep.subr.bf16.mxu0 0
        %2498 = vmatpush1.bf16.msra.mxu0 0
        %2499 = vmatprep.mubr.bf16.mxu0 0
        %2500 = vmatmul.mubr.bf16.gmra.mrb[0].mxu0 %v2466
        %v2501 = vpop.f32.mrb[0].mxu0
        %v2502 = vadd.f32 0.0, %v2501
        %v2503 = vpop.f32.mrb[0].mxu0
        %v2504 = vadd.f32 0.0, %v2503
        %v2505 = vpop.f32.mrb[0].mxu0
        %v2506 = vpop.f32.mrb[0].mxu0
        %2507 = vdwg.mxu0
        %2508 = vmatprep.subr.bf16.mxu0 %v1819
        %2509 = vmatpush1.bf16.msra.mxu0 %v1818
        %2510 = vmatprep.subr.bf16.mxu0 %v1823
        %2511 = vmatpush1.bf16.msra.mxu0 %v1822
        %2512 = vmatprep.subr.bf16.mxu0 %v1827
        %2513 = vmatpush1.bf16.msra.mxu0 %v1826
        %2514 = vmatprep.subr.bf16.mxu0 %v1831
        %2515 = vmatpush1.bf16.msra.mxu0 %v1830
        %2516 = vmatprep.subr.bf16.mxu0 %v1835
        %2517 = vmatpush1.bf16.msra.mxu0 %v1834
        %2518 = vmatprep.subr.bf16.mxu0 %v1839
        %2519 = vmatpush1.bf16.msra.mxu0 %v1838
        %2520 = vmatprep.subr.bf16.mxu0 %v1843
        %2521 = vmatpush1.bf16.msra.mxu0 %v1842
        %2522 = vmatprep.subr.bf16.mxu0 %v1847
        %2523 = vmatpush1.bf16.msra.mxu0 %v1846
        %2524 = vmatprep.subr.bf16.mxu0 0
        %2525 = vmatpush1.bf16.msra.mxu0 0
        %2526 = vmatprep.subr.bf16.mxu0 0
        %2527 = vmatpush1.bf16.msra.mxu0 0
        %2528 = vmatprep.subr.bf16.mxu0 0
        %2529 = vmatpush1.bf16.msra.mxu0 0
        %2530 = vmatprep.subr.bf16.mxu0 0
        %2531 = vmatpush1.bf16.msra.mxu0 0
        %2532 = vmatprep.subr.bf16.mxu0 0
        %2533 = vmatpush1.bf16.msra.mxu0 0
        %2534 = vmatprep.subr.bf16.mxu0 0
        %2535 = vmatpush1.bf16.msra.mxu0 0
        %2536 = vmatprep.subr.bf16.mxu0 0
        %2537 = vmatpush1.bf16.msra.mxu0 0
        %2538 = vmatprep.subr.bf16.mxu0 0
        %2539 = vmatpush1.bf16.msra.mxu0 0
        %2540 = vmatprep.mubr.bf16.mxu0 0
        %2541 = vmatmul.mubr.bf16.gmra.mrb[0].mxu0 %v2466
        %v2542 = vpop.f32.mrb[0].mxu0
        %v2543 = vadd.f32 0.0, %v2542
        %v2544 = vpop.f32.mrb[0].mxu0
        %v2545 = vadd.f32 0.0, %v2544
        %v2546 = vpop.f32.mrb[0].mxu0
        %v2547 = vpop.f32.mrb[0].mxu0
        %2548 = vdwg.mxu0
        %v2549 = vadd.f32 %v2462, %v2502
        %v2550 = vadd.f32 %v2463, %v2504
        %v2551 = vadd.f32 %v2464, %v2543
        %v2552 = vadd.f32 %v2465, %v2545
        %v2553 = vxor.u32 %v2549, 2147483648
        %v2554 = vmul.f32 %v2553, 1.442695
        %v2555 = vpow.pop %v2554
        %v2556 = vadd.f32 %v2555, 1.0
        %v2557 = vrcp.pop %v2556
        %v2558 = vmul.f32 1.0, %v2557
        %v2559 = vxor.u32 %v2550, 2147483648
        %v2560 = vmul.f32 %v2559, 1.442695
        %v2561 = vpow.pop %v2560
        %v2562 = vadd.f32 %v2561, 1.0
        %v2563 = vrcp.pop %v2562
        %v2564 = vmul.f32 1.0, %v2563
        %v2565 = vtanh.pop %v2551
        %v2566 = vxor.u32 %v2552, 2147483648
        %v2567 = vmul.f32 %v2566, 1.442695
        %v2568 = vpow.pop %v2567
        %v2569 = vadd.f32 %v2568, 1.0
        %v2570 = vrcp.pop %v2569
        %v2571 = vmul.f32 1.0, %v2570
        %v2572 = vmul.f32 %v2564, %v2457
        %v2573 = vmul.f32 %v2558, %v2565
        %v2574 = vadd.f32 %v2572, %v2573
        %v2575 = vtanh.pop %v2574
        %v2576 = vmul.f32 %v2571, %v2575
        %v2577 = vsel %vm1992, %v2574, %v2576
        %v2578 = vadd.f32 %v2460, %v2577
        %v2579 = vld [vmem:[#allocation2 + $0xc0] sm:$0xff]
        %v2580 = vld [vmem:[#allocation2 + $0xc8] sm:$0xff]
        %v2581 = vld [vmem:[#allocation2 + $0xd0] sm:$0xff]
        %v2582 = vld [vmem:[#allocation2 + $0xd8] sm:$0xff]
        %v2583 = vpack.c.bf16 %v2576, %v2576
        %2584 = vmatprep.subr.bf16.mxu0 %v1817
        %2585 = vmatpush1.bf16.msra.mxu0 %v1816
        %2586 = vmatprep.subr.bf16.mxu0 %v1821
        %2587 = vmatpush1.bf16.msra.mxu0 %v1820
        %2588 = vmatprep.subr.bf16.mxu0 %v1825
        %2589 = vmatpush1.bf16.msra.mxu0 %v1824
        %2590 = vmatprep.subr.bf16.mxu0 %v1829
        %2591 = vmatpush1.bf16.msra.mxu0 %v1828
        %2592 = vmatprep.subr.bf16.mxu0 %v1833
        %2593 = vmatpush1.bf16.msra.mxu0 %v1832
        %2594 = vmatprep.subr.bf16.mxu0 %v1837
        %2595 = vmatpush1.bf16.msra.mxu0 %v1836
        %2596 = vmatprep.subr.bf16.mxu0 %v1841
        %2597 = vmatpush1.bf16.msra.mxu0 %v1840
        %2598 = vmatprep.subr.bf16.mxu0 %v1845
        %2599 = vmatpush1.bf16.msra.mxu0 %v1844
        %2600 = vmatprep.subr.bf16.mxu0 0
        %2601 = vmatpush1.bf16.msra.mxu0 0
        %2602 = vmatprep.subr.bf16.mxu0 0
        %2603 = vmatpush1.bf16.msra.mxu0 0
        %2604 = vmatprep.subr.bf16.mxu0 0
        %2605 = vmatpush1.bf16.msra.mxu0 0
        %2606 = vmatprep.subr.bf16.mxu0 0
        %2607 = vmatpush1.bf16.msra.mxu0 0
        %2608 = vmatprep.subr.bf16.mxu0 0
        %2609 = vmatpush1.bf16.msra.mxu0 0
        %2610 = vmatprep.subr.bf16.mxu0 0
        %2611 = vmatpush1.bf16.msra.mxu0 0
        %2612 = vmatprep.subr.bf16.mxu0 0
        %2613 = vmatpush1.bf16.msra.mxu0 0
        %2614 = vmatprep.subr.bf16.mxu0 0
        %2615 = vmatpush1.bf16.msra.mxu0 0
        %2616 = vmatprep.mubr.bf16.mxu0 0
        %2617 = vmatmul.mubr.bf16.gmra.mrb[0].mxu0 %v2583
        %v2618 = vpop.f32.mrb[0].mxu0
        %v2619 = vadd.f32 0.0, %v2618
        %v2620 = vpop.f32.mrb[0].mxu0
        %v2621 = vadd.f32 0.0, %v2620
        %v2622 = vpop.f32.mrb[0].mxu0
        %v2623 = vpop.f32.mrb[0].mxu0
        %2624 = vdwg.mxu0
        %2625 = vmatprep.subr.bf16.mxu0 %v1819
        %2626 = vmatpush1.bf16.msra.mxu0 %v1818
        %2627 = vmatprep.subr.bf16.mxu0 %v1823
        %2628 = vmatpush1.bf16.msra.mxu0 %v1822
        %2629 = vmatprep.subr.bf16.mxu0 %v1827
        %2630 = vmatpush1.bf16.msra.mxu0 %v1826
        %2631 = vmatprep.subr.bf16.mxu0 %v1831
        %2632 = vmatpush1.bf16.msra.mxu0 %v1830
        %2633 = vmatprep.subr.bf16.mxu0 %v1835
        %2634 = vmatpush1.bf16.msra.mxu0 %v1834
        %2635 = vmatprep.subr.bf16.mxu0 %v1839
        %2636 = vmatpush1.bf16.msra.mxu0 %v1838
        %2637 = vmatprep.subr.bf16.mxu0 %v1843
        %2638 = vmatpush1.bf16.msra.mxu0 %v1842
        %2639 = vmatprep.subr.bf16.mxu0 %v1847
        %2640 = vmatpush1.bf16.msra.mxu0 %v1846
        %2641 = vmatprep.subr.bf16.mxu0 0
        %2642 = vmatpush1.bf16.msra.mxu0 0
        %2643 = vmatprep.subr.bf16.mxu0 0
        %2644 = vmatpush1.bf16.msra.mxu0 0
        %2645 = vmatprep.subr.bf16.mxu0 0
        %2646 = vmatpush1.bf16.msra.mxu0 0
        %2647 = vmatprep.subr.bf16.mxu0 0
        %2648 = vmatpush1.bf16.msra.mxu0 0
        %2649 = vmatprep.subr.bf16.mxu0 0
        %2650 = vmatpush1.bf16.msra.mxu0 0
        %2651 = vmatprep.subr.bf16.mxu0 0
        %2652 = vmatpush1.bf16.msra.mxu0 0
        %2653 = vmatprep.subr.bf16.mxu0 0
        %2654 = vmatpush1.bf16.msra.mxu0 0
        %2655 = vmatprep.subr.bf16.mxu0 0
        %2656 = vmatpush1.bf16.msra.mxu0 0
        %2657 = vmatprep.mubr.bf16.mxu0 0
        %2658 = vmatmul.mubr.bf16.gmra.mrb[0].mxu0 %v2583
        %v2659 = vpop.f32.mrb[0].mxu0
        %v2660 = vadd.f32 0.0, %v2659
        %v2661 = vpop.f32.mrb[0].mxu0
        %v2662 = vadd.f32 0.0, %v2661
        %v2663 = vpop.f32.mrb[0].mxu0
        %v2664 = vpop.f32.mrb[0].mxu0
        %2665 = vdwg.mxu0
        %v2666 = vadd.f32 %v2579, %v2619
        %v2667 = vadd.f32 %v2580, %v2621
        %v2668 = vadd.f32 %v2581, %v2660
        %v2669 = vadd.f32 %v2582, %v2662
        %v2670 = vxor.u32 %v2666, 2147483648
        %v2671 = vmul.f32 %v2670, 1.442695
        %v2672 = vpow.pop %v2671
        %v2673 = vadd.f32 %v2672, 1.0
        %v2674 = vrcp.pop %v2673
        %v2675 = vmul.f32 1.0, %v2674
        %v2676 = vxor.u32 %v2667, 2147483648
        %v2677 = vmul.f32 %v2676, 1.442695
        %v2678 = vpow.pop %v2677
        %v2679 = vadd.f32 %v2678, 1.0
        %v2680 = vrcp.pop %v2679
        %v2681 = vmul.f32 1.0, %v2680
        %v2682 = vtanh.pop %v2668
        %v2683 = vxor.u32 %v2669, 2147483648
        %v2684 = vmul.f32 %v2683, 1.442695
        %v2685 = vpow.pop %v2684
        %v2686 = vadd.f32 %v2685, 1.0
        %v2687 = vrcp.pop %v2686
        %v2688 = vmul.f32 1.0, %v2687
        %v2689 = vmul.f32 %v2681, %v2574
        %v2690 = vmul.f32 %v2675, %v2682
        %v2691 = vadd.f32 %v2689, %v2690
        %v2692 = vtanh.pop %v2691
        %v2693 = vmul.f32 %v2688, %v2692
        %v2694 = vsel %vm1992, %v2691, %v2693
        %v2695 = vadd.f32 %v2578, %v2694
        %v2696 = vld [vmem:[#allocation2 + $0xe0] sm:$0xff]
        %v2697 = vld [vmem:[#allocation2 + $0xe8] sm:$0xff]
        %v2698 = vld [vmem:[#allocation2 + $0xf0] sm:$0xff]
        %v2699 = vld [vmem:[#allocation2 + $0xf8] sm:$0xff]
        %v2700 = vpack.c.bf16 %v2693, %v2693
        %2701 = vmatprep.subr.bf16.mxu0 %v1817
        %2702 = vmatpush1.bf16.msra.mxu0 %v1816
        %2703 = vmatprep.subr.bf16.mxu0 %v1821
        %2704 = vmatpush1.bf16.msra.mxu0 %v1820
        %2705 = vmatprep.subr.bf16.mxu0 %v1825
        %2706 = vmatpush1.bf16.msra.mxu0 %v1824
        %2707 = vmatprep.subr.bf16.mxu0 %v1829
        %2708 = vmatpush1.bf16.msra.mxu0 %v1828
        %2709 = vmatprep.subr.bf16.mxu0 %v1833
        %2710 = vmatpush1.bf16.msra.mxu0 %v1832
        %2711 = vmatprep.subr.bf16.mxu0 %v1837
        %2712 = vmatpush1.bf16.msra.mxu0 %v1836
        %2713 = vmatprep.subr.bf16.mxu0 %v1841
        %2714 = vmatpush1.bf16.msra.mxu0 %v1840
        %2715 = vmatprep.subr.bf16.mxu0 %v1845
        %2716 = vmatpush1.bf16.msra.mxu0 %v1844
        %2717 = vmatprep.subr.bf16.mxu0 0
        %2718 = vmatpush1.bf16.msra.mxu0 0
        %2719 = vmatprep.subr.bf16.mxu0 0
        %2720 = vmatpush1.bf16.msra.mxu0 0
        %2721 = vmatprep.subr.bf16.mxu0 0
        %2722 = vmatpush1.bf16.msra.mxu0 0
        %2723 = vmatprep.subr.bf16.mxu0 0
        %2724 = vmatpush1.bf16.msra.mxu0 0
        %2725 = vmatprep.subr.bf16.mxu0 0
        %2726 = vmatpush1.bf16.msra.mxu0 0
        %2727 = vmatprep.subr.bf16.mxu0 0
        %2728 = vmatpush1.bf16.msra.mxu0 0
        %2729 = vmatprep.subr.bf16.mxu0 0
        %2730 = vmatpush1.bf16.msra.mxu0 0
        %2731 = vmatprep.subr.bf16.mxu0 0
        %2732 = vmatpush1.bf16.msra.mxu0 0
        %2733 = vmatprep.mubr.bf16.mxu0 0
        %2734 = vmatmul.mubr.bf16.gmra.mrb[0].mxu0 %v2700
        %v2735 = vpop.f32.mrb[0].mxu0
        %v2736 = vadd.f32 0.0, %v2735
        %v2737 = vpop.f32.mrb[0].mxu0
        %v2738 = vadd.f32 0.0, %v2737
        %v2739 = vpop.f32.mrb[0].mxu0
        %v2740 = vpop.f32.mrb[0].mxu0
        %2741 = vdwg.mxu0
        %2742 = vmatprep.subr.bf16.mxu0 %v1819
        %2743 = vmatpush1.bf16.msra.mxu0 %v1818
        %2744 = vmatprep.subr.bf16.mxu0 %v1823
        %2745 = vmatpush1.bf16.msra.mxu0 %v1822
        %2746 = vmatprep.subr.bf16.mxu0 %v1827
        %2747 = vmatpush1.bf16.msra.mxu0 %v1826
        %2748 = vmatprep.subr.bf16.mxu0 %v1831
        %2749 = vmatpush1.bf16.msra.mxu0 %v1830
        %2750 = vmatprep.subr.bf16.mxu0 %v1835
        %2751 = vmatpush1.bf16.msra.mxu0 %v1834
        %2752 = vmatprep.subr.bf16.mxu0 %v1839
        %2753 = vmatpush1.bf16.msra.mxu0 %v1838
        %2754 = vmatprep.subr.bf16.mxu0 %v1843
        %2755 = vmatpush1.bf16.msra.mxu0 %v1842
        %2756 = vmatprep.subr.bf16.mxu0 %v1847
        %2757 = vmatpush1.bf16.msra.mxu0 %v1846
        %2758 = vmatprep.subr.bf16.mxu0 0
        %2759 = vmatpush1.bf16.msra.mxu0 0
        %2760 = vmatprep.subr.bf16.mxu0 0
        %2761 = vmatpush1.bf16.msra.mxu0 0
        %2762 = vmatprep.subr.bf16.mxu0 0
        %2763 = vmatpush1.bf16.msra.mxu0 0
        %2764 = vmatprep.subr.bf16.mxu0 0
        %2765 = vmatpush1.bf16.msra.mxu0 0
        %2766 = vmatprep.subr.bf16.mxu0 0
        %2767 = vmatpush1.bf16.msra.mxu0 0
        %2768 = vmatprep.subr.bf16.mxu0 0
        %2769 = vmatpush1.bf16.msra.mxu0 0
        %2770 = vmatprep.subr.bf16.mxu0 0
        %2771 = vmatpush1.bf16.msra.mxu0 0
        %2772 = vmatprep.subr.bf16.mxu0 0
        %2773 = vmatpush1.bf16.msra.mxu0 0
        %2774 = vmatprep.mubr.bf16.mxu0 0
        %2775 = vmatmul.mubr.bf16.gmra.mrb[0].mxu0 %v2700
        %v2776 = vpop.f32.mrb[0].mxu0
        %v2777 = vadd.f32 0.0, %v2776
        %v2778 = vpop.f32.mrb[0].mxu0
        %v2779 = vadd.f32 0.0, %v2778
        %v2780 = vpop.f32.mrb[0].mxu0
        %v2781 = vpop.f32.mrb[0].mxu0
        %2782 = vdwg.mxu0
        %v2783 = vadd.f32 %v2696, %v2736
        %v2784 = vadd.f32 %v2697, %v2738
        %v2785 = vadd.f32 %v2698, %v2777
        %v2786 = vadd.f32 %v2699, %v2779
        %v2787 = vxor.u32 %v2783, 2147483648
        %v2788 = vmul.f32 %v2787, 1.442695
        %v2789 = vpow.pop %v2788
        %v2790 = vadd.f32 %v2789, 1.0
        %v2791 = vrcp.pop %v2790
        %v2792 = vmul.f32 1.0, %v2791
        %v2793 = vxor.u32 %v2784, 2147483648
        %v2794 = vmul.f32 %v2793, 1.442695
        %v2795 = vpow.pop %v2794
        %v2796 = vadd.f32 %v2795, 1.0
        %v2797 = vrcp.pop %v2796
        %v2798 = vmul.f32 1.0, %v2797
        %v2799 = vtanh.pop %v2785
        %v2800 = vxor.u32 %v2786, 2147483648
        %v2801 = vmul.f32 %v2800, 1.442695
        %v2802 = vpow.pop %v2801
        %v2803 = vadd.f32 %v2802, 1.0
        %v2804 = vrcp.pop %v2803
        %v2805 = vmul.f32 1.0, %v2804
        %v2806 = vmul.f32 %v2798, %v2691
        %v2807 = vmul.f32 %v2792, %v2799
        %v2808 = vadd.f32 %v2806, %v2807
        %v2809 = vtanh.pop %v2808
        %v2810 = vmul.f32 %v2805, %v2809
        %v2811 = vsel %vm1992, %v2808, %v2810
        %v2812 = vadd.f32 %v2694, %v2811
        %v2813 = vld [vmem:[#allocation2 + $0x100] sm:$0xff]
        %v2814 = vld [vmem:[#allocation2 + $0x108] sm:$0xff]
        %v2815 = vld [vmem:[#allocation2 + $0x110] sm:$0xff]
        %v2816 = vld [vmem:[#allocation2 + $0x118] sm:$0xff]
        %v2817 = vpack.c.bf16 %v2810, %v2810
        %2818 = vmatprep.subr.bf16.mxu0 %v1817
        %2819 = vmatpush1.bf16.msra.mxu0 %v1816
        %2820 = vmatprep.subr.bf16.mxu0 %v1821
        %2821 = vmatpush1.bf16.msra.mxu0 %v1820
        %2822 = vmatprep.subr.bf16.mxu0 %v1825
        %2823 = vmatpush1.bf16.msra.mxu0 %v1824
        %2824 = vmatprep.subr.bf16.mxu0 %v1829
        %2825 = vmatpush1.bf16.msra.mxu0 %v1828
        %2826 = vmatprep.subr.bf16.mxu0 %v1833
        %2827 = vmatpush1.bf16.msra.mxu0 %v1832
        %2828 = vmatprep.subr.bf16.mxu0 %v1837
        %2829 = vmatpush1.bf16.msra.mxu0 %v1836
        %2830 = vmatprep.subr.bf16.mxu0 %v1841
        %2831 = vmatpush1.bf16.msra.mxu0 %v1840
        %2832 = vmatprep.subr.bf16.mxu0 %v1845
        %2833 = vmatpush1.bf16.msra.mxu0 %v1844
        %2834 = vmatprep.subr.bf16.mxu0 0
        %2835 = vmatpush1.bf16.msra.mxu0 0
        %2836 = vmatprep.subr.bf16.mxu0 0
        %2837 = vmatpush1.bf16.msra.mxu0 0
        %2838 = vmatprep.subr.bf16.mxu0 0
        %2839 = vmatpush1.bf16.msra.mxu0 0
        %2840 = vmatprep.subr.bf16.mxu0 0
        %2841 = vmatpush1.bf16.msra.mxu0 0
        %2842 = vmatprep.subr.bf16.mxu0 0
        %2843 = vmatpush1.bf16.msra.mxu0 0
        %2844 = vmatprep.subr.bf16.mxu0 0
        %2845 = vmatpush1.bf16.msra.mxu0 0
        %2846 = vmatprep.subr.bf16.mxu0 0
        %2847 = vmatpush1.bf16.msra.mxu0 0
        %2848 = vmatprep.subr.bf16.mxu0 0
        %2849 = vmatpush1.bf16.msra.mxu0 0
        %2850 = vmatprep.mubr.bf16.mxu0 0
        %2851 = vmatmul.mubr.bf16.gmra.mrb[0].mxu0 %v2817
        %v2852 = vpop.f32.mrb[0].mxu0
        %v2853 = vadd.f32 0.0, %v2852
        %v2854 = vpop.f32.mrb[0].mxu0
        %v2855 = vadd.f32 0.0, %v2854
        %v2856 = vpop.f32.mrb[0].mxu0
        %v2857 = vpop.f32.mrb[0].mxu0
        %2858 = vdwg.mxu0
        %2859 = vmatprep.subr.bf16.mxu0 %v1819
        %2860 = vmatpush1.bf16.msra.mxu0 %v1818
        %2861 = vmatprep.subr.bf16.mxu0 %v1823
        %2862 = vmatpush1.bf16.msra.mxu0 %v1822
        %2863 = vmatprep.subr.bf16.mxu0 %v1827
        %2864 = vmatpush1.bf16.msra.mxu0 %v1826
        %2865 = vmatprep.subr.bf16.mxu0 %v1831
        %2866 = vmatpush1.bf16.msra.mxu0 %v1830
        %2867 = vmatprep.subr.bf16.mxu0 %v1835
        %2868 = vmatpush1.bf16.msra.mxu0 %v1834
        %2869 = vmatprep.subr.bf16.mxu0 %v1839
        %2870 = vmatpush1.bf16.msra.mxu0 %v1838
        %2871 = vmatprep.subr.bf16.mxu0 %v1843
        %2872 = vmatpush1.bf16.msra.mxu0 %v1842
        %2873 = vmatprep.subr.bf16.mxu0 %v1847
        %2874 = vmatpush1.bf16.msra.mxu0 %v1846
        %2875 = vmatprep.subr.bf16.mxu0 0
        %2876 = vmatpush1.bf16.msra.mxu0 0
        %2877 = vmatprep.subr.bf16.mxu0 0
        %2878 = vmatpush1.bf16.msra.mxu0 0
        %2879 = vmatprep.subr.bf16.mxu0 0
        %2880 = vmatpush1.bf16.msra.mxu0 0
        %2881 = vmatprep.subr.bf16.mxu0 0
        %2882 = vmatpush1.bf16.msra.mxu0 0
        %2883 = vmatprep.subr.bf16.mxu0 0
        %2884 = vmatpush1.bf16.msra.mxu0 0
        %2885 = vmatprep.subr.bf16.mxu0 0
        %2886 = vmatpush1.bf16.msra.mxu0 0
        %2887 = vmatprep.subr.bf16.mxu0 0
        %2888 = vmatpush1.bf16.msra.mxu0 0
        %2889 = vmatprep.subr.bf16.mxu0 0
        %2890 = vmatpush1.bf16.msra.mxu0 0
        %2891 = vmatprep.mubr.bf16.mxu0 0
        %2892 = vmatmul.mubr.bf16.gmra.mrb[0].mxu0 %v2817
        %v2893 = vpop.f32.mrb[0].mxu0
        %v2894 = vadd.f32 0.0, %v2893
        %v2895 = vpop.f32.mrb[0].mxu0
        %v2896 = vadd.f32 0.0, %v2895
        %v2897 = vpop.f32.mrb[0].mxu0
        %v2898 = vpop.f32.mrb[0].mxu0
        %2899 = vdwg.mxu0
        %v2900 = vadd.f32 %v2813, %v2853
        %v2901 = vadd.f32 %v2814, %v2855
        %v2902 = vadd.f32 %v2815, %v2894
        %v2903 = vadd.f32 %v2816, %v2896
        %v2904 = vxor.u32 %v2900, 2147483648
        %v2905 = vmul.f32 %v2904, 1.442695
        %v2906 = vpow.pop %v2905
        %v2907 = vadd.f32 %v2906, 1.0
        %v2908 = vrcp.pop %v2907
        %v2909 = vmul.f32 1.0, %v2908
        %v2910 = vxor.u32 %v2901, 2147483648
        %v2911 = vmul.f32 %v2910, 1.442695
        %v2912 = vpow.pop %v2911
        %v2913 = vadd.f32 %v2912, 1.0
        %v2914 = vrcp.pop %v2913
        %v2915 = vmul.f32 1.0, %v2914
        %v2916 = vtanh.pop %v2902
        %v2917 = vxor.u32 %v2903, 2147483648
        %v2918 = vmul.f32 %v2917, 1.442695
        %v2919 = vpow.pop %v2918
        %v2920 = vadd.f32 %v2919, 1.0
        %v2921 = vrcp.pop %v2920
        %v2922 = vmul.f32 1.0, %v2921
        %v2923 = vmul.f32 %v2915, %v2808
        %v2924 = vmul.f32 %v2909, %v2916
        %v2925 = vadd.f32 %v2923, %v2924
        %v2926 = vtanh.pop %v2925
        %v2927 = vmul.f32 %v2922, %v2926
        %v2928 = vsel %vm1992, %v2925, %v2927
        %v2929 = vadd.f32 %v2812, %v2928
        %v2930 = vld [vmem:[#allocation2 + $0x120] sm:$0xff]
        %v2931 = vld [vmem:[#allocation2 + $0x128] sm:$0xff]
        %v2932 = vld [vmem:[#allocation2 + $0x130] sm:$0xff]
        %v2933 = vld [vmem:[#allocation2 + $0x138] sm:$0xff]
        %v2934 = vpack.c.bf16 %v2927, %v2927
        %2935 = vmatprep.subr.bf16.mxu0 %v1817
        %2936 = vmatpush1.bf16.msra.mxu0 %v1816
        %2937 = vmatprep.subr.bf16.mxu0 %v1821
        %2938 = vmatpush1.bf16.msra.mxu0 %v1820
        %2939 = vmatprep.subr.bf16.mxu0 %v1825
        %2940 = vmatpush1.bf16.msra.mxu0 %v1824
        %2941 = vmatprep.subr.bf16.mxu0 %v1829
        %2942 = vmatpush1.bf16.msra.mxu0 %v1828
        %2943 = vmatprep.subr.bf16.mxu0 %v1833
        %2944 = vmatpush1.bf16.msra.mxu0 %v1832
        %2945 = vmatprep.subr.bf16.mxu0 %v1837
        %2946 = vmatpush1.bf16.msra.mxu0 %v1836
        %2947 = vmatprep.subr.bf16.mxu0 %v1841
        %2948 = vmatpush1.bf16.msra.mxu0 %v1840
        %2949 = vmatprep.subr.bf16.mxu0 %v1845
        %2950 = vmatpush1.bf16.msra.mxu0 %v1844
        %2951 = vmatprep.subr.bf16.mxu0 0
        %2952 = vmatpush1.bf16.msra.mxu0 0
        %2953 = vmatprep.subr.bf16.mxu0 0
        %2954 = vmatpush1.bf16.msra.mxu0 0
        %2955 = vmatprep.subr.bf16.mxu0 0
        %2956 = vmatpush1.bf16.msra.mxu0 0
        %2957 = vmatprep.subr.bf16.mxu0 0
        %2958 = vmatpush1.bf16.msra.mxu0 0
        %2959 = vmatprep.subr.bf16.mxu0 0
        %2960 = vmatpush1.bf16.msra.mxu0 0
        %2961 = vmatprep.subr.bf16.mxu0 0
        %2962 = vmatpush1.bf16.msra.mxu0 0
        %2963 = vmatprep.subr.bf16.mxu0 0
        %2964 = vmatpush1.bf16.msra.mxu0 0
        %2965 = vmatprep.subr.bf16.mxu0 0
        %2966 = vmatpush1.bf16.msra.mxu0 0
        %2967 = vmatprep.mubr.bf16.mxu0 0
        %2968 = vmatmul.mubr.bf16.gmra.mrb[0].mxu0 %v2934
        %v2969 = vpop.f32.mrb[0].mxu0
        %v2970 = vadd.f32 0.0, %v2969
        %v2971 = vpop.f32.mrb[0].mxu0
        %v2972 = vadd.f32 0.0, %v2971
        %v2973 = vpop.f32.mrb[0].mxu0
        %v2974 = vpop.f32.mrb[0].mxu0
        %2975 = vdwg.mxu0
        %2976 = vmatprep.subr.bf16.mxu0 %v1819
        %2977 = vmatpush1.bf16.msra.mxu0 %v1818
        %2978 = vmatprep.subr.bf16.mxu0 %v1823
        %2979 = vmatpush1.bf16.msra.mxu0 %v1822
        %2980 = vmatprep.subr.bf16.mxu0 %v1827
        %2981 = vmatpush1.bf16.msra.mxu0 %v1826
        %2982 = vmatprep.subr.bf16.mxu0 %v1831
        %2983 = vmatpush1.bf16.msra.mxu0 %v1830
        %2984 = vmatprep.subr.bf16.mxu0 %v1835
        %2985 = vmatpush1.bf16.msra.mxu0 %v1834
        %2986 = vmatprep.subr.bf16.mxu0 %v1839
        %2987 = vmatpush1.bf16.msra.mxu0 %v1838
        %2988 = vmatprep.subr.bf16.mxu0 %v1843
        %2989 = vmatpush1.bf16.msra.mxu0 %v1842
        %2990 = vmatprep.subr.bf16.mxu0 %v1847
        %2991 = vmatpush1.bf16.msra.mxu0 %v1846
        %2992 = vmatprep.subr.bf16.mxu0 0
        %2993 = vmatpush1.bf16.msra.mxu0 0
        %2994 = vmatprep.subr.bf16.mxu0 0
        %2995 = vmatpush1.bf16.msra.mxu0 0
        %2996 = vmatprep.subr.bf16.mxu0 0
        %2997 = vmatpush1.bf16.msra.mxu0 0
        %2998 = vmatprep.subr.bf16.mxu0 0
        %2999 = vmatpush1.bf16.msra.mxu0 0
        %3000 = vmatprep.subr.bf16.mxu0 0
        %3001 = vmatpush1.bf16.msra.mxu0 0
        %3002 = vmatprep.subr.bf16.mxu0 0
        %3003 = vmatpush1.bf16.msra.mxu0 0
        %3004 = vmatprep.subr.bf16.mxu0 0
        %3005 = vmatpush1.bf16.msra.mxu0 0
        %3006 = vmatprep.subr.bf16.mxu0 0
        %3007 = vmatpush1.bf16.msra.mxu0 0
        %3008 = vmatprep.mubr.bf16.mxu0 0
        %3009 = vmatmul.mubr.bf16.gmra.mrb[0].mxu0 %v2934
        %v3010 = vpop.f32.mrb[0].mxu0
        %v3011 = vadd.f32 0.0, %v3010
        %v3012 = vpop.f32.mrb[0].mxu0
        %v3013 = vadd.f32 0.0, %v3012
        %v3014 = vpop.f32.mrb[0].mxu0
        %v3015 = vpop.f32.mrb[0].mxu0
        %3016 = vdwg.mxu0
        %v3017 = vadd.f32 %v2930, %v2970
        %v3018 = vadd.f32 %v2931, %v2972
        %v3019 = vadd.f32 %v2932, %v3011
        %v3020 = vadd.f32 %v2933, %v3013
        %v3021 = vxor.u32 %v3017, 2147483648
        %v3022 = vmul.f32 %v3021, 1.442695
        %v3023 = vpow.pop %v3022
        %v3024 = vadd.f32 %v3023, 1.0
        %v3025 = vrcp.pop %v3024
        %v3026 = vmul.f32 1.0, %v3025
        %v3027 = vxor.u32 %v3018, 2147483648
        %v3028 = vmul.f32 %v3027, 1.442695
        %v3029 = vpow.pop %v3028
        %v3030 = vadd.f32 %v3029, 1.0
        %v3031 = vrcp.pop %v3030
        %v3032 = vmul.f32 1.0, %v3031
        %v3033 = vtanh.pop %v3019
        %v3034 = vxor.u32 %v3020, 2147483648
        %v3035 = vmul.f32 %v3034, 1.442695
        %v3036 = vpow.pop %v3035
        %v3037 = vadd.f32 %v3036, 1.0
        %v3038 = vrcp.pop %v3037
        %v3039 = vmul.f32 1.0, %v3038
        %v3040 = vmul.f32 %v3032, %v2925
        %v3041 = vmul.f32 %v3026, %v3033
        %v3042 = vadd.f32 %v3040, %v3041
        %v3043 = vtanh.pop %v3042
        %v3044 = vmul.f32 %v3039, %v3043
        %v3045 = vsel %vm1992, %v3042, %v3044
        %v3046 = vadd.f32 %v2928, %v3045
        %v3047 = vld [vmem:[#allocation2 + $0x140] sm:$0xff]
        %v3048 = vld [vmem:[#allocation2 + $0x148] sm:$0xff]
        %v3049 = vld [vmem:[#allocation2 + $0x150] sm:$0xff]
        %v3050 = vld [vmem:[#allocation2 + $0x158] sm:$0xff]
        %v3051 = vpack.c.bf16 %v3044, %v3044
        %3052 = vmatprep.subr.bf16.mxu0 %v1817
        %3053 = vmatpush1.bf16.msra.mxu0 %v1816
        %3054 = vmatprep.subr.bf16.mxu0 %v1821
        %3055 = vmatpush1.bf16.msra.mxu0 %v1820
        %3056 = vmatprep.subr.bf16.mxu0 %v1825
        %3057 = vmatpush1.bf16.msra.mxu0 %v1824
        %3058 = vmatprep.subr.bf16.mxu0 %v1829
        %3059 = vmatpush1.bf16.msra.mxu0 %v1828
        %3060 = vmatprep.subr.bf16.mxu0 %v1833
        %3061 = vmatpush1.bf16.msra.mxu0 %v1832
        %3062 = vmatprep.subr.bf16.mxu0 %v1837
        %3063 = vmatpush1.bf16.msra.mxu0 %v1836
        %3064 = vmatprep.subr.bf16.mxu0 %v1841
        %3065 = vmatpush1.bf16.msra.mxu0 %v1840
        %3066 = vmatprep.subr.bf16.mxu0 %v1845
        %3067 = vmatpush1.bf16.msra.mxu0 %v1844
        %3068 = vmatprep.subr.bf16.mxu0 0
        %3069 = vmatpush1.bf16.msra.mxu0 0
        %3070 = vmatprep.subr.bf16.mxu0 0
        %3071 = vmatpush1.bf16.msra.mxu0 0
        %3072 = vmatprep.subr.bf16.mxu0 0
        %3073 = vmatpush1.bf16.msra.mxu0 0
        %3074 = vmatprep.subr.bf16.mxu0 0
        %3075 = vmatpush1.bf16.msra.mxu0 0
        %3076 = vmatprep.subr.bf16.mxu0 0
        %3077 = vmatpush1.bf16.msra.mxu0 0
        %3078 = vmatprep.subr.bf16.mxu0 0
        %3079 = vmatpush1.bf16.msra.mxu0 0
        %3080 = vmatprep.subr.bf16.mxu0 0
        %3081 = vmatpush1.bf16.msra.mxu0 0
        %3082 = vmatprep.subr.bf16.mxu0 0
        %3083 = vmatpush1.bf16.msra.mxu0 0
        %3084 = vmatprep.mubr.bf16.mxu0 0
        %3085 = vmatmul.mubr.bf16.gmra.mrb[0].mxu0 %v3051
        %v3086 = vpop.f32.mrb[0].mxu0
        %v3087 = vadd.f32 0.0, %v3086
        %v3088 = vpop.f32.mrb[0].mxu0
        %v3089 = vadd.f32 0.0, %v3088
        %v3090 = vpop.f32.mrb[0].mxu0
        %v3091 = vpop.f32.mrb[0].mxu0
        %3092 = vdwg.mxu0
        %3093 = vmatprep.subr.bf16.mxu0 %v1819
        %3094 = vmatpush1.bf16.msra.mxu0 %v1818
        %3095 = vmatprep.subr.bf16.mxu0 %v1823
        %3096 = vmatpush1.bf16.msra.mxu0 %v1822
        %3097 = vmatprep.subr.bf16.mxu0 %v1827
        %3098 = vmatpush1.bf16.msra.mxu0 %v1826
        %3099 = vmatprep.subr.bf16.mxu0 %v1831
        %3100 = vmatpush1.bf16.msra.mxu0 %v1830
        %3101 = vmatprep.subr.bf16.mxu0 %v1835
        %3102 = vmatpush1.bf16.msra.mxu0 %v1834
        %3103 = vmatprep.subr.bf16.mxu0 %v1839
        %3104 = vmatpush1.bf16.msra.mxu0 %v1838
        %3105 = vmatprep.subr.bf16.mxu0 %v1843
        %3106 = vmatpush1.bf16.msra.mxu0 %v1842
        %3107 = vmatprep.subr.bf16.mxu0 %v1847
        %3108 = vmatpush1.bf16.msra.mxu0 %v1846
        %3109 = vmatprep.subr.bf16.mxu0 0
        %3110 = vmatpush1.bf16.msra.mxu0 0
        %3111 = vmatprep.subr.bf16.mxu0 0
        %3112 = vmatpush1.bf16.msra.mxu0 0
        %3113 = vmatprep.subr.bf16.mxu0 0
        %3114 = vmatpush1.bf16.msra.mxu0 0
        %3115 = vmatprep.subr.bf16.mxu0 0
        %3116 = vmatpush1.bf16.msra.mxu0 0
        %3117 = vmatprep.subr.bf16.mxu0 0
        %3118 = vmatpush1.bf16.msra.mxu0 0
        %3119 = vmatprep.subr.bf16.mxu0 0
        %3120 = vmatpush1.bf16.msra.mxu0 0
        %3121 = vmatprep.subr.bf16.mxu0 0
        %3122 = vmatpush1.bf16.msra.mxu0 0
        %3123 = vmatprep.subr.bf16.mxu0 0
        %3124 = vmatpush1.bf16.msra.mxu0 0
        %3125 = vmatprep.mubr.bf16.mxu0 0
        %3126 = vmatmul.mubr.bf16.gmra.mrb[0].mxu0 %v3051
        %v3127 = vpop.f32.mrb[0].mxu0
        %v3128 = vadd.f32 0.0, %v3127
        %v3129 = vpop.f32.mrb[0].mxu0
        %v3130 = vadd.f32 0.0, %v3129
        %v3131 = vpop.f32.mrb[0].mxu0
        %v3132 = vpop.f32.mrb[0].mxu0
        %3133 = vdwg.mxu0
        %v3134 = vadd.f32 %v3047, %v3087
        %v3135 = vadd.f32 %v3048, %v3089
        %v3136 = vadd.f32 %v3049, %v3128
        %v3137 = vadd.f32 %v3050, %v3130
        %v3138 = vxor.u32 %v3134, 2147483648
        %v3139 = vmul.f32 %v3138, 1.442695
        %v3140 = vpow.pop %v3139
        %v3141 = vadd.f32 %v3140, 1.0
        %v3142 = vrcp.pop %v3141
        %v3143 = vmul.f32 1.0, %v3142
        %v3144 = vxor.u32 %v3135, 2147483648
        %v3145 = vmul.f32 %v3144, 1.442695
        %v3146 = vpow.pop %v3145
        %v3147 = vadd.f32 %v3146, 1.0
        %v3148 = vrcp.pop %v3147
        %v3149 = vmul.f32 1.0, %v3148
        %v3150 = vtanh.pop %v3136
        %v3151 = vxor.u32 %v3137, 2147483648
        %v3152 = vmul.f32 %v3151, 1.442695
        %v3153 = vpow.pop %v3152
        %v3154 = vadd.f32 %v3153, 1.0
        %v3155 = vrcp.pop %v3154
        %v3156 = vmul.f32 1.0, %v3155
        %v3157 = vmul.f32 %v3149, %v3042
        %v3158 = vmul.f32 %v3143, %v3150
        %v3159 = vadd.f32 %v3157, %v3158
        %v3160 = vtanh.pop %v3159
        %v3161 = vmul.f32 %v3156, %v3160
        %v3162 = vsel %vm1992, %v3159, %v3161
        %v3163 = vadd.f32 %v3046, %v3162
        %v3164 = vld [vmem:[#allocation2 + $0x160] sm:$0xff]
        %v3165 = vld [vmem:[#allocation2 + $0x168] sm:$0xff]
        %v3166 = vld [vmem:[#allocation2 + $0x170] sm:$0xff]
        %v3167 = vld [vmem:[#allocation2 + $0x178] sm:$0xff]
        %v3168 = vpack.c.bf16 %v3161, %v3161
        %3169 = vmatprep.subr.bf16.mxu0 %v1817
        %3170 = vmatpush1.bf16.msra.mxu0 %v1816
        %3171 = vmatprep.subr.bf16.mxu0 %v1821
        %3172 = vmatpush1.bf16.msra.mxu0 %v1820
        %3173 = vmatprep.subr.bf16.mxu0 %v1825
        %3174 = vmatpush1.bf16.msra.mxu0 %v1824
        %3175 = vmatprep.subr.bf16.mxu0 %v1829
        %3176 = vmatpush1.bf16.msra.mxu0 %v1828
        %3177 = vmatprep.subr.bf16.mxu0 %v1833
        %3178 = vmatpush1.bf16.msra.mxu0 %v1832
        %3179 = vmatprep.subr.bf16.mxu0 %v1837
        %3180 = vmatpush1.bf16.msra.mxu0 %v1836
        %3181 = vmatprep.subr.bf16.mxu0 %v1841
        %3182 = vmatpush1.bf16.msra.mxu0 %v1840
        %3183 = vmatprep.subr.bf16.mxu0 %v1845
        %3184 = vmatpush1.bf16.msra.mxu0 %v1844
        %3185 = vmatprep.subr.bf16.mxu0 0
        %3186 = vmatpush1.bf16.msra.mxu0 0
        %3187 = vmatprep.subr.bf16.mxu0 0
        %3188 = vmatpush1.bf16.msra.mxu0 0
        %3189 = vmatprep.subr.bf16.mxu0 0
        %3190 = vmatpush1.bf16.msra.mxu0 0
        %3191 = vmatprep.subr.bf16.mxu0 0
        %3192 = vmatpush1.bf16.msra.mxu0 0
        %3193 = vmatprep.subr.bf16.mxu0 0
        %3194 = vmatpush1.bf16.msra.mxu0 0
        %3195 = vmatprep.subr.bf16.mxu0 0
        %3196 = vmatpush1.bf16.msra.mxu0 0
        %3197 = vmatprep.subr.bf16.mxu0 0
        %3198 = vmatpush1.bf16.msra.mxu0 0
        %3199 = vmatprep.subr.bf16.mxu0 0
        %3200 = vmatpush1.bf16.msra.mxu0 0
        %3201 = vmatprep.mubr.bf16.mxu0 0
        %3202 = vmatmul.mubr.bf16.gmra.mrb[0].mxu0 %v3168
        %v3203 = vpop.f32.mrb[0].mxu0
        %v3204 = vadd.f32 0.0, %v3203
        %v3205 = vpop.f32.mrb[0].mxu0
        %v3206 = vadd.f32 0.0, %v3205
        %v3207 = vpop.f32.mrb[0].mxu0
        %v3208 = vpop.f32.mrb[0].mxu0
        %3209 = vdwg.mxu0
        %3210 = vmatprep.subr.bf16.mxu0 %v1819
        %3211 = vmatpush1.bf16.msra.mxu0 %v1818
        %3212 = vmatprep.subr.bf16.mxu0 %v1823
        %3213 = vmatpush1.bf16.msra.mxu0 %v1822
        %3214 = vmatprep.subr.bf16.mxu0 %v1827
        %3215 = vmatpush1.bf16.msra.mxu0 %v1826
        %3216 = vmatprep.subr.bf16.mxu0 %v1831
        %3217 = vmatpush1.bf16.msra.mxu0 %v1830
        %3218 = vmatprep.subr.bf16.mxu0 %v1835
        %3219 = vmatpush1.bf16.msra.mxu0 %v1834
        %3220 = vmatprep.subr.bf16.mxu0 %v1839
        %3221 = vmatpush1.bf16.msra.mxu0 %v1838
        %3222 = vmatprep.subr.bf16.mxu0 %v1843
        %3223 = vmatpush1.bf16.msra.mxu0 %v1842
        %3224 = vmatprep.subr.bf16.mxu0 %v1847
        %3225 = vmatpush1.bf16.msra.mxu0 %v1846
        %3226 = vmatprep.subr.bf16.mxu0 0
        %3227 = vmatpush1.bf16.msra.mxu0 0
        %3228 = vmatprep.subr.bf16.mxu0 0
        %3229 = vmatpush1.bf16.msra.mxu0 0
        %3230 = vmatprep.subr.bf16.mxu0 0
        %3231 = vmatpush1.bf16.msra.mxu0 0
        %3232 = vmatprep.subr.bf16.mxu0 0
        %3233 = vmatpush1.bf16.msra.mxu0 0
        %3234 = vmatprep.subr.bf16.mxu0 0
        %3235 = vmatpush1.bf16.msra.mxu0 0
        %3236 = vmatprep.subr.bf16.mxu0 0
        %3237 = vmatpush1.bf16.msra.mxu0 0
        %3238 = vmatprep.subr.bf16.mxu0 0
        %3239 = vmatpush1.bf16.msra.mxu0 0
        %3240 = vmatprep.subr.bf16.mxu0 0
        %3241 = vmatpush1.bf16.msra.mxu0 0
        %3242 = vmatprep.mubr.bf16.mxu0 0
        %3243 = vmatmul.mubr.bf16.gmra.mrb[0].mxu0 %v3168
        %v3244 = vpop.f32.mrb[0].mxu0
        %v3245 = vadd.f32 0.0, %v3244
        %v3246 = vpop.f32.mrb[0].mxu0
        %v3247 = vadd.f32 0.0, %v3246
        %v3248 = vpop.f32.mrb[0].mxu0
        %v3249 = vpop.f32.mrb[0].mxu0
        %3250 = vdwg.mxu0
        %v3251 = vadd.f32 %v3164, %v3204
        %v3252 = vadd.f32 %v3165, %v3206
        %v3253 = vadd.f32 %v3166, %v3245
        %v3254 = vadd.f32 %v3167, %v3247
        %v3255 = vxor.u32 %v3251, 2147483648
        %v3256 = vmul.f32 %v3255, 1.442695
        %v3257 = vpow.pop %v3256
        %v3258 = vadd.f32 %v3257, 1.0
        %v3259 = vrcp.pop %v3258
        %v3260 = vmul.f32 1.0, %v3259
        %v3261 = vxor.u32 %v3252, 2147483648
        %v3262 = vmul.f32 %v3261, 1.442695
        %v3263 = vpow.pop %v3262
        %v3264 = vadd.f32 %v3263, 1.0
        %v3265 = vrcp.pop %v3264
        %v3266 = vmul.f32 1.0, %v3265
        %v3267 = vtanh.pop %v3253
        %v3268 = vxor.u32 %v3254, 2147483648
        %v3269 = vmul.f32 %v3268, 1.442695
        %v3270 = vpow.pop %v3269
        %v3271 = vadd.f32 %v3270, 1.0
        %v3272 = vrcp.pop %v3271
        %v3273 = vmul.f32 1.0, %v3272
        %v3274 = vmul.f32 %v3266, %v3159
        %v3275 = vmul.f32 %v3260, %v3267
        %v3276 = vadd.f32 %v3274, %v3275
        %v3277 = vtanh.pop %v3276
        %v3278 = vmul.f32 %v3273, %v3277
        %v3279 = vsel %vm1992, %v3276, %v3278
        %v3280 = vadd.f32 %v3162, %v3279
        %v3281 = vld [vmem:[#allocation2 + $0x180] sm:$0xff]
        %v3282 = vld [vmem:[#allocation2 + $0x188] sm:$0xff]
        %v3283 = vld [vmem:[#allocation2 + $0x190] sm:$0xff]
        %v3284 = vld [vmem:[#allocation2 + $0x198] sm:$0xff]
        %v3285 = vpack.c.bf16 %v3278, %v3278
        %3286 = vmatprep.subr.bf16.mxu0 %v1817
        %3287 = vmatpush1.bf16.msra.mxu0 %v1816
        %3288 = vmatprep.subr.bf16.mxu0 %v1821
        %3289 = vmatpush1.bf16.msra.mxu0 %v1820
        %3290 = vmatprep.subr.bf16.mxu0 %v1825
        %3291 = vmatpush1.bf16.msra.mxu0 %v1824
        %3292 = vmatprep.subr.bf16.mxu0 %v1829
        %3293 = vmatpush1.bf16.msra.mxu0 %v1828
        %3294 = vmatprep.subr.bf16.mxu0 %v1833
        %3295 = vmatpush1.bf16.msra.mxu0 %v1832
        %3296 = vmatprep.subr.bf16.mxu0 %v1837
        %3297 = vmatpush1.bf16.msra.mxu0 %v1836
        %3298 = vmatprep.subr.bf16.mxu0 %v1841
        %3299 = vmatpush1.bf16.msra.mxu0 %v1840
        %3300 = vmatprep.subr.bf16.mxu0 %v1845
        %3301 = vmatpush1.bf16.msra.mxu0 %v1844
        %3302 = vmatprep.subr.bf16.mxu0 0
        %3303 = vmatpush1.bf16.msra.mxu0 0
        %3304 = vmatprep.subr.bf16.mxu0 0
        %3305 = vmatpush1.bf16.msra.mxu0 0
        %3306 = vmatprep.subr.bf16.mxu0 0
        %3307 = vmatpush1.bf16.msra.mxu0 0
        %3308 = vmatprep.subr.bf16.mxu0 0
        %3309 = vmatpush1.bf16.msra.mxu0 0
        %3310 = vmatprep.subr.bf16.mxu0 0
        %3311 = vmatpush1.bf16.msra.mxu0 0
        %3312 = vmatprep.subr.bf16.mxu0 0
        %3313 = vmatpush1.bf16.msra.mxu0 0
        %3314 = vmatprep.subr.bf16.mxu0 0
        %3315 = vmatpush1.bf16.msra.mxu0 0
        %3316 = vmatprep.subr.bf16.mxu0 0
        %3317 = vmatpush1.bf16.msra.mxu0 0
        %3318 = vmatprep.mubr.bf16.mxu0 0
        %3319 = vmatmul.mubr.bf16.gmra.mrb[0].mxu0 %v3285
        %v3320 = vpop.f32.mrb[0].mxu0
        %v3321 = vadd.f32 0.0, %v3320
        %v3322 = vpop.f32.mrb[0].mxu0
        %v3323 = vadd.f32 0.0, %v3322
        %v3324 = vpop.f32.mrb[0].mxu0
        %v3325 = vpop.f32.mrb[0].mxu0
        %3326 = vdwg.mxu0
        %3327 = vmatprep.subr.bf16.mxu0 %v1819
        %3328 = vmatpush1.bf16.msra.mxu0 %v1818
        %3329 = vmatprep.subr.bf16.mxu0 %v1823
        %3330 = vmatpush1.bf16.msra.mxu0 %v1822
        %3331 = vmatprep.subr.bf16.mxu0 %v1827
        %3332 = vmatpush1.bf16.msra.mxu0 %v1826
        %3333 = vmatprep.subr.bf16.mxu0 %v1831
        %3334 = vmatpush1.bf16.msra.mxu0 %v1830
        %3335 = vmatprep.subr.bf16.mxu0 %v1835
        %3336 = vmatpush1.bf16.msra.mxu0 %v1834
        %3337 = vmatprep.subr.bf16.mxu0 %v1839
        %3338 = vmatpush1.bf16.msra.mxu0 %v1838
        %3339 = vmatprep.subr.bf16.mxu0 %v1843
        %3340 = vmatpush1.bf16.msra.mxu0 %v1842
        %3341 = vmatprep.subr.bf16.mxu0 %v1847
        %3342 = vmatpush1.bf16.msra.mxu0 %v1846
        %3343 = vmatprep.subr.bf16.mxu0 0
        %3344 = vmatpush1.bf16.msra.mxu0 0
        %3345 = vmatprep.subr.bf16.mxu0 0
        %3346 = vmatpush1.bf16.msra.mxu0 0
        %3347 = vmatprep.subr.bf16.mxu0 0
        %3348 = vmatpush1.bf16.msra.mxu0 0
        %3349 = vmatprep.subr.bf16.mxu0 0
        %3350 = vmatpush1.bf16.msra.mxu0 0
        %3351 = vmatprep.subr.bf16.mxu0 0
        %3352 = vmatpush1.bf16.msra.mxu0 0
        %3353 = vmatprep.subr.bf16.mxu0 0
        %3354 = vmatpush1.bf16.msra.mxu0 0
        %3355 = vmatprep.subr.bf16.mxu0 0
        %3356 = vmatpush1.bf16.msra.mxu0 0
        %3357 = vmatprep.subr.bf16.mxu0 0
        %3358 = vmatpush1.bf16.msra.mxu0 0
        %3359 = vmatprep.mubr.bf16.mxu0 0
        %3360 = vmatmul.mubr.bf16.gmra.mrb[0].mxu0 %v3285
        %v3361 = vpop.f32.mrb[0].mxu0
        %v3362 = vadd.f32 0.0, %v3361
        %v3363 = vpop.f32.mrb[0].mxu0
        %v3364 = vadd.f32 0.0, %v3363
        %v3365 = vpop.f32.mrb[0].mxu0
        %v3366 = vpop.f32.mrb[0].mxu0
        %3367 = vdwg.mxu0
        %v3368 = vadd.f32 %v3281, %v3321
        %v3369 = vadd.f32 %v3282, %v3323
        %v3370 = vadd.f32 %v3283, %v3362
        %v3371 = vadd.f32 %v3284, %v3364
        %v3372 = vxor.u32 %v3368, 2147483648
        %v3373 = vmul.f32 %v3372, 1.442695
        %v3374 = vpow.pop %v3373
        %v3375 = vadd.f32 %v3374, 1.0
        %v3376 = vrcp.pop %v3375
        %v3377 = vmul.f32 1.0, %v3376
        %v3378 = vxor.u32 %v3369, 2147483648
        %v3379 = vmul.f32 %v3378, 1.442695
        %v3380 = vpow.pop %v3379
        %v3381 = vadd.f32 %v3380, 1.0
        %v3382 = vrcp.pop %v3381
        %v3383 = vmul.f32 1.0, %v3382
        %v3384 = vtanh.pop %v3370
        %v3385 = vxor.u32 %v3371, 2147483648
        %v3386 = vmul.f32 %v3385, 1.442695
        %v3387 = vpow.pop %v3386
        %v3388 = vadd.f32 %v3387, 1.0
        %v3389 = vrcp.pop %v3388
        %v3390 = vmul.f32 1.0, %v3389
        %v3391 = vmul.f32 %v3383, %v3276
        %v3392 = vmul.f32 %v3377, %v3384
        %v3393 = vadd.f32 %v3391, %v3392
        %v3394 = vtanh.pop %v3393
        %v3395 = vmul.f32 %v3390, %v3394
        %v3396 = vsel %vm1992, %v3393, %v3395
        %v3397 = vadd.f32 %v3280, %v3396
        %v3398 = vld [vmem:[#allocation2 + $0x1a0] sm:$0xff]
        %v3399 = vld [vmem:[#allocation2 + $0x1a8] sm:$0xff]
        %v3400 = vld [vmem:[#allocation2 + $0x1b0] sm:$0xff]
        %v3401 = vld [vmem:[#allocation2 + $0x1b8] sm:$0xff]
        %v3402 = vpack.c.bf16 %v3395, %v3395
        %3403 = vmatprep.subr.bf16.mxu0 %v1817
        %3404 = vmatpush1.bf16.msra.mxu0 %v1816
        %3405 = vmatprep.subr.bf16.mxu0 %v1821
        %3406 = vmatpush1.bf16.msra.mxu0 %v1820
        %3407 = vmatprep.subr.bf16.mxu0 %v1825
        %3408 = vmatpush1.bf16.msra.mxu0 %v1824
        %3409 = vmatprep.subr.bf16.mxu0 %v1829
        %3410 = vmatpush1.bf16.msra.mxu0 %v1828
        %3411 = vmatprep.subr.bf16.mxu0 %v1833
        %3412 = vmatpush1.bf16.msra.mxu0 %v1832
        %3413 = vmatprep.subr.bf16.mxu0 %v1837
        %3414 = vmatpush1.bf16.msra.mxu0 %v1836
        %3415 = vmatprep.subr.bf16.mxu0 %v1841
        %3416 = vmatpush1.bf16.msra.mxu0 %v1840
        %3417 = vmatprep.subr.bf16.mxu0 %v1845
        %3418 = vmatpush1.bf16.msra.mxu0 %v1844
        %3419 = vmatprep.subr.bf16.mxu0 0
        %3420 = vmatpush1.bf16.msra.mxu0 0
        %3421 = vmatprep.subr.bf16.mxu0 0
        %3422 = vmatpush1.bf16.msra.mxu0 0
        %3423 = vmatprep.subr.bf16.mxu0 0
        %3424 = vmatpush1.bf16.msra.mxu0 0
        %3425 = vmatprep.subr.bf16.mxu0 0
        %3426 = vmatpush1.bf16.msra.mxu0 0
        %3427 = vmatprep.subr.bf16.mxu0 0
        %3428 = vmatpush1.bf16.msra.mxu0 0
        %3429 = vmatprep.subr.bf16.mxu0 0
        %3430 = vmatpush1.bf16.msra.mxu0 0
        %3431 = vmatprep.subr.bf16.mxu0 0
        %3432 = vmatpush1.bf16.msra.mxu0 0
        %3433 = vmatprep.subr.bf16.mxu0 0
        %3434 = vmatpush1.bf16.msra.mxu0 0
        %3435 = vmatprep.mubr.bf16.mxu0 0
        %3436 = vmatmul.mubr.bf16.gmra.mrb[0].mxu0 %v3402
        %v3437 = vpop.f32.mrb[0].mxu0
        %v3438 = vadd.f32 0.0, %v3437
        %v3439 = vpop.f32.mrb[0].mxu0
        %v3440 = vadd.f32 0.0, %v3439
        %v3441 = vpop.f32.mrb[0].mxu0
        %v3442 = vpop.f32.mrb[0].mxu0
        %3443 = vdwg.mxu0
        %3444 = vmatprep.subr.bf16.mxu0 %v1819
        %3445 = vmatpush1.bf16.msra.mxu0 %v1818
        %3446 = vmatprep.subr.bf16.mxu0 %v1823
        %3447 = vmatpush1.bf16.msra.mxu0 %v1822
        %3448 = vmatprep.subr.bf16.mxu0 %v1827
        %3449 = vmatpush1.bf16.msra.mxu0 %v1826
        %3450 = vmatprep.subr.bf16.mxu0 %v1831
        %3451 = vmatpush1.bf16.msra.mxu0 %v1830
        %3452 = vmatprep.subr.bf16.mxu0 %v1835
        %3453 = vmatpush1.bf16.msra.mxu0 %v1834
        %3454 = vmatprep.subr.bf16.mxu0 %v1839
        %3455 = vmatpush1.bf16.msra.mxu0 %v1838
        %3456 = vmatprep.subr.bf16.mxu0 %v1843
        %3457 = vmatpush1.bf16.msra.mxu0 %v1842
        %3458 = vmatprep.subr.bf16.mxu0 %v1847
        %3459 = vmatpush1.bf16.msra.mxu0 %v1846
        %3460 = vmatprep.subr.bf16.mxu0 0
        %3461 = vmatpush1.bf16.msra.mxu0 0
        %3462 = vmatprep.subr.bf16.mxu0 0
        %3463 = vmatpush1.bf16.msra.mxu0 0
        %3464 = vmatprep.subr.bf16.mxu0 0
        %3465 = vmatpush1.bf16.msra.mxu0 0
        %3466 = vmatprep.subr.bf16.mxu0 0
        %3467 = vmatpush1.bf16.msra.mxu0 0
        %3468 = vmatprep.subr.bf16.mxu0 0
        %3469 = vmatpush1.bf16.msra.mxu0 0
        %3470 = vmatprep.subr.bf16.mxu0 0
        %3471 = vmatpush1.bf16.msra.mxu0 0
        %3472 = vmatprep.subr.bf16.mxu0 0
        %3473 = vmatpush1.bf16.msra.mxu0 0
        %3474 = vmatprep.subr.bf16.mxu0 0
        %3475 = vmatpush1.bf16.msra.mxu0 0
        %3476 = vmatprep.mubr.bf16.mxu0 0
        %3477 = vmatmul.mubr.bf16.gmra.mrb[0].mxu0 %v3402
        %v3478 = vpop.f32.mrb[0].mxu0
        %v3479 = vadd.f32 0.0, %v3478
        %v3480 = vpop.f32.mrb[0].mxu0
        %v3481 = vadd.f32 0.0, %v3480
        %v3482 = vpop.f32.mrb[0].mxu0
        %v3483 = vpop.f32.mrb[0].mxu0
        %3484 = vdwg.mxu0
        %v3485 = vadd.f32 %v3398, %v3438
        %v3486 = vadd.f32 %v3399, %v3440
        %v3487 = vadd.f32 %v3400, %v3479
        %v3488 = vadd.f32 %v3401, %v3481
        %v3489 = vxor.u32 %v3485, 2147483648
        %v3490 = vmul.f32 %v3489, 1.442695
        %v3491 = vpow.pop %v3490
        %v3492 = vadd.f32 %v3491, 1.0
        %v3493 = vrcp.pop %v3492
        %v3494 = vmul.f32 1.0, %v3493
        %v3495 = vxor.u32 %v3486, 2147483648
        %v3496 = vmul.f32 %v3495, 1.442695
        %v3497 = vpow.pop %v3496
        %v3498 = vadd.f32 %v3497, 1.0
        %v3499 = vrcp.pop %v3498
        %v3500 = vmul.f32 1.0, %v3499
        %v3501 = vtanh.pop %v3487
        %v3502 = vxor.u32 %v3488, 2147483648
        %v3503 = vmul.f32 %v3502, 1.442695
        %v3504 = vpow.pop %v3503
        %v3505 = vadd.f32 %v3504, 1.0
        %v3506 = vrcp.pop %v3505
        %v3507 = vmul.f32 1.0, %v3506
        %v3508 = vmul.f32 %v3500, %v3393
        %v3509 = vmul.f32 %v3494, %v3501
        %v3510 = vadd.f32 %v3508, %v3509
        %v3511 = vtanh.pop %v3510
        %v3512 = vmul.f32 %v3507, %v3511
        %v3513 = vsel %vm1992, %v3510, %v3512
        %v3514 = vadd.f32 %v3396, %v3513
        %v3515 = vld [vmem:[#allocation2 + $0x1c0] sm:$0xff]
        %v3516 = vld [vmem:[#allocation2 + $0x1c8] sm:$0xff]
        %v3517 = vld [vmem:[#allocation2 + $0x1d0] sm:$0xff]
        %v3518 = vld [vmem:[#allocation2 + $0x1d8] sm:$0xff]
        %v3519 = vpack.c.bf16 %v3512, %v3512
        %3520 = vmatprep.subr.bf16.mxu0 %v1817
        %3521 = vmatpush1.bf16.msra.mxu0 %v1816
        %3522 = vmatprep.subr.bf16.mxu0 %v1821
        %3523 = vmatpush1.bf16.msra.mxu0 %v1820
        %3524 = vmatprep.subr.bf16.mxu0 %v1825
        %3525 = vmatpush1.bf16.msra.mxu0 %v1824
        %3526 = vmatprep.subr.bf16.mxu0 %v1829
        %3527 = vmatpush1.bf16.msra.mxu0 %v1828
        %3528 = vmatprep.subr.bf16.mxu0 %v1833
        %3529 = vmatpush1.bf16.msra.mxu0 %v1832
        %3530 = vmatprep.subr.bf16.mxu0 %v1837
        %3531 = vmatpush1.bf16.msra.mxu0 %v1836
        %3532 = vmatprep.subr.bf16.mxu0 %v1841
        %3533 = vmatpush1.bf16.msra.mxu0 %v1840
        %3534 = vmatprep.subr.bf16.mxu0 %v1845
        %3535 = vmatpush1.bf16.msra.mxu0 %v1844
        %3536 = vmatprep.subr.bf16.mxu0 0
        %3537 = vmatpush1.bf16.msra.mxu0 0
        %3538 = vmatprep.subr.bf16.mxu0 0
        %3539 = vmatpush1.bf16.msra.mxu0 0
        %3540 = vmatprep.subr.bf16.mxu0 0
        %3541 = vmatpush1.bf16.msra.mxu0 0
        %3542 = vmatprep.subr.bf16.mxu0 0
        %3543 = vmatpush1.bf16.msra.mxu0 0
        %3544 = vmatprep.subr.bf16.mxu0 0
        %3545 = vmatpush1.bf16.msra.mxu0 0
        %3546 = vmatprep.subr.bf16.mxu0 0
        %3547 = vmatpush1.bf16.msra.mxu0 0
        %3548 = vmatprep.subr.bf16.mxu0 0
        %3549 = vmatpush1.bf16.msra.mxu0 0
        %3550 = vmatprep.subr.bf16.mxu0 0
        %3551 = vmatpush1.bf16.msra.mxu0 0
        %3552 = vmatprep.mubr.bf16.mxu0 0
        %3553 = vmatmul.mubr.bf16.gmra.mrb[0].mxu0 %v3519
        %v3554 = vpop.f32.mrb[0].mxu0
        %v3555 = vadd.f32 0.0, %v3554
        %v3556 = vpop.f32.mrb[0].mxu0
        %v3557 = vadd.f32 0.0, %v3556
        %v3558 = vpop.f32.mrb[0].mxu0
        %v3559 = vpop.f32.mrb[0].mxu0
        %3560 = vdwg.mxu0
        %3561 = vmatprep.subr.bf16.mxu0 %v1819
        %3562 = vmatpush1.bf16.msra.mxu0 %v1818
        %3563 = vmatprep.subr.bf16.mxu0 %v1823
        %3564 = vmatpush1.bf16.msra.mxu0 %v1822
        %3565 = vmatprep.subr.bf16.mxu0 %v1827
        %3566 = vmatpush1.bf16.msra.mxu0 %v1826
        %3567 = vmatprep.subr.bf16.mxu0 %v1831
        %3568 = vmatpush1.bf16.msra.mxu0 %v1830
        %3569 = vmatprep.subr.bf16.mxu0 %v1835
        %3570 = vmatpush1.bf16.msra.mxu0 %v1834
        %3571 = vmatprep.subr.bf16.mxu0 %v1839
        %3572 = vmatpush1.bf16.msra.mxu0 %v1838
        %3573 = vmatprep.subr.bf16.mxu0 %v1843
        %3574 = vmatpush1.bf16.msra.mxu0 %v1842
        %3575 = vmatprep.subr.bf16.mxu0 %v1847
        %3576 = vmatpush1.bf16.msra.mxu0 %v1846
        %3577 = vmatprep.subr.bf16.mxu0 0
        %3578 = vmatpush1.bf16.msra.mxu0 0
        %3579 = vmatprep.subr.bf16.mxu0 0
        %3580 = vmatpush1.bf16.msra.mxu0 0
        %3581 = vmatprep.subr.bf16.mxu0 0
        %3582 = vmatpush1.bf16.msra.mxu0 0
        %3583 = vmatprep.subr.bf16.mxu0 0
        %3584 = vmatpush1.bf16.msra.mxu0 0
        %3585 = vmatprep.subr.bf16.mxu0 0
        %3586 = vmatpush1.bf16.msra.mxu0 0
        %3587 = vmatprep.subr.bf16.mxu0 0
        %3588 = vmatpush1.bf16.msra.mxu0 0
        %3589 = vmatprep.subr.bf16.mxu0 0
        %3590 = vmatpush1.bf16.msra.mxu0 0
        %3591 = vmatprep.subr.bf16.mxu0 0
        %3592 = vmatpush1.bf16.msra.mxu0 0
        %3593 = vmatprep.mubr.bf16.mxu0 0
        %3594 = vmatmul.mubr.bf16.gmra.mrb[0].mxu0 %v3519
        %v3595 = vpop.f32.mrb[0].mxu0
        %v3596 = vadd.f32 0.0, %v3595
        %v3597 = vpop.f32.mrb[0].mxu0
        %v3598 = vadd.f32 0.0, %v3597
        %v3599 = vpop.f32.mrb[0].mxu0
        %v3600 = vpop.f32.mrb[0].mxu0
        %3601 = vdwg.mxu0
        %v3602 = vadd.f32 %v3515, %v3555
        %v3603 = vadd.f32 %v3516, %v3557
        %v3604 = vadd.f32 %v3517, %v3596
        %v3605 = vadd.f32 %v3518, %v3598
        %v3606 = vxor.u32 %v3602, 2147483648
        %v3607 = vmul.f32 %v3606, 1.442695
        %v3608 = vpow.pop %v3607
        %v3609 = vadd.f32 %v3608, 1.0
        %v3610 = vrcp.pop %v3609
        %v3611 = vmul.f32 1.0, %v3610
        %v3612 = vxor.u32 %v3603, 2147483648
        %v3613 = vmul.f32 %v3612, 1.442695
        %v3614 = vpow.pop %v3613
        %v3615 = vadd.f32 %v3614, 1.0
        %v3616 = vrcp.pop %v3615
        %v3617 = vmul.f32 1.0, %v3616
        %v3618 = vtanh.pop %v3604
        %v3619 = vxor.u32 %v3605, 2147483648
        %v3620 = vmul.f32 %v3619, 1.442695
        %v3621 = vpow.pop %v3620
        %v3622 = vadd.f32 %v3621, 1.0
        %v3623 = vrcp.pop %v3622
        %v3624 = vmul.f32 1.0, %v3623
        %v3625 = vmul.f32 %v3617, %v3510
        %v3626 = vmul.f32 %v3611, %v3618
        %v3627 = vadd.f32 %v3625, %v3626
        %v3628 = vtanh.pop %v3627
        %v3629 = vmul.f32 %v3624, %v3628
        %v3630 = vsel %vm1992, %v3627, %v3629
        %v3631 = vadd.f32 %v3514, %v3630
        %v3632 = vld [vmem:[#allocation2 + $0x1e0] sm:$0xff]
        %v3633 = vld [vmem:[#allocation2 + $0x1e8] sm:$0xff]
        %v3634 = vld [vmem:[#allocation2 + $0x1f0] sm:$0xff]
        %v3635 = vld [vmem:[#allocation2 + $0x1f8] sm:$0xff]
        %v3636 = vpack.c.bf16 %v3629, %v3629
        %3637 = vmatprep.subr.bf16.mxu0 %v1817
        %3638 = vmatpush1.bf16.msra.mxu0 %v1816
        %3639 = vmatprep.subr.bf16.mxu0 %v1821
        %3640 = vmatpush1.bf16.msra.mxu0 %v1820
        %3641 = vmatprep.subr.bf16.mxu0 %v1825
        %3642 = vmatpush1.bf16.msra.mxu0 %v1824
        %3643 = vmatprep.subr.bf16.mxu0 %v1829
        %3644 = vmatpush1.bf16.msra.mxu0 %v1828
        %3645 = vmatprep.subr.bf16.mxu0 %v1833
        %3646 = vmatpush1.bf16.msra.mxu0 %v1832
        %3647 = vmatprep.subr.bf16.mxu0 %v1837
        %3648 = vmatpush1.bf16.msra.mxu0 %v1836
        %3649 = vmatprep.subr.bf16.mxu0 %v1841
        %3650 = vmatpush1.bf16.msra.mxu0 %v1840
        %3651 = vmatprep.subr.bf16.mxu0 %v1845
        %3652 = vmatpush1.bf16.msra.mxu0 %v1844
        %3653 = vmatprep.subr.bf16.mxu0 0
        %3654 = vmatpush1.bf16.msra.mxu0 0
        %3655 = vmatprep.subr.bf16.mxu0 0
        %3656 = vmatpush1.bf16.msra.mxu0 0
        %3657 = vmatprep.subr.bf16.mxu0 0
        %3658 = vmatpush1.bf16.msra.mxu0 0
        %3659 = vmatprep.subr.bf16.mxu0 0
        %3660 = vmatpush1.bf16.msra.mxu0 0
        %3661 = vmatprep.subr.bf16.mxu0 0
        %3662 = vmatpush1.bf16.msra.mxu0 0
        %3663 = vmatprep.subr.bf16.mxu0 0
        %3664 = vmatpush1.bf16.msra.mxu0 0
        %3665 = vmatprep.subr.bf16.mxu0 0
        %3666 = vmatpush1.bf16.msra.mxu0 0
        %3667 = vmatprep.subr.bf16.mxu0 0
        %3668 = vmatpush1.bf16.msra.mxu0 0
        %3669 = vmatprep.mubr.bf16.mxu0 0
        %3670 = vmatmul.mubr.bf16.gmra.mrb[0].mxu0 %v3636
        %v3671 = vpop.f32.mrb[0].mxu0
        %v3672 = vadd.f32 0.0, %v3671
        %v3673 = vpop.f32.mrb[0].mxu0
        %v3674 = vadd.f32 0.0, %v3673
        %v3675 = vpop.f32.mrb[0].mxu0
        %v3676 = vpop.f32.mrb[0].mxu0
        %3677 = vdwg.mxu0
        %3678 = vmatprep.subr.bf16.mxu0 %v1819
        %3679 = vmatpush1.bf16.msra.mxu0 %v1818
        %3680 = vmatprep.subr.bf16.mxu0 %v1823
        %3681 = vmatpush1.bf16.msra.mxu0 %v1822
        %3682 = vmatprep.subr.bf16.mxu0 %v1827
        %3683 = vmatpush1.bf16.msra.mxu0 %v1826
        %3684 = vmatprep.subr.bf16.mxu0 %v1831
        %3685 = vmatpush1.bf16.msra.mxu0 %v1830
        %3686 = vmatprep.subr.bf16.mxu0 %v1835
        %3687 = vmatpush1.bf16.msra.mxu0 %v1834
        %3688 = vmatprep.subr.bf16.mxu0 %v1839
        %3689 = vmatpush1.bf16.msra.mxu0 %v1838
        %3690 = vmatprep.subr.bf16.mxu0 %v1843
        %3691 = vmatpush1.bf16.msra.mxu0 %v1842
        %3692 = vmatprep.subr.bf16.mxu0 %v1847
        %3693 = vmatpush1.bf16.msra.mxu0 %v1846
        %3694 = vmatprep.subr.bf16.mxu0 0
        %3695 = vmatpush1.bf16.msra.mxu0 0
        %3696 = vmatprep.subr.bf16.mxu0 0
        %3697 = vmatpush1.bf16.msra.mxu0 0
        %3698 = vmatprep.subr.bf16.mxu0 0
        %3699 = vmatpush1.bf16.msra.mxu0 0
        %3700 = vmatprep.subr.bf16.mxu0 0
        %3701 = vmatpush1.bf16.msra.mxu0 0
        %3702 = vmatprep.subr.bf16.mxu0 0
        %3703 = vmatpush1.bf16.msra.mxu0 0
        %3704 = vmatprep.subr.bf16.mxu0 0
        %3705 = vmatpush1.bf16.msra.mxu0 0
        %3706 = vmatprep.subr.bf16.mxu0 0
        %3707 = vmatpush1.bf16.msra.mxu0 0
        %3708 = vmatprep.subr.bf16.mxu0 0
        %3709 = vmatpush1.bf16.msra.mxu0 0
        %3710 = vmatprep.mubr.bf16.mxu0 0
        %3711 = vmatmul.mubr.bf16.gmra.mrb[0].mxu0 %v3636
        %v3712 = vpop.f32.mrb[0].mxu0
        %v3713 = vadd.f32 0.0, %v3712
        %v3714 = vpop.f32.mrb[0].mxu0
        %v3715 = vadd.f32 0.0, %v3714
        %v3716 = vpop.f32.mrb[0].mxu0
        %v3717 = vpop.f32.mrb[0].mxu0
        %3718 = vdwg.mxu0
        %v3719 = vadd.f32 %v3632, %v3672
        %v3720 = vadd.f32 %v3633, %v3674
        %v3721 = vadd.f32 %v3634, %v3713
        %v3722 = vadd.f32 %v3635, %v3715
        %v3723 = vxor.u32 %v3719, 2147483648
        %v3724 = vmul.f32 %v3723, 1.442695
        %v3725 = vpow.pop %v3724
        %v3726 = vadd.f32 %v3725, 1.0
        %v3727 = vrcp.pop %v3726
        %v3728 = vmul.f32 1.0, %v3727
        %v3729 = vxor.u32 %v3720, 2147483648
        %v3730 = vmul.f32 %v3729, 1.442695
        %v3731 = vpow.pop %v3730
        %v3732 = vadd.f32 %v3731, 1.0
        %v3733 = vrcp.pop %v3732
        %v3734 = vmul.f32 1.0, %v3733
        %v3735 = vtanh.pop %v3721
        %v3736 = vxor.u32 %v3722, 2147483648
        %v3737 = vmul.f32 %v3736, 1.442695
        %v3738 = vpow.pop %v3737
        %v3739 = vadd.f32 %v3738, 1.0
        %v3740 = vrcp.pop %v3739
        %v3741 = vmul.f32 1.0, %v3740
        %v3742 = vmul.f32 %v3734, %v3627
        %v3743 = vmul.f32 %v3728, %v3735
        %v3744 = vadd.f32 %v3742, %v3743
        %v3745 = vtanh.pop %v3744
        %v3746 = vmul.f32 %v3741, %v3745
        %v3747 = vsel %vm1992, %v3744, %v3746
        %v3748 = vadd.f32 %v3630, %v3747
        %v3749 = vld [vmem:[#allocation2 + $0x200] sm:$0xff]
        %v3750 = vld [vmem:[#allocation2 + $0x208] sm:$0xff]
        %v3751 = vld [vmem:[#allocation2 + $0x210] sm:$0xff]
        %v3752 = vld [vmem:[#allocation2 + $0x218] sm:$0xff]
        %v3753 = vpack.c.bf16 %v3746, %v3746
        %3754 = vmatprep.subr.bf16.mxu0 %v1817
        %3755 = vmatpush1.bf16.msra.mxu0 %v1816
        %3756 = vmatprep.subr.bf16.mxu0 %v1821
        %3757 = vmatpush1.bf16.msra.mxu0 %v1820
        %3758 = vmatprep.subr.bf16.mxu0 %v1825
        %3759 = vmatpush1.bf16.msra.mxu0 %v1824
        %3760 = vmatprep.subr.bf16.mxu0 %v1829
        %3761 = vmatpush1.bf16.msra.mxu0 %v1828
        %3762 = vmatprep.subr.bf16.mxu0 %v1833
        %3763 = vmatpush1.bf16.msra.mxu0 %v1832
        %3764 = vmatprep.subr.bf16.mxu0 %v1837
        %3765 = vmatpush1.bf16.msra.mxu0 %v1836
        %3766 = vmatprep.subr.bf16.mxu0 %v1841
        %3767 = vmatpush1.bf16.msra.mxu0 %v1840
        %3768 = vmatprep.subr.bf16.mxu0 %v1845
        %3769 = vmatpush1.bf16.msra.mxu0 %v1844
        %3770 = vmatprep.subr.bf16.mxu0 0
        %3771 = vmatpush1.bf16.msra.mxu0 0
        %3772 = vmatprep.subr.bf16.mxu0 0
        %3773 = vmatpush1.bf16.msra.mxu0 0
        %3774 = vmatprep.subr.bf16.mxu0 0
        %3775 = vmatpush1.bf16.msra.mxu0 0
        %3776 = vmatprep.subr.bf16.mxu0 0
        %3777 = vmatpush1.bf16.msra.mxu0 0
        %3778 = vmatprep.subr.bf16.mxu0 0
        %3779 = vmatpush1.bf16.msra.mxu0 0
        %3780 = vmatprep.subr.bf16.mxu0 0
        %3781 = vmatpush1.bf16.msra.mxu0 0
        %3782 = vmatprep.subr.bf16.mxu0 0
        %3783 = vmatpush1.bf16.msra.mxu0 0
        %3784 = vmatprep.subr.bf16.mxu0 0
        %3785 = vmatpush1.bf16.msra.mxu0 0
        %3786 = vmatprep.mubr.bf16.mxu0 0
        %3787 = vmatmul.mubr.bf16.gmra.mrb[0].mxu0 %v3753
        %v3788 = vpop.f32.mrb[0].mxu0
        %v3789 = vadd.f32 0.0, %v3788
        %v3790 = vpop.f32.mrb[0].mxu0
        %v3791 = vadd.f32 0.0, %v3790
        %v3792 = vpop.f32.mrb[0].mxu0
        %v3793 = vpop.f32.mrb[0].mxu0
        %3794 = vdwg.mxu0
        %3795 = vmatprep.subr.bf16.mxu0 %v1819
        %3796 = vmatpush1.bf16.msra.mxu0 %v1818
        %3797 = vmatprep.subr.bf16.mxu0 %v1823
        %3798 = vmatpush1.bf16.msra.mxu0 %v1822
        %3799 = vmatprep.subr.bf16.mxu0 %v1827
        %3800 = vmatpush1.bf16.msra.mxu0 %v1826
        %3801 = vmatprep.subr.bf16.mxu0 %v1831
        %3802 = vmatpush1.bf16.msra.mxu0 %v1830
        %3803 = vmatprep.subr.bf16.mxu0 %v1835
        %3804 = vmatpush1.bf16.msra.mxu0 %v1834
        %3805 = vmatprep.subr.bf16.mxu0 %v1839
        %3806 = vmatpush1.bf16.msra.mxu0 %v1838
        %3807 = vmatprep.subr.bf16.mxu0 %v1843
        %3808 = vmatpush1.bf16.msra.mxu0 %v1842
        %3809 = vmatprep.subr.bf16.mxu0 %v1847
        %3810 = vmatpush1.bf16.msra.mxu0 %v1846
        %3811 = vmatprep.subr.bf16.mxu0 0
        %3812 = vmatpush1.bf16.msra.mxu0 0
        %3813 = vmatprep.subr.bf16.mxu0 0
        %3814 = vmatpush1.bf16.msra.mxu0 0
        %3815 = vmatprep.subr.bf16.mxu0 0
        %3816 = vmatpush1.bf16.msra.mxu0 0
        %3817 = vmatprep.subr.bf16.mxu0 0
        %3818 = vmatpush1.bf16.msra.mxu0 0
        %3819 = vmatprep.subr.bf16.mxu0 0
        %3820 = vmatpush1.bf16.msra.mxu0 0
        %3821 = vmatprep.subr.bf16.mxu0 0
        %3822 = vmatpush1.bf16.msra.mxu0 0
        %3823 = vmatprep.subr.bf16.mxu0 0
        %3824 = vmatpush1.bf16.msra.mxu0 0
        %3825 = vmatprep.subr.bf16.mxu0 0
        %3826 = vmatpush1.bf16.msra.mxu0 0
        %3827 = vmatprep.mubr.bf16.mxu0 0
        %3828 = vmatmul.mubr.bf16.gmra.mrb[0].mxu0 %v3753
        %v3829 = vpop.f32.mrb[0].mxu0
        %v3830 = vadd.f32 0.0, %v3829
        %v3831 = vpop.f32.mrb[0].mxu0
        %v3832 = vadd.f32 0.0, %v3831
        %v3833 = vpop.f32.mrb[0].mxu0
        %v3834 = vpop.f32.mrb[0].mxu0
        %3835 = vdwg.mxu0
        %v3836 = vadd.f32 %v3749, %v3789
        %v3837 = vadd.f32 %v3750, %v3791
        %v3838 = vadd.f32 %v3751, %v3830
        %v3839 = vadd.f32 %v3752, %v3832
        %v3840 = vxor.u32 %v3836, 2147483648
        %v3841 = vmul.f32 %v3840, 1.442695
        %v3842 = vpow.pop %v3841
        %v3843 = vadd.f32 %v3842, 1.0
        %v3844 = vrcp.pop %v3843
        %v3845 = vmul.f32 1.0, %v3844
        %v3846 = vxor.u32 %v3837, 2147483648
        %v3847 = vmul.f32 %v3846, 1.442695
        %v3848 = vpow.pop %v3847
        %v3849 = vadd.f32 %v3848, 1.0
        %v3850 = vrcp.pop %v3849
        %v3851 = vmul.f32 1.0, %v3850
        %v3852 = vtanh.pop %v3838
        %v3853 = vxor.u32 %v3839, 2147483648
        %v3854 = vmul.f32 %v3853, 1.442695
        %v3855 = vpow.pop %v3854
        %v3856 = vadd.f32 %v3855, 1.0
        %v3857 = vrcp.pop %v3856
        %v3858 = vmul.f32 1.0, %v3857
        %v3859 = vmul.f32 %v3851, %v3744
        %v3860 = vmul.f32 %v3845, %v3852
        %v3861 = vadd.f32 %v3859, %v3860
        %v3862 = vtanh.pop %v3861
        %v3863 = vmul.f32 %v3858, %v3862
        %v3864 = vsel %vm1992, %v3861, %v3863
        %v3865 = vadd.f32 %v3748, %v3864
        %v3866 = vld [vmem:[#allocation2 + $0x220] sm:$0xff]
        %v3867 = vld [vmem:[#allocation2 + $0x228] sm:$0xff]
        %v3868 = vld [vmem:[#allocation2 + $0x230] sm:$0xff]
        %v3869 = vld [vmem:[#allocation2 + $0x238] sm:$0xff]
        %v3870 = vpack.c.bf16 %v3863, %v3863
        %3871 = vmatprep.subr.bf16.mxu0 %v1817
        %3872 = vmatpush1.bf16.msra.mxu0 %v1816
        %3873 = vmatprep.subr.bf16.mxu0 %v1821
        %3874 = vmatpush1.bf16.msra.mxu0 %v1820
        %3875 = vmatprep.subr.bf16.mxu0 %v1825
        %3876 = vmatpush1.bf16.msra.mxu0 %v1824
        %3877 = vmatprep.subr.bf16.mxu0 %v1829
        %3878 = vmatpush1.bf16.msra.mxu0 %v1828
        %3879 = vmatprep.subr.bf16.mxu0 %v1833
        %3880 = vmatpush1.bf16.msra.mxu0 %v1832
        %3881 = vmatprep.subr.bf16.mxu0 %v1837
        %3882 = vmatpush1.bf16.msra.mxu0 %v1836
        %3883 = vmatprep.subr.bf16.mxu0 %v1841
        %3884 = vmatpush1.bf16.msra.mxu0 %v1840
        %3885 = vmatprep.subr.bf16.mxu0 %v1845
        %3886 = vmatpush1.bf16.msra.mxu0 %v1844
        %3887 = vmatprep.subr.bf16.mxu0 0
        %3888 = vmatpush1.bf16.msra.mxu0 0
        %3889 = vmatprep.subr.bf16.mxu0 0
        %3890 = vmatpush1.bf16.msra.mxu0 0
        %3891 = vmatprep.subr.bf16.mxu0 0
        %3892 = vmatpush1.bf16.msra.mxu0 0
        %3893 = vmatprep.subr.bf16.mxu0 0
        %3894 = vmatpush1.bf16.msra.mxu0 0
        %3895 = vmatprep.subr.bf16.mxu0 0
        %3896 = vmatpush1.bf16.msra.mxu0 0
        %3897 = vmatprep.subr.bf16.mxu0 0
        %3898 = vmatpush1.bf16.msra.mxu0 0
        %3899 = vmatprep.subr.bf16.mxu0 0
        %3900 = vmatpush1.bf16.msra.mxu0 0
        %3901 = vmatprep.subr.bf16.mxu0 0
        %3902 = vmatpush1.bf16.msra.mxu0 0
        %3903 = vmatprep.mubr.bf16.mxu0 0
        %3904 = vmatmul.mubr.bf16.gmra.mrb[0].mxu0 %v3870
        %v3905 = vpop.f32.mrb[0].mxu0
        %v3906 = vadd.f32 0.0, %v3905
        %v3907 = vpop.f32.mrb[0].mxu0
        %v3908 = vadd.f32 0.0, %v3907
        %v3909 = vpop.f32.mrb[0].mxu0
        %v3910 = vpop.f32.mrb[0].mxu0
        %3911 = vdwg.mxu0
        %3912 = vmatprep.subr.bf16.mxu0 %v1819
        %3913 = vmatpush1.bf16.msra.mxu0 %v1818
        %3914 = vmatprep.subr.bf16.mxu0 %v1823
        %3915 = vmatpush1.bf16.msra.mxu0 %v1822
        %3916 = vmatprep.subr.bf16.mxu0 %v1827
        %3917 = vmatpush1.bf16.msra.mxu0 %v1826
        %3918 = vmatprep.subr.bf16.mxu0 %v1831
        %3919 = vmatpush1.bf16.msra.mxu0 %v1830
        %3920 = vmatprep.subr.bf16.mxu0 %v1835
        %3921 = vmatpush1.bf16.msra.mxu0 %v1834
        %3922 = vmatprep.subr.bf16.mxu0 %v1839
        %3923 = vmatpush1.bf16.msra.mxu0 %v1838
        %3924 = vmatprep.subr.bf16.mxu0 %v1843
        %3925 = vmatpush1.bf16.msra.mxu0 %v1842
        %3926 = vmatprep.subr.bf16.mxu0 %v1847
        %3927 = vmatpush1.bf16.msra.mxu0 %v1846
        %3928 = vmatprep.subr.bf16.mxu0 0
        %3929 = vmatpush1.bf16.msra.mxu0 0
        %3930 = vmatprep.subr.bf16.mxu0 0
        %3931 = vmatpush1.bf16.msra.mxu0 0
        %3932 = vmatprep.subr.bf16.mxu0 0
        %3933 = vmatpush1.bf16.msra.mxu0 0
        %3934 = vmatprep.subr.bf16.mxu0 0
        %3935 = vmatpush1.bf16.msra.mxu0 0
        %3936 = vmatprep.subr.bf16.mxu0 0
        %3937 = vmatpush1.bf16.msra.mxu0 0
        %3938 = vmatprep.subr.bf16.mxu0 0
        %3939 = vmatpush1.bf16.msra.mxu0 0
        %3940 = vmatprep.subr.bf16.mxu0 0
        %3941 = vmatpush1.bf16.msra.mxu0 0
        %3942 = vmatprep.subr.bf16.mxu0 0
        %3943 = vmatpush1.bf16.msra.mxu0 0
        %3944 = vmatprep.mubr.bf16.mxu0 0
        %3945 = vmatmul.mubr.bf16.gmra.mrb[0].mxu0 %v3870
        %v3946 = vpop.f32.mrb[0].mxu0
        %v3947 = vadd.f32 0.0, %v3946
        %v3948 = vpop.f32.mrb[0].mxu0
        %v3949 = vadd.f32 0.0, %v3948
        %v3950 = vpop.f32.mrb[0].mxu0
        %v3951 = vpop.f32.mrb[0].mxu0
        %3952 = vdwg.mxu0
        %v3953 = vadd.f32 %v3866, %v3906
        %v3954 = vadd.f32 %v3867, %v3908
        %v3955 = vadd.f32 %v3868, %v3947
        %v3956 = vadd.f32 %v3869, %v3949
        %v3957 = vxor.u32 %v3953, 2147483648
        %v3958 = vmul.f32 %v3957, 1.442695
        %v3959 = vpow.pop %v3958
        %v3960 = vadd.f32 %v3959, 1.0
        %v3961 = vrcp.pop %v3960
        %v3962 = vmul.f32 1.0, %v3961
        %v3963 = vxor.u32 %v3954, 2147483648
        %v3964 = vmul.f32 %v3963, 1.442695
        %v3965 = vpow.pop %v3964
        %v3966 = vadd.f32 %v3965, 1.0
        %v3967 = vrcp.pop %v3966
        %v3968 = vmul.f32 1.0, %v3967
        %v3969 = vtanh.pop %v3955
        %v3970 = vxor.u32 %v3956, 2147483648
        %v3971 = vmul.f32 %v3970, 1.442695
        %v3972 = vpow.pop %v3971
        %v3973 = vadd.f32 %v3972, 1.0
        %v3974 = vrcp.pop %v3973
        %v3975 = vmul.f32 1.0, %v3974
        %v3976 = vmul.f32 %v3968, %v3861
        %v3977 = vmul.f32 %v3962, %v3969
        %v3978 = vadd.f32 %v3976, %v3977
        %v3979 = vtanh.pop %v3978
        %v3980 = vmul.f32 %v3975, %v3979
        %v3981 = vsel %vm1992, %v3978, %v3980
        %v3982 = vadd.f32 %v3864, %v3981
        %v3983 = vld [vmem:[#allocation2 + $0x240] sm:$0xff]
        %v3984 = vld [vmem:[#allocation2 + $0x248] sm:$0xff]
        %v3985 = vld [vmem:[#allocation2 + $0x250] sm:$0xff]
        %v3986 = vld [vmem:[#allocation2 + $0x258] sm:$0xff]
        %v3987 = vpack.c.bf16 %v3980, %v3980
        %3988 = vmatprep.subr.bf16.mxu0 %v1817
        %3989 = vmatpush1.bf16.msra.mxu0 %v1816
        %3990 = vmatprep.subr.bf16.mxu0 %v1821
        %3991 = vmatpush1.bf16.msra.mxu0 %v1820
        %3992 = vmatprep.subr.bf16.mxu0 %v1825
        %3993 = vmatpush1.bf16.msra.mxu0 %v1824
        %3994 = vmatprep.subr.bf16.mxu0 %v1829
        %3995 = vmatpush1.bf16.msra.mxu0 %v1828
        %3996 = vmatprep.subr.bf16.mxu0 %v1833
        %3997 = vmatpush1.bf16.msra.mxu0 %v1832
        %3998 = vmatprep.subr.bf16.mxu0 %v1837
        %3999 = vmatpush1.bf16.msra.mxu0 %v1836
        %4000 = vmatprep.subr.bf16.mxu0 %v1841
        %4001 = vmatpush1.bf16.msra.mxu0 %v1840
        %4002 = vmatprep.subr.bf16.mxu0 %v1845
        %4003 = vmatpush1.bf16.msra.mxu0 %v1844
        %4004 = vmatprep.subr.bf16.mxu0 0
        %4005 = vmatpush1.bf16.msra.mxu0 0
        %4006 = vmatprep.subr.bf16.mxu0 0
        %4007 = vmatpush1.bf16.msra.mxu0 0
        %4008 = vmatprep.subr.bf16.mxu0 0
        %4009 = vmatpush1.bf16.msra.mxu0 0
        %4010 = vmatprep.subr.bf16.mxu0 0
        %4011 = vmatpush1.bf16.msra.mxu0 0
        %4012 = vmatprep.subr.bf16.mxu0 0
        %4013 = vmatpush1.bf16.msra.mxu0 0
        %4014 = vmatprep.subr.bf16.mxu0 0
        %4015 = vmatpush1.bf16.msra.mxu0 0
        %4016 = vmatprep.subr.bf16.mxu0 0
        %4017 = vmatpush1.bf16.msra.mxu0 0
        %4018 = vmatprep.subr.bf16.mxu0 0
        %4019 = vmatpush1.bf16.msra.mxu0 0
        %4020 = vmatprep.mubr.bf16.mxu0 0
        %4021 = vmatmul.mubr.bf16.gmra.mrb[0].mxu0 %v3987
        %v4022 = vpop.f32.mrb[0].mxu0
        %v4023 = vadd.f32 0.0, %v4022
        %v4024 = vpop.f32.mrb[0].mxu0
        %v4025 = vadd.f32 0.0, %v4024
        %v4026 = vpop.f32.mrb[0].mxu0
        %v4027 = vpop.f32.mrb[0].mxu0
        %4028 = vdwg.mxu0
        %4029 = vmatprep.subr.bf16.mxu0 %v1819
        %4030 = vmatpush1.bf16.msra.mxu0 %v1818
        %4031 = vmatprep.subr.bf16.mxu0 %v1823
        %4032 = vmatpush1.bf16.msra.mxu0 %v1822
        %4033 = vmatprep.subr.bf16.mxu0 %v1827
        %4034 = vmatpush1.bf16.msra.mxu0 %v1826
        %4035 = vmatprep.subr.bf16.mxu0 %v1831
        %4036 = vmatpush1.bf16.msra.mxu0 %v1830
        %4037 = vmatprep.subr.bf16.mxu0 %v1835
        %4038 = vmatpush1.bf16.msra.mxu0 %v1834
        %4039 = vmatprep.subr.bf16.mxu0 %v1839
        %4040 = vmatpush1.bf16.msra.mxu0 %v1838
        %4041 = vmatprep.subr.bf16.mxu0 %v1843
        %4042 = vmatpush1.bf16.msra.mxu0 %v1842
        %4043 = vmatprep.subr.bf16.mxu0 %v1847
        %4044 = vmatpush1.bf16.msra.mxu0 %v1846
        %4045 = vmatprep.subr.bf16.mxu0 0
        %4046 = vmatpush1.bf16.msra.mxu0 0
        %4047 = vmatprep.subr.bf16.mxu0 0
        %4048 = vmatpush1.bf16.msra.mxu0 0
        %4049 = vmatprep.subr.bf16.mxu0 0
        %4050 = vmatpush1.bf16.msra.mxu0 0
        %4051 = vmatprep.subr.bf16.mxu0 0
        %4052 = vmatpush1.bf16.msra.mxu0 0
        %4053 = vmatprep.subr.bf16.mxu0 0
        %4054 = vmatpush1.bf16.msra.mxu0 0
        %4055 = vmatprep.subr.bf16.mxu0 0
        %4056 = vmatpush1.bf16.msra.mxu0 0
        %4057 = vmatprep.subr.bf16.mxu0 0
        %4058 = vmatpush1.bf16.msra.mxu0 0
        %4059 = vmatprep.subr.bf16.mxu0 0
        %4060 = vmatpush1.bf16.msra.mxu0 0
        %4061 = vmatprep.mubr.bf16.mxu0 0
        %4062 = vmatmul.mubr.bf16.gmra.mrb[0].mxu0 %v3987
        %v4063 = vpop.f32.mrb[0].mxu0
        %v4064 = vadd.f32 0.0, %v4063
        %v4065 = vpop.f32.mrb[0].mxu0
        %v4066 = vadd.f32 0.0, %v4065
        %v4067 = vpop.f32.mrb[0].mxu0
        %v4068 = vpop.f32.mrb[0].mxu0
        %4069 = vdwg.mxu0
        %v4070 = vadd.f32 %v3983, %v4023
        %v4071 = vadd.f32 %v3984, %v4025
        %v4072 = vadd.f32 %v3985, %v4064
        %v4073 = vadd.f32 %v3986, %v4066
        %v4074 = vxor.u32 %v4070, 2147483648
        %v4075 = vmul.f32 %v4074, 1.442695
        %v4076 = vpow.pop %v4075
        %v4077 = vadd.f32 %v4076, 1.0
        %v4078 = vrcp.pop %v4077
        %v4079 = vmul.f32 1.0, %v4078
        %v4080 = vxor.u32 %v4071, 2147483648
        %v4081 = vmul.f32 %v4080, 1.442695
        %v4082 = vpow.pop %v4081
        %v4083 = vadd.f32 %v4082, 1.0
        %v4084 = vrcp.pop %v4083
        %v4085 = vmul.f32 1.0, %v4084
        %v4086 = vtanh.pop %v4072
        %v4087 = vxor.u32 %v4073, 2147483648
        %v4088 = vmul.f32 %v4087, 1.442695
        %v4089 = vpow.pop %v4088
        %v4090 = vadd.f32 %v4089, 1.0
        %v4091 = vrcp.pop %v4090
        %v4092 = vmul.f32 1.0, %v4091
        %v4093 = vmul.f32 %v4085, %v3978
        %v4094 = vmul.f32 %v4079, %v4086
        %v4095 = vadd.f32 %v4093, %v4094
        %v4096 = vtanh.pop %v4095
        %v4097 = vmul.f32 %v4092, %v4096
        %v4098 = vsel %vm1992, %v4095, %v4097
        %v4099 = vadd.f32 %v3982, %v4098
        %s4100 = smul.u32 %s373, 9
        %s4101 = smul.addr %s4100, 8
        %s4102 = scalar_lea.vmem [#allocation3], %s4101
        %v4103 = vld [vmem:[%s4102] sm:$0xff]
        %v4104 = vld [vmem:[%s4102 + $0x8] sm:$0xff]
        %v4105 = vld [vmem:[%s4102 + $0x10] sm:$0xff]
        %v4106 = vld [vmem:[%s4102 + $0x18] sm:$0xff]
        %v4107 = vld [vmem:[%s4102 + $0x20] sm:$0xff]
        %v4108 = vld [vmem:[%s4102 + $0x28] sm:$0xff]
        %v4109 = vld [vmem:[%s4102 + $0x30] sm:$0xff]
        %v4110 = vld [vmem:[%s4102 + $0x38] sm:$0xff]
        %v4111 = vld [vmem:[%s4102 + $0x40] sm:$0xff]
        %v4112 = vadd.f32 %v4103, %v2227
        %v4113 = vadd.f32 %v4104, %v2461
        %v4114 = vadd.f32 %v4105, %v2695
        %v4115 = vadd.f32 %v4106, %v2929
        %v4116 = vadd.f32 %v4107, %v3163
        %v4117 = vadd.f32 %v4108, %v3397
        %v4118 = vadd.f32 %v4109, %v3631
        %v4119 = vadd.f32 %v4110, %v3865
        %v4120 = vadd.f32 %v4111, %v4099
        %4121 = vst [vmem:[%s4102] sm:$0xff] %v4112
        %4122 = vst [vmem:[%s4102 + $0x8] sm:$0xff] %v4113
        %4123 = vst [vmem:[%s4102 + $0x10] sm:$0xff] %v4114
        %4124 = vst [vmem:[%s4102 + $0x18] sm:$0xff] %v4115
        %4125 = vst [vmem:[%s4102 + $0x20] sm:$0xff] %v4116
        %4126 = vst [vmem:[%s4102 + $0x28] sm:$0xff] %v4117
        %4127 = vst [vmem:[%s4102 + $0x30] sm:$0xff] %v4118
        %4128 = vst [vmem:[%s4102 + $0x38] sm:$0xff] %v4119
        %4129 = vst [vmem:[%s4102 + $0x40] sm:$0xff] %v4120
        %p4130 = scmp.eq.s32.totalorder %s24, 5
        // Predicated region
        $region69: #{forward.1} parent=43 // pred_check
          %p4131 = pneg %p4130
        $region70: #{forward.1} parent=43 // pred_check_branch
          %4133 = sbr.rel (%p4131) target = $region72
        $region71: #{forward.1} parent=43 // pred_region
          %v4134 = vld [vmem:[#allocation3] sm:$0xff]
          %v4135 = vld [vmem:[#allocation3 + $0x8] sm:$0xff]
          %v4136 = vld [vmem:[#allocation3 + $0x10] sm:$0xff]
          %v4137 = vld [vmem:[#allocation3 + $0x18] sm:$0xff]
          %v4138 = vld [vmem:[#allocation3 + $0x20] sm:$0xff]
          %v4139 = vld [vmem:[#allocation3 + $0x28] sm:$0xff]
          %v4140 = vld [vmem:[#allocation3 + $0x30] sm:$0xff]
          %v4141 = vld [vmem:[#allocation3 + $0x38] sm:$0xff]
          %v4142 = vld [vmem:[#allocation3 + $0x40] sm:$0xff]
          %s4143 = scalar_lea.vmem [#allocation3], 72
          %v4144 = vld [vmem:[%s4143] sm:$0xff]
          %v4145 = vld [vmem:[%s4143 + $0x8] sm:$0xff]
          %v4146 = vld [vmem:[%s4143 + $0x10] sm:$0xff]
          %v4147 = vld [vmem:[%s4143 + $0x18] sm:$0xff]
          %v4148 = vld [vmem:[%s4143 + $0x20] sm:$0xff]
          %v4149 = vld [vmem:[%s4143 + $0x28] sm:$0xff]
          %v4150 = vld [vmem:[%s4143 + $0x30] sm:$0xff]
          %v4151 = vld [vmem:[%s4143 + $0x38] sm:$0xff]
          %v4152 = vld [vmem:[%s4143 + $0x40] sm:$0xff]
          %v4153 = vld [vmem:[#allocation9] sm:$0xff]
          %v4154 = vld [vmem:[#allocation9 + $0x8] sm:$0xff]
          %v4155 = vld [vmem:[#allocation9 + $0x10] sm:$0xff]
          %v4156 = vld [vmem:[#allocation9 + $0x18] sm:$0xff]
          %v4157 = vld [vmem:[#allocation9 + $0x20] sm:$0xff]
          %v4158 = vld [vmem:[#allocation9 + $0x28] sm:$0xff]
          %v4159 = vld [vmem:[#allocation9 + $0x30] sm:$0xff]
          %v4160 = vld [vmem:[#allocation9 + $0x38] sm:$0xff]
          %v4161 = vld [vmem:[#allocation9 + $0x40] sm:$0xff]
          %v4162 = vld [vmem:[#allocation9 + $0x48] sm:$0xff]
          %v4163 = vld [vmem:[#allocation9 + $0x50] sm:$0xff]
          %v4164 = vld [vmem:[#allocation9 + $0x58] sm:$0xff]
          %v4165 = vld [vmem:[#allocation9 + $0x60] sm:$0xff]
          %v4166 = vld [vmem:[#allocation9 + $0x68] sm:$0xff]
          %v4167 = vld [vmem:[#allocation9 + $0x70] sm:$0xff]
          %v4168 = vld [vmem:[#allocation9 + $0x78] sm:$0xff]
          %v4169 = vld [vmem:[#allocation9 + $0x80] sm:$0xff]
          %v4170 = vld [vmem:[#allocation9 + $0x88] sm:$0xff]
          %v4171 = vld [vmem:[#allocation9 + $0x90] sm:$0xff]
          %v4172 = vld [vmem:[#allocation9 + $0x98] sm:$0xff]
          %v4173 = vld [vmem:[#allocation9 + $0xa0] sm:$0xff]
          %v4174 = vld [vmem:[#allocation9 + $0xa8] sm:$0xff]
          %v4175 = vld [vmem:[#allocation9 + $0xb0] sm:$0xff]
          %v4176 = vld [vmem:[#allocation9 + $0xb8] sm:$0xff]
          %v4177 = vld [vmem:[#allocation9 + $0xc0] sm:$0xff]
          %v4178 = vld [vmem:[#allocation9 + $0xc8] sm:$0xff]
          %v4179 = vld [vmem:[#allocation9 + $0xd0] sm:$0xff]
          %v4180 = vld [vmem:[#allocation9 + $0xd8] sm:$0xff]
          %v4181 = vld [vmem:[#allocation9 + $0xe0] sm:$0xff]
          %v4182 = vld [vmem:[#allocation9 + $0xe8] sm:$0xff]
          %v4183 = vld [vmem:[#allocation9 + $0xf0] sm:$0xff]
          %v4184 = vld [vmem:[#allocation9 + $0xf8] sm:$0xff]
          %v4185 = vld [vmem:[#allocation9 + $0x100] sm:$0xff]
          %v4186 = vld [vmem:[#allocation9 + $0x108] sm:$0xff]
          %v4187 = vld [vmem:[#allocation9 + $0x110] sm:$0xff]
          %v4188 = vld [vmem:[#allocation9 + $0x118] sm:$0xff]
          %v4189 = vld [vmem:[#allocation9 + $0x120] sm:$0xff]
          %v4190 = vld [vmem:[#allocation9 + $0x128] sm:$0xff]
          %v4191 = vld [vmem:[#allocation9 + $0x130] sm:$0xff]
          %v4192 = vld [vmem:[#allocation9 + $0x138] sm:$0xff]
          %v4193 = vld [vmem:[#allocation9 + $0x140] sm:$0xff]
          %v4194 = vld [vmem:[#allocation9 + $0x148] sm:$0xff]
          %v4195 = vld [vmem:[#allocation9 + $0x150] sm:$0xff]
          %v4196 = vld [vmem:[#allocation9 + $0x158] sm:$0xff]
          %v4197 = vld [vmem:[#allocation9 + $0x160] sm:$0xff]
          %v4198 = vld [vmem:[#allocation9 + $0x168] sm:$0xff]
          %v4199 = vld [vmem:[#allocation9 + $0x170] sm:$0xff]
          %v4200 = vld [vmem:[#allocation9 + $0x178] sm:$0xff]
          %v4201 = vld [vmem:[#allocation9 + $0x180] sm:$0xff]
          %v4202 = vld [vmem:[#allocation9 + $0x188] sm:$0xff]
          %v4203 = vld [vmem:[#allocation9 + $0x190] sm:$0xff]
          %v4204 = vld [vmem:[#allocation9 + $0x198] sm:$0xff]
          %v4205 = vld [vmem:[#allocation9 + $0x1a0] sm:$0xff]
          %v4206 = vld [vmem:[#allocation9 + $0x1a8] sm:$0xff]
          %v4207 = vld [vmem:[#allocation9 + $0x1b0] sm:$0xff]
          %v4208 = vld [vmem:[#allocation9 + $0x1b8] sm:$0xff]
          %v4209 = vld [vmem:[#allocation9 + $0x1c0] sm:$0xff]
          %v4210 = vld [vmem:[#allocation9 + $0x1c8] sm:$0xff]
          %v4211 = vld [vmem:[#allocation9 + $0x1d0] sm:$0xff]
          %v4212 = vld [vmem:[#allocation9 + $0x1d8] sm:$0xff]
          %v4213 = vld [vmem:[#allocation9 + $0x1e0] sm:$0xff]
          %v4214 = vld [vmem:[#allocation9 + $0x1e8] sm:$0xff]
          %v4215 = vld [vmem:[#allocation9 + $0x1f0] sm:$0xff]
          %v4216 = vld [vmem:[#allocation9 + $0x1f8] sm:$0xff]
          %v4217 = vld [vmem:[#allocation9 + $0x200] sm:$0xff]
          %v4218 = vld [vmem:[#allocation9 + $0x208] sm:$0xff]
          %v4219 = vld [vmem:[#allocation9 + $0x210] sm:$0xff]
          %v4220 = vld [vmem:[#allocation9 + $0x218] sm:$0xff]
          %v4221 = vld [vmem:[#allocation9 + $0x220] sm:$0xff]
          %v4222 = vld [vmem:[#allocation9 + $0x228] sm:$0xff]
          %v4223 = vld [vmem:[#allocation9 + $0x230] sm:$0xff]
          %v4224 = vld [vmem:[#allocation9 + $0x238] sm:$0xff]
          %v4225 = vld [vmem:[#allocation9 + $0x240] sm:$0xff]
          %v4226 = vld [vmem:[#allocation9 + $0x248] sm:$0xff]
          %v4227 = vld [vmem:[#allocation9 + $0x250] sm:$0xff]
          %v4228 = vld [vmem:[#allocation9 + $0x258] sm:$0xff]
          %v4229 = vld [vmem:[#allocation9 + $0x260] sm:$0xff]
          %v4230 = vld [vmem:[#allocation9 + $0x268] sm:$0xff]
          %v4231 = vld [vmem:[#allocation9 + $0x270] sm:$0xff]
          %v4232 = vld [vmem:[#allocation9 + $0x278] sm:$0xff]
          %v4233 = vld [vmem:[#allocation9 + $0x280] sm:$0xff]
          %v4234 = vld [vmem:[#allocation9 + $0x288] sm:$0xff]
          %v4235 = vld [vmem:[#allocation9 + $0x290] sm:$0xff]
          %v4236 = vld [vmem:[#allocation9 + $0x298] sm:$0xff]
          %v4237 = vld [vmem:[#allocation9 + $0x2a0] sm:$0xff]
          %v4238 = vld [vmem:[#allocation9 + $0x2a8] sm:$0xff]
          %v4239 = vld [vmem:[#allocation9 + $0x2b0] sm:$0xff]
          %v4240 = vld [vmem:[#allocation9 + $0x2b8] sm:$0xff]
          %v4241 = vld [vmem:[#allocation9 + $0x2c0] sm:$0xff]
          %v4242 = vld [vmem:[#allocation9 + $0x2c8] sm:$0xff]
          %v4243 = vld [vmem:[#allocation9 + $0x2d0] sm:$0xff]
          %v4244 = vld [vmem:[#allocation9 + $0x2d8] sm:$0xff]
          %v4245 = vld [vmem:[#allocation9 + $0x2e0] sm:$0xff]
          %v4246 = vld [vmem:[#allocation9 + $0x2e8] sm:$0xff]
          %v4247 = vld [vmem:[#allocation9 + $0x2f0] sm:$0xff]
          %v4248 = vld [vmem:[#allocation9 + $0x2f8] sm:$0xff]
          %v4249 = vld [vmem:[#allocation9 + $0x300] sm:$0xff]
          %v4250 = vld [vmem:[#allocation9 + $0x308] sm:$0xff]
          %v4251 = vld [vmem:[#allocation9 + $0x310] sm:$0xff]
          %v4252 = vld [vmem:[#allocation9 + $0x318] sm:$0xff]
          %v4253 = vld [vmem:[#allocation9 + $0x320] sm:$0xff]
          %v4254 = vld [vmem:[#allocation9 + $0x328] sm:$0xff]
          %v4255 = vld [vmem:[#allocation9 + $0x330] sm:$0xff]
          %v4256 = vld [vmem:[#allocation9 + $0x338] sm:$0xff]
          %v4257 = vld [vmem:[#allocation9 + $0x340] sm:$0xff]
          %v4258 = vld [vmem:[#allocation9 + $0x348] sm:$0xff]
          %v4259 = vld [vmem:[#allocation9 + $0x350] sm:$0xff]
          %v4260 = vld [vmem:[#allocation9 + $0x358] sm:$0xff]
          %v4261 = vld [vmem:[#allocation9 + $0x360] sm:$0xff]
          %v4262 = vld [vmem:[#allocation9 + $0x368] sm:$0xff]
          %v4263 = vld [vmem:[#allocation9 + $0x370] sm:$0xff]
          %v4264 = vld [vmem:[#allocation9 + $0x378] sm:$0xff]
          %v4265 = vld [vmem:[#allocation9 + $0x380] sm:$0xff]
          %v4266 = vld [vmem:[#allocation9 + $0x388] sm:$0xff]
          %v4267 = vld [vmem:[#allocation9 + $0x390] sm:$0xff]
          %v4268 = vld [vmem:[#allocation9 + $0x398] sm:$0xff]
          %v4269 = vld [vmem:[#allocation9 + $0x3a0] sm:$0xff]
          %v4270 = vld [vmem:[#allocation9 + $0x3a8] sm:$0xff]
          %v4271 = vld [vmem:[#allocation9 + $0x3b0] sm:$0xff]
          %v4272 = vld [vmem:[#allocation9 + $0x3b8] sm:$0xff]
          %v4273 = vld [vmem:[#allocation9 + $0x3c0] sm:$0xff]
          %v4274 = vld [vmem:[#allocation9 + $0x3c8] sm:$0xff]
          %v4275 = vld [vmem:[#allocation9 + $0x3d0] sm:$0xff]
          %v4276 = vld [vmem:[#allocation9 + $0x3d8] sm:$0xff]
          %v4277 = vld [vmem:[#allocation9 + $0x3e0] sm:$0xff]
          %v4278 = vld [vmem:[#allocation9 + $0x3e8] sm:$0xff]
          %v4279 = vld [vmem:[#allocation9 + $0x3f0] sm:$0xff]
          %v4280 = vld [vmem:[#allocation9 + $0x3f8] sm:$0xff]
          %v4281 = vld [vmem:[#allocation9 + $0x400] sm:$0xff]
          %v4282 = vld [vmem:[#allocation9 + $0x408] sm:$0xff]
          %v4283 = vld [vmem:[#allocation9 + $0x410] sm:$0xff]
          %v4284 = vld [vmem:[#allocation9 + $0x418] sm:$0xff]
          %v4285 = vld [vmem:[#allocation9 + $0x420] sm:$0xff]
          %v4286 = vld [vmem:[#allocation9 + $0x428] sm:$0xff]
          %v4287 = vld [vmem:[#allocation9 + $0x430] sm:$0xff]
          %v4288 = vld [vmem:[#allocation9 + $0x438] sm:$0xff]
          %v4289 = vld [vmem:[#allocation9 + $0x440] sm:$0xff]
          %v4290 = vld [vmem:[#allocation9 + $0x448] sm:$0xff]
          %v4291 = vld [vmem:[#allocation9 + $0x450] sm:$0xff]
          %v4292 = vld [vmem:[#allocation9 + $0x458] sm:$0xff]
          %v4293 = vld [vmem:[#allocation9 + $0x460] sm:$0xff]
          %v4294 = vld [vmem:[#allocation9 + $0x468] sm:$0xff]
          %v4295 = vld [vmem:[#allocation9 + $0x470] sm:$0xff]
          %v4296 = vld [vmem:[#allocation9 + $0x478] sm:$0xff]
          %v4297 = vld [vmem:[#allocation9 + $0x480] sm:$0xff]
          %v4298 = vld [vmem:[#allocation9 + $0x488] sm:$0xff]
          %v4299 = vld [vmem:[#allocation9 + $0x490] sm:$0xff]
          %v4300 = vld [vmem:[#allocation9 + $0x498] sm:$0xff]
          %v4301 = vld [vmem:[#allocation9 + $0x4a0] sm:$0xff]
          %v4302 = vld [vmem:[#allocation9 + $0x4a8] sm:$0xff]
          %v4303 = vld [vmem:[#allocation9 + $0x4b0] sm:$0xff]
          %v4304 = vld [vmem:[#allocation9 + $0x4b8] sm:$0xff]
          %v4305 = vld [vmem:[#allocation9 + $0x4c0] sm:$0xff]
          %v4306 = vld [vmem:[#allocation9 + $0x4c8] sm:$0xff]
          %v4307 = vld [vmem:[#allocation9 + $0x4d0] sm:$0xff]
          %v4308 = vld [vmem:[#allocation9 + $0x4d8] sm:$0xff]
          %v4309 = vld [vmem:[#allocation9 + $0x4e0] sm:$0xff]
          %v4310 = vld [vmem:[#allocation9 + $0x4e8] sm:$0xff]
          %v4311 = vld [vmem:[#allocation9 + $0x4f0] sm:$0xff]
          %v4312 = vld [vmem:[#allocation9 + $0x4f8] sm:$0xff]
          %v4313 = vld [vmem:[#allocation9 + $0x500] sm:$0xff]
          %v4314 = vld [vmem:[#allocation9 + $0x508] sm:$0xff]
          %v4315 = vld [vmem:[#allocation9 + $0x510] sm:$0xff]
          %v4316 = vld [vmem:[#allocation9 + $0x518] sm:$0xff]
          %v4317 = vld [vmem:[#allocation9 + $0x520] sm:$0xff]
          %v4318 = vld [vmem:[#allocation9 + $0x528] sm:$0xff]
          %v4319 = vld [vmem:[#allocation9 + $0x530] sm:$0xff]
          %v4320 = vld [vmem:[#allocation9 + $0x538] sm:$0xff]
          %v4321 = vld [vmem:[#allocation9 + $0x540] sm:$0xff]
          %v4322 = vld [vmem:[#allocation9 + $0x548] sm:$0xff]
          %v4323 = vld [vmem:[#allocation9 + $0x550] sm:$0xff]
          %v4324 = vld [vmem:[#allocation9 + $0x558] sm:$0xff]
          %v4325 = vld [vmem:[#allocation9 + $0x560] sm:$0xff]
          %v4326 = vld [vmem:[#allocation9 + $0x568] sm:$0xff]
          %v4327 = vld [vmem:[#allocation9 + $0x570] sm:$0xff]
          %v4328 = vld [vmem:[#allocation9 + $0x578] sm:$0xff]
          %v4329 = vld [vmem:[#allocation9 + $0x580] sm:$0xff]
          %v4330 = vld [vmem:[#allocation9 + $0x588] sm:$0xff]
          %v4331 = vld [vmem:[#allocation9 + $0x590] sm:$0xff]
          %v4332 = vld [vmem:[#allocation9 + $0x598] sm:$0xff]
          %v4333 = vld [vmem:[#allocation9 + $0x5a0] sm:$0xff]
          %v4334 = vld [vmem:[#allocation9 + $0x5a8] sm:$0xff]
          %v4335 = vld [vmem:[#allocation9 + $0x5b0] sm:$0xff]
          %v4336 = vld [vmem:[#allocation9 + $0x5b8] sm:$0xff]
          %v4337 = vld [vmem:[#allocation9 + $0x5c0] sm:$0xff]
          %v4338 = vld [vmem:[#allocation9 + $0x5c8] sm:$0xff]
          %v4339 = vld [vmem:[#allocation9 + $0x5d0] sm:$0xff]
          %v4340 = vld [vmem:[#allocation9 + $0x5d8] sm:$0xff]
          %v4341 = vld [vmem:[#allocation9 + $0x5e0] sm:$0xff]
          %v4342 = vld [vmem:[#allocation9 + $0x5e8] sm:$0xff]
          %v4343 = vld [vmem:[#allocation9 + $0x5f0] sm:$0xff]
          %v4344 = vld [vmem:[#allocation9 + $0x5f8] sm:$0xff]
          %v4345 = vld [vmem:[#allocation9 + $0x600] sm:$0xff]
          %v4346 = vld [vmem:[#allocation9 + $0x608] sm:$0xff]
          %v4347 = vld [vmem:[#allocation9 + $0x610] sm:$0xff]
          %v4348 = vld [vmem:[#allocation9 + $0x618] sm:$0xff]
          %v4349 = vld [vmem:[#allocation9 + $0x620] sm:$0xff]
          %v4350 = vld [vmem:[#allocation9 + $0x628] sm:$0xff]
          %v4351 = vld [vmem:[#allocation9 + $0x630] sm:$0xff]
          %v4352 = vld [vmem:[#allocation9 + $0x638] sm:$0xff]
          %v4353 = vld [vmem:[#allocation9 + $0x640] sm:$0xff]
          %v4354 = vld [vmem:[#allocation9 + $0x648] sm:$0xff]
          %v4355 = vld [vmem:[#allocation9 + $0x650] sm:$0xff]
          %v4356 = vld [vmem:[#allocation9 + $0x658] sm:$0xff]
          %v4357 = vld [vmem:[#allocation9 + $0x660] sm:$0xff]
          %v4358 = vld [vmem:[#allocation9 + $0x668] sm:$0xff]
          %v4359 = vld [vmem:[#allocation9 + $0x670] sm:$0xff]
          %v4360 = vld [vmem:[#allocation9 + $0x678] sm:$0xff]
          %v4361 = vld [vmem:[#allocation9 + $0x680] sm:$0xff]
          %v4362 = vld [vmem:[#allocation9 + $0x688] sm:$0xff]
          %v4363 = vld [vmem:[#allocation9 + $0x690] sm:$0xff]
          %v4364 = vld [vmem:[#allocation9 + $0x698] sm:$0xff]
          %v4365 = vld [vmem:[#allocation9 + $0x6a0] sm:$0xff]
          %v4366 = vld [vmem:[#allocation9 + $0x6a8] sm:$0xff]
          %v4367 = vld [vmem:[#allocation9 + $0x6b0] sm:$0xff]
          %v4368 = vld [vmem:[#allocation9 + $0x6b8] sm:$0xff]
          %v4369 = vld [vmem:[#allocation9 + $0x6c0] sm:$0xff]
          %v4370 = vld [vmem:[#allocation9 + $0x6c8] sm:$0xff]
          %v4371 = vld [vmem:[#allocation9 + $0x6d0] sm:$0xff]
          %v4372 = vld [vmem:[#allocation9 + $0x6d8] sm:$0xff]
          %v4373 = vld [vmem:[#allocation9 + $0x6e0] sm:$0xff]
          %v4374 = vld [vmem:[#allocation9 + $0x6e8] sm:$0xff]
          %v4375 = vld [vmem:[#allocation9 + $0x6f0] sm:$0xff]
          %v4376 = vld [vmem:[#allocation9 + $0x6f8] sm:$0xff]
          %v4377 = vld [vmem:[#allocation9 + $0x700] sm:$0xff]
          %v4378 = vld [vmem:[#allocation9 + $0x708] sm:$0xff]
          %v4379 = vld [vmem:[#allocation9 + $0x710] sm:$0xff]
          %v4380 = vld [vmem:[#allocation9 + $0x718] sm:$0xff]
          %v4381 = vld [vmem:[#allocation9 + $0x720] sm:$0xff]
          %v4382 = vld [vmem:[#allocation9 + $0x728] sm:$0xff]
          %v4383 = vld [vmem:[#allocation9 + $0x730] sm:$0xff]
          %v4384 = vld [vmem:[#allocation9 + $0x738] sm:$0xff]
          %v4385 = vld [vmem:[#allocation9 + $0x740] sm:$0xff]
          %v4386 = vld [vmem:[#allocation9 + $0x748] sm:$0xff]
          %v4387 = vld [vmem:[#allocation9 + $0x750] sm:$0xff]
          %v4388 = vld [vmem:[#allocation9 + $0x758] sm:$0xff]
          %v4389 = vld [vmem:[#allocation9 + $0x760] sm:$0xff]
          %v4390 = vld [vmem:[#allocation9 + $0x768] sm:$0xff]
          %v4391 = vld [vmem:[#allocation9 + $0x770] sm:$0xff]
          %v4392 = vld [vmem:[#allocation9 + $0x778] sm:$0xff]
          %v4393 = vld [vmem:[#allocation9 + $0x780] sm:$0xff]
          %v4394 = vld [vmem:[#allocation9 + $0x788] sm:$0xff]
          %v4395 = vld [vmem:[#allocation9 + $0x790] sm:$0xff]
          %v4396 = vld [vmem:[#allocation9 + $0x798] sm:$0xff]
          %v4397 = vld [vmem:[#allocation9 + $0x7a0] sm:$0xff]
          %v4398 = vld [vmem:[#allocation9 + $0x7a8] sm:$0xff]
          %v4399 = vld [vmem:[#allocation9 + $0x7b0] sm:$0xff]
          %v4400 = vld [vmem:[#allocation9 + $0x7b8] sm:$0xff]
          %v4401 = vld [vmem:[#allocation9 + $0x7c0] sm:$0xff]
          %v4402 = vld [vmem:[#allocation9 + $0x7c8] sm:$0xff]
          %v4403 = vld [vmem:[#allocation9 + $0x7d0] sm:$0xff]
          %v4404 = vld [vmem:[#allocation9 + $0x7d8] sm:$0xff]
          %v4405 = vld [vmem:[#allocation9 + $0x7e0] sm:$0xff]
          %v4406 = vld [vmem:[#allocation9 + $0x7e8] sm:$0xff]
          %v4407 = vld [vmem:[#allocation9 + $0x7f0] sm:$0xff]
          %v4408 = vld [vmem:[#allocation9 + $0x7f8] sm:$0xff]
          %v4409 = vld [vmem:[#allocation9 + $0x800] sm:$0xff]
          %v4410 = vld [vmem:[#allocation9 + $0x808] sm:$0xff]
          %v4411 = vld [vmem:[#allocation9 + $0x810] sm:$0xff]
          %v4412 = vld [vmem:[#allocation9 + $0x818] sm:$0xff]
          %v4413 = vld [vmem:[#allocation9 + $0x820] sm:$0xff]
          %v4414 = vld [vmem:[#allocation9 + $0x828] sm:$0xff]
          %v4415 = vld [vmem:[#allocation9 + $0x830] sm:$0xff]
          %v4416 = vld [vmem:[#allocation9 + $0x838] sm:$0xff]
          %v4417 = vld [vmem:[#allocation9 + $0x840] sm:$0xff]
          %v4418 = vld [vmem:[#allocation9 + $0x848] sm:$0xff]
          %v4419 = vld [vmem:[#allocation9 + $0x850] sm:$0xff]
          %v4420 = vld [vmem:[#allocation9 + $0x858] sm:$0xff]
          %v4421 = vld [vmem:[#allocation9 + $0x860] sm:$0xff]
          %v4422 = vld [vmem:[#allocation9 + $0x868] sm:$0xff]
          %v4423 = vld [vmem:[#allocation9 + $0x870] sm:$0xff]
          %v4424 = vld [vmem:[#allocation9 + $0x878] sm:$0xff]
          %v4425 = vld [vmem:[#allocation9 + $0x880] sm:$0xff]
          %v4426 = vld [vmem:[#allocation9 + $0x888] sm:$0xff]
          %v4427 = vld [vmem:[#allocation9 + $0x890] sm:$0xff]
          %v4428 = vld [vmem:[#allocation9 + $0x898] sm:$0xff]
          %v4429 = vld [vmem:[#allocation9 + $0x8a0] sm:$0xff]
          %v4430 = vld [vmem:[#allocation9 + $0x8a8] sm:$0xff]
          %v4431 = vld [vmem:[#allocation9 + $0x8b0] sm:$0xff]
          %v4432 = vld [vmem:[#allocation9 + $0x8b8] sm:$0xff]
          %v4433 = vld [vmem:[#allocation9 + $0x8c0] sm:$0xff]
          %v4434 = vld [vmem:[#allocation9 + $0x8c8] sm:$0xff]
          %v4435 = vld [vmem:[#allocation9 + $0x8d0] sm:$0xff]
          %v4436 = vld [vmem:[#allocation9 + $0x8d8] sm:$0xff]
          %v4437 = vld [vmem:[#allocation9 + $0x8e0] sm:$0xff]
          %v4438 = vld [vmem:[#allocation9 + $0x8e8] sm:$0xff]
          %v4439 = vld [vmem:[#allocation9 + $0x8f0] sm:$0xff]
          %v4440 = vld [vmem:[#allocation9 + $0x8f8] sm:$0xff]
          %v4441 = vld [vmem:[#allocation11] sm:$0x1]
          %v4443 = vlaneseq
          %v4444 = vshrl.u32 %v4443, 7
          %v4445 = vsub.s32 0, %v4444
          %v4446 = vrot.slane %v4441, %v4445
          %4448 = vmatprep.subr.mxu0 0.0
          %4449 = vmatpush1.msra.mxu0 %v4153
          %4450 = vmatprep.subr.mxu0 0.0
          %4451 = vmatpush1.msra.mxu0 %v4154
          %4452 = vmatprep.subr.mxu0 0.0
          %4453 = vmatpush1.msra.mxu0 %v4155
          %4454 = vmatprep.subr.mxu0 0.0
          %4455 = vmatpush1.msra.mxu0 %v4156
          %4456 = vmatprep.subr.mxu0 0.0
          %4457 = vmatpush1.msra.mxu0 %v4157
          %4458 = vmatprep.subr.mxu0 0.0
          %4459 = vmatpush1.msra.mxu0 %v4158
          %4460 = vmatprep.subr.mxu0 0.0
          %4461 = vmatpush1.msra.mxu0 %v4159
          %4462 = vmatprep.subr.mxu0 0.0
          %4463 = vmatpush1.msra.mxu0 %v4160
          %4464 = vmatprep.subr.mxu0 0.0
          %4465 = vmatpush1.msra.mxu0 %v4161
          %4466 = vmatprep.subr.mxu0 0.0
          %4467 = vmatpush1.msra.mxu0 %v4162
          %4468 = vmatprep.subr.mxu0 0.0
          %4469 = vmatpush1.msra.mxu0 %v4163
          %4470 = vmatprep.subr.mxu0 0.0
          %4471 = vmatpush1.msra.mxu0 %v4164
          %4472 = vmatprep.subr.mxu0 0.0
          %4473 = vmatpush1.msra.mxu0 %v4165
          %4474 = vmatprep.subr.mxu0 0.0
          %4475 = vmatpush1.msra.mxu0 %v4166
          %4476 = vmatprep.subr.mxu0 0.0
          %4477 = vmatpush1.msra.mxu0 %v4167
          %4478 = vmatprep.subr.mxu0 0.0
          %4479 = vmatpush1.msra.mxu0 %v4168
          %4480 = vmatprep.subr.mxu0 0.0
          %4481 = vmatpush1.msra.mxu0 %v4169
          %4482 = vmatprep.subr.mxu0 0.0
          %4483 = vmatpush1.msra.mxu0 %v4170
          %4484 = vmatprep.subr.mxu0 0.0
          %4485 = vmatpush1.msra.mxu0 %v4171
          %4486 = vmatprep.subr.mxu0 0.0
          %4487 = vmatpush1.msra.mxu0 %v4172
          %4488 = vmatprep.subr.mxu0 0.0
          %4489 = vmatpush1.msra.mxu0 %v4173
          %4490 = vmatprep.subr.mxu0 0.0
          %4491 = vmatpush1.msra.mxu0 %v4174
          %4492 = vmatprep.subr.mxu0 0.0
          %4493 = vmatpush1.msra.mxu0 %v4175
          %4494 = vmatprep.subr.mxu0 0.0
          %4495 = vmatpush1.msra.mxu0 %v4176
          %4496 = vmatprep.subr.mxu0 0.0
          %4497 = vmatpush1.msra.mxu0 %v4177
          %4498 = vmatprep.subr.mxu0 0.0
          %4499 = vmatpush1.msra.mxu0 %v4178
          %4500 = vmatprep.subr.mxu0 0.0
          %4501 = vmatpush1.msra.mxu0 %v4179
          %4502 = vmatprep.subr.mxu0 0.0
          %4503 = vmatpush1.msra.mxu0 %v4180
          %4504 = vmatprep.subr.mxu0 0.0
          %4505 = vmatpush1.msra.mxu0 %v4181
          %4506 = vmatprep.subr.mxu0 0.0
          %4507 = vmatpush1.msra.mxu0 %v4182
          %4508 = vmatprep.subr.mxu0 0.0
          %4509 = vmatpush1.msra.mxu0 %v4183
          %4510 = vmatprep.subr.mxu0 0.0
          %4511 = vmatpush1.msra.mxu0 %v4184
          %4512 = vmatprep.mubr.f32.mxu0 %v4135
          %4513 = vmatmul.mubr.f32.gmra.mrb[0].mxu0 %v4134
          %v4514 = vpop.f32.mrb[0].mxu0
          %v4515 = vadd.f32 %v4446, %v4514
          %v4516 = vpop.f32.mrb[0].mxu0
          %4517 = vdwg.mxu0
          %4518 = vmatprep.subr.mxu0 0.0
          %4519 = vmatpush1.msra.mxu0 %v4185
          %4520 = vmatprep.subr.mxu0 0.0
          %4521 = vmatpush1.msra.mxu0 %v4186
          %4522 = vmatprep.subr.mxu0 0.0
          %4523 = vmatpush1.msra.mxu0 %v4187
          %4524 = vmatprep.subr.mxu0 0.0
          %4525 = vmatpush1.msra.mxu0 %v4188
          %4526 = vmatprep.subr.mxu0 0.0
          %4527 = vmatpush1.msra.mxu0 %v4189
          %4528 = vmatprep.subr.mxu0 0.0
          %4529 = vmatpush1.msra.mxu0 %v4190
          %4530 = vmatprep.subr.mxu0 0.0
          %4531 = vmatpush1.msra.mxu0 %v4191
          %4532 = vmatprep.subr.mxu0 0.0
          %4533 = vmatpush1.msra.mxu0 %v4192
          %4534 = vmatprep.subr.mxu0 0.0
          %4535 = vmatpush1.msra.mxu0 %v4193
          %4536 = vmatprep.subr.mxu0 0.0
          %4537 = vmatpush1.msra.mxu0 %v4194
          %4538 = vmatprep.subr.mxu0 0.0
          %4539 = vmatpush1.msra.mxu0 %v4195
          %4540 = vmatprep.subr.mxu0 0.0
          %4541 = vmatpush1.msra.mxu0 %v4196
          %4542 = vmatprep.subr.mxu0 0.0
          %4543 = vmatpush1.msra.mxu0 %v4197
          %4544 = vmatprep.subr.mxu0 0.0
          %4545 = vmatpush1.msra.mxu0 %v4198
          %4546 = vmatprep.subr.mxu0 0.0
          %4547 = vmatpush1.msra.mxu0 %v4199
          %4548 = vmatprep.subr.mxu0 0.0
          %4549 = vmatpush1.msra.mxu0 %v4200
          %4550 = vmatprep.subr.mxu0 0.0
          %4551 = vmatpush1.msra.mxu0 %v4201
          %4552 = vmatprep.subr.mxu0 0.0
          %4553 = vmatpush1.msra.mxu0 %v4202
          %4554 = vmatprep.subr.mxu0 0.0
          %4555 = vmatpush1.msra.mxu0 %v4203
          %4556 = vmatprep.subr.mxu0 0.0
          %4557 = vmatpush1.msra.mxu0 %v4204
          %4558 = vmatprep.subr.mxu0 0.0
          %4559 = vmatpush1.msra.mxu0 %v4205
          %4560 = vmatprep.subr.mxu0 0.0
          %4561 = vmatpush1.msra.mxu0 %v4206
          %4562 = vmatprep.subr.mxu0 0.0
          %4563 = vmatpush1.msra.mxu0 %v4207
          %4564 = vmatprep.subr.mxu0 0.0
          %4565 = vmatpush1.msra.mxu0 %v4208
          %4566 = vmatprep.subr.mxu0 0.0
          %4567 = vmatpush1.msra.mxu0 %v4209
          %4568 = vmatprep.subr.mxu0 0.0
          %4569 = vmatpush1.msra.mxu0 %v4210
          %4570 = vmatprep.subr.mxu0 0.0
          %4571 = vmatpush1.msra.mxu0 %v4211
          %4572 = vmatprep.subr.mxu0 0.0
          %4573 = vmatpush1.msra.mxu0 %v4212
          %4574 = vmatprep.subr.mxu0 0.0
          %4575 = vmatpush1.msra.mxu0 %v4213
          %4576 = vmatprep.subr.mxu0 0.0
          %4577 = vmatpush1.msra.mxu0 %v4214
          %4578 = vmatprep.subr.mxu0 0.0
          %4579 = vmatpush1.msra.mxu0 %v4215
          %4580 = vmatprep.subr.mxu0 0.0
          %4581 = vmatpush1.msra.mxu0 %v4216
          %4582 = vmatprep.mubr.f32.mxu0 %v4137
          %4583 = vmatmul.mubr.f32.gmra.mrb[0].mxu0 %v4136
          %v4584 = vpop.f32.mrb[0].mxu0
          %v4585 = vadd.f32 %v4515, %v4584
          %v4586 = vpop.f32.mrb[0].mxu0
          %4587 = vdwg.mxu0
          %4588 = vmatprep.subr.mxu0 0.0
          %4589 = vmatpush1.msra.mxu0 %v4217
          %4590 = vmatprep.subr.mxu0 0.0
          %4591 = vmatpush1.msra.mxu0 %v4218
          %4592 = vmatprep.subr.mxu0 0.0
          %4593 = vmatpush1.msra.mxu0 %v4219
          %4594 = vmatprep.subr.mxu0 0.0
          %4595 = vmatpush1.msra.mxu0 %v4220
          %4596 = vmatprep.subr.mxu0 0.0
          %4597 = vmatpush1.msra.mxu0 %v4221
          %4598 = vmatprep.subr.mxu0 0.0
          %4599 = vmatpush1.msra.mxu0 %v4222
          %4600 = vmatprep.subr.mxu0 0.0
          %4601 = vmatpush1.msra.mxu0 %v4223
          %4602 = vmatprep.subr.mxu0 0.0
          %4603 = vmatpush1.msra.mxu0 %v4224
          %4604 = vmatprep.subr.mxu0 0.0
          %4605 = vmatpush1.msra.mxu0 %v4225
          %4606 = vmatprep.subr.mxu0 0.0
          %4607 = vmatpush1.msra.mxu0 %v4226
          %4608 = vmatprep.subr.mxu0 0.0
          %4609 = vmatpush1.msra.mxu0 %v4227
          %4610 = vmatprep.subr.mxu0 0.0
          %4611 = vmatpush1.msra.mxu0 %v4228
          %4612 = vmatprep.subr.mxu0 0.0
          %4613 = vmatpush1.msra.mxu0 %v4229
          %4614 = vmatprep.subr.mxu0 0.0
          %4615 = vmatpush1.msra.mxu0 %v4230
          %4616 = vmatprep.subr.mxu0 0.0
          %4617 = vmatpush1.msra.mxu0 %v4231
          %4618 = vmatprep.subr.mxu0 0.0
          %4619 = vmatpush1.msra.mxu0 %v4232
          %4620 = vmatprep.subr.mxu0 0.0
          %4621 = vmatpush1.msra.mxu0 %v4233
          %4622 = vmatprep.subr.mxu0 0.0
          %4623 = vmatpush1.msra.mxu0 %v4234
          %4624 = vmatprep.subr.mxu0 0.0
          %4625 = vmatpush1.msra.mxu0 %v4235
          %4626 = vmatprep.subr.mxu0 0.0
          %4627 = vmatpush1.msra.mxu0 %v4236
          %4628 = vmatprep.subr.mxu0 0.0
          %4629 = vmatpush1.msra.mxu0 %v4237
          %4630 = vmatprep.subr.mxu0 0.0
          %4631 = vmatpush1.msra.mxu0 %v4238
          %4632 = vmatprep.subr.mxu0 0.0
          %4633 = vmatpush1.msra.mxu0 %v4239
          %4634 = vmatprep.subr.mxu0 0.0
          %4635 = vmatpush1.msra.mxu0 %v4240
          %4636 = vmatprep.subr.mxu0 0.0
          %4637 = vmatpush1.msra.mxu0 %v4241
          %4638 = vmatprep.subr.mxu0 0.0
          %4639 = vmatpush1.msra.mxu0 %v4242
          %4640 = vmatprep.subr.mxu0 0.0
          %4641 = vmatpush1.msra.mxu0 %v4243
          %4642 = vmatprep.subr.mxu0 0.0
          %4643 = vmatpush1.msra.mxu0 %v4244
          %4644 = vmatprep.subr.mxu0 0.0
          %4645 = vmatpush1.msra.mxu0 %v4245
          %4646 = vmatprep.subr.mxu0 0.0
          %4647 = vmatpush1.msra.mxu0 %v4246
          %4648 = vmatprep.subr.mxu0 0.0
          %4649 = vmatpush1.msra.mxu0 %v4247
          %4650 = vmatprep.subr.mxu0 0.0
          %4651 = vmatpush1.msra.mxu0 %v4248
          %4652 = vmatprep.mubr.f32.mxu0 %v4139
          %4653 = vmatmul.mubr.f32.gmra.mrb[0].mxu0 %v4138
          %v4654 = vpop.f32.mrb[0].mxu0
          %v4655 = vadd.f32 %v4585, %v4654
          %v4656 = vpop.f32.mrb[0].mxu0
          %4657 = vdwg.mxu0
          %4658 = vmatprep.subr.mxu0 0.0
          %4659 = vmatpush1.msra.mxu0 %v4249
          %4660 = vmatprep.subr.mxu0 0.0
          %4661 = vmatpush1.msra.mxu0 %v4250
          %4662 = vmatprep.subr.mxu0 0.0
          %4663 = vmatpush1.msra.mxu0 %v4251
          %4664 = vmatprep.subr.mxu0 0.0
          %4665 = vmatpush1.msra.mxu0 %v4252
          %4666 = vmatprep.subr.mxu0 0.0
          %4667 = vmatpush1.msra.mxu0 %v4253
          %4668 = vmatprep.subr.mxu0 0.0
          %4669 = vmatpush1.msra.mxu0 %v4254
          %4670 = vmatprep.subr.mxu0 0.0
          %4671 = vmatpush1.msra.mxu0 %v4255
          %4672 = vmatprep.subr.mxu0 0.0
          %4673 = vmatpush1.msra.mxu0 %v4256
          %4674 = vmatprep.subr.mxu0 0.0
          %4675 = vmatpush1.msra.mxu0 %v4257
          %4676 = vmatprep.subr.mxu0 0.0
          %4677 = vmatpush1.msra.mxu0 %v4258
          %4678 = vmatprep.subr.mxu0 0.0
          %4679 = vmatpush1.msra.mxu0 %v4259
          %4680 = vmatprep.subr.mxu0 0.0
          %4681 = vmatpush1.msra.mxu0 %v4260
          %4682 = vmatprep.subr.mxu0 0.0
          %4683 = vmatpush1.msra.mxu0 %v4261
          %4684 = vmatprep.subr.mxu0 0.0
          %4685 = vmatpush1.msra.mxu0 %v4262
          %4686 = vmatprep.subr.mxu0 0.0
          %4687 = vmatpush1.msra.mxu0 %v4263
          %4688 = vmatprep.subr.mxu0 0.0
          %4689 = vmatpush1.msra.mxu0 %v4264
          %4690 = vmatprep.subr.mxu0 0.0
          %4691 = vmatpush1.msra.mxu0 %v4265
          %4692 = vmatprep.subr.mxu0 0.0
          %4693 = vmatpush1.msra.mxu0 %v4266
          %4694 = vmatprep.subr.mxu0 0.0
          %4695 = vmatpush1.msra.mxu0 %v4267
          %4696 = vmatprep.subr.mxu0 0.0
          %4697 = vmatpush1.msra.mxu0 %v4268
          %4698 = vmatprep.subr.mxu0 0.0
          %4699 = vmatpush1.msra.mxu0 %v4269
          %4700 = vmatprep.subr.mxu0 0.0
          %4701 = vmatpush1.msra.mxu0 %v4270
          %4702 = vmatprep.subr.mxu0 0.0
          %4703 = vmatpush1.msra.mxu0 %v4271
          %4704 = vmatprep.subr.mxu0 0.0
          %4705 = vmatpush1.msra.mxu0 %v4272
          %4706 = vmatprep.subr.mxu0 0.0
          %4707 = vmatpush1.msra.mxu0 %v4273
          %4708 = vmatprep.subr.mxu0 0.0
          %4709 = vmatpush1.msra.mxu0 %v4274
          %4710 = vmatprep.subr.mxu0 0.0
          %4711 = vmatpush1.msra.mxu0 %v4275
          %4712 = vmatprep.subr.mxu0 0.0
          %4713 = vmatpush1.msra.mxu0 %v4276
          %4714 = vmatprep.subr.mxu0 0.0
          %4715 = vmatpush1.msra.mxu0 %v4277
          %4716 = vmatprep.subr.mxu0 0.0
          %4717 = vmatpush1.msra.mxu0 %v4278
          %4718 = vmatprep.subr.mxu0 0.0
          %4719 = vmatpush1.msra.mxu0 %v4279
          %4720 = vmatprep.subr.mxu0 0.0
          %4721 = vmatpush1.msra.mxu0 %v4280
          %4722 = vmatprep.mubr.f32.mxu0 %v4141
          %4723 = vmatmul.mubr.f32.gmra.mrb[0].mxu0 %v4140
          %v4724 = vpop.f32.mrb[0].mxu0
          %v4725 = vadd.f32 %v4655, %v4724
          %v4726 = vpop.f32.mrb[0].mxu0
          %4727 = vdwg.mxu0
          %4728 = vmatprep.subr.mxu0 0.0
          %4729 = vmatpush1.msra.mxu0 %v4281
          %4730 = vmatprep.subr.mxu0 0.0
          %4731 = vmatpush1.msra.mxu0 %v4282
          %4732 = vmatprep.subr.mxu0 0.0
          %4733 = vmatpush1.msra.mxu0 %v4283
          %4734 = vmatprep.subr.mxu0 0.0
          %4735 = vmatpush1.msra.mxu0 %v4284
          %4736 = vmatprep.subr.mxu0 0.0
          %4737 = vmatpush1.msra.mxu0 %v4285
          %4738 = vmatprep.subr.mxu0 0.0
          %4739 = vmatpush1.msra.mxu0 %v4286
          %4740 = vmatprep.subr.mxu0 0.0
          %4741 = vmatpush1.msra.mxu0 %v4287
          %4742 = vmatprep.subr.mxu0 0.0
          %4743 = vmatpush1.msra.mxu0 %v4288
          %4744 = vmatprep.subr.mxu0 0.0
          %4745 = vmatpush1.msra.mxu0 %v4289
          %4746 = vmatprep.subr.mxu0 0.0
          %4747 = vmatpush1.msra.mxu0 %v4290
          %4748 = vmatprep.subr.mxu0 0.0
          %4749 = vmatpush1.msra.mxu0 %v4291
          %4750 = vmatprep.subr.mxu0 0.0
          %4751 = vmatpush1.msra.mxu0 %v4292
          %4752 = vmatprep.subr.mxu0 0.0
          %4753 = vmatpush1.msra.mxu0 %v4293
          %4754 = vmatprep.subr.mxu0 0.0
          %4755 = vmatpush1.msra.mxu0 %v4294
          %4756 = vmatprep.subr.mxu0 0.0
          %4757 = vmatpush1.msra.mxu0 %v4295
          %4758 = vmatprep.subr.mxu0 0.0
          %4759 = vmatpush1.msra.mxu0 %v4296
          %4760 = vmatprep.subr.mxu0 0.0
          %4761 = vmatpush1.msra.mxu0 %v4297
          %4762 = vmatprep.subr.mxu0 0.0
          %4763 = vmatpush1.msra.mxu0 %v4298
          %4764 = vmatprep.subr.mxu0 0.0
          %4765 = vmatpush1.msra.mxu0 %v4299
          %4766 = vmatprep.subr.mxu0 0.0
          %4767 = vmatpush1.msra.mxu0 %v4300
          %4768 = vmatprep.subr.mxu0 0.0
          %4769 = vmatpush1.msra.mxu0 %v4301
          %4770 = vmatprep.subr.mxu0 0.0
          %4771 = vmatpush1.msra.mxu0 %v4302
          %4772 = vmatprep.subr.mxu0 0.0
          %4773 = vmatpush1.msra.mxu0 %v4303
          %4774 = vmatprep.subr.mxu0 0.0
          %4775 = vmatpush1.msra.mxu0 %v4304
          %4776 = vmatprep.subr.mxu0 0.0
          %4777 = vmatpush1.msra.mxu0 %v4305
          %4778 = vmatprep.subr.mxu0 0.0
          %4779 = vmatpush1.msra.mxu0 %v4306
          %4780 = vmatprep.subr.mxu0 0.0
          %4781 = vmatpush1.msra.mxu0 %v4307
          %4782 = vmatprep.subr.mxu0 0.0
          %4783 = vmatpush1.msra.mxu0 %v4308
          %4784 = vmatprep.subr.mxu0 0.0
          %4785 = vmatpush1.msra.mxu0 %v4309
          %4786 = vmatprep.subr.mxu0 0.0
          %4787 = vmatpush1.msra.mxu0 %v4310
          %4788 = vmatprep.subr.mxu0 0.0
          %4789 = vmatpush1.msra.mxu0 %v4311
          %4790 = vmatprep.subr.mxu0 0.0
          %4791 = vmatpush1.msra.mxu0 %v4312
          %4792 = vmatprep.mubr.f32.mxu0 %v4144
          %4793 = vmatmul.mubr.f32.gmra.mrb[0].mxu0 %v4142
          %v4794 = vpop.f32.mrb[0].mxu0
          %v4795 = vadd.f32 %v4725, %v4794
          %v4796 = vpop.f32.mrb[0].mxu0
          %4797 = vdwg.mxu0
          %4798 = vmatprep.subr.mxu0 0.0
          %4799 = vmatpush1.msra.mxu0 %v4313
          %4800 = vmatprep.subr.mxu0 0.0
          %4801 = vmatpush1.msra.mxu0 %v4314
          %4802 = vmatprep.subr.mxu0 0.0
          %4803 = vmatpush1.msra.mxu0 %v4315
          %4804 = vmatprep.subr.mxu0 0.0
          %4805 = vmatpush1.msra.mxu0 %v4316
          %4806 = vmatprep.subr.mxu0 0.0
          %4807 = vmatpush1.msra.mxu0 %v4317
          %4808 = vmatprep.subr.mxu0 0.0
          %4809 = vmatpush1.msra.mxu0 %v4318
          %4810 = vmatprep.subr.mxu0 0.0
          %4811 = vmatpush1.msra.mxu0 %v4319
          %4812 = vmatprep.subr.mxu0 0.0
          %4813 = vmatpush1.msra.mxu0 %v4320
          %4814 = vmatprep.subr.mxu0 0.0
          %4815 = vmatpush1.msra.mxu0 %v4321
          %4816 = vmatprep.subr.mxu0 0.0
          %4817 = vmatpush1.msra.mxu0 %v4322
          %4818 = vmatprep.subr.mxu0 0.0
          %4819 = vmatpush1.msra.mxu0 %v4323
          %4820 = vmatprep.subr.mxu0 0.0
          %4821 = vmatpush1.msra.mxu0 %v4324
          %4822 = vmatprep.subr.mxu0 0.0
          %4823 = vmatpush1.msra.mxu0 %v4325
          %4824 = vmatprep.subr.mxu0 0.0
          %4825 = vmatpush1.msra.mxu0 %v4326
          %4826 = vmatprep.subr.mxu0 0.0
          %4827 = vmatpush1.msra.mxu0 %v4327
          %4828 = vmatprep.subr.mxu0 0.0
          %4829 = vmatpush1.msra.mxu0 %v4328
          %4830 = vmatprep.subr.mxu0 0.0
          %4831 = vmatpush1.msra.mxu0 %v4329
          %4832 = vmatprep.subr.mxu0 0.0
          %4833 = vmatpush1.msra.mxu0 %v4330
          %4834 = vmatprep.subr.mxu0 0.0
          %4835 = vmatpush1.msra.mxu0 %v4331
          %4836 = vmatprep.subr.mxu0 0.0
          %4837 = vmatpush1.msra.mxu0 %v4332
          %4838 = vmatprep.subr.mxu0 0.0
          %4839 = vmatpush1.msra.mxu0 %v4333
          %4840 = vmatprep.subr.mxu0 0.0
          %4841 = vmatpush1.msra.mxu0 %v4334
          %4842 = vmatprep.subr.mxu0 0.0
          %4843 = vmatpush1.msra.mxu0 %v4335
          %4844 = vmatprep.subr.mxu0 0.0
          %4845 = vmatpush1.msra.mxu0 %v4336
          %4846 = vmatprep.subr.mxu0 0.0
          %4847 = vmatpush1.msra.mxu0 %v4337
          %4848 = vmatprep.subr.mxu0 0.0
          %4849 = vmatpush1.msra.mxu0 %v4338
          %4850 = vmatprep.subr.mxu0 0.0
          %4851 = vmatpush1.msra.mxu0 %v4339
          %4852 = vmatprep.subr.mxu0 0.0
          %4853 = vmatpush1.msra.mxu0 %v4340
          %4854 = vmatprep.subr.mxu0 0.0
          %4855 = vmatpush1.msra.mxu0 %v4341
          %4856 = vmatprep.subr.mxu0 0.0
          %4857 = vmatpush1.msra.mxu0 %v4342
          %4858 = vmatprep.subr.mxu0 0.0
          %4859 = vmatpush1.msra.mxu0 %v4343
          %4860 = vmatprep.subr.mxu0 0.0
          %4861 = vmatpush1.msra.mxu0 %v4344
          %4862 = vmatprep.mubr.f32.mxu0 %v4146
          %4863 = vmatmul.mubr.f32.gmra.mrb[0].mxu0 %v4145
          %v4864 = vpop.f32.mrb[0].mxu0
          %v4865 = vadd.f32 %v4795, %v4864
          %v4866 = vpop.f32.mrb[0].mxu0
          %4867 = vdwg.mxu0
          %4868 = vmatprep.subr.mxu0 0.0
          %4869 = vmatpush1.msra.mxu0 %v4345
          %4870 = vmatprep.subr.mxu0 0.0
          %4871 = vmatpush1.msra.mxu0 %v4346
          %4872 = vmatprep.subr.mxu0 0.0
          %4873 = vmatpush1.msra.mxu0 %v4347
          %4874 = vmatprep.subr.mxu0 0.0
          %4875 = vmatpush1.msra.mxu0 %v4348
          %4876 = vmatprep.subr.mxu0 0.0
          %4877 = vmatpush1.msra.mxu0 %v4349
          %4878 = vmatprep.subr.mxu0 0.0
          %4879 = vmatpush1.msra.mxu0 %v4350
          %4880 = vmatprep.subr.mxu0 0.0
          %4881 = vmatpush1.msra.mxu0 %v4351
          %4882 = vmatprep.subr.mxu0 0.0
          %4883 = vmatpush1.msra.mxu0 %v4352
          %4884 = vmatprep.subr.mxu0 0.0
          %4885 = vmatpush1.msra.mxu0 %v4353
          %4886 = vmatprep.subr.mxu0 0.0
          %4887 = vmatpush1.msra.mxu0 %v4354
          %4888 = vmatprep.subr.mxu0 0.0
          %4889 = vmatpush1.msra.mxu0 %v4355
          %4890 = vmatprep.subr.mxu0 0.0
          %4891 = vmatpush1.msra.mxu0 %v4356
          %4892 = vmatprep.subr.mxu0 0.0
          %4893 = vmatpush1.msra.mxu0 %v4357
          %4894 = vmatprep.subr.mxu0 0.0
          %4895 = vmatpush1.msra.mxu0 %v4358
          %4896 = vmatprep.subr.mxu0 0.0
          %4897 = vmatpush1.msra.mxu0 %v4359
          %4898 = vmatprep.subr.mxu0 0.0
          %4899 = vmatpush1.msra.mxu0 %v4360
          %4900 = vmatprep.subr.mxu0 0.0
          %4901 = vmatpush1.msra.mxu0 %v4361
          %4902 = vmatprep.subr.mxu0 0.0
          %4903 = vmatpush1.msra.mxu0 %v4362
          %4904 = vmatprep.subr.mxu0 0.0
          %4905 = vmatpush1.msra.mxu0 %v4363
          %4906 = vmatprep.subr.mxu0 0.0
          %4907 = vmatpush1.msra.mxu0 %v4364
          %4908 = vmatprep.subr.mxu0 0.0
          %4909 = vmatpush1.msra.mxu0 %v4365
          %4910 = vmatprep.subr.mxu0 0.0
          %4911 = vmatpush1.msra.mxu0 %v4366
          %4912 = vmatprep.subr.mxu0 0.0
          %4913 = vmatpush1.msra.mxu0 %v4367
          %4914 = vmatprep.subr.mxu0 0.0
          %4915 = vmatpush1.msra.mxu0 %v4368
          %4916 = vmatprep.subr.mxu0 0.0
          %4917 = vmatpush1.msra.mxu0 %v4369
          %4918 = vmatprep.subr.mxu0 0.0
          %4919 = vmatpush1.msra.mxu0 %v4370
          %4920 = vmatprep.subr.mxu0 0.0
          %4921 = vmatpush1.msra.mxu0 %v4371
          %4922 = vmatprep.subr.mxu0 0.0
          %4923 = vmatpush1.msra.mxu0 %v4372
          %4924 = vmatprep.subr.mxu0 0.0
          %4925 = vmatpush1.msra.mxu0 %v4373
          %4926 = vmatprep.subr.mxu0 0.0
          %4927 = vmatpush1.msra.mxu0 %v4374
          %4928 = vmatprep.subr.mxu0 0.0
          %4929 = vmatpush1.msra.mxu0 %v4375
          %4930 = vmatprep.subr.mxu0 0.0
          %4931 = vmatpush1.msra.mxu0 %v4376
          %4932 = vmatprep.mubr.f32.mxu0 %v4148
          %4933 = vmatmul.mubr.f32.gmra.mrb[0].mxu0 %v4147
          %v4934 = vpop.f32.mrb[0].mxu0
          %v4935 = vadd.f32 %v4865, %v4934
          %v4936 = vpop.f32.mrb[0].mxu0
          %4937 = vdwg.mxu0
          %4938 = vmatprep.subr.mxu0 0.0
          %4939 = vmatpush1.msra.mxu0 %v4377
          %4940 = vmatprep.subr.mxu0 0.0
          %4941 = vmatpush1.msra.mxu0 %v4378
          %4942 = vmatprep.subr.mxu0 0.0
          %4943 = vmatpush1.msra.mxu0 %v4379
          %4944 = vmatprep.subr.mxu0 0.0
          %4945 = vmatpush1.msra.mxu0 %v4380
          %4946 = vmatprep.subr.mxu0 0.0
          %4947 = vmatpush1.msra.mxu0 %v4381
          %4948 = vmatprep.subr.mxu0 0.0
          %4949 = vmatpush1.msra.mxu0 %v4382
          %4950 = vmatprep.subr.mxu0 0.0
          %4951 = vmatpush1.msra.mxu0 %v4383
          %4952 = vmatprep.subr.mxu0 0.0
          %4953 = vmatpush1.msra.mxu0 %v4384
          %4954 = vmatprep.subr.mxu0 0.0
          %4955 = vmatpush1.msra.mxu0 %v4385
          %4956 = vmatprep.subr.mxu0 0.0
          %4957 = vmatpush1.msra.mxu0 %v4386
          %4958 = vmatprep.subr.mxu0 0.0
          %4959 = vmatpush1.msra.mxu0 %v4387
          %4960 = vmatprep.subr.mxu0 0.0
          %4961 = vmatpush1.msra.mxu0 %v4388
          %4962 = vmatprep.subr.mxu0 0.0
          %4963 = vmatpush1.msra.mxu0 %v4389
          %4964 = vmatprep.subr.mxu0 0.0
          %4965 = vmatpush1.msra.mxu0 %v4390
          %4966 = vmatprep.subr.mxu0 0.0
          %4967 = vmatpush1.msra.mxu0 %v4391
          %4968 = vmatprep.subr.mxu0 0.0
          %4969 = vmatpush1.msra.mxu0 %v4392
          %4970 = vmatprep.subr.mxu0 0.0
          %4971 = vmatpush1.msra.mxu0 %v4393
          %4972 = vmatprep.subr.mxu0 0.0
          %4973 = vmatpush1.msra.mxu0 %v4394
          %4974 = vmatprep.subr.mxu0 0.0
          %4975 = vmatpush1.msra.mxu0 %v4395
          %4976 = vmatprep.subr.mxu0 0.0
          %4977 = vmatpush1.msra.mxu0 %v4396
          %4978 = vmatprep.subr.mxu0 0.0
          %4979 = vmatpush1.msra.mxu0 %v4397
          %4980 = vmatprep.subr.mxu0 0.0
          %4981 = vmatpush1.msra.mxu0 %v4398
          %4982 = vmatprep.subr.mxu0 0.0
          %4983 = vmatpush1.msra.mxu0 %v4399
          %4984 = vmatprep.subr.mxu0 0.0
          %4985 = vmatpush1.msra.mxu0 %v4400
          %4986 = vmatprep.subr.mxu0 0.0
          %4987 = vmatpush1.msra.mxu0 %v4401
          %4988 = vmatprep.subr.mxu0 0.0
          %4989 = vmatpush1.msra.mxu0 %v4402
          %4990 = vmatprep.subr.mxu0 0.0
          %4991 = vmatpush1.msra.mxu0 %v4403
          %4992 = vmatprep.subr.mxu0 0.0
          %4993 = vmatpush1.msra.mxu0 %v4404
          %4994 = vmatprep.subr.mxu0 0.0
          %4995 = vmatpush1.msra.mxu0 %v4405
          %4996 = vmatprep.subr.mxu0 0.0
          %4997 = vmatpush1.msra.mxu0 %v4406
          %4998 = vmatprep.subr.mxu0 0.0
          %4999 = vmatpush1.msra.mxu0 %v4407
          %5000 = vmatprep.subr.mxu0 0.0
          %5001 = vmatpush1.msra.mxu0 %v4408
          %5002 = vmatprep.mubr.f32.mxu0 %v4150
          %5003 = vmatmul.mubr.f32.gmra.mrb[0].mxu0 %v4149
          %v5004 = vpop.f32.mrb[0].mxu0
          %v5005 = vadd.f32 %v4935, %v5004
          %v5006 = vpop.f32.mrb[0].mxu0
          %5007 = vdwg.mxu0
          %5008 = vmatprep.subr.mxu0 0.0
          %5009 = vmatpush1.msra.mxu0 %v4409
          %5010 = vmatprep.subr.mxu0 0.0
          %5011 = vmatpush1.msra.mxu0 %v4410
          %5012 = vmatprep.subr.mxu0 0.0
          %5013 = vmatpush1.msra.mxu0 %v4411
          %5014 = vmatprep.subr.mxu0 0.0
          %5015 = vmatpush1.msra.mxu0 %v4412
          %5016 = vmatprep.subr.mxu0 0.0
          %5017 = vmatpush1.msra.mxu0 %v4413
          %5018 = vmatprep.subr.mxu0 0.0
          %5019 = vmatpush1.msra.mxu0 %v4414
          %5020 = vmatprep.subr.mxu0 0.0
          %5021 = vmatpush1.msra.mxu0 %v4415
          %5022 = vmatprep.subr.mxu0 0.0
          %5023 = vmatpush1.msra.mxu0 %v4416
          %5024 = vmatprep.subr.mxu0 0.0
          %5025 = vmatpush1.msra.mxu0 %v4417
          %5026 = vmatprep.subr.mxu0 0.0
          %5027 = vmatpush1.msra.mxu0 %v4418
          %5028 = vmatprep.subr.mxu0 0.0
          %5029 = vmatpush1.msra.mxu0 %v4419
          %5030 = vmatprep.subr.mxu0 0.0
          %5031 = vmatpush1.msra.mxu0 %v4420
          %5032 = vmatprep.subr.mxu0 0.0
          %5033 = vmatpush1.msra.mxu0 %v4421
          %5034 = vmatprep.subr.mxu0 0.0
          %5035 = vmatpush1.msra.mxu0 %v4422
          %5036 = vmatprep.subr.mxu0 0.0
          %5037 = vmatpush1.msra.mxu0 %v4423
          %5038 = vmatprep.subr.mxu0 0.0
          %5039 = vmatpush1.msra.mxu0 %v4424
          %5040 = vmatprep.subr.mxu0 0.0
          %5041 = vmatpush1.msra.mxu0 %v4425
          %5042 = vmatprep.subr.mxu0 0.0
          %5043 = vmatpush1.msra.mxu0 %v4426
          %5044 = vmatprep.subr.mxu0 0.0
          %5045 = vmatpush1.msra.mxu0 %v4427
          %5046 = vmatprep.subr.mxu0 0.0
          %5047 = vmatpush1.msra.mxu0 %v4428
          %5048 = vmatprep.subr.mxu0 0.0
          %5049 = vmatpush1.msra.mxu0 %v4429
          %5050 = vmatprep.subr.mxu0 0.0
          %5051 = vmatpush1.msra.mxu0 %v4430
          %5052 = vmatprep.subr.mxu0 0.0
          %5053 = vmatpush1.msra.mxu0 %v4431
          %5054 = vmatprep.subr.mxu0 0.0
          %5055 = vmatpush1.msra.mxu0 %v4432
          %5056 = vmatprep.subr.mxu0 0.0
          %5057 = vmatpush1.msra.mxu0 %v4433
          %5058 = vmatprep.subr.mxu0 0.0
          %5059 = vmatpush1.msra.mxu0 %v4434
          %5060 = vmatprep.subr.mxu0 0.0
          %5061 = vmatpush1.msra.mxu0 %v4435
          %5062 = vmatprep.subr.mxu0 0.0
          %5063 = vmatpush1.msra.mxu0 %v4436
          %5064 = vmatprep.subr.mxu0 0.0
          %5065 = vmatpush1.msra.mxu0 %v4437
          %5066 = vmatprep.subr.mxu0 0.0
          %5067 = vmatpush1.msra.mxu0 %v4438
          %5068 = vmatprep.subr.mxu0 0.0
          %5069 = vmatpush1.msra.mxu0 %v4439
          %5070 = vmatprep.subr.mxu0 0.0
          %5071 = vmatpush1.msra.mxu0 %v4440
          %5072 = vmatprep.mubr.f32.mxu0 %v4152
          %5073 = vmatmul.mubr.f32.gmra.mrb[0].mxu0 %v4151
          %v5074 = vpop.f32.mrb[0].mxu0
          %v5075 = vadd.f32 %v5005, %v5074
          %v5076 = vpop.f32.mrb[0].mxu0
          %5077 = vdwg.mxu0
          %5078 = vst [vmem:[%s6] sm:$0xff] %v5075
        $region72: #{forward.1} parent=43 // pred_fallthru
          _
        // Predicated region
        $region73: #{forward.1} parent=43 // pred_check
          %p5079 = pneg %p178
        $region74: #{forward.1} parent=43 // pred_check_branch
          %5081 = sbr.rel (%p5079) target = $region76
        $region75: #{forward.1} parent=43 // pred_region
          _
        $region76: #{forward.1} parent=43 // pred_fallthru
          _
        // Predicated region
        $region77: #{forward.1} parent=43 // pred_check
          %p5082 = pneg %p178
        $region78: #{forward.1} parent=43 // pred_check_branch
          %5084 = sbr.rel (%p5082) target = $region80
        $region79: #{forward.1} parent=43 // pred_region
          _
        $region80: #{forward.1} parent=43 // pred_fallthru
          _
      $region44: #{forward.1} parent=5 // pred_fallthru
        _
      %p5085 = scmp.le.s32.totalorder 2, %s19
      // Predicated region
      $region81: #{forward.1} parent=5 // pred_check
        %p5086 = pneg %p5085
      $region82: #{forward.1} parent=5 // pred_check_branch
        %5088 = sbr.rel (%p5086) target = $region84
      $region83: #{forward.1} parent=5 // pred_region
        %s5089 = ssub.s32 %s19, 2
      $region84: #{forward.1} parent=5 // pred_fallthru
        _
    $region6: #{forward.1} parent=1 // loop_footer
      %s23 = sadd.s32 1, %s19
    $region7: #{forward.1} parent=1 // loop_footer_branch
      %18 = sbr.rel target = $region3
    $region8: #{forward.1} parent=1 // loop_exit
      _
    %5090 = vsyncpa [#allocation5], 1
    %s5091 = scalar_lea.sflag [#allocation5], 1
    %5092 = vsyncpa %s5091, 1
    %5093 = vsyncpa [#allocation7], 1
    %s5094 = scalar_lea.sflag [#allocation7], 1
    %5095 = vsyncpa %s5094, 1
    %5096 = vsyncpa [#allocation10], 1

</llo_original>
